<compile_context>
chip_gen: v7x
topology: tpu7x:2x2x1
jax: 0.10.0
libtpu: 0.0.40
codegen_flags: <defaults>
</compile_context>

<pallas_src>
import functools

import jax
import jax.numpy as jnp
from jax.experimental import pallas as pl
from jax.experimental.pallas import tpu as pltpu


# --------------------------- packed-slab row layout ---------------------------

ROW_CV1B, ROW_GN_G, ROW_GN_B = 0, 1, 2
ROW_DW1W, ROW_DW1B = 3, 12            # dw1 weights rows 3..11, bias row 12
ROW_PW1B, ROW_GN1G, ROW_GN1B = 13, 14, 15
ROW_DW2W, ROW_DW2B = 16, 25           # dw2 weights rows 16..24, bias row 25
ROW_PW2B, ROW_GN2G, ROW_GN2B = 26, 27, 28
SLAB_ROWS = 29


# ------------------------------ in-kernel helpers ------------------------------

def _group_stats(v, A_ref, eps):
    """Per-channel group mean / inv-std for GroupNorm via one tiny matmul.

    v: (HW, C) value. A_ref: (C, C) block-diagonal group-averaging matrix.
    Single-pass E[x^2]-E[x]^2 with clamp at 0 (f32).
    """
    s1 = jnp.sum(v, axis=0, keepdims=True)
    s2 = jnp.sum(v * v, axis=0, keepdims=True)
    stats = jnp.dot(jnp.concatenate([s1, s2], axis=0), A_ref[...],
                    preferred_element_type=jnp.float32)        # (2, C)
    mean = stats[0:1]
    var = jnp.maximum(stats[1:2] - mean * mean, 0.0)
    return mean, jax.lax.rsqrt(var + eps)


def _store_center_and_shifts(pad_c, pad_xm, pad_xp, val, mask_xm, mask_xp,
                             H, W, ncols):
    """Write an (HW, ncols) image into the H-padded center buffer and build the
    pre-shifted (x-1 / x+1), pre-masked copies once (2 rolls total)."""
    HW = H * W
    lo, hi = W, (H + 1) * W
    pad_c[lo:hi, 0:ncols] = val
    v = pad_c[lo:hi, 0:ncols]
    # roll(v, shift=1)[j]    = v[j-1]  -> value at x-1 (masked where x==0)
    # roll(v, shift=HW-1)[j] = v[j+1]  -> value at x+1 (masked where x==W-1)
    pad_xm[lo:hi, 0:ncols] = jnp.where(mask_xm, pltpu.roll(v, shift=1, axis=0), 0.0)
    pad_xp[lo:hi, 0:ncols] = jnp.where(mask_xp, pltpu.roll(v, shift=HW - 1, axis=0), 0.0)


def _dwconv3x3(pad_c, pad_xm, pad_xp, dst_ref, w9, bias, H, W, ncols, strip_h):
    """Depthwise 3x3, stride 1, padding 1, on row-flattened (H*W, ncols) data.

    pad_c/pad_xm/pad_xp: ((H+2)*W, 256) VMEM refs holding the zero-H-padded
    image and its pre-shifted/pre-masked x-1 / x+1 copies (cols 0:ncols valid).
    The 9-tap loop is pure aligned slice + FMA; the accumulator covers strip_h
    output rows to bound vreg live range.
    """
    n = strip_h * W
    srcs = (pad_xm, pad_c, pad_xp)            # dx = 0, 1, 2  ->  x-1, x, x+1
    w_rows = [w9[k:k + 1, :] for k in range(9)]   # hoisted out of the loops
    for y0 in range(0, H, strip_h):
        acc = jnp.zeros((n, ncols), jnp.float32)
        for dy in range(3):
            r0 = (y0 + dy) * W                # aligned: W % 8 == 0
            for dx in range(3):
                acc = acc + srcs[dx][r0:r0 + n, 0:ncols] * w_rows[dy * 3 + dx]
        dst_ref[y0 * W:y0 * W + n, 0:ncols] = acc + bias


# --------------------------------- the kernel ---------------------------------

def mfa_kernel(x_ref,              # (HW, 320)
               cv1w_ref,           # (320, 256)  BN + channel_shuffle folded
               pw1w_ref,           # (256, 256)  blockdiag(pw1_w, pw1_w)
               pw2w_ref,           # (128, 256)
               A8_ref,             # (256, 256)  8-group averaging matrix
               A4_ref,             # (256, 256)  4-group averaging matrix
               slab_ref,           # (29, 256)   packed small weights
               o_ref,              # (HW, 256)
               y_scr, pad_c, pad_xm, pad_xp, dw_scr, pw_scr,
               *, H, W, eps, strip_h1, strip_h2):
    HW = H * W
    C2 = 256

    # Column-validity masks for the W-direction shifts (shared by both dwconvs).
    xcol = jax.lax.broadcasted_iota(jnp.int32, (HW, 1), 0) % W
    mask_xm = xcol >= 1             # x-1 exists
    mask_xp = xcol <= W - 2         # x+1 exists

    # Zero the H-padding rows of all three shift buffers (once per grid step;
    # each TC has its own scratch, so this must not be gated on program_id).
    zrow = jnp.zeros((W, C2), jnp.float32)
    for buf in (pad_c, pad_xm, pad_xp):
        buf[0:W, :] = zrow
        buf[(H + 1) * W:(H + 2) * W, :] = zrow

    # ---- cv1: one (HW,320)@(320,256) matmul + folded BN + ReLU.  The
    #      channel_shuffle(4) permutation is folded into the weight columns, so
    #      cols 0:128 are x51 and cols 128:256 are x52. ----
    y_scr[...] = jnp.maximum(
        jnp.dot(x_ref[...], cv1w_ref[...], preferred_element_type=jnp.float32)
        + slab_ref[ROW_CV1B:ROW_CV1B + 1, :], 0.0)

    # ---- shared GroupNorm(4,128) on each half == 8 groups over 256 channels. ----
    y = y_scr[...]
    mean, inv = _group_stats(y, A8_ref, eps)
    gn = ((y - mean) * inv * slab_ref[ROW_GN_G:ROW_GN_G + 1, :]
          + slab_ref[ROW_GN_B:ROW_GN_B + 1, :])
    _store_center_and_shifts(pad_c, pad_xm, pad_xp, gn, mask_xm, mask_xp, H, W, C2)

    # ---- dwconv1 depthwise 3x3, both halves at once (weights tiled to 256). ----
    _dwconv3x3(pad_c, pad_xm, pad_xp, dw_scr,
               slab_ref[ROW_DW1W:ROW_DW1W + 9, :],
               slab_ref[ROW_DW1B:ROW_DW1B + 1, :],
               H, W, C2, strip_h1)

    # ---- dwconv1 pointwise: (HW,256) @ blockdiag(W,W) fills the 256-wide MXU. ----
    pw_scr[...] = (jnp.dot(dw_scr[...], pw1w_ref[...],
                           preferred_element_type=jnp.float32)
                   + slab_ref[ROW_PW1B:ROW_PW1B + 1, :])

    # ---- dwconv1 GroupNorm + ReLU, sigmoid gate, and the half-sum x5_. ----
    mean, inv = _group_stats(pw_scr[...], A8_ref, eps)
    x5 = None
    for h in range(2):
        cl, ch = h * 128, (h + 1) * 128
        a = jnp.maximum((pw_scr[:, cl:ch] - mean[:, cl:ch]) * inv[:, cl:ch]
                        * slab_ref[ROW_GN1G:ROW_GN1G + 1, cl:ch]
                        + slab_ref[ROW_GN1B:ROW_GN1B + 1, cl:ch], 0.0)
        g = y_scr[:, cl:ch] * jax.nn.sigmoid(a)
        x5 = g if x5 is None else x5 + g
    # TODO(synk): `torch.add([x51_, x52_], dim=1)` is not valid torch; it is
    # interpreted as the elementwise sum x51_ + x52_ (the only reading that
    # matches dwconv2's 128-channel input).

    # ---- dwconv2 depthwise 3x3 on x5_ (reuses cols 0:128 of the pad buffers;
    #      their padding rows are still zero). ----
    _store_center_and_shifts(pad_c, pad_xm, pad_xp, x5, mask_xm, mask_xp, H, W, 128)
    _dwconv3x3(pad_c, pad_xm, pad_xp, dw_scr,
               slab_ref[ROW_DW2W:ROW_DW2W + 9, 0:128],
               slab_ref[ROW_DW2B:ROW_DW2B + 1, 0:128],
               H, W, 128, strip_h2)

    # ---- dwconv2 pointwise (128->256) straight into o_ref, then GroupNorm(4,256)
    #      + ReLU in place (no pw2 scratch buffer). ----
    o_ref[...] = (jnp.dot(dw_scr[:, 0:128], pw2w_ref[...],
                          preferred_element_type=jnp.float32)
                  + slab_ref[ROW_PW2B:ROW_PW2B + 1, :])
    mean, inv = _group_stats(o_ref[...], A4_ref, eps)
    o_ref[...] = jnp.maximum((o_ref[...] - mean) * inv
                             * slab_ref[ROW_GN2G:ROW_GN2G + 1, :]
                             + slab_ref[ROW_GN2B:ROW_GN2B + 1, :], 0.0)


# ------------------------------- parameters -------------------------------

def init_params(key):
    ks = jax.random.split(key, 24)

    def n(k, shape, s=0.05):
        return s * jax.random.normal(k, shape, jnp.float32)

    p = {}
    # cv1: Conv2d(320, 256, 1) + BatchNorm2d(256)
    p["cv1_w"] = n(ks[0], (320, 256))          # (Cin, Cout)
    p["cv1_b"] = n(ks[1], (256,))
    p["cv1_bn_gamma"] = 1.0 + n(ks[2], (256,))
    p["cv1_bn_beta"] = n(ks[3], (256,))
    p["cv1_bn_mean"] = n(ks[4], (256,))
    p["cv1_bn_var"] = 1.0 + 0.1 * jax.random.uniform(ks[5], (256,), jnp.float32)
    # shared GroupNorm(4, 128)
    p["gn_gamma"] = 1.0 + n(ks[6], (128,))
    p["gn_beta"] = n(ks[7], (128,))
    # dwconv1 = DWCon(128, 128)   (its BatchNorm `bn` is unused in forward)
    p["dw1_w"] = n(ks[8], (3, 3, 128))
    p["dw1_b"] = n(ks[9], (128,))
    p["pw1_w"] = n(ks[10], (128, 128))         # (Cin, Cout)
    p["pw1_b"] = n(ks[11], (128,))
    p["gn1_gamma"] = 1.0 + n(ks[12], (128,))
    p["gn1_beta"] = n(ks[13], (128,))
    # dwconv2 = DWCon(128, 256)
    p["dw2_w"] = n(ks[14], (3, 3, 128))
    p["dw2_b"] = n(ks[15], (128,))
    p["pw2_w"] = n(ks[16], (128, 256))
    p["pw2_b"] = n(ks[17], (256,))
    p["gn2_gamma"] = 1.0 + n(ks[18], (256,))
    p["gn2_beta"] = n(ks[19], (256,))
    return p


# ------------------------------ forward pass ------------------------------

def _group_avg_matrix(C, groups, n_rows):
    """Block-diagonal (C,C) matrix s.t. [sums;sumsq] @ A = per-channel group means."""
    gid = jnp.arange(C) // (C // groups)
    return ((gid[:, None] == gid[None, :]).astype(jnp.float32)
            / float(n_rows * (C // groups)))


def _pick_strip(H, W, max_rows):
    s = 1
    for cand in (2, 4, 8):
        if H % cand == 0 and cand * W <= max_rows:
            s = cand
    return s


def _tile2(v):                       # (128,) -> (1, 256), same params both halves
    return jnp.concatenate([v, v]).reshape(1, 256)


def _pad256(v2d):                    # (r, 128) -> (r, 256) zero-padded right half
    return jnp.concatenate([v2d, jnp.zeros_like(v2d)], axis=1)


@jax.jit
def mfa_forward_nhwc(x_nhwc, p):
    """Channels-last entry point (preferred: no layout transposes)."""
    B, H, W, Cin = x_nhwc.shape
    assert Cin == 320 and W % 8 == 0
    HW = H * W
    eps = 1e-5
    C = 256

    # Fold eval-mode BN and the channel_shuffle(groups=4) output permutation
    # into the cv1 1x1-conv weights (compile-time work under jit).
    scale = p["cv1_bn_gamma"] / jnp.sqrt(p["cv1_bn_var"] + eps)
    shift = p["cv1_bn_beta"] - p["cv1_bn_mean"] * scale
    w_eff = p["cv1_w"] * scale[None, :]
    b_eff = p["cv1_b"] * scale + shift
    k = jnp.arange(C)
    perm = (k % 4) * (C // 4) + k // 4          # channel_shuffle, groups=4
    w_eff = w_eff[:, perm]
    b_eff = b_eff[perm]

    # Block-diagonal pointwise-1 weights (shared across both halves).
    z = jnp.zeros((128, 128), jnp.float32)
    pw1_bd = jnp.concatenate(
        [jnp.concatenate([p["pw1_w"], z], axis=1),
         jnp.concatenate([z, p["pw1_w"]], axis=1)], axis=0)

    A8 = _group_avg_matrix(256, 8, HW)          # GN(4,128) on both halves
    A4 = _group_avg_matrix(256, 4, HW)          # GN(4,256)

    # Packed slab of all small per-channel vectors (one operand, one DMA).
    slab = jnp.concatenate([
        b_eff.reshape(1, 256),
        _tile2(p["gn_gamma"]), _tile2(p["gn_beta"]),
        jnp.tile(p["dw1_w"].reshape(9, 128), (1, 2)),
        _tile2(p["dw1_b"]),
        _tile2(p["pw1_b"]),
        _tile2(p["gn1_gamma"]), _tile2(p["gn1_beta"]),
        _pad256(p["dw2_w"].reshape(9, 128)),
        _pad256(p["dw2_b"].reshape(1, 128)),
        p["pw2_b"].reshape(1, 256),
        p["gn2_gamma"].reshape(1, 256), p["gn2_beta"].reshape(1, 256),
    ], axis=0)
    assert slab.shape == (SLAB_ROWS, 256)

    x = x_nhwc.reshape(B, HW, Cin)

    # Strip heights: keep the depthwise f32 accumulator at <= ~16 vregs.
    strip_h1 = _pick_strip(H, W, 64)            # 256-wide accumulator
    strip_h2 = _pick_strip(H, W, 128)           # 128-wide accumulator

    # Per-step VMEM footprint -> explicit limit (headroom incl. double buffers).
    pad_rows = (H + 2) * W
    f32 = 4
    scratch_bytes = (3 * HW + 3 * pad_rows) * 256 * f32
    io_bytes = HW * (320 + 256) * f32
    weight_bytes = (320 * 256 + 3 * 256 * 256 + 128 * 256 + SLAB_ROWS * 256) * f32
    vmem_limit = int(min(64 * 1024 * 1024,
                         2 * (io_bytes + weight_bytes) + scratch_bytes + (8 << 20)))

    cost = pl.CostEstimate(
        flops=int(B * (2 * HW * (320 * 256 + 256 * 256 + 128 * 256)
                       + 2 * HW * 9 * (256 + 128) + 12 * HW * 256)),
        transcendentals=int(B * HW * 256),
        bytes_accessed=int(B * io_bytes + weight_bytes))

    kernel = functools.partial(mfa_kernel, H=H, W=W, eps=eps,
                               strip_h1=strip_h1, strip_h2=strip_h2)

    out = pl.pallas_call(
        kernel,
        out_shape=jax.ShapeDtypeStruct((B, HW, 256), jnp.float32),
        grid_spec=pltpu.PrefetchScalarGridSpec(
            num_scalar_prefetch=0,
            grid=(B,),
            in_specs=[
                pl.BlockSpec((None, HW, 320), lambda b: (b, 0, 0)),
                pl.BlockSpec((320, 256), lambda b: (0, 0)),
                pl.BlockSpec((256, 256), lambda b: (0, 0)),
                pl.BlockSpec((128, 256), lambda b: (0, 0)),
                pl.BlockSpec((256, 256), lambda b: (0, 0)),
                pl.BlockSpec((256, 256), lambda b: (0, 0)),
                pl.BlockSpec((SLAB_ROWS, 256), lambda b: (0, 0)),
            ],
            out_specs=pl.BlockSpec((None, HW, 256), lambda b: (b, 0, 0)),
            scratch_shapes=[
                pltpu.VMEM((HW, 256), jnp.float32),             # y (cv1 output)
                pltpu.VMEM((pad_rows, 256), jnp.float32),       # padded center
                pltpu.VMEM((pad_rows, 256), jnp.float32),       # padded, x-1 shifted
                pltpu.VMEM((pad_rows, 256), jnp.float32),       # padded, x+1 shifted
                pltpu.VMEM((HW, 256), jnp.float32),             # depthwise outputs
                pltpu.VMEM((HW, 256), jnp.float32),             # pw1 output
            ],
        ),
        compiler_params=pltpu.CompilerParams(
            dimension_semantics=("parallel",),
            vmem_limit_bytes=vmem_limit),
        cost_estimate=cost,
    )(x, w_eff, pw1_bd, p["pw2_w"], A8, A4, slab)

    return out.reshape(B, H, W, 256)


@jax.jit
def mfa_forward(x_nchw, p):
    """NCHW wrapper matching the PyTorch module interface.

    The two layout transposes here are HBM-bound XLA ops; models that are
    already channels-last should call mfa_forward_nhwc directly.
    """
    x = jnp.transpose(x_nchw, (0, 2, 3, 1))
    out = mfa_forward_nhwc(x, p)
    return jnp.transpose(out, (0, 3, 1, 2))


# ---------------------------------- main -----------------------------------

if __name__ == "__main__":
    B, H, W = 2, 16, 16                        # B >= 2 keeps both v7x TCs busy
    x = jax.random.normal(jax.random.PRNGKey(0), (B, 320, H, W), jnp.float32)
    params = init_params(jax.random.PRNGKey(42))

    out = mfa_forward(x, params)
    out = jax.block_until_ready(out)

    assert out.shape == (B, 256, H, W), out.shape
    assert bool(jnp.all(jnp.isfinite(out)))
    print("KERNEL_OK")
</pallas_src>

<mosaic_0001>
module attributes {stable_mosaic.version = 11 : i64} {
  func.func @mfa_kernel(%arg0: i32, %arg1: memref<1x256x320xf32, #tpu.memory_space<vmem>>, %arg2: memref<320x256xf32, #tpu.memory_space<vmem>>, %arg3: memref<256x256xf32, #tpu.memory_space<vmem>>, %arg4: memref<128x256xf32, #tpu.memory_space<vmem>>, %arg5: memref<256x256xf32, #tpu.memory_space<vmem>>, %arg6: memref<256x256xf32, #tpu.memory_space<vmem>>, %arg7: memref<29x256xf32, #tpu.memory_space<vmem>>, %arg8: memref<1x256x256xf32, #tpu.memory_space<vmem>>, %arg9: memref<256x256xf32, #tpu.memory_space<vmem>>, %arg10: memref<288x256xf32, #tpu.memory_space<vmem>>, %arg11: memref<288x256xf32, #tpu.memory_space<vmem>>, %arg12: memref<288x256xf32, #tpu.memory_space<vmem>>, %arg13: memref<256x256xf32, #tpu.memory_space<vmem>>, %arg14: memref<256x256xf32, #tpu.memory_space<vmem>>) attributes {dimension_semantics = [#tpu.dimension_semantics<parallel>], iteration_bounds = array<i64: 2>, scalar_prefetch = 0 : i64, scratch_operands = 6 : i64, tpu.core_type = #tpu.core_type<tc>, window_params = [{transform_indices = @transform_0, window_bounds = array<i64: 1, 256, 320>}, {pipeline_mode = #tpu.pipeline_mode<synchronous>, transform_indices = @transform_1, window_bounds = array<i64: 320, 256>}, {pipeline_mode = #tpu.pipeline_mode<synchronous>, transform_indices = @transform_2, window_bounds = array<i64: 256, 256>}, {pipeline_mode = #tpu.pipeline_mode<synchronous>, transform_indices = @transform_3, window_bounds = array<i64: 128, 256>}, {pipeline_mode = #tpu.pipeline_mode<synchronous>, transform_indices = @transform_4, window_bounds = array<i64: 256, 256>}, {pipeline_mode = #tpu.pipeline_mode<synchronous>, transform_indices = @transform_5, window_bounds = array<i64: 256, 256>}, {pipeline_mode = #tpu.pipeline_mode<synchronous>, transform_indices = @transform_6, window_bounds = array<i64: 29, 256>}, {transform_indices = @transform_7, window_bounds = array<i64: 1, 256, 256>}]} {
    %0 = tpu.iota {dimensions = array<i32: 0>} : vector<256x1xi32>
    %c16_i32 = arith.constant 16 : i32
    %c0_i32 = arith.constant 0 : i32
    %1 = arith.cmpi eq, %c16_i32, %c0_i32 : i32
    %c1_i32 = arith.constant 1 : i32
    %2 = arith.select %1, %c1_i32, %c16_i32 : i32
    %3 = vector.broadcast %2 : i32 to vector<256x1xi32>
    %4 = arith.remsi %0, %3 : vector<256x1xi32>
    %c0_i32_0 = arith.constant 0 : i32
    %5 = vector.broadcast %c0_i32_0 : i32 to vector<256x1xi32>
    %6 = arith.cmpi ne, %4, %5 : vector<256x1xi32>
    %c0_i32_1 = arith.constant 0 : i32
    %7 = vector.broadcast %c0_i32_1 : i32 to vector<256x1xi32>
    %8 = arith.cmpi slt, %4, %7 : vector<256x1xi32>
    %c0_i32_2 = arith.constant 0 : i32
    %9 = arith.cmpi slt, %2, %c0_i32_2 : i32
    %10 = vector.broadcast %9 : i1 to vector<256x1xi1>
    %11 = vector.broadcast %10 : vector<256x1xi1> to vector<256x1xi1>
    %12 = arith.xori %8, %11 : vector<256x1xi1>
    %13 = arith.andi %12, %6 : vector<256x1xi1>
    %14 = vector.broadcast %2 : i32 to vector<256x1xi32>
    %15 = arith.addi %4, %14 : vector<256x1xi32>
    %16 = arith.select %13, %15, %4 : vector<256x1xi1>, vector<256x1xi32>
    %c1_i32_3 = arith.constant 1 : i32
    %17 = vector.broadcast %c1_i32_3 : i32 to vector<256x1xi32>
    %18 = arith.cmpi sge, %16, %17 : vector<256x1xi32>
    %c14_i32 = arith.constant 14 : i32
    %19 = vector.broadcast %c14_i32 : i32 to vector<256x1xi32>
    %20 = arith.cmpi sle, %16, %19 : vector<256x1xi32>
    %cst = arith.constant 0.000000e+00 : f32
    %21 = vector.broadcast %cst : f32 to vector<16x256xf32>
    %c0 = arith.constant 0 : index
    %c0_4 = arith.constant 0 : index
    %22 = vector.load %arg10[%c0, %c0_4] : memref<288x256xf32, #tpu.memory_space<vmem>>, vector<16x256xf32>
    tpu.vector_store %arg10[%c0, %c0_4], %21 {strides = array<i32>} : memref<288x256xf32, #tpu.memory_space<vmem>>, vector<16x256xf32>,
    %c272 = arith.constant 272 : index
    %c0_5 = arith.constant 0 : index
    %23 = vector.load %arg10[%c272, %c0_5] : memref<288x256xf32, #tpu.memory_space<vmem>>, vector<16x256xf32>
    tpu.vector_store %arg10[%c272, %c0_5], %21 {strides = array<i32>} : memref<288x256xf32, #tpu.memory_space<vmem>>, vector<16x256xf32>,
    %c0_6 = arith.constant 0 : index
    %c0_7 = arith.constant 0 : index
    %24 = vector.load %arg11[%c0_6, %c0_7] : memref<288x256xf32, #tpu.memory_space<vmem>>, vector<16x256xf32>
    tpu.vector_store %arg11[%c0_6, %c0_7], %21 {strides = array<i32>} : memref<288x256xf32, #tpu.memory_space<vmem>>, vector<16x256xf32>,
    %c272_8 = arith.constant 272 : index
    %c0_9 = arith.constant 0 : index
    %25 = vector.load %arg11[%c272_8, %c0_9] : memref<288x256xf32, #tpu.memory_space<vmem>>, vector<16x256xf32>
    tpu.vector_store %arg11[%c272_8, %c0_9], %21 {strides = array<i32>} : memref<288x256xf32, #tpu.memory_space<vmem>>, vector<16x256xf32>,
    %c0_10 = arith.constant 0 : index
    %c0_11 = arith.constant 0 : index
    %26 = vector.load %arg12[%c0_10, %c0_11] : memref<288x256xf32, #tpu.memory_space<vmem>>, vector<16x256xf32>
    tpu.vector_store %arg12[%c0_10, %c0_11], %21 {strides = array<i32>} : memref<288x256xf32, #tpu.memory_space<vmem>>, vector<16x256xf32>,
    %c272_12 = arith.constant 272 : index
    %c0_13 = arith.constant 0 : index
    %27 = vector.load %arg12[%c272_12, %c0_13] : memref<288x256xf32, #tpu.memory_space<vmem>>, vector<16x256xf32>
    tpu.vector_store %arg12[%c272_12, %c0_13], %21 {strides = array<i32>} : memref<288x256xf32, #tpu.memory_space<vmem>>, vector<16x256xf32>,
    %c0_14 = arith.constant 0 : index
    %c0_15 = arith.constant 0 : index
    %c0_16 = arith.constant 0 : index
    %28 = vector.load %arg1[%c0_14, %c0_15, %c0_16] : memref<1x256x320xf32, #tpu.memory_space<vmem>>, vector<1x256x320xf32>
    %29 = vector.shape_cast %28 : vector<1x256x320xf32> to vector<256x320xf32>
    %c0_17 = arith.constant 0 : index
    %c0_18 = arith.constant 0 : index
    %30 = vector.load %arg2[%c0_17, %c0_18] : memref<320x256xf32, #tpu.memory_space<vmem>>, vector<320x256xf32>
    %cst_19 = arith.constant dense<0.000000e+00> : vector<256x256xf32>
    %31 = tpu.matmul %29, %30, %cst_19 {dimension_numbers = #tpu.dot_dimension_numbers<[1], [0], [0], [1], [0, 0, 1, 1], [], []>} : vector<256x320xf32>, vector<320x256xf32>, vector<256x256xf32> -> vector<256x256xf32>
    %c0_20 = arith.constant 0 : index
    %c0_21 = arith.constant 0 : index
    %32 = vector.load %arg7[%c0_20, %c0_21] : memref<29x256xf32, #tpu.memory_space<vmem>>, vector<1x256xf32>
    %33 = vector.broadcast %32 : vector<1x256xf32> to vector<256x256xf32>
    %34 = arith.addf %31, %33 : vector<256x256xf32>
    %cst_22 = arith.constant 0.000000e+00 : f32
    %35 = vector.broadcast %cst_22 : f32 to vector<256x256xf32>
    %36 = arith.maximumf %34, %35 : vector<256x256xf32>
    %c0_23 = arith.constant 0 : index
    %c0_24 = arith.constant 0 : index
    %37 = vector.load %arg9[%c0_23, %c0_24] : memref<256x256xf32, #tpu.memory_space<vmem>>, vector<256x256xf32>
    tpu.vector_store %arg9[%c0_23, %c0_24], %36 {strides = array<i32>} : memref<256x256xf32, #tpu.memory_space<vmem>>, vector<256x256xf32>,
    %c0_25 = arith.constant 0 : index
    %c0_26 = arith.constant 0 : index
    %38 = vector.load %arg9[%c0_25, %c0_26] : memref<256x256xf32, #tpu.memory_space<vmem>>, vector<256x256xf32>
    %cst_27 = arith.constant dense<0.000000e+00> : vector<256xf32>
    %39 = vector.multi_reduction <add>, %38, %cst_27 [0] : vector<256x256xf32> to vector<256xf32>
    %40 = vector.shape_cast %39 : vector<256xf32> to vector<1x256xf32>
    %41 = arith.mulf %38, %38 : vector<256x256xf32>
    %cst_28 = arith.constant dense<0.000000e+00> : vector<256xf32>
    %42 = vector.multi_reduction <add>, %41, %cst_28 [0] : vector<256x256xf32> to vector<256xf32>
    %43 = vector.shape_cast %42 : vector<256xf32> to vector<1x256xf32>
    %44 = tpu.concatenate %40, %43 in 0 : vector<1x256xf32>, vector<1x256xf32> -> vector<2x256xf32>
    %c0_29 = arith.constant 0 : index
    %c0_30 = arith.constant 0 : index
    %45 = vector.load %arg5[%c0_29, %c0_30] : memref<256x256xf32, #tpu.memory_space<vmem>>, vector<256x256xf32>
    %cst_31 = arith.constant dense<0.000000e+00> : vector<2x256xf32>
    %46 = tpu.matmul %44, %45, %cst_31 {dimension_numbers = #tpu.dot_dimension_numbers<[1], [0], [0], [1], [0, 0, 1, 1], [], []>} : vector<2x256xf32>, vector<256x256xf32>, vector<2x256xf32> -> vector<2x256xf32>
    %47 = vector.extract_strided_slice %46 {offsets = [0, 0], sizes = [1, 256], strides = [1, 1]} : vector<2x256xf32> to vector<1x256xf32>
    %48 = vector.extract_strided_slice %46 {offsets = [1, 0], sizes = [1, 256], strides = [1, 1]} : vector<2x256xf32> to vector<1x256xf32>
    %49 = arith.mulf %47, %47 : vector<1x256xf32>
    %50 = arith.subf %48, %49 : vector<1x256xf32>
    %cst_32 = arith.constant 0.000000e+00 : f32
    %51 = vector.broadcast %cst_32 : f32 to vector<1x256xf32>
    %52 = arith.maximumf %50, %51 : vector<1x256xf32>
    %cst_33 = arith.constant 9.99999974E-6 : f32
    %53 = vector.broadcast %cst_33 : f32 to vector<1x256xf32>
    %54 = arith.addf %52, %53 : vector<1x256xf32>
    %55 = math.rsqrt %54 : vector<1x256xf32>
    %56 = vector.broadcast %47 : vector<1x256xf32> to vector<256x256xf32>
    %57 = arith.subf %38, %56 : vector<256x256xf32>
    %58 = vector.broadcast %55 : vector<1x256xf32> to vector<256x256xf32>
    %59 = arith.mulf %57, %58 : vector<256x256xf32>
    %c1 = arith.constant 1 : index
    %c0_34 = arith.constant 0 : index
    %60 = vector.load %arg7[%c1, %c0_34] : memref<29x256xf32, #tpu.memory_space<vmem>>, vector<1x256xf32>
    %61 = vector.broadcast %60 : vector<1x256xf32> to vector<256x256xf32>
    %62 = arith.mulf %59, %61 : vector<256x256xf32>
    %c2 = arith.constant 2 : index
    %c0_35 = arith.constant 0 : index
    %63 = vector.load %arg7[%c2, %c0_35] : memref<29x256xf32, #tpu.memory_space<vmem>>, vector<1x256xf32>
    %64 = vector.broadcast %63 : vector<1x256xf32> to vector<256x256xf32>
    %65 = arith.addf %62, %64 : vector<256x256xf32>
    %c16 = arith.constant 16 : index
    %c0_36 = arith.constant 0 : index
    %66 = vector.load %arg10[%c16, %c0_36] : memref<288x256xf32, #tpu.memory_space<vmem>>, vector<256x256xf32>
    tpu.vector_store %arg10[%c16, %c0_36], %65 {strides = array<i32>} : memref<288x256xf32, #tpu.memory_space<vmem>>, vector<256x256xf32>,
    %c16_37 = arith.constant 16 : index
    %c0_38 = arith.constant 0 : index
    %67 = vector.load %arg10[%c16_37, %c0_38] : memref<288x256xf32, #tpu.memory_space<vmem>>, vector<256x256xf32>
    %c1_i32_39 = arith.constant 1 : i32
    %68 = tpu.dynamic_rotate %67 by %c1_i32_39 dim 0 : vector<256x256xf32>, i32 -> vector<256x256xf32>
    %cst_40 = arith.constant 0.000000e+00 : f32
    %69 = vector.shape_cast %18 : vector<256x1xi1> to vector<256x1xi1>
    %70 = vector.broadcast %69 : vector<256x1xi1> to vector<256x256xi1>
    %71 = vector.broadcast %cst_40 : f32 to vector<256x256xf32>
    %72 = arith.select %70, %68, %71 : vector<256x256xi1>, vector<256x256xf32>
    %c16_41 = arith.constant 16 : index
    %c0_42 = arith.constant 0 : index
    %73 = vector.load %arg11[%c16_41, %c0_42] : memref<288x256xf32, #tpu.memory_space<vmem>>, vector<256x256xf32>
    tpu.vector_store %arg11[%c16_41, %c0_42], %72 {strides = array<i32>} : memref<288x256xf32, #tpu.memory_space<vmem>>, vector<256x256xf32>,
    %c255_i32 = arith.constant 255 : i32
    %74 = tpu.dynamic_rotate %67 by %c255_i32 dim 0 : vector<256x256xf32>, i32 -> vector<256x256xf32>
    %cst_43 = arith.constant 0.000000e+00 : f32
    %75 = vector.shape_cast %20 : vector<256x1xi1> to vector<256x1xi1>
    %76 = vector.broadcast %75 : vector<256x1xi1> to vector<256x256xi1>
    %77 = vector.broadcast %cst_43 : f32 to vector<256x256xf32>
    %78 = arith.select %76, %74, %77 : vector<256x256xi1>, vector<256x256xf32>
    %c16_44 = arith.constant 16 : index
    %c0_45 = arith.constant 0 : index
    %79 = vector.load %arg12[%c16_44, %c0_45] : memref<288x256xf32, #tpu.memory_space<vmem>>, vector<256x256xf32>
    tpu.vector_store %arg12[%c16_44, %c0_45], %78 {strides = array<i32>} : memref<288x256xf32, #tpu.memory_space<vmem>>, vector<256x256xf32>,
    %c3 = arith.constant 3 : index
    %c0_46 = arith.constant 0 : index
    %80 = vector.load %arg7[%c3, %c0_46] : memref<29x256xf32, #tpu.memory_space<vmem>>, vector<9x256xf32>
    %c12 = arith.constant 12 : index
    %c0_47 = arith.constant 0 : index
    %81 = vector.load %arg7[%c12, %c0_47] : memref<29x256xf32, #tpu.memory_space<vmem>>, vector<1x256xf32>
    %82 = vector.extract_strided_slice %80 {offsets = [0, 0], sizes = [1, 256], strides = [1, 1]} : vector<9x256xf32> to vector<1x256xf32>
    %83 = vector.extract_strided_slice %80 {offsets = [1, 0], sizes = [1, 256], strides = [1, 1]} : vector<9x256xf32> to vector<1x256xf32>
    %84 = vector.extract_strided_slice %80 {offsets = [2, 0], sizes = [1, 256], strides = [1, 1]} : vector<9x256xf32> to vector<1x256xf32>
    %85 = vector.extract_strided_slice %80 {offsets = [3, 0], sizes = [1, 256], strides = [1, 1]} : vector<9x256xf32> to vector<1x256xf32>
    %86 = vector.extract_strided_slice %80 {offsets = [4, 0], sizes = [1, 256], strides = [1, 1]} : vector<9x256xf32> to vector<1x256xf32>
    %87 = vector.extract_strided_slice %80 {offsets = [5, 0], sizes = [1, 256], strides = [1, 1]} : vector<9x256xf32> to vector<1x256xf32>
    %88 = vector.extract_strided_slice %80 {offsets = [6, 0], sizes = [1, 256], strides = [1, 1]} : vector<9x256xf32> to vector<1x256xf32>
    %89 = vector.extract_strided_slice %80 {offsets = [7, 0], sizes = [1, 256], strides = [1, 1]} : vector<9x256xf32> to vector<1x256xf32>
    %90 = vector.extract_strided_slice %80 {offsets = [8, 0], sizes = [1, 256], strides = [1, 1]} : vector<9x256xf32> to vector<1x256xf32>
    %cst_48 = arith.constant 0.000000e+00 : f32
    %91 = vector.broadcast %cst_48 : f32 to vector<64x256xf32>
    %c0_49 = arith.constant 0 : index
    %c0_50 = arith.constant 0 : index
    %92 = vector.load %arg11[%c0_49, %c0_50] : memref<288x256xf32, #tpu.memory_space<vmem>>, vector<64x256xf32>
    %93 = vector.broadcast %82 : vector<1x256xf32> to vector<64x256xf32>
    %94 = arith.mulf %92, %93 : vector<64x256xf32>
    %95 = arith.addf %91, %94 : vector<64x256xf32>
    %c0_51 = arith.constant 0 : index
    %c0_52 = arith.constant 0 : index
    %96 = vector.load %arg10[%c0_51, %c0_52] : memref<288x256xf32, #tpu.memory_space<vmem>>, vector<64x256xf32>
    %97 = vector.broadcast %83 : vector<1x256xf32> to vector<64x256xf32>
    %98 = arith.mulf %96, %97 : vector<64x256xf32>
    %99 = arith.addf %95, %98 : vector<64x256xf32>
    %c0_53 = arith.constant 0 : index
    %c0_54 = arith.constant 0 : index
    %100 = vector.load %arg12[%c0_53, %c0_54] : memref<288x256xf32, #tpu.memory_space<vmem>>, vector<64x256xf32>
    %101 = vector.broadcast %84 : vector<1x256xf32> to vector<64x256xf32>
    %102 = arith.mulf %100, %101 : vector<64x256xf32>
    %103 = arith.addf %99, %102 : vector<64x256xf32>
    %c16_55 = arith.constant 16 : index
    %c0_56 = arith.constant 0 : index
    %104 = vector.load %arg11[%c16_55, %c0_56] : memref<288x256xf32, #tpu.memory_space<vmem>>, vector<64x256xf32>
    %105 = vector.broadcast %85 : vector<1x256xf32> to vector<64x256xf32>
    %106 = arith.mulf %104, %105 : vector<64x256xf32>
    %107 = arith.addf %103, %106 : vector<64x256xf32>
    %c16_57 = arith.constant 16 : index
    %c0_58 = arith.constant 0 : index
    %108 = vector.load %arg10[%c16_57, %c0_58] : memref<288x256xf32, #tpu.memory_space<vmem>>, vector<64x256xf32>
    %109 = vector.broadcast %86 : vector<1x256xf32> to vector<64x256xf32>
    %110 = arith.mulf %108, %109 : vector<64x256xf32>
    %111 = arith.addf %107, %110 : vector<64x256xf32>
    %c16_59 = arith.constant 16 : index
    %c0_60 = arith.constant 0 : index
    %112 = vector.load %arg12[%c16_59, %c0_60] : memref<288x256xf32, #tpu.memory_space<vmem>>, vector<64x256xf32>
    %113 = vector.broadcast %87 : vector<1x256xf32> to vector<64x256xf32>
    %114 = arith.mulf %112, %113 : vector<64x256xf32>
    %115 = arith.addf %111, %114 : vector<64x256xf32>
    %c32 = arith.constant 32 : index
    %c0_61 = arith.constant 0 : index
    %116 = vector.load %arg11[%c32, %c0_61] : memref<288x256xf32, #tpu.memory_space<vmem>>, vector<64x256xf32>
    %117 = vector.broadcast %88 : vector<1x256xf32> to vector<64x256xf32>
    %118 = arith.mulf %116, %117 : vector<64x256xf32>
    %119 = arith.addf %115, %118 : vector<64x256xf32>
    %c32_62 = arith.constant 32 : index
    %c0_63 = arith.constant 0 : index
    %120 = vector.load %arg10[%c32_62, %c0_63] : memref<288x256xf32, #tpu.memory_space<vmem>>, vector<64x256xf32>
    %121 = vector.broadcast %89 : vector<1x256xf32> to vector<64x256xf32>
    %122 = arith.mulf %120, %121 : vector<64x256xf32>
    %123 = arith.addf %119, %122 : vector<64x256xf32>
    %c32_64 = arith.constant 32 : index
    %c0_65 = arith.constant 0 : index
    %124 = vector.load %arg12[%c32_64, %c0_65] : memref<288x256xf32, #tpu.memory_space<vmem>>, vector<64x256xf32>
    %125 = vector.broadcast %90 : vector<1x256xf32> to vector<64x256xf32>
    %126 = arith.mulf %124, %125 : vector<64x256xf32>
    %127 = arith.addf %123, %126 : vector<64x256xf32>
    %128 = vector.broadcast %81 : vector<1x256xf32> to vector<64x256xf32>
    %129 = arith.addf %127, %128 : vector<64x256xf32>
    %c0_66 = arith.constant 0 : index
    %c0_67 = arith.constant 0 : index
    %130 = vector.load %arg13[%c0_66, %c0_67] : memref<256x256xf32, #tpu.memory_space<vmem>>, vector<64x256xf32>
    tpu.vector_store %arg13[%c0_66, %c0_67], %129 {strides = array<i32>} : memref<256x256xf32, #tpu.memory_space<vmem>>, vector<64x256xf32>,
    %cst_68 = arith.constant 0.000000e+00 : f32
    %131 = vector.broadcast %cst_68 : f32 to vector<64x256xf32>
    %c64 = arith.constant 64 : index
    %c0_69 = arith.constant 0 : index
    %132 = vector.load %arg11[%c64, %c0_69] : memref<288x256xf32, #tpu.memory_space<vmem>>, vector<64x256xf32>
    %133 = vector.broadcast %82 : vector<1x256xf32> to vector<64x256xf32>
    %134 = arith.mulf %132, %133 : vector<64x256xf32>
    %135 = arith.addf %131, %134 : vector<64x256xf32>
    %c64_70 = arith.constant 64 : index
    %c0_71 = arith.constant 0 : index
    %136 = vector.load %arg10[%c64_70, %c0_71] : memref<288x256xf32, #tpu.memory_space<vmem>>, vector<64x256xf32>
    %137 = vector.broadcast %83 : vector<1x256xf32> to vector<64x256xf32>
    %138 = arith.mulf %136, %137 : vector<64x256xf32>
    %139 = arith.addf %135, %138 : vector<64x256xf32>
    %c64_72 = arith.constant 64 : index
    %c0_73 = arith.constant 0 : index
    %140 = vector.load %arg12[%c64_72, %c0_73] : memref<288x256xf32, #tpu.memory_space<vmem>>, vector<64x256xf32>
    %141 = vector.broadcast %84 : vector<1x256xf32> to vector<64x256xf32>
    %142 = arith.mulf %140, %141 : vector<64x256xf32>
    %143 = arith.addf %139, %142 : vector<64x256xf32>
    %c80 = arith.constant 80 : index
    %c0_74 = arith.constant 0 : index
    %144 = vector.load %arg11[%c80, %c0_74] : memref<288x256xf32, #tpu.memory_space<vmem>>, vector<64x256xf32>
    %145 = vector.broadcast %85 : vector<1x256xf32> to vector<64x256xf32>
    %146 = arith.mulf %144, %145 : vector<64x256xf32>
    %147 = arith.addf %143, %146 : vector<64x256xf32>
    %c80_75 = arith.constant 80 : index
    %c0_76 = arith.constant 0 : index
    %148 = vector.load %arg10[%c80_75, %c0_76] : memref<288x256xf32, #tpu.memory_space<vmem>>, vector<64x256xf32>
    %149 = vector.broadcast %86 : vector<1x256xf32> to vector<64x256xf32>
    %150 = arith.mulf %148, %149 : vector<64x256xf32>
    %151 = arith.addf %147, %150 : vector<64x256xf32>
    %c80_77 = arith.constant 80 : index
    %c0_78 = arith.constant 0 : index
    %152 = vector.load %arg12[%c80_77, %c0_78] : memref<288x256xf32, #tpu.memory_space<vmem>>, vector<64x256xf32>
    %153 = vector.broadcast %87 : vector<1x256xf32> to vector<64x256xf32>
    %154 = arith.mulf %152, %153 : vector<64x256xf32>
    %155 = arith.addf %151, %154 : vector<64x256xf32>
    %c96 = arith.constant 96 : index
    %c0_79 = arith.constant 0 : index
    %156 = vector.load %arg11[%c96, %c0_79] : memref<288x256xf32, #tpu.memory_space<vmem>>, vector<64x256xf32>
    %157 = vector.broadcast %88 : vector<1x256xf32> to vector<64x256xf32>
    %158 = arith.mulf %156, %157 : vector<64x256xf32>
    %159 = arith.addf %155, %158 : vector<64x256xf32>
    %c96_80 = arith.constant 96 : index
    %c0_81 = arith.constant 0 : index
    %160 = vector.load %arg10[%c96_80, %c0_81] : memref<288x256xf32, #tpu.memory_space<vmem>>, vector<64x256xf32>
    %161 = vector.broadcast %89 : vector<1x256xf32> to vector<64x256xf32>
    %162 = arith.mulf %160, %161 : vector<64x256xf32>
    %163 = arith.addf %159, %162 : vector<64x256xf32>
    %c96_82 = arith.constant 96 : index
    %c0_83 = arith.constant 0 : index
    %164 = vector.load %arg12[%c96_82, %c0_83] : memref<288x256xf32, #tpu.memory_space<vmem>>, vector<64x256xf32>
    %165 = vector.broadcast %90 : vector<1x256xf32> to vector<64x256xf32>
    %166 = arith.mulf %164, %165 : vector<64x256xf32>
    %167 = arith.addf %163, %166 : vector<64x256xf32>
    %168 = vector.broadcast %81 : vector<1x256xf32> to vector<64x256xf32>
    %169 = arith.addf %167, %168 : vector<64x256xf32>
    %c64_84 = arith.constant 64 : index
    %c0_85 = arith.constant 0 : index
    %170 = vector.load %arg13[%c64_84, %c0_85] : memref<256x256xf32, #tpu.memory_space<vmem>>, vector<64x256xf32>
    tpu.vector_store %arg13[%c64_84, %c0_85], %169 {strides = array<i32>} : memref<256x256xf32, #tpu.memory_space<vmem>>, vector<64x256xf32>,
    %cst_86 = arith.constant 0.000000e+00 : f32
    %171 = vector.broadcast %cst_86 : f32 to vector<64x256xf32>
    %c128 = arith.constant 128 : index
    %c0_87 = arith.constant 0 : index
    %172 = vector.load %arg11[%c128, %c0_87] : memref<288x256xf32, #tpu.memory_space<vmem>>, vector<64x256xf32>
    %173 = vector.broadcast %82 : vector<1x256xf32> to vector<64x256xf32>
    %174 = arith.mulf %172, %173 : vector<64x256xf32>
    %175 = arith.addf %171, %174 : vector<64x256xf32>
    %c128_88 = arith.constant 128 : index
    %c0_89 = arith.constant 0 : index
    %176 = vector.load %arg10[%c128_88, %c0_89] : memref<288x256xf32, #tpu.memory_space<vmem>>, vector<64x256xf32>
    %177 = vector.broadcast %83 : vector<1x256xf32> to vector<64x256xf32>
    %178 = arith.mulf %176, %177 : vector<64x256xf32>
    %179 = arith.addf %175, %178 : vector<64x256xf32>
    %c128_90 = arith.constant 128 : index
    %c0_91 = arith.constant 0 : index
    %180 = vector.load %arg12[%c128_90, %c0_91] : memref<288x256xf32, #tpu.memory_space<vmem>>, vector<64x256xf32>
    %181 = vector.broadcast %84 : vector<1x256xf32> to vector<64x256xf32>
    %182 = arith.mulf %180, %181 : vector<64x256xf32>
    %183 = arith.addf %179, %182 : vector<64x256xf32>
    %c144 = arith.constant 144 : index
    %c0_92 = arith.constant 0 : index
    %184 = vector.load %arg11[%c144, %c0_92] : memref<288x256xf32, #tpu.memory_space<vmem>>, vector<64x256xf32>
    %185 = vector.broadcast %85 : vector<1x256xf32> to vector<64x256xf32>
    %186 = arith.mulf %184, %185 : vector<64x256xf32>
    %187 = arith.addf %183, %186 : vector<64x256xf32>
    %c144_93 = arith.constant 144 : index
    %c0_94 = arith.constant 0 : index
    %188 = vector.load %arg10[%c144_93, %c0_94] : memref<288x256xf32, #tpu.memory_space<vmem>>, vector<64x256xf32>
    %189 = vector.broadcast %86 : vector<1x256xf32> to vector<64x256xf32>
    %190 = arith.mulf %188, %189 : vector<64x256xf32>
    %191 = arith.addf %187, %190 : vector<64x256xf32>
    %c144_95 = arith.constant 144 : index
    %c0_96 = arith.constant 0 : index
    %192 = vector.load %arg12[%c144_95, %c0_96] : memref<288x256xf32, #tpu.memory_space<vmem>>, vector<64x256xf32>
    %193 = vector.broadcast %87 : vector<1x256xf32> to vector<64x256xf32>
    %194 = arith.mulf %192, %193 : vector<64x256xf32>
    %195 = arith.addf %191, %194 : vector<64x256xf32>
    %c160 = arith.constant 160 : index
    %c0_97 = arith.constant 0 : index
    %196 = vector.load %arg11[%c160, %c0_97] : memref<288x256xf32, #tpu.memory_space<vmem>>, vector<64x256xf32>
    %197 = vector.broadcast %88 : vector<1x256xf32> to vector<64x256xf32>
    %198 = arith.mulf %196, %197 : vector<64x256xf32>
    %199 = arith.addf %195, %198 : vector<64x256xf32>
    %c160_98 = arith.constant 160 : index
    %c0_99 = arith.constant 0 : index
    %200 = vector.load %arg10[%c160_98, %c0_99] : memref<288x256xf32, #tpu.memory_space<vmem>>, vector<64x256xf32>
    %201 = vector.broadcast %89 : vector<1x256xf32> to vector<64x256xf32>
    %202 = arith.mulf %200, %201 : vector<64x256xf32>
    %203 = arith.addf %199, %202 : vector<64x256xf32>
    %c160_100 = arith.constant 160 : index
    %c0_101 = arith.constant 0 : index
    %204 = vector.load %arg12[%c160_100, %c0_101] : memref<288x256xf32, #tpu.memory_space<vmem>>, vector<64x256xf32>
    %205 = vector.broadcast %90 : vector<1x256xf32> to vector<64x256xf32>
    %206 = arith.mulf %204, %205 : vector<64x256xf32>
    %207 = arith.addf %203, %206 : vector<64x256xf32>
    %208 = vector.broadcast %81 : vector<1x256xf32> to vector<64x256xf32>
    %209 = arith.addf %207, %208 : vector<64x256xf32>
    %c128_102 = arith.constant 128 : index
    %c0_103 = arith.constant 0 : index
    %210 = vector.load %arg13[%c128_102, %c0_103] : memref<256x256xf32, #tpu.memory_space<vmem>>, vector<64x256xf32>
    tpu.vector_store %arg13[%c128_102, %c0_103], %209 {strides = array<i32>} : memref<256x256xf32, #tpu.memory_space<vmem>>, vector<64x256xf32>,
    %cst_104 = arith.constant 0.000000e+00 : f32
    %211 = vector.broadcast %cst_104 : f32 to vector<64x256xf32>
    %c192 = arith.constant 192 : index
    %c0_105 = arith.constant 0 : index
    %212 = vector.load %arg11[%c192, %c0_105] : memref<288x256xf32, #tpu.memory_space<vmem>>, vector<64x256xf32>
    %213 = vector.broadcast %82 : vector<1x256xf32> to vector<64x256xf32>
    %214 = arith.mulf %212, %213 : vector<64x256xf32>
    %215 = arith.addf %211, %214 : vector<64x256xf32>
    %c192_106 = arith.constant 192 : index
    %c0_107 = arith.constant 0 : index
    %216 = vector.load %arg10[%c192_106, %c0_107] : memref<288x256xf32, #tpu.memory_space<vmem>>, vector<64x256xf32>
    %217 = vector.broadcast %83 : vector<1x256xf32> to vector<64x256xf32>
    %218 = arith.mulf %216, %217 : vector<64x256xf32>
    %219 = arith.addf %215, %218 : vector<64x256xf32>
    %c192_108 = arith.constant 192 : index
    %c0_109 = arith.constant 0 : index
    %220 = vector.load %arg12[%c192_108, %c0_109] : memref<288x256xf32, #tpu.memory_space<vmem>>, vector<64x256xf32>
    %221 = vector.broadcast %84 : vector<1x256xf32> to vector<64x256xf32>
    %222 = arith.mulf %220, %221 : vector<64x256xf32>
    %223 = arith.addf %219, %222 : vector<64x256xf32>
    %c208 = arith.constant 208 : index
    %c0_110 = arith.constant 0 : index
    %224 = vector.load %arg11[%c208, %c0_110] : memref<288x256xf32, #tpu.memory_space<vmem>>, vector<64x256xf32>
    %225 = vector.broadcast %85 : vector<1x256xf32> to vector<64x256xf32>
    %226 = arith.mulf %224, %225 : vector<64x256xf32>
    %227 = arith.addf %223, %226 : vector<64x256xf32>
    %c208_111 = arith.constant 208 : index
    %c0_112 = arith.constant 0 : index
    %228 = vector.load %arg10[%c208_111, %c0_112] : memref<288x256xf32, #tpu.memory_space<vmem>>, vector<64x256xf32>
    %229 = vector.broadcast %86 : vector<1x256xf32> to vector<64x256xf32>
    %230 = arith.mulf %228, %229 : vector<64x256xf32>
    %231 = arith.addf %227, %230 : vector<64x256xf32>
    %c208_113 = arith.constant 208 : index
    %c0_114 = arith.constant 0 : index
    %232 = vector.load %arg12[%c208_113, %c0_114] : memref<288x256xf32, #tpu.memory_space<vmem>>, vector<64x256xf32>
    %233 = vector.broadcast %87 : vector<1x256xf32> to vector<64x256xf32>
    %234 = arith.mulf %232, %233 : vector<64x256xf32>
    %235 = arith.addf %231, %234 : vector<64x256xf32>
    %c224 = arith.constant 224 : index
    %c0_115 = arith.constant 0 : index
    %236 = vector.load %arg11[%c224, %c0_115] : memref<288x256xf32, #tpu.memory_space<vmem>>, vector<64x256xf32>
    %237 = vector.broadcast %88 : vector<1x256xf32> to vector<64x256xf32>
    %238 = arith.mulf %236, %237 : vector<64x256xf32>
    %239 = arith.addf %235, %238 : vector<64x256xf32>
    %c224_116 = arith.constant 224 : index
    %c0_117 = arith.constant 0 : index
    %240 = vector.load %arg10[%c224_116, %c0_117] : memref<288x256xf32, #tpu.memory_space<vmem>>, vector<64x256xf32>
    %241 = vector.broadcast %89 : vector<1x256xf32> to vector<64x256xf32>
    %242 = arith.mulf %240, %241 : vector<64x256xf32>
    %243 = arith.addf %239, %242 : vector<64x256xf32>
    %c224_118 = arith.constant 224 : index
    %c0_119 = arith.constant 0 : index
    %244 = vector.load %arg12[%c224_118, %c0_119] : memref<288x256xf32, #tpu.memory_space<vmem>>, vector<64x256xf32>
    %245 = vector.broadcast %90 : vector<1x256xf32> to vector<64x256xf32>
    %246 = arith.mulf %244, %245 : vector<64x256xf32>
    %247 = arith.addf %243, %246 : vector<64x256xf32>
    %248 = vector.broadcast %81 : vector<1x256xf32> to vector<64x256xf32>
    %249 = arith.addf %247, %248 : vector<64x256xf32>
    %c192_120 = arith.constant 192 : index
    %c0_121 = arith.constant 0 : index
    %250 = vector.load %arg13[%c192_120, %c0_121] : memref<256x256xf32, #tpu.memory_space<vmem>>, vector<64x256xf32>
    tpu.vector_store %arg13[%c192_120, %c0_121], %249 {strides = array<i32>} : memref<256x256xf32, #tpu.memory_space<vmem>>, vector<64x256xf32>,
    %c0_122 = arith.constant 0 : index
    %c0_123 = arith.constant 0 : index
    %251 = vector.load %arg13[%c0_122, %c0_123] : memref<256x256xf32, #tpu.memory_space<vmem>>, vector<256x256xf32>
    %c0_124 = arith.constant 0 : index
    %c0_125 = arith.constant 0 : index
    %252 = vector.load %arg3[%c0_124, %c0_125] : memref<256x256xf32, #tpu.memory_space<vmem>>, vector<256x256xf32>
    %cst_126 = arith.constant dense<0.000000e+00> : vector<256x256xf32>
    %253 = tpu.matmul %251, %252, %cst_126 {dimension_numbers = #tpu.dot_dimension_numbers<[1], [0], [0], [1], [0, 0, 1, 1], [], []>} : vector<256x256xf32>, vector<256x256xf32>, vector<256x256xf32> -> vector<256x256xf32>
    %c13 = arith.constant 13 : index
    %c0_127 = arith.constant 0 : index
    %254 = vector.load %arg7[%c13, %c0_127] : memref<29x256xf32, #tpu.memory_space<vmem>>, vector<1x256xf32>
    %255 = vector.broadcast %254 : vector<1x256xf32> to vector<256x256xf32>
    %256 = arith.addf %253, %255 : vector<256x256xf32>
    %c0_128 = arith.constant 0 : index
    %c0_129 = arith.constant 0 : index
    %257 = vector.load %arg14[%c0_128, %c0_129] : memref<256x256xf32, #tpu.memory_space<vmem>>, vector<256x256xf32>
    tpu.vector_store %arg14[%c0_128, %c0_129], %256 {strides = array<i32>} : memref<256x256xf32, #tpu.memory_space<vmem>>, vector<256x256xf32>,
    %c0_130 = arith.constant 0 : index
    %c0_131 = arith.constant 0 : index
    %258 = vector.load %arg14[%c0_130, %c0_131] : memref<256x256xf32, #tpu.memory_space<vmem>>, vector<256x256xf32>
    %cst_132 = arith.constant dense<0.000000e+00> : vector<256xf32>
    %259 = vector.multi_reduction <add>, %258, %cst_132 [0] : vector<256x256xf32> to vector<256xf32>
    %260 = vector.shape_cast %259 : vector<256xf32> to vector<1x256xf32>
    %261 = arith.mulf %258, %258 : vector<256x256xf32>
    %cst_133 = arith.constant dense<0.000000e+00> : vector<256xf32>
    %262 = vector.multi_reduction <add>, %261, %cst_133 [0] : vector<256x256xf32> to vector<256xf32>
    %263 = vector.shape_cast %262 : vector<256xf32> to vector<1x256xf32>
    %264 = tpu.concatenate %260, %263 in 0 : vector<1x256xf32>, vector<1x256xf32> -> vector<2x256xf32>
    %c0_134 = arith.constant 0 : index
    %c0_135 = arith.constant 0 : index
    %265 = vector.load %arg5[%c0_134, %c0_135] : memref<256x256xf32, #tpu.memory_space<vmem>>, vector<256x256xf32>
    %cst_136 = arith.constant dense<0.000000e+00> : vector<2x256xf32>
    %266 = tpu.matmul %264, %265, %cst_136 {dimension_numbers = #tpu.dot_dimension_numbers<[1], [0], [0], [1], [0, 0, 1, 1], [], []>} : vector<2x256xf32>, vector<256x256xf32>, vector<2x256xf32> -> vector<2x256xf32>
    %267 = vector.extract_strided_slice %266 {offsets = [0, 0], sizes = [1, 256], strides = [1, 1]} : vector<2x256xf32> to vector<1x256xf32>
    %268 = vector.extract_strided_slice %266 {offsets = [1, 0], sizes = [1, 256], strides = [1, 1]} : vector<2x256xf32> to vector<1x256xf32>
    %269 = arith.mulf %267, %267 : vector<1x256xf32>
    %270 = arith.subf %268, %269 : vector<1x256xf32>
    %cst_137 = arith.constant 0.000000e+00 : f32
    %271 = vector.broadcast %cst_137 : f32 to vector<1x256xf32>
    %272 = arith.maximumf %270, %271 : vector<1x256xf32>
    %cst_138 = arith.constant 9.99999974E-6 : f32
    %273 = vector.broadcast %cst_138 : f32 to vector<1x256xf32>
    %274 = arith.addf %272, %273 : vector<1x256xf32>
    %275 = math.rsqrt %274 : vector<1x256xf32>
    %c0_139 = arith.constant 0 : index
    %c0_140 = arith.constant 0 : index
    %276 = vector.load %arg14[%c0_139, %c0_140] : memref<256x256xf32, #tpu.memory_space<vmem>>, vector<256x128xf32>
    %277 = vector.extract_strided_slice %267 {offsets = [0, 0], sizes = [1, 128], strides = [1, 1]} : vector<1x256xf32> to vector<1x128xf32>
    %278 = vector.broadcast %277 : vector<1x128xf32> to vector<256x128xf32>
    %279 = arith.subf %276, %278 : vector<256x128xf32>
    %280 = vector.extract_strided_slice %275 {offsets = [0, 0], sizes = [1, 128], strides = [1, 1]} : vector<1x256xf32> to vector<1x128xf32>
    %281 = vector.broadcast %280 : vector<1x128xf32> to vector<256x128xf32>
    %282 = arith.mulf %279, %281 : vector<256x128xf32>
    %c14 = arith.constant 14 : index
    %c0_141 = arith.constant 0 : index
    %283 = vector.load %arg7[%c14, %c0_141] : memref<29x256xf32, #tpu.memory_space<vmem>>, vector<1x128xf32>
    %284 = vector.broadcast %283 : vector<1x128xf32> to vector<256x128xf32>
    %285 = arith.mulf %282, %284 : vector<256x128xf32>
    %c15 = arith.constant 15 : index
    %c0_142 = arith.constant 0 : index
    %286 = vector.load %arg7[%c15, %c0_142] : memref<29x256xf32, #tpu.memory_space<vmem>>, vector<1x128xf32>
    %287 = vector.broadcast %286 : vector<1x128xf32> to vector<256x128xf32>
    %288 = arith.addf %285, %287 : vector<256x128xf32>
    %cst_143 = arith.constant 0.000000e+00 : f32
    %289 = vector.broadcast %cst_143 : f32 to vector<256x128xf32>
    %290 = arith.maximumf %288, %289 : vector<256x128xf32>
    %c0_144 = arith.constant 0 : index
    %c0_145 = arith.constant 0 : index
    %291 = vector.load %arg9[%c0_144, %c0_145] : memref<256x256xf32, #tpu.memory_space<vmem>>, vector<256x128xf32>
    %292 = arith.negf %290 : vector<256x128xf32>
    %293 = math.exp %292 : vector<256x128xf32>
    %cst_146 = arith.constant 1.000000e+00 : f32
    %294 = vector.broadcast %cst_146 : f32 to vector<256x128xf32>
    %295 = arith.addf %294, %293 : vector<256x128xf32>
    %296 = arith.divf %294, %295 : vector<256x128xf32>
    %297 = arith.mulf %291, %296 : vector<256x128xf32>
    %c0_147 = arith.constant 0 : index
    %c128_148 = arith.constant 128 : index
    %298 = vector.load %arg14[%c0_147, %c128_148] : memref<256x256xf32, #tpu.memory_space<vmem>>, vector<256x128xf32>
    %299 = vector.extract_strided_slice %267 {offsets = [0, 128], sizes = [1, 128], strides = [1, 1]} : vector<1x256xf32> to vector<1x128xf32>
    %300 = vector.broadcast %299 : vector<1x128xf32> to vector<256x128xf32>
    %301 = arith.subf %298, %300 : vector<256x128xf32>
    %302 = vector.extract_strided_slice %275 {offsets = [0, 128], sizes = [1, 128], strides = [1, 1]} : vector<1x256xf32> to vector<1x128xf32>
    %303 = vector.broadcast %302 : vector<1x128xf32> to vector<256x128xf32>
    %304 = arith.mulf %301, %303 : vector<256x128xf32>
    %c14_149 = arith.constant 14 : index
    %c128_150 = arith.constant 128 : index
    %305 = vector.load %arg7[%c14_149, %c128_150] : memref<29x256xf32, #tpu.memory_space<vmem>>, vector<1x128xf32>
    %306 = vector.broadcast %305 : vector<1x128xf32> to vector<256x128xf32>
    %307 = arith.mulf %304, %306 : vector<256x128xf32>
    %c15_151 = arith.constant 15 : index
    %c128_152 = arith.constant 128 : index
    %308 = vector.load %arg7[%c15_151, %c128_152] : memref<29x256xf32, #tpu.memory_space<vmem>>, vector<1x128xf32>
    %309 = vector.broadcast %308 : vector<1x128xf32> to vector<256x128xf32>
    %310 = arith.addf %307, %309 : vector<256x128xf32>
    %cst_153 = arith.constant 0.000000e+00 : f32
    %311 = vector.broadcast %cst_153 : f32 to vector<256x128xf32>
    %312 = arith.maximumf %310, %311 : vector<256x128xf32>
    %c0_154 = arith.constant 0 : index
    %c128_155 = arith.constant 128 : index
    %313 = vector.load %arg9[%c0_154, %c128_155] : memref<256x256xf32, #tpu.memory_space<vmem>>, vector<256x128xf32>
    %314 = arith.negf %312 : vector<256x128xf32>
    %315 = math.exp %314 : vector<256x128xf32>
    %cst_156 = arith.constant 1.000000e+00 : f32
    %316 = vector.broadcast %cst_156 : f32 to vector<256x128xf32>
    %317 = arith.addf %316, %315 : vector<256x128xf32>
    %318 = arith.divf %316, %317 : vector<256x128xf32>
    %319 = arith.mulf %313, %318 : vector<256x128xf32>
    %320 = arith.addf %297, %319 : vector<256x128xf32>
    %c16_157 = arith.constant 16 : index
    %c0_158 = arith.constant 0 : index
    %321 = vector.load %arg10[%c16_157, %c0_158] : memref<288x256xf32, #tpu.memory_space<vmem>>, vector<256x128xf32>
    tpu.vector_store %arg10[%c16_157, %c0_158], %320 {strides = array<i32>} : memref<288x256xf32, #tpu.memory_space<vmem>>, vector<256x128xf32>,
    %c16_159 = arith.constant 16 : index
    %c0_160 = arith.constant 0 : index
    %322 = vector.load %arg10[%c16_159, %c0_160] : memref<288x256xf32, #tpu.memory_space<vmem>>, vector<256x128xf32>
    %c1_i32_161 = arith.constant 1 : i32
    %323 = tpu.dynamic_rotate %322 by %c1_i32_161 dim 0 : vector<256x128xf32>, i32 -> vector<256x128xf32>
    %cst_162 = arith.constant 0.000000e+00 : f32
    %324 = vector.shape_cast %18 : vector<256x1xi1> to vector<256x1xi1>
    %325 = vector.broadcast %324 : vector<256x1xi1> to vector<256x128xi1>
    %326 = vector.broadcast %cst_162 : f32 to vector<256x128xf32>
    %327 = arith.select %325, %323, %326 : vector<256x128xi1>, vector<256x128xf32>
    %c16_163 = arith.constant 16 : index
    %c0_164 = arith.constant 0 : index
    %328 = vector.load %arg11[%c16_163, %c0_164] : memref<288x256xf32, #tpu.memory_space<vmem>>, vector<256x128xf32>
    tpu.vector_store %arg11[%c16_163, %c0_164], %327 {strides = array<i32>} : memref<288x256xf32, #tpu.memory_space<vmem>>, vector<256x128xf32>,
    %c255_i32_165 = arith.constant 255 : i32
    %329 = tpu.dynamic_rotate %322 by %c255_i32_165 dim 0 : vector<256x128xf32>, i32 -> vector<256x128xf32>
    %cst_166 = arith.constant 0.000000e+00 : f32
    %330 = vector.shape_cast %20 : vector<256x1xi1> to vector<256x1xi1>
    %331 = vector.broadcast %330 : vector<256x1xi1> to vector<256x128xi1>
    %332 = vector.broadcast %cst_166 : f32 to vector<256x128xf32>
    %333 = arith.select %331, %329, %332 : vector<256x128xi1>, vector<256x128xf32>
    %c16_167 = arith.constant 16 : index
    %c0_168 = arith.constant 0 : index
    %334 = vector.load %arg12[%c16_167, %c0_168] : memref<288x256xf32, #tpu.memory_space<vmem>>, vector<256x128xf32>
    tpu.vector_store %arg12[%c16_167, %c0_168], %333 {strides = array<i32>} : memref<288x256xf32, #tpu.memory_space<vmem>>, vector<256x128xf32>,
    %c16_169 = arith.constant 16 : index
    %c0_170 = arith.constant 0 : index
    %335 = vector.load %arg7[%c16_169, %c0_170] : memref<29x256xf32, #tpu.memory_space<vmem>>, vector<9x128xf32>
    %c25 = arith.constant 25 : index
    %c0_171 = arith.constant 0 : index
    %336 = vector.load %arg7[%c25, %c0_171] : memref<29x256xf32, #tpu.memory_space<vmem>>, vector<1x128xf32>
    %337 = vector.extract_strided_slice %335 {offsets = [0, 0], sizes = [1, 128], strides = [1, 1]} : vector<9x128xf32> to vector<1x128xf32>
    %338 = vector.extract_strided_slice %335 {offsets = [1, 0], sizes = [1, 128], strides = [1, 1]} : vector<9x128xf32> to vector<1x128xf32>
    %339 = vector.extract_strided_slice %335 {offsets = [2, 0], sizes = [1, 128], strides = [1, 1]} : vector<9x128xf32> to vector<1x128xf32>
    %340 = vector.extract_strided_slice %335 {offsets = [3, 0], sizes = [1, 128], strides = [1, 1]} : vector<9x128xf32> to vector<1x128xf32>
    %341 = vector.extract_strided_slice %335 {offsets = [4, 0], sizes = [1, 128], strides = [1, 1]} : vector<9x128xf32> to vector<1x128xf32>
    %342 = vector.extract_strided_slice %335 {offsets = [5, 0], sizes = [1, 128], strides = [1, 1]} : vector<9x128xf32> to vector<1x128xf32>
    %343 = vector.extract_strided_slice %335 {offsets = [6, 0], sizes = [1, 128], strides = [1, 1]} : vector<9x128xf32> to vector<1x128xf32>
    %344 = vector.extract_strided_slice %335 {offsets = [7, 0], sizes = [1, 128], strides = [1, 1]} : vector<9x128xf32> to vector<1x128xf32>
    %345 = vector.extract_strided_slice %335 {offsets = [8, 0], sizes = [1, 128], strides = [1, 1]} : vector<9x128xf32> to vector<1x128xf32>
    %cst_172 = arith.constant 0.000000e+00 : f32
    %346 = vector.broadcast %cst_172 : f32 to vector<128x128xf32>
    %c0_173 = arith.constant 0 : index
    %c0_174 = arith.constant 0 : index
    %347 = vector.load %arg11[%c0_173, %c0_174] : memref<288x256xf32, #tpu.memory_space<vmem>>, vector<128x128xf32>
    %348 = vector.broadcast %337 : vector<1x128xf32> to vector<128x128xf32>
    %349 = arith.mulf %347, %348 : vector<128x128xf32>
    %350 = arith.addf %346, %349 : vector<128x128xf32>
    %c0_175 = arith.constant 0 : index
    %c0_176 = arith.constant 0 : index
    %351 = vector.load %arg10[%c0_175, %c0_176] : memref<288x256xf32, #tpu.memory_space<vmem>>, vector<128x128xf32>
    %352 = vector.broadcast %338 : vector<1x128xf32> to vector<128x128xf32>
    %353 = arith.mulf %351, %352 : vector<128x128xf32>
    %354 = arith.addf %350, %353 : vector<128x128xf32>
    %c0_177 = arith.constant 0 : index
    %c0_178 = arith.constant 0 : index
    %355 = vector.load %arg12[%c0_177, %c0_178] : memref<288x256xf32, #tpu.memory_space<vmem>>, vector<128x128xf32>
    %356 = vector.broadcast %339 : vector<1x128xf32> to vector<128x128xf32>
    %357 = arith.mulf %355, %356 : vector<128x128xf32>
    %358 = arith.addf %354, %357 : vector<128x128xf32>
    %c16_179 = arith.constant 16 : index
    %c0_180 = arith.constant 0 : index
    %359 = vector.load %arg11[%c16_179, %c0_180] : memref<288x256xf32, #tpu.memory_space<vmem>>, vector<128x128xf32>
    %360 = vector.broadcast %340 : vector<1x128xf32> to vector<128x128xf32>
    %361 = arith.mulf %359, %360 : vector<128x128xf32>
    %362 = arith.addf %358, %361 : vector<128x128xf32>
    %c16_181 = arith.constant 16 : index
    %c0_182 = arith.constant 0 : index
    %363 = vector.load %arg10[%c16_181, %c0_182] : memref<288x256xf32, #tpu.memory_space<vmem>>, vector<128x128xf32>
    %364 = vector.broadcast %341 : vector<1x128xf32> to vector<128x128xf32>
    %365 = arith.mulf %363, %364 : vector<128x128xf32>
    %366 = arith.addf %362, %365 : vector<128x128xf32>
    %c16_183 = arith.constant 16 : index
    %c0_184 = arith.constant 0 : index
    %367 = vector.load %arg12[%c16_183, %c0_184] : memref<288x256xf32, #tpu.memory_space<vmem>>, vector<128x128xf32>
    %368 = vector.broadcast %342 : vector<1x128xf32> to vector<128x128xf32>
    %369 = arith.mulf %367, %368 : vector<128x128xf32>
    %370 = arith.addf %366, %369 : vector<128x128xf32>
    %c32_185 = arith.constant 32 : index
    %c0_186 = arith.constant 0 : index
    %371 = vector.load %arg11[%c32_185, %c0_186] : memref<288x256xf32, #tpu.memory_space<vmem>>, vector<128x128xf32>
    %372 = vector.broadcast %343 : vector<1x128xf32> to vector<128x128xf32>
    %373 = arith.mulf %371, %372 : vector<128x128xf32>
    %374 = arith.addf %370, %373 : vector<128x128xf32>
    %c32_187 = arith.constant 32 : index
    %c0_188 = arith.constant 0 : index
    %375 = vector.load %arg10[%c32_187, %c0_188] : memref<288x256xf32, #tpu.memory_space<vmem>>, vector<128x128xf32>
    %376 = vector.broadcast %344 : vector<1x128xf32> to vector<128x128xf32>
    %377 = arith.mulf %375, %376 : vector<128x128xf32>
    %378 = arith.addf %374, %377 : vector<128x128xf32>
    %c32_189 = arith.constant 32 : index
    %c0_190 = arith.constant 0 : index
    %379 = vector.load %arg12[%c32_189, %c0_190] : memref<288x256xf32, #tpu.memory_space<vmem>>, vector<128x128xf32>
    %380 = vector.broadcast %345 : vector<1x128xf32> to vector<128x128xf32>
    %381 = arith.mulf %379, %380 : vector<128x128xf32>
    %382 = arith.addf %378, %381 : vector<128x128xf32>
    %383 = vector.broadcast %336 : vector<1x128xf32> to vector<128x128xf32>
    %384 = arith.addf %382, %383 : vector<128x128xf32>
    %c0_191 = arith.constant 0 : index
    %c0_192 = arith.constant 0 : index
    %385 = vector.load %arg13[%c0_191, %c0_192] : memref<256x256xf32, #tpu.memory_space<vmem>>, vector<128x128xf32>
    tpu.vector_store %arg13[%c0_191, %c0_192], %384 {strides = array<i32>} : memref<256x256xf32, #tpu.memory_space<vmem>>, vector<128x128xf32>,
    %cst_193 = arith.constant 0.000000e+00 : f32
    %386 = vector.broadcast %cst_193 : f32 to vector<128x128xf32>
    %c128_194 = arith.constant 128 : index
    %c0_195 = arith.constant 0 : index
    %387 = vector.load %arg11[%c128_194, %c0_195] : memref<288x256xf32, #tpu.memory_space<vmem>>, vector<128x128xf32>
    %388 = vector.broadcast %337 : vector<1x128xf32> to vector<128x128xf32>
    %389 = arith.mulf %387, %388 : vector<128x128xf32>
    %390 = arith.addf %386, %389 : vector<128x128xf32>
    %c128_196 = arith.constant 128 : index
    %c0_197 = arith.constant 0 : index
    %391 = vector.load %arg10[%c128_196, %c0_197] : memref<288x256xf32, #tpu.memory_space<vmem>>, vector<128x128xf32>
    %392 = vector.broadcast %338 : vector<1x128xf32> to vector<128x128xf32>
    %393 = arith.mulf %391, %392 : vector<128x128xf32>
    %394 = arith.addf %390, %393 : vector<128x128xf32>
    %c128_198 = arith.constant 128 : index
    %c0_199 = arith.constant 0 : index
    %395 = vector.load %arg12[%c128_198, %c0_199] : memref<288x256xf32, #tpu.memory_space<vmem>>, vector<128x128xf32>
    %396 = vector.broadcast %339 : vector<1x128xf32> to vector<128x128xf32>
    %397 = arith.mulf %395, %396 : vector<128x128xf32>
    %398 = arith.addf %394, %397 : vector<128x128xf32>
    %c144_200 = arith.constant 144 : index
    %c0_201 = arith.constant 0 : index
    %399 = vector.load %arg11[%c144_200, %c0_201] : memref<288x256xf32, #tpu.memory_space<vmem>>, vector<128x128xf32>
    %400 = vector.broadcast %340 : vector<1x128xf32> to vector<128x128xf32>
    %401 = arith.mulf %399, %400 : vector<128x128xf32>
    %402 = arith.addf %398, %401 : vector<128x128xf32>
    %c144_202 = arith.constant 144 : index
    %c0_203 = arith.constant 0 : index
    %403 = vector.load %arg10[%c144_202, %c0_203] : memref<288x256xf32, #tpu.memory_space<vmem>>, vector<128x128xf32>
    %404 = vector.broadcast %341 : vector<1x128xf32> to vector<128x128xf32>
    %405 = arith.mulf %403, %404 : vector<128x128xf32>
    %406 = arith.addf %402, %405 : vector<128x128xf32>
    %c144_204 = arith.constant 144 : index
    %c0_205 = arith.constant 0 : index
    %407 = vector.load %arg12[%c144_204, %c0_205] : memref<288x256xf32, #tpu.memory_space<vmem>>, vector<128x128xf32>
    %408 = vector.broadcast %342 : vector<1x128xf32> to vector<128x128xf32>
    %409 = arith.mulf %407, %408 : vector<128x128xf32>
    %410 = arith.addf %406, %409 : vector<128x128xf32>
    %c160_206 = arith.constant 160 : index
    %c0_207 = arith.constant 0 : index
    %411 = vector.load %arg11[%c160_206, %c0_207] : memref<288x256xf32, #tpu.memory_space<vmem>>, vector<128x128xf32>
    %412 = vector.broadcast %343 : vector<1x128xf32> to vector<128x128xf32>
    %413 = arith.mulf %411, %412 : vector<128x128xf32>
    %414 = arith.addf %410, %413 : vector<128x128xf32>
    %c160_208 = arith.constant 160 : index
    %c0_209 = arith.constant 0 : index
    %415 = vector.load %arg10[%c160_208, %c0_209] : memref<288x256xf32, #tpu.memory_space<vmem>>, vector<128x128xf32>
    %416 = vector.broadcast %344 : vector<1x128xf32> to vector<128x128xf32>
    %417 = arith.mulf %415, %416 : vector<128x128xf32>
    %418 = arith.addf %414, %417 : vector<128x128xf32>
    %c160_210 = arith.constant 160 : index
    %c0_211 = arith.constant 0 : index
    %419 = vector.load %arg12[%c160_210, %c0_211] : memref<288x256xf32, #tpu.memory_space<vmem>>, vector<128x128xf32>
    %420 = vector.broadcast %345 : vector<1x128xf32> to vector<128x128xf32>
    %421 = arith.mulf %419, %420 : vector<128x128xf32>
    %422 = arith.addf %418, %421 : vector<128x128xf32>
    %423 = vector.broadcast %336 : vector<1x128xf32> to vector<128x128xf32>
    %424 = arith.addf %422, %423 : vector<128x128xf32>
    %c128_212 = arith.constant 128 : index
    %c0_213 = arith.constant 0 : index
    %425 = vector.load %arg13[%c128_212, %c0_213] : memref<256x256xf32, #tpu.memory_space<vmem>>, vector<128x128xf32>
    tpu.vector_store %arg13[%c128_212, %c0_213], %424 {strides = array<i32>} : memref<256x256xf32, #tpu.memory_space<vmem>>, vector<128x128xf32>,
    %c0_214 = arith.constant 0 : index
    %c0_215 = arith.constant 0 : index
    %426 = vector.load %arg13[%c0_214, %c0_215] : memref<256x256xf32, #tpu.memory_space<vmem>>, vector<256x128xf32>
    %c0_216 = arith.constant 0 : index
    %c0_217 = arith.constant 0 : index
    %427 = vector.load %arg4[%c0_216, %c0_217] : memref<128x256xf32, #tpu.memory_space<vmem>>, vector<128x256xf32>
    %cst_218 = arith.constant dense<0.000000e+00> : vector<256x256xf32>
    %428 = tpu.matmul %426, %427, %cst_218 {dimension_numbers = #tpu.dot_dimension_numbers<[1], [0], [0], [1], [0, 0, 1, 1], [], []>} : vector<256x128xf32>, vector<128x256xf32>, vector<256x256xf32> -> vector<256x256xf32>
    %c26 = arith.constant 26 : index
    %c0_219 = arith.constant 0 : index
    %429 = vector.load %arg7[%c26, %c0_219] : memref<29x256xf32, #tpu.memory_space<vmem>>, vector<1x256xf32>
    %430 = vector.broadcast %429 : vector<1x256xf32> to vector<256x256xf32>
    %431 = arith.addf %428, %430 : vector<256x256xf32>
    %c0_220 = arith.constant 0 : index
    %c0_221 = arith.constant 0 : index
    %c0_222 = arith.constant 0 : index
    %432 = vector.load %arg8[%c0_220, %c0_221, %c0_222] : memref<1x256x256xf32, #tpu.memory_space<vmem>>, vector<1x256x256xf32>
    %433 = vector.shape_cast %432 : vector<1x256x256xf32> to vector<256x256xf32>
    %434 = vector.shape_cast %431 : vector<256x256xf32> to vector<1x256x256xf32>
    tpu.vector_store %arg8[%c0_220, %c0_221, %c0_222], %434 {strides = array<i32>} : memref<1x256x256xf32, #tpu.memory_space<vmem>>, vector<1x256x256xf32>,
    %c0_223 = arith.constant 0 : index
    %c0_224 = arith.constant 0 : index
    %c0_225 = arith.constant 0 : index
    %435 = vector.load %arg8[%c0_223, %c0_224, %c0_225] : memref<1x256x256xf32, #tpu.memory_space<vmem>>, vector<1x256x256xf32>
    %436 = vector.shape_cast %435 : vector<1x256x256xf32> to vector<256x256xf32>
    %cst_226 = arith.constant dense<0.000000e+00> : vector<256xf32>
    %437 = vector.multi_reduction <add>, %436, %cst_226 [0] : vector<256x256xf32> to vector<256xf32>
    %438 = vector.shape_cast %437 : vector<256xf32> to vector<1x256xf32>
    %439 = arith.mulf %436, %436 : vector<256x256xf32>
    %cst_227 = arith.constant dense<0.000000e+00> : vector<256xf32>
    %440 = vector.multi_reduction <add>, %439, %cst_227 [0] : vector<256x256xf32> to vector<256xf32>
    %441 = vector.shape_cast %440 : vector<256xf32> to vector<1x256xf32>
    %442 = tpu.concatenate %438, %441 in 0 : vector<1x256xf32>, vector<1x256xf32> -> vector<2x256xf32>
    %c0_228 = arith.constant 0 : index
    %c0_229 = arith.constant 0 : index
    %443 = vector.load %arg6[%c0_228, %c0_229] : memref<256x256xf32, #tpu.memory_space<vmem>>, vector<256x256xf32>
    %cst_230 = arith.constant dense<0.000000e+00> : vector<2x256xf32>
    %444 = tpu.matmul %442, %443, %cst_230 {dimension_numbers = #tpu.dot_dimension_numbers<[1], [0], [0], [1], [0, 0, 1, 1], [], []>} : vector<2x256xf32>, vector<256x256xf32>, vector<2x256xf32> -> vector<2x256xf32>
    %445 = vector.extract_strided_slice %444 {offsets = [0, 0], sizes = [1, 256], strides = [1, 1]} : vector<2x256xf32> to vector<1x256xf32>
    %446 = vector.extract_strided_slice %444 {offsets = [1, 0], sizes = [1, 256], strides = [1, 1]} : vector<2x256xf32> to vector<1x256xf32>
    %447 = arith.mulf %445, %445 : vector<1x256xf32>
    %448 = arith.subf %446, %447 : vector<1x256xf32>
    %cst_231 = arith.constant 0.000000e+00 : f32
    %449 = vector.broadcast %cst_231 : f32 to vector<1x256xf32>
    %450 = arith.maximumf %448, %449 : vector<1x256xf32>
    %cst_232 = arith.constant 9.99999974E-6 : f32
    %451 = vector.broadcast %cst_232 : f32 to vector<1x256xf32>
    %452 = arith.addf %450, %451 : vector<1x256xf32>
    %453 = math.rsqrt %452 : vector<1x256xf32>
    %c0_233 = arith.constant 0 : index
    %c0_234 = arith.constant 0 : index
    %c0_235 = arith.constant 0 : index
    %454 = vector.load %arg8[%c0_233, %c0_234, %c0_235] : memref<1x256x256xf32, #tpu.memory_space<vmem>>, vector<1x256x256xf32>
    %455 = vector.shape_cast %454 : vector<1x256x256xf32> to vector<256x256xf32>
    %456 = vector.broadcast %445 : vector<1x256xf32> to vector<256x256xf32>
    %457 = arith.subf %455, %456 : vector<256x256xf32>
    %458 = vector.broadcast %453 : vector<1x256xf32> to vector<256x256xf32>
    %459 = arith.mulf %457, %458 : vector<256x256xf32>
    %c27 = arith.constant 27 : index
    %c0_236 = arith.constant 0 : index
    %460 = vector.load %arg7[%c27, %c0_236] : memref<29x256xf32, #tpu.memory_space<vmem>>, vector<1x256xf32>
    %461 = vector.broadcast %460 : vector<1x256xf32> to vector<256x256xf32>
    %462 = arith.mulf %459, %461 : vector<256x256xf32>
    %c28 = arith.constant 28 : index
    %c0_237 = arith.constant 0 : index
    %463 = vector.load %arg7[%c28, %c0_237] : memref<29x256xf32, #tpu.memory_space<vmem>>, vector<1x256xf32>
    %464 = vector.broadcast %463 : vector<1x256xf32> to vector<256x256xf32>
    %465 = arith.addf %462, %464 : vector<256x256xf32>
    %cst_238 = arith.constant 0.000000e+00 : f32
    %466 = vector.broadcast %cst_238 : f32 to vector<256x256xf32>
    %467 = arith.maximumf %465, %466 : vector<256x256xf32>
    %c0_239 = arith.constant 0 : index
    %c0_240 = arith.constant 0 : index
    %c0_241 = arith.constant 0 : index
    %468 = vector.load %arg8[%c0_239, %c0_240, %c0_241] : memref<1x256x256xf32, #tpu.memory_space<vmem>>, vector<1x256x256xf32>
    %469 = vector.shape_cast %468 : vector<1x256x256xf32> to vector<256x256xf32>
    %470 = vector.shape_cast %467 : vector<256x256xf32> to vector<1x256x256xf32>
    tpu.vector_store %arg8[%c0_239, %c0_240, %c0_241], %470 {strides = array<i32>} : memref<1x256x256xf32, #tpu.memory_space<vmem>>, vector<1x256x256xf32>,
    return
  }
  func.func @transform_0(%arg0: i32) -> (i32, i32, i32) {
    %c0_i32 = arith.constant 0 : i32
    %c0_i32_0 = arith.constant 0 : i32
    %c0_i32_1 = arith.constant 0 : i32
    return %arg0, %c0_i32, %c0_i32_0 : i32, i32, i32
  }
  func.func @transform_1(%arg0: i32) -> (i32, i32) {
    %c0_i32 = arith.constant 0 : i32
    %c0_i32_0 = arith.constant 0 : i32
    %c0_i32_1 = arith.constant 0 : i32
    return %c0_i32, %c0_i32_0 : i32, i32
  }
  func.func @transform_2(%arg0: i32) -> (i32, i32) {
    %c0_i32 = arith.constant 0 : i32
    %c0_i32_0 = arith.constant 0 : i32
    %c0_i32_1 = arith.constant 0 : i32
    return %c0_i32, %c0_i32_0 : i32, i32
  }
  func.func @transform_3(%arg0: i32) -> (i32, i32) {
    %c0_i32 = arith.constant 0 : i32
    %c0_i32_0 = arith.constant 0 : i32
    %c0_i32_1 = arith.constant 0 : i32
    return %c0_i32, %c0_i32_0 : i32, i32
  }
  func.func @transform_4(%arg0: i32) -> (i32, i32) {
    %c0_i32 = arith.constant 0 : i32
    %c0_i32_0 = arith.constant 0 : i32
    %c0_i32_1 = arith.constant 0 : i32
    return %c0_i32, %c0_i32_0 : i32, i32
  }
  func.func @transform_5(%arg0: i32) -> (i32, i32) {
    %c0_i32 = arith.constant 0 : i32
    %c0_i32_0 = arith.constant 0 : i32
    %c0_i32_1 = arith.constant 0 : i32
    return %c0_i32, %c0_i32_0 : i32, i32
  }
  func.func @transform_6(%arg0: i32) -> (i32, i32) {
    %c0_i32 = arith.constant 0 : i32
    %c0_i32_0 = arith.constant 0 : i32
    %c0_i32_1 = arith.constant 0 : i32
    return %c0_i32, %c0_i32_0 : i32, i32
  }
  func.func @transform_7(%arg0: i32) -> (i32, i32, i32) {
    %c0_i32 = arith.constant 0 : i32
    %c0_i32_0 = arith.constant 0 : i32
    %c0_i32_1 = arith.constant 0 : i32
    return %arg0, %c0_i32, %c0_i32_0 : i32, i32, i32
  }
}

</mosaic_0001>

<llo_original>
// kernel: mfa_forward_nhwc.1
$region0: #{mfa_forward_nhwc.1}
  #allocation0 [shape = 'u32[]', space=smem, size = 0x4, offset = 0x4, fixed_abs, tag = 'smem constant byte address 0x4 - core index']
  #allocation1 [shape = 'u32[144,128]{1,0:T(1,128)}', space=vmem, size = 0x12000, scoped, tag = 'internal scratch']
  #allocation2 [shape = 'f32[256,256]{1,0:T(8,128)}', space=vmem, size = 0x40000, scoped, tag = 'scratch operand']
  #allocation3 [shape = 'f32[288,256]{1,0:T(8,128)}', space=vmem, size = 0x48000, scoped, tag = 'scratch operand']
  #allocation4 [shape = 'f32[288,256]{1,0:T(8,128)}', space=vmem, size = 0x48000, scoped, tag = 'scratch operand']
  #allocation5 [shape = 'f32[288,256]{1,0:T(8,128)}', space=vmem, size = 0x48000, scoped, tag = 'scratch operand']
  #allocation6 [shape = 'f32[256,256]{1,0:T(8,128)}', space=vmem, size = 0x40000, scoped, tag = 'scratch operand']
  #allocation7 [shape = 'f32[256,256]{1,0:T(8,128)}', space=vmem, size = 0x40000, scoped, tag = 'scratch operand']
  %s0 = inlined_call_operand.vmem [shape: f32[2,256,320], index: 0, kind: input, shape index: {}]
  %s1 = inlined_call_operand.vmem [shape: f32[320,256], index: 1, kind: input, shape index: {}]
  %s2 = inlined_call_operand.vmem [shape: f32[256,256], index: 2, kind: input, shape index: {}]
  %s3 = inlined_call_operand.vmem [shape: f32[128,256], index: 3, kind: input, shape index: {}]
  %s4 = inlined_call_operand.vmem [shape: f32[256,256], index: 4, kind: input, shape index: {}]
  %s5 = inlined_call_operand.vmem [shape: f32[256,256], index: 5, kind: input, shape index: {}]
  %s6 = inlined_call_operand.vmem [shape: f32[29,256], index: 6, kind: input, shape index: {}]
  %s7 = inlined_call_operand.hbm [shape: f32[2,256,256], index: 7, kind: output, shape index: {}]
  %s8 = sld [smem:[#allocation0]]
  $region61: #{mfa_forward_nhwc.1} parent=0
    _
  %s10 = ssub.s32 1, %s8
  %s11 = scalar_select 0, %s10, %s8
  $region1: #{mfa_forward_nhwc.1} parent=0
    #allocation8 [shape = 'u8[524288]{0}', space=vmem, size = 0x80000, scoped, tag = 'output window, operand 0']
    #allocation9 [shape = 's32[2]{0}', space=sflag, size = 0x8, scoped, tag = 'scoped memory for mfa_forward_nhwc.1']
    %12 = vsyncpa [#allocation9], 0
    %s13 = scalar_lea.sflag [#allocation9], 1
    %14 = vsyncpa %s13, 0
    loop: start=0, step=1, limit=4
    $region2: #{mfa_forward_nhwc.1} parent=1 // loop_pre_header
      _
    $region3: #{mfa_forward_nhwc.1} parent=1 // loop_header
      %s16 = sphi 0, %s20
      %p17 = scmp.ge.s32.totalorder %s16, 4
      %s26 = sphi 0, %s28
      %s29 = sphi 0, %s26
      %s30 = sphi 0, %s29
      %s46 = sphi 0, %s30
      %s50 = sphi 0, %s50
      %s52 = sphi 0, %s50
      %s53 = sphi 0, %s52
      %s67 = sphi 0, %s53
      %s71 = sphi 0, %s71
      %s73 = sphi 0, %s71
      %s74 = sphi 0, %s73
      %s88 = sphi 0, %s74
      %s92 = sphi 0, %s92
      %s94 = sphi 0, %s92
      %s95 = sphi 0, %s94
      %s109 = sphi 0, %s95
      %s113 = sphi 0, %s113
      %s115 = sphi 0, %s113
      %s116 = sphi 0, %s115
      %s130 = sphi 0, %s116
      %s134 = sphi 0, %s134
      %s136 = sphi 0, %s134
      %s137 = sphi 0, %s136
      %s151 = sphi 0, %s137
      %s155 = sphi 0, %s155
      %s157 = sphi 0, %s155
      %s158 = sphi 0, %s157
      %s172 = sphi 0, %s158
      %s178 = sphi 0, %s180
      %s181 = sphi 0, %s178
      %s182 = sphi 0, %s181
      %s198 = sphi 0, %s182
    $region4: #{mfa_forward_nhwc.1} parent=1 // loop_header_branch
      %19 = sbr.rel (%p17) target = $region8
    $region5: #{mfa_forward_nhwc.1} parent=1 // loop_body
      %s21 = ssub.s32 %s16, 1
      %s22 = ssub.s32 %s16, 2
      %s23 = sadd.s32 %s16, 1
      %s24 = ssub.s32 %s16, %s23
      %p25 = scmp.eq.s32.totalorder %s24, 0
      %s27 = sadd.s32 %s26, 1
      %s28 = scalar_select %p25, %s26, %s27
      %p31 = pneg %p25
      %p32 = scmp.eq.s32.totalorder %s16, 1
      %p33 = por %p31, %p32
      %p34 = scmp.ne.s32.totalorder %s26, %s29
      %p35 = scmp.eq.s32.totalorder %s16, 0
      %p36 = por %p34, %p35
      %p37 = scmp.ne.s32.totalorder %s26, %s29
      %p38 = scmp.eq.s32.totalorder %s21, 1
      %p39 = por %p37, %p38
      %p40 = scmp.ne.s32.totalorder %s29, %s30
      %p41 = scmp.eq.s32.totalorder %s21, 0
      %p42 = por %p40, %p41
      %p43 = scmp.ne.s32.totalorder %s29, %s30
      %p44 = scmp.eq.s32.totalorder %s22, 1
      %p45 = por %p43, %p44
      %p47 = scmp.ne.s32.totalorder %s30, %s46
      %p48 = scmp.eq.s32.totalorder %s22, 0
      %p49 = por %p47, %p48
      %s51 = sadd.s32 %s50, 1
      %p54 = scmp.eq.s32.totalorder %s16, 1
      %p55 = scmp.ne.s32.totalorder %s50, %s52
      %p56 = scmp.eq.s32.totalorder %s16, 0
      %p57 = por %p55, %p56
      %p58 = scmp.ne.s32.totalorder %s50, %s52
      %p59 = scmp.eq.s32.totalorder %s21, 1
      %p60 = por %p58, %p59
      %p61 = scmp.ne.s32.totalorder %s52, %s53
      %p62 = scmp.eq.s32.totalorder %s21, 0
      %p63 = por %p61, %p62
      %p64 = scmp.ne.s32.totalorder %s52, %s53
      %p65 = scmp.eq.s32.totalorder %s22, 1
      %p66 = por %p64, %p65
      %p68 = scmp.ne.s32.totalorder %s53, %s67
      %p69 = scmp.eq.s32.totalorder %s22, 0
      %p70 = por %p68, %p69
      %s72 = sadd.s32 %s71, 1
      %p75 = scmp.eq.s32.totalorder %s16, 1
      %p76 = scmp.ne.s32.totalorder %s71, %s73
      %p77 = scmp.eq.s32.totalorder %s16, 0
      %p78 = por %p76, %p77
      %p79 = scmp.ne.s32.totalorder %s71, %s73
      %p80 = scmp.eq.s32.totalorder %s21, 1
      %p81 = por %p79, %p80
      %p82 = scmp.ne.s32.totalorder %s73, %s74
      %p83 = scmp.eq.s32.totalorder %s21, 0
      %p84 = por %p82, %p83
      %p85 = scmp.ne.s32.totalorder %s73, %s74
      %p86 = scmp.eq.s32.totalorder %s22, 1
      %p87 = por %p85, %p86
      %p89 = scmp.ne.s32.totalorder %s74, %s88
      %p90 = scmp.eq.s32.totalorder %s22, 0
      %p91 = por %p89, %p90
      %s93 = sadd.s32 %s92, 1
      %p96 = scmp.eq.s32.totalorder %s16, 1
      %p97 = scmp.ne.s32.totalorder %s92, %s94
      %p98 = scmp.eq.s32.totalorder %s16, 0
      %p99 = por %p97, %p98
      %p100 = scmp.ne.s32.totalorder %s92, %s94
      %p101 = scmp.eq.s32.totalorder %s21, 1
      %p102 = por %p100, %p101
      %p103 = scmp.ne.s32.totalorder %s94, %s95
      %p104 = scmp.eq.s32.totalorder %s21, 0
      %p105 = por %p103, %p104
      %p106 = scmp.ne.s32.totalorder %s94, %s95
      %p107 = scmp.eq.s32.totalorder %s22, 1
      %p108 = por %p106, %p107
      %p110 = scmp.ne.s32.totalorder %s95, %s109
      %p111 = scmp.eq.s32.totalorder %s22, 0
      %p112 = por %p110, %p111
      %s114 = sadd.s32 %s113, 1
      %p117 = scmp.eq.s32.totalorder %s16, 1
      %p118 = scmp.ne.s32.totalorder %s113, %s115
      %p119 = scmp.eq.s32.totalorder %s16, 0
      %p120 = por %p118, %p119
      %p121 = scmp.ne.s32.totalorder %s113, %s115
      %p122 = scmp.eq.s32.totalorder %s21, 1
      %p123 = por %p121, %p122
      %p124 = scmp.ne.s32.totalorder %s115, %s116
      %p125 = scmp.eq.s32.totalorder %s21, 0
      %p126 = por %p124, %p125
      %p127 = scmp.ne.s32.totalorder %s115, %s116
      %p128 = scmp.eq.s32.totalorder %s22, 1
      %p129 = por %p127, %p128
      %p131 = scmp.ne.s32.totalorder %s116, %s130
      %p132 = scmp.eq.s32.totalorder %s22, 0
      %p133 = por %p131, %p132
      %s135 = sadd.s32 %s134, 1
      %p138 = scmp.eq.s32.totalorder %s16, 1
      %p139 = scmp.ne.s32.totalorder %s134, %s136
      %p140 = scmp.eq.s32.totalorder %s16, 0
      %p141 = por %p139, %p140
      %p142 = scmp.ne.s32.totalorder %s134, %s136
      %p143 = scmp.eq.s32.totalorder %s21, 1
      %p144 = por %p142, %p143
      %p145 = scmp.ne.s32.totalorder %s136, %s137
      %p146 = scmp.eq.s32.totalorder %s21, 0
      %p147 = por %p145, %p146
      %p148 = scmp.ne.s32.totalorder %s136, %s137
      %p149 = scmp.eq.s32.totalorder %s22, 1
      %p150 = por %p148, %p149
      %p152 = scmp.ne.s32.totalorder %s137, %s151
      %p153 = scmp.eq.s32.totalorder %s22, 0
      %p154 = por %p152, %p153
      %s156 = sadd.s32 %s155, 1
      %p159 = scmp.eq.s32.totalorder %s16, 1
      %p160 = scmp.ne.s32.totalorder %s155, %s157
      %p161 = scmp.eq.s32.totalorder %s16, 0
      %p162 = por %p160, %p161
      %p163 = scmp.ne.s32.totalorder %s155, %s157
      %p164 = scmp.eq.s32.totalorder %s21, 1
      %p165 = por %p163, %p164
      %p166 = scmp.ne.s32.totalorder %s157, %s158
      %p167 = scmp.eq.s32.totalorder %s21, 0
      %p168 = por %p166, %p167
      %p169 = scmp.ne.s32.totalorder %s157, %s158
      %p170 = scmp.eq.s32.totalorder %s22, 1
      %p171 = por %p169, %p170
      %p173 = scmp.ne.s32.totalorder %s158, %s172
      %p174 = scmp.eq.s32.totalorder %s22, 0
      %p175 = por %p173, %p174
      %s176 = ssub.s32 %s16, %s23
      %p177 = scmp.eq.s32.totalorder %s176, 0
      %s179 = sadd.s32 %s178, 1
      %s180 = scalar_select %p177, %s178, %s179
      %p183 = pneg %p177
      %p184 = scmp.eq.s32.totalorder %s16, 1
      %p185 = por %p183, %p184
      %p186 = scmp.ne.s32.totalorder %s178, %s181
      %p187 = scmp.eq.s32.totalorder %s16, 0
      %p188 = por %p186, %p187
      %p189 = scmp.ne.s32.totalorder %s178, %s181
      %p190 = scmp.eq.s32.totalorder %s21, 1
      %p191 = por %p189, %p190
      %p192 = scmp.ne.s32.totalorder %s181, %s182
      %p193 = scmp.eq.s32.totalorder %s21, 0
      %p194 = por %p192, %p193
      %p195 = scmp.ne.s32.totalorder %s181, %s182
      %p196 = scmp.eq.s32.totalorder %s22, 1
      %p197 = por %p195, %p196
      %p199 = scmp.ne.s32.totalorder %s182, %s198
      %p200 = scmp.eq.s32.totalorder %s22, 0
      %p201 = por %p199, %p200
      %p202 = scmp.le.s32.totalorder 1, %s16
      %p203 = scmp.lt.s32.totalorder %s16, 3
      %p204 = pnand %p202, %p203
      %p205 = pneg %p204
      // Predicated region
      $region9: #{mfa_forward_nhwc.1} parent=5 // pred_check
        _
      $region10: #{mfa_forward_nhwc.1} parent=5 // pred_check_branch
        %207 = sbr.rel (%p204) target = $region12
      $region11: #{mfa_forward_nhwc.1} parent=5 // pred_region
        %s208 = ssub.s32 %s16, 1
        // Predicated region
        $region13: #{mfa_forward_nhwc.1} parent=11 // pred_check
          %p209 = pneg %p63
        $region14: #{mfa_forward_nhwc.1} parent=11 // pred_check_branch
          %211 = sbr.rel (%p209) target = $region16
        $region15: #{mfa_forward_nhwc.1} parent=11 // pred_region
          _
        $region16: #{mfa_forward_nhwc.1} parent=11 // pred_fallthru
          _
        // Predicated region
        $region17: #{mfa_forward_nhwc.1} parent=11 // pred_check
          %p212 = pneg %p84
        $region18: #{mfa_forward_nhwc.1} parent=11 // pred_check_branch
          %214 = sbr.rel (%p212) target = $region20
        $region19: #{mfa_forward_nhwc.1} parent=11 // pred_region
          _
        $region20: #{mfa_forward_nhwc.1} parent=11 // pred_fallthru
          _
        // Predicated region
        $region21: #{mfa_forward_nhwc.1} parent=11 // pred_check
          %p215 = pneg %p105
        $region22: #{mfa_forward_nhwc.1} parent=11 // pred_check_branch
          %217 = sbr.rel (%p215) target = $region24
        $region23: #{mfa_forward_nhwc.1} parent=11 // pred_region
          _
        $region24: #{mfa_forward_nhwc.1} parent=11 // pred_fallthru
          _
        // Predicated region
        $region25: #{mfa_forward_nhwc.1} parent=11 // pred_check
          %p218 = pneg %p126
        $region26: #{mfa_forward_nhwc.1} parent=11 // pred_check_branch
          %220 = sbr.rel (%p218) target = $region28
        $region27: #{mfa_forward_nhwc.1} parent=11 // pred_region
          _
        $region28: #{mfa_forward_nhwc.1} parent=11 // pred_fallthru
          _
        // Predicated region
        $region29: #{mfa_forward_nhwc.1} parent=11 // pred_check
          %p221 = pneg %p147
        $region30: #{mfa_forward_nhwc.1} parent=11 // pred_check_branch
          %223 = sbr.rel (%p221) target = $region32
        $region31: #{mfa_forward_nhwc.1} parent=11 // pred_region
          _
        $region32: #{mfa_forward_nhwc.1} parent=11 // pred_fallthru
          _
        // Predicated region
        $region33: #{mfa_forward_nhwc.1} parent=11 // pred_check
          %p224 = pneg %p168
        $region34: #{mfa_forward_nhwc.1} parent=11 // pred_check_branch
          %226 = sbr.rel (%p224) target = $region36
        $region35: #{mfa_forward_nhwc.1} parent=11 // pred_region
          _
        $region36: #{mfa_forward_nhwc.1} parent=11 // pred_fallthru
          _
      $region12: #{mfa_forward_nhwc.1} parent=5 // pred_fallthru
        _
      %p227 = scmp.lt.s32.totalorder %s16, 2
      // Predicated region
      $region37: #{mfa_forward_nhwc.1} parent=5 // pred_check
        %p228 = pneg %p227
      $region38: #{mfa_forward_nhwc.1} parent=5 // pred_check_branch
        %230 = sbr.rel (%p228) target = $region40
      $region39: #{mfa_forward_nhwc.1} parent=5 // pred_region
        // Predicated region
        $region41: #{mfa_forward_nhwc.1} parent=39 // pred_check
          %p231 = pneg %p36
        $region42: #{mfa_forward_nhwc.1} parent=39 // pred_check_branch
          %233 = sbr.rel (%p231) target = $region44
        $region43: #{mfa_forward_nhwc.1} parent=39 // pred_region
          %p234 = scmp.lt.s32.totalorder %s16, 1
          %s235 = scalar_select %p234, %s16, 1
          %s236 = smul.addr %s235, 96
          %s237 = smul.addr %s236, 8
          %s238 = scalar_lea.vmem %s0, %s237
        $region44: #{mfa_forward_nhwc.1} parent=39 // pred_fallthru
          _
      $region40: #{mfa_forward_nhwc.1} parent=5 // pred_fallthru
        _
      %p239 = scmp.le.s32.totalorder 1, %s16
      %p240 = scmp.lt.s32.totalorder %s16, 3
      %p241 = pnand %p239, %p240
      %p242 = pneg %p241
      // Predicated region
      $region45: #{mfa_forward_nhwc.1} parent=5 // pred_check
        _
      $region46: #{mfa_forward_nhwc.1} parent=5 // pred_check_branch
        %244 = sbr.rel (%p241) target = $region48
      $region47: #{mfa_forward_nhwc.1} parent=5 // pred_region
        %s245 = ssub.s32 %s16, 1
        %p246 = scmp.lt.s32.totalorder %s21, 1
        %s247 = scalar_select %p246, %s21, 1
        %s248 = smul.addr %s247, 96
        %s249 = smul.addr %s248, 8
        %s250 = scalar_lea.vmem %s0, %s249
        %p251 = pneg %p42
        %p252 = pneg %p39
        %p253 = pneg %p63
        %p254 = pneg %p60
        %p255 = pneg %p84
        %p256 = pneg %p81
        %p257 = pneg %p105
        %p258 = pneg %p102
        %p259 = pneg %p126
        %p260 = pneg %p123
        %p261 = pneg %p147
        %p262 = pneg %p144
        %p263 = pneg %p168
        %p264 = pneg %p165
        %p265 = pneg %p194
        %p266 = pneg %p191
        %s267 = sand.u32 %s181, 1
        %s268 = scalar_lea.sflag [#allocation9], %s267
        %s269 = sand.u32 %s181, 1
        %s270 = smul.addr %s269, 512
        %s271 = scalar_lea.vmem [#allocation8], %s270
        %p272 = scmp.lt.s32.totalorder %s21, 1
        %s273 = scalar_select %p272, %s21, 1
        %s274 = smul.addr %s273, 96
        %s275 = smul.addr %s274, 8
        %s276 = scalar_lea.vmem %s0, %s275
        %v277 = vlaneseq
        %v278 = vshrl.u32 %v277, 7
        %v279 = vadd.s32 %v278, 8
        %v280 = vadd.s32 %v278, 16
        %v281 = vadd.s32 %v278, 24
        %v282 = vadd.s32 %v278, 32
        %v283 = vadd.s32 %v278, 40
        %v284 = vadd.s32 %v278, 48
        %v285 = vadd.s32 %v278, 56
        %v286 = vadd.s32 %v278, 64
        %v287 = vadd.s32 %v278, 72
        %v288 = vadd.s32 %v278, 80
        %v289 = vadd.s32 %v278, 88
        %v290 = vadd.s32 %v278, 96
        %v291 = vadd.s32 %v278, 104
        %v292 = vadd.s32 %v278, 112
        %v293 = vadd.s32 %v278, 120
        %v294 = vadd.s32 %v278, 128
        %v295 = vadd.s32 %v278, 136
        %v296 = vadd.s32 %v278, 144
        %v297 = vadd.s32 %v278, 152
        %v298 = vadd.s32 %v278, 160
        %v299 = vadd.s32 %v278, 168
        %v300 = vadd.s32 %v278, 176
        %v301 = vadd.s32 %v278, 184
        %v302 = vadd.s32 %v278, 192
        %v303 = vadd.s32 %v278, 200
        %v304 = vadd.s32 %v278, 208
        %v305 = vadd.s32 %v278, 216
        %v306 = vadd.s32 %v278, 224
        %v307 = vadd.s32 %v278, 232
        %v308 = vadd.s32 %v278, 240
        %v309 = vadd.s32 %v278, 248
        %vm310 = vcmp.lt.s32.totalorder %v278, 0
        %v311 = vsub.s32 0, %v278
        %v312 = vsel %vm310, %v311, %v278
        %v313 = vshrl.u32 %v312, 4
        %v314 = vand.u32 %v312, 15
        %v315 = vsub.s32 0, %v314
        %v316 = vsel %vm310, %v315, %v314
        %vm317 = vcmp.lt.s32.totalorder %v279, 0
        %v318 = vsub.s32 0, %v279
        %v319 = vsel %vm317, %v318, %v279
        %v320 = vshrl.u32 %v319, 4
        %v321 = vand.u32 %v319, 15
        %v322 = vsub.s32 0, %v321
        %v323 = vsel %vm317, %v322, %v321
        %vm324 = vcmp.lt.s32.totalorder %v280, 0
        %v325 = vsub.s32 0, %v280
        %v326 = vsel %vm324, %v325, %v280
        %v327 = vshrl.u32 %v326, 4
        %v328 = vand.u32 %v326, 15
        %v329 = vsub.s32 0, %v328
        %v330 = vsel %vm324, %v329, %v328
        %vm331 = vcmp.lt.s32.totalorder %v281, 0
        %v332 = vsub.s32 0, %v281
        %v333 = vsel %vm331, %v332, %v281
        %v334 = vshrl.u32 %v333, 4
        %v335 = vand.u32 %v333, 15
        %v336 = vsub.s32 0, %v335
        %v337 = vsel %vm331, %v336, %v335
        %vm338 = vcmp.lt.s32.totalorder %v282, 0
        %v339 = vsub.s32 0, %v282
        %v340 = vsel %vm338, %v339, %v282
        %v341 = vshrl.u32 %v340, 4
        %v342 = vand.u32 %v340, 15
        %v343 = vsub.s32 0, %v342
        %v344 = vsel %vm338, %v343, %v342
        %vm345 = vcmp.lt.s32.totalorder %v283, 0
        %v346 = vsub.s32 0, %v283
        %v347 = vsel %vm345, %v346, %v283
        %v348 = vshrl.u32 %v347, 4
        %v349 = vand.u32 %v347, 15
        %v350 = vsub.s32 0, %v349
        %v351 = vsel %vm345, %v350, %v349
        %vm352 = vcmp.lt.s32.totalorder %v284, 0
        %v353 = vsub.s32 0, %v284
        %v354 = vsel %vm352, %v353, %v284
        %v355 = vshrl.u32 %v354, 4
        %v356 = vand.u32 %v354, 15
        %v357 = vsub.s32 0, %v356
        %v358 = vsel %vm352, %v357, %v356
        %vm359 = vcmp.lt.s32.totalorder %v285, 0
        %v360 = vsub.s32 0, %v285
        %v361 = vsel %vm359, %v360, %v285
        %v362 = vshrl.u32 %v361, 4
        %v363 = vand.u32 %v361, 15
        %v364 = vsub.s32 0, %v363
        %v365 = vsel %vm359, %v364, %v363
        %vm366 = vcmp.lt.s32.totalorder %v286, 0
        %v367 = vsub.s32 0, %v286
        %v368 = vsel %vm366, %v367, %v286
        %v369 = vshrl.u32 %v368, 4
        %v370 = vand.u32 %v368, 15
        %v371 = vsub.s32 0, %v370
        %v372 = vsel %vm366, %v371, %v370
        %vm373 = vcmp.lt.s32.totalorder %v287, 0
        %v374 = vsub.s32 0, %v287
        %v375 = vsel %vm373, %v374, %v287
        %v376 = vshrl.u32 %v375, 4
        %v377 = vand.u32 %v375, 15
        %v378 = vsub.s32 0, %v377
        %v379 = vsel %vm373, %v378, %v377
        %vm380 = vcmp.lt.s32.totalorder %v288, 0
        %v381 = vsub.s32 0, %v288
        %v382 = vsel %vm380, %v381, %v288
        %v383 = vshrl.u32 %v382, 4
        %v384 = vand.u32 %v382, 15
        %v385 = vsub.s32 0, %v384
        %v386 = vsel %vm380, %v385, %v384
        %vm387 = vcmp.lt.s32.totalorder %v289, 0
        %v388 = vsub.s32 0, %v289
        %v389 = vsel %vm387, %v388, %v289
        %v390 = vshrl.u32 %v389, 4
        %v391 = vand.u32 %v389, 15
        %v392 = vsub.s32 0, %v391
        %v393 = vsel %vm387, %v392, %v391
        %vm394 = vcmp.lt.s32.totalorder %v290, 0
        %v395 = vsub.s32 0, %v290
        %v396 = vsel %vm394, %v395, %v290
        %v397 = vshrl.u32 %v396, 4
        %v398 = vand.u32 %v396, 15
        %v399 = vsub.s32 0, %v398
        %v400 = vsel %vm394, %v399, %v398
        %vm401 = vcmp.lt.s32.totalorder %v291, 0
        %v402 = vsub.s32 0, %v291
        %v403 = vsel %vm401, %v402, %v291
        %v404 = vshrl.u32 %v403, 4
        %v405 = vand.u32 %v403, 15
        %v406 = vsub.s32 0, %v405
        %v407 = vsel %vm401, %v406, %v405
        %vm408 = vcmp.lt.s32.totalorder %v292, 0
        %v409 = vsub.s32 0, %v292
        %v410 = vsel %vm408, %v409, %v292
        %v411 = vshrl.u32 %v410, 4
        %v412 = vand.u32 %v410, 15
        %v413 = vsub.s32 0, %v412
        %v414 = vsel %vm408, %v413, %v412
        %vm415 = vcmp.lt.s32.totalorder %v293, 0
        %v416 = vsub.s32 0, %v293
        %v417 = vsel %vm415, %v416, %v293
        %v418 = vshrl.u32 %v417, 4
        %v419 = vand.u32 %v417, 15
        %v420 = vsub.s32 0, %v419
        %v421 = vsel %vm415, %v420, %v419
        %vm422 = vcmp.lt.s32.totalorder %v294, 0
        %v423 = vsub.s32 0, %v294
        %v424 = vsel %vm422, %v423, %v294
        %v425 = vshrl.u32 %v424, 4
        %v426 = vand.u32 %v424, 15
        %v427 = vsub.s32 0, %v426
        %v428 = vsel %vm422, %v427, %v426
        %vm429 = vcmp.lt.s32.totalorder %v295, 0
        %v430 = vsub.s32 0, %v295
        %v431 = vsel %vm429, %v430, %v295
        %v432 = vshrl.u32 %v431, 4
        %v433 = vand.u32 %v431, 15
        %v434 = vsub.s32 0, %v433
        %v435 = vsel %vm429, %v434, %v433
        %vm436 = vcmp.lt.s32.totalorder %v296, 0
        %v437 = vsub.s32 0, %v296
        %v438 = vsel %vm436, %v437, %v296
        %v439 = vshrl.u32 %v438, 4
        %v440 = vand.u32 %v438, 15
        %v441 = vsub.s32 0, %v440
        %v442 = vsel %vm436, %v441, %v440
        %vm443 = vcmp.lt.s32.totalorder %v297, 0
        %v444 = vsub.s32 0, %v297
        %v445 = vsel %vm443, %v444, %v297
        %v446 = vshrl.u32 %v445, 4
        %v447 = vand.u32 %v445, 15
        %v448 = vsub.s32 0, %v447
        %v449 = vsel %vm443, %v448, %v447
        %vm450 = vcmp.lt.s32.totalorder %v298, 0
        %v451 = vsub.s32 0, %v298
        %v452 = vsel %vm450, %v451, %v298
        %v453 = vshrl.u32 %v452, 4
        %v454 = vand.u32 %v452, 15
        %v455 = vsub.s32 0, %v454
        %v456 = vsel %vm450, %v455, %v454
        %vm457 = vcmp.lt.s32.totalorder %v299, 0
        %v458 = vsub.s32 0, %v299
        %v459 = vsel %vm457, %v458, %v299
        %v460 = vshrl.u32 %v459, 4
        %v461 = vand.u32 %v459, 15
        %v462 = vsub.s32 0, %v461
        %v463 = vsel %vm457, %v462, %v461
        %vm464 = vcmp.lt.s32.totalorder %v300, 0
        %v465 = vsub.s32 0, %v300
        %v466 = vsel %vm464, %v465, %v300
        %v467 = vshrl.u32 %v466, 4
        %v468 = vand.u32 %v466, 15
        %v469 = vsub.s32 0, %v468
        %v470 = vsel %vm464, %v469, %v468
        %vm471 = vcmp.lt.s32.totalorder %v301, 0
        %v472 = vsub.s32 0, %v301
        %v473 = vsel %vm471, %v472, %v301
        %v474 = vshrl.u32 %v473, 4
        %v475 = vand.u32 %v473, 15
        %v476 = vsub.s32 0, %v475
        %v477 = vsel %vm471, %v476, %v475
        %vm478 = vcmp.lt.s32.totalorder %v302, 0
        %v479 = vsub.s32 0, %v302
        %v480 = vsel %vm478, %v479, %v302
        %v481 = vshrl.u32 %v480, 4
        %v482 = vand.u32 %v480, 15
        %v483 = vsub.s32 0, %v482
        %v484 = vsel %vm478, %v483, %v482
        %vm485 = vcmp.lt.s32.totalorder %v303, 0
        %v486 = vsub.s32 0, %v303
        %v487 = vsel %vm485, %v486, %v303
        %v488 = vshrl.u32 %v487, 4
        %v489 = vand.u32 %v487, 15
        %v490 = vsub.s32 0, %v489
        %v491 = vsel %vm485, %v490, %v489
        %vm492 = vcmp.lt.s32.totalorder %v304, 0
        %v493 = vsub.s32 0, %v304
        %v494 = vsel %vm492, %v493, %v304
        %v495 = vshrl.u32 %v494, 4
        %v496 = vand.u32 %v494, 15
        %v497 = vsub.s32 0, %v496
        %v498 = vsel %vm492, %v497, %v496
        %vm499 = vcmp.lt.s32.totalorder %v305, 0
        %v500 = vsub.s32 0, %v305
        %v501 = vsel %vm499, %v500, %v305
        %v502 = vshrl.u32 %v501, 4
        %v503 = vand.u32 %v501, 15
        %v504 = vsub.s32 0, %v503
        %v505 = vsel %vm499, %v504, %v503
        %vm506 = vcmp.lt.s32.totalorder %v306, 0
        %v507 = vsub.s32 0, %v306
        %v508 = vsel %vm506, %v507, %v306
        %v509 = vshrl.u32 %v508, 4
        %v510 = vand.u32 %v508, 15
        %v511 = vsub.s32 0, %v510
        %v512 = vsel %vm506, %v511, %v510
        %vm513 = vcmp.lt.s32.totalorder %v307, 0
        %v514 = vsub.s32 0, %v307
        %v515 = vsel %vm513, %v514, %v307
        %v516 = vshrl.u32 %v515, 4
        %v517 = vand.u32 %v515, 15
        %v518 = vsub.s32 0, %v517
        %v519 = vsel %vm513, %v518, %v517
        %vm520 = vcmp.lt.s32.totalorder %v308, 0
        %v521 = vsub.s32 0, %v308
        %v522 = vsel %vm520, %v521, %v308
        %v523 = vshrl.u32 %v522, 4
        %v524 = vand.u32 %v522, 15
        %v525 = vsub.s32 0, %v524
        %v526 = vsel %vm520, %v525, %v524
        %vm527 = vcmp.lt.s32.totalorder %v309, 0
        %v528 = vsub.s32 0, %v309
        %v529 = vsel %vm527, %v528, %v309
        %v530 = vshrl.u32 %v529, 4
        %v531 = vand.u32 %v529, 15
        %v532 = vsub.s32 0, %v531
        %v533 = vsel %vm527, %v532, %v531
        %vm534 = vcmp.ne.s32.totalorder %v316, 0
        %vm535 = vcmp.ne.s32.totalorder %v323, 0
        %vm536 = vcmp.ne.s32.totalorder %v330, 0
        %vm537 = vcmp.ne.s32.totalorder %v337, 0
        %vm538 = vcmp.ne.s32.totalorder %v344, 0
        %vm539 = vcmp.ne.s32.totalorder %v351, 0
        %vm540 = vcmp.ne.s32.totalorder %v358, 0
        %vm541 = vcmp.ne.s32.totalorder %v365, 0
        %vm542 = vcmp.ne.s32.totalorder %v372, 0
        %vm543 = vcmp.ne.s32.totalorder %v379, 0
        %vm544 = vcmp.ne.s32.totalorder %v386, 0
        %vm545 = vcmp.ne.s32.totalorder %v393, 0
        %vm546 = vcmp.ne.s32.totalorder %v400, 0
        %vm547 = vcmp.ne.s32.totalorder %v407, 0
        %vm548 = vcmp.ne.s32.totalorder %v414, 0
        %vm549 = vcmp.ne.s32.totalorder %v421, 0
        %vm550 = vcmp.ne.s32.totalorder %v428, 0
        %vm551 = vcmp.ne.s32.totalorder %v435, 0
        %vm552 = vcmp.ne.s32.totalorder %v442, 0
        %vm553 = vcmp.ne.s32.totalorder %v449, 0
        %vm554 = vcmp.ne.s32.totalorder %v456, 0
        %vm555 = vcmp.ne.s32.totalorder %v463, 0
        %vm556 = vcmp.ne.s32.totalorder %v470, 0
        %vm557 = vcmp.ne.s32.totalorder %v477, 0
        %vm558 = vcmp.ne.s32.totalorder %v484, 0
        %vm559 = vcmp.ne.s32.totalorder %v491, 0
        %vm560 = vcmp.ne.s32.totalorder %v498, 0
        %vm561 = vcmp.ne.s32.totalorder %v505, 0
        %vm562 = vcmp.ne.s32.totalorder %v512, 0
        %vm563 = vcmp.ne.s32.totalorder %v519, 0
        %vm564 = vcmp.ne.s32.totalorder %v526, 0
        %vm565 = vcmp.ne.s32.totalorder %v533, 0
        %vm566 = vcmp.lt.s32.totalorder %v316, 0
        %vm567 = vcmp.lt.s32.totalorder %v323, 0
        %vm568 = vcmp.lt.s32.totalorder %v330, 0
        %vm569 = vcmp.lt.s32.totalorder %v337, 0
        %vm570 = vcmp.lt.s32.totalorder %v344, 0
        %vm571 = vcmp.lt.s32.totalorder %v351, 0
        %vm572 = vcmp.lt.s32.totalorder %v358, 0
        %vm573 = vcmp.lt.s32.totalorder %v365, 0
        %vm574 = vcmp.lt.s32.totalorder %v372, 0
        %vm575 = vcmp.lt.s32.totalorder %v379, 0
        %vm576 = vcmp.lt.s32.totalorder %v386, 0
        %vm577 = vcmp.lt.s32.totalorder %v393, 0
        %vm578 = vcmp.lt.s32.totalorder %v400, 0
        %vm579 = vcmp.lt.s32.totalorder %v407, 0
        %vm580 = vcmp.lt.s32.totalorder %v414, 0
        %vm581 = vcmp.lt.s32.totalorder %v421, 0
        %vm582 = vcmp.lt.s32.totalorder %v428, 0
        %vm583 = vcmp.lt.s32.totalorder %v435, 0
        %vm584 = vcmp.lt.s32.totalorder %v442, 0
        %vm585 = vcmp.lt.s32.totalorder %v449, 0
        %vm586 = vcmp.lt.s32.totalorder %v456, 0
        %vm587 = vcmp.lt.s32.totalorder %v463, 0
        %vm588 = vcmp.lt.s32.totalorder %v470, 0
        %vm589 = vcmp.lt.s32.totalorder %v477, 0
        %vm590 = vcmp.lt.s32.totalorder %v484, 0
        %vm591 = vcmp.lt.s32.totalorder %v491, 0
        %vm592 = vcmp.lt.s32.totalorder %v498, 0
        %vm593 = vcmp.lt.s32.totalorder %v505, 0
        %vm594 = vcmp.lt.s32.totalorder %v512, 0
        %vm595 = vcmp.lt.s32.totalorder %v519, 0
        %vm596 = vcmp.lt.s32.totalorder %v526, 0
        %vm597 = vcmp.lt.s32.totalorder %v533, 0
        %vm598 = vmand %vm566, %vm534
        %vm599 = vmand %vm567, %vm535
        %vm600 = vmand %vm568, %vm536
        %vm601 = vmand %vm569, %vm537
        %vm602 = vmand %vm570, %vm538
        %vm603 = vmand %vm571, %vm539
        %vm604 = vmand %vm572, %vm540
        %vm605 = vmand %vm573, %vm541
        %vm606 = vmand %vm574, %vm542
        %vm607 = vmand %vm575, %vm543
        %vm608 = vmand %vm576, %vm544
        %vm609 = vmand %vm577, %vm545
        %vm610 = vmand %vm578, %vm546
        %vm611 = vmand %vm579, %vm547
        %vm612 = vmand %vm580, %vm548
        %vm613 = vmand %vm581, %vm549
        %vm614 = vmand %vm582, %vm550
        %vm615 = vmand %vm583, %vm551
        %vm616 = vmand %vm584, %vm552
        %vm617 = vmand %vm585, %vm553
        %vm618 = vmand %vm586, %vm554
        %vm619 = vmand %vm587, %vm555
        %vm620 = vmand %vm588, %vm556
        %vm621 = vmand %vm589, %vm557
        %vm622 = vmand %vm590, %vm558
        %vm623 = vmand %vm591, %vm559
        %vm624 = vmand %vm592, %vm560
        %vm625 = vmand %vm593, %vm561
        %vm626 = vmand %vm594, %vm562
        %vm627 = vmand %vm595, %vm563
        %vm628 = vmand %vm596, %vm564
        %vm629 = vmand %vm597, %vm565
        %v630 = vadd.s32 %v316, 16
        %v631 = vadd.s32 %v323, 16
        %v632 = vadd.s32 %v330, 16
        %v633 = vadd.s32 %v337, 16
        %v634 = vadd.s32 %v344, 16
        %v635 = vadd.s32 %v351, 16
        %v636 = vadd.s32 %v358, 16
        %v637 = vadd.s32 %v365, 16
        %v638 = vadd.s32 %v372, 16
        %v639 = vadd.s32 %v379, 16
        %v640 = vadd.s32 %v386, 16
        %v641 = vadd.s32 %v393, 16
        %v642 = vadd.s32 %v400, 16
        %v643 = vadd.s32 %v407, 16
        %v644 = vadd.s32 %v414, 16
        %v645 = vadd.s32 %v421, 16
        %v646 = vadd.s32 %v428, 16
        %v647 = vadd.s32 %v435, 16
        %v648 = vadd.s32 %v442, 16
        %v649 = vadd.s32 %v449, 16
        %v650 = vadd.s32 %v456, 16
        %v651 = vadd.s32 %v463, 16
        %v652 = vadd.s32 %v470, 16
        %v653 = vadd.s32 %v477, 16
        %v654 = vadd.s32 %v484, 16
        %v655 = vadd.s32 %v491, 16
        %v656 = vadd.s32 %v498, 16
        %v657 = vadd.s32 %v505, 16
        %v658 = vadd.s32 %v512, 16
        %v659 = vadd.s32 %v519, 16
        %v660 = vadd.s32 %v526, 16
        %v661 = vadd.s32 %v533, 16
        %v662 = vsel %vm598, %v630, %v316
        %v663 = vsel %vm599, %v631, %v323
        %v664 = vsel %vm600, %v632, %v330
        %v665 = vsel %vm601, %v633, %v337
        %v666 = vsel %vm602, %v634, %v344
        %v667 = vsel %vm603, %v635, %v351
        %v668 = vsel %vm604, %v636, %v358
        %v669 = vsel %vm605, %v637, %v365
        %v670 = vsel %vm606, %v638, %v372
        %v671 = vsel %vm607, %v639, %v379
        %v672 = vsel %vm608, %v640, %v386
        %v673 = vsel %vm609, %v641, %v393
        %v674 = vsel %vm610, %v642, %v400
        %v675 = vsel %vm611, %v643, %v407
        %v676 = vsel %vm612, %v644, %v414
        %v677 = vsel %vm613, %v645, %v421
        %v678 = vsel %vm614, %v646, %v428
        %v679 = vsel %vm615, %v647, %v435
        %v680 = vsel %vm616, %v648, %v442
        %v681 = vsel %vm617, %v649, %v449
        %v682 = vsel %vm618, %v650, %v456
        %v683 = vsel %vm619, %v651, %v463
        %v684 = vsel %vm620, %v652, %v470
        %v685 = vsel %vm621, %v653, %v477
        %v686 = vsel %vm622, %v654, %v484
        %v687 = vsel %vm623, %v655, %v491
        %v688 = vsel %vm624, %v656, %v498
        %v689 = vsel %vm625, %v657, %v505
        %v690 = vsel %vm626, %v658, %v512
        %v691 = vsel %vm627, %v659, %v519
        %v692 = vsel %vm628, %v660, %v526
        %v693 = vsel %vm629, %v661, %v533
        %vm694 = vcmp.ge.s32.totalorder %v662, 1
        %vm695 = vcmp.ge.s32.totalorder %v663, 1
        %vm696 = vcmp.ge.s32.totalorder %v664, 1
        %vm697 = vcmp.ge.s32.totalorder %v665, 1
        %vm698 = vcmp.ge.s32.totalorder %v666, 1
        %vm699 = vcmp.ge.s32.totalorder %v667, 1
        %vm700 = vcmp.ge.s32.totalorder %v668, 1
        %vm701 = vcmp.ge.s32.totalorder %v669, 1
        %vm702 = vcmp.ge.s32.totalorder %v670, 1
        %vm703 = vcmp.ge.s32.totalorder %v671, 1
        %vm704 = vcmp.ge.s32.totalorder %v672, 1
        %vm705 = vcmp.ge.s32.totalorder %v673, 1
        %vm706 = vcmp.ge.s32.totalorder %v674, 1
        %vm707 = vcmp.ge.s32.totalorder %v675, 1
        %vm708 = vcmp.ge.s32.totalorder %v676, 1
        %vm709 = vcmp.ge.s32.totalorder %v677, 1
        %vm710 = vcmp.ge.s32.totalorder %v678, 1
        %vm711 = vcmp.ge.s32.totalorder %v679, 1
        %vm712 = vcmp.ge.s32.totalorder %v680, 1
        %vm713 = vcmp.ge.s32.totalorder %v681, 1
        %vm714 = vcmp.ge.s32.totalorder %v682, 1
        %vm715 = vcmp.ge.s32.totalorder %v683, 1
        %vm716 = vcmp.ge.s32.totalorder %v684, 1
        %vm717 = vcmp.ge.s32.totalorder %v685, 1
        %vm718 = vcmp.ge.s32.totalorder %v686, 1
        %vm719 = vcmp.ge.s32.totalorder %v687, 1
        %vm720 = vcmp.ge.s32.totalorder %v688, 1
        %vm721 = vcmp.ge.s32.totalorder %v689, 1
        %vm722 = vcmp.ge.s32.totalorder %v690, 1
        %vm723 = vcmp.ge.s32.totalorder %v691, 1
        %vm724 = vcmp.ge.s32.totalorder %v692, 1
        %vm725 = vcmp.ge.s32.totalorder %v693, 1
        %vm726 = vcmp.le.s32.totalorder %v662, 14
        %vm727 = vcmp.le.s32.totalorder %v663, 14
        %vm728 = vcmp.le.s32.totalorder %v664, 14
        %vm729 = vcmp.le.s32.totalorder %v665, 14
        %vm730 = vcmp.le.s32.totalorder %v666, 14
        %vm731 = vcmp.le.s32.totalorder %v667, 14
        %vm732 = vcmp.le.s32.totalorder %v668, 14
        %vm733 = vcmp.le.s32.totalorder %v669, 14
        %vm734 = vcmp.le.s32.totalorder %v670, 14
        %vm735 = vcmp.le.s32.totalorder %v671, 14
        %vm736 = vcmp.le.s32.totalorder %v672, 14
        %vm737 = vcmp.le.s32.totalorder %v673, 14
        %vm738 = vcmp.le.s32.totalorder %v674, 14
        %vm739 = vcmp.le.s32.totalorder %v675, 14
        %vm740 = vcmp.le.s32.totalorder %v676, 14
        %vm741 = vcmp.le.s32.totalorder %v677, 14
        %vm742 = vcmp.le.s32.totalorder %v678, 14
        %vm743 = vcmp.le.s32.totalorder %v679, 14
        %vm744 = vcmp.le.s32.totalorder %v680, 14
        %vm745 = vcmp.le.s32.totalorder %v681, 14
        %vm746 = vcmp.le.s32.totalorder %v682, 14
        %vm747 = vcmp.le.s32.totalorder %v683, 14
        %vm748 = vcmp.le.s32.totalorder %v684, 14
        %vm749 = vcmp.le.s32.totalorder %v685, 14
        %vm750 = vcmp.le.s32.totalorder %v686, 14
        %vm751 = vcmp.le.s32.totalorder %v687, 14
        %vm752 = vcmp.le.s32.totalorder %v688, 14
        %vm753 = vcmp.le.s32.totalorder %v689, 14
        %vm754 = vcmp.le.s32.totalorder %v690, 14
        %vm755 = vcmp.le.s32.totalorder %v691, 14
        %vm756 = vcmp.le.s32.totalorder %v692, 14
        %vm757 = vcmp.le.s32.totalorder %v693, 14
        %758 = vst [vmem:[#allocation3] sm:$0xff] 0.0
        %759 = vst [vmem:[#allocation3 + $0x8] sm:$0xff] 0.0
        %760 = vst [vmem:[#allocation3 + $0x10] sm:$0xff] 0.0
        %761 = vst [vmem:[#allocation3 + $0x18] sm:$0xff] 0.0
        %762 = vst [vmem:[#allocation3 + $0x220] sm:$0xff] 0.0
        %763 = vst [vmem:[#allocation3 + $0x228] sm:$0xff] 0.0
        %764 = vst [vmem:[#allocation3 + $0x230] sm:$0xff] 0.0
        %765 = vst [vmem:[#allocation3 + $0x238] sm:$0xff] 0.0
        %766 = vst [vmem:[#allocation4] sm:$0xff] 0.0
        %767 = vst [vmem:[#allocation4 + $0x8] sm:$0xff] 0.0
        %768 = vst [vmem:[#allocation4 + $0x10] sm:$0xff] 0.0
        %769 = vst [vmem:[#allocation4 + $0x18] sm:$0xff] 0.0
        %770 = vst [vmem:[#allocation4 + $0x220] sm:$0xff] 0.0
        %771 = vst [vmem:[#allocation4 + $0x228] sm:$0xff] 0.0
        %772 = vst [vmem:[#allocation4 + $0x230] sm:$0xff] 0.0
        %773 = vst [vmem:[#allocation4 + $0x238] sm:$0xff] 0.0
        %774 = vst [vmem:[#allocation5] sm:$0xff] 0.0
        %775 = vst [vmem:[#allocation5 + $0x8] sm:$0xff] 0.0
        %776 = vst [vmem:[#allocation5 + $0x10] sm:$0xff] 0.0
        %777 = vst [vmem:[#allocation5 + $0x18] sm:$0xff] 0.0
        %778 = vst [vmem:[#allocation5 + $0x220] sm:$0xff] 0.0
        %779 = vst [vmem:[#allocation5 + $0x228] sm:$0xff] 0.0
        %780 = vst [vmem:[#allocation5 + $0x230] sm:$0xff] 0.0
        %781 = vst [vmem:[#allocation5 + $0x238] sm:$0xff] 0.0
        %v782 = vld [vmem:[%s276] sm:$0xff]
        %v783 = vld [vmem:[%s276 + $0x8] sm:$0xff]
        %v784 = vld [vmem:[%s276 + $0x10] sm:$0xff]
        %v785 = vld [vmem:[%s276 + $0x18] sm:$0xff]
        %v786 = vld [vmem:[%s276 + $0x20] sm:$0xff]
        %v787 = vld [vmem:[%s276 + $0x28] sm:$0xff]
        %v788 = vld [vmem:[%s276 + $0x30] sm:$0xff]
        %v789 = vld [vmem:[%s276 + $0x38] sm:$0xff]
        %v790 = vld [vmem:[%s276 + $0x40] sm:$0xff]
        %v791 = vld [vmem:[%s276 + $0x48] sm:$0xff]
        %v792 = vld [vmem:[%s276 + $0x50] sm:$0xff]
        %v793 = vld [vmem:[%s276 + $0x58] sm:$0xff]
        %v794 = vld [vmem:[%s276 + $0x60] sm:$0xff]
        %v795 = vld [vmem:[%s276 + $0x68] sm:$0xff]
        %v796 = vld [vmem:[%s276 + $0x70] sm:$0xff]
        %v797 = vld [vmem:[%s276 + $0x78] sm:$0xff]
        %v798 = vld [vmem:[%s276 + $0x80] sm:$0xff]
        %v799 = vld [vmem:[%s276 + $0x88] sm:$0xff]
        %v800 = vld [vmem:[%s276 + $0x90] sm:$0xff]
        %v801 = vld [vmem:[%s276 + $0x98] sm:$0xff]
        %v802 = vld [vmem:[%s276 + $0xa0] sm:$0xff]
        %v803 = vld [vmem:[%s276 + $0xa8] sm:$0xff]
        %v804 = vld [vmem:[%s276 + $0xb0] sm:$0xff]
        %v805 = vld [vmem:[%s276 + $0xb8] sm:$0xff]
        %v806 = vld [vmem:[%s276 + $0xc0] sm:$0xff]
        %v807 = vld [vmem:[%s276 + $0xc8] sm:$0xff]
        %v808 = vld [vmem:[%s276 + $0xd0] sm:$0xff]
        %v809 = vld [vmem:[%s276 + $0xd8] sm:$0xff]
        %v810 = vld [vmem:[%s276 + $0xe0] sm:$0xff]
        %v811 = vld [vmem:[%s276 + $0xe8] sm:$0xff]
        %v812 = vld [vmem:[%s276 + $0xf0] sm:$0xff]
        %v813 = vld [vmem:[%s276 + $0xf8] sm:$0xff]
        %v814 = vld [vmem:[%s276 + $0x100] sm:$0xff]
        %v815 = vld [vmem:[%s276 + $0x108] sm:$0xff]
        %v816 = vld [vmem:[%s276 + $0x110] sm:$0xff]
        %v817 = vld [vmem:[%s276 + $0x118] sm:$0xff]
        %v818 = vld [vmem:[%s276 + $0x120] sm:$0xff]
        %v819 = vld [vmem:[%s276 + $0x128] sm:$0xff]
        %v820 = vld [vmem:[%s276 + $0x130] sm:$0xff]
        %v821 = vld [vmem:[%s276 + $0x138] sm:$0xff]
        %v822 = vld [vmem:[%s276 + $0x140] sm:$0xff]
        %v823 = vld [vmem:[%s276 + $0x148] sm:$0xff]
        %v824 = vld [vmem:[%s276 + $0x150] sm:$0xff]
        %v825 = vld [vmem:[%s276 + $0x158] sm:$0xff]
        %v826 = vld [vmem:[%s276 + $0x160] sm:$0xff]
        %v827 = vld [vmem:[%s276 + $0x168] sm:$0xff]
        %v828 = vld [vmem:[%s276 + $0x170] sm:$0xff]
        %v829 = vld [vmem:[%s276 + $0x178] sm:$0xff]
        %v830 = vld [vmem:[%s276 + $0x180] sm:$0xff]
        %v831 = vld [vmem:[%s276 + $0x188] sm:$0xff]
        %v832 = vld [vmem:[%s276 + $0x190] sm:$0xff]
        %v833 = vld [vmem:[%s276 + $0x198] sm:$0xff]
        %v834 = vld [vmem:[%s276 + $0x1a0] sm:$0xff]
        %v835 = vld [vmem:[%s276 + $0x1a8] sm:$0xff]
        %v836 = vld [vmem:[%s276 + $0x1b0] sm:$0xff]
        %v837 = vld [vmem:[%s276 + $0x1b8] sm:$0xff]
        %v838 = vld [vmem:[%s276 + $0x1c0] sm:$0xff]
        %v839 = vld [vmem:[%s276 + $0x1c8] sm:$0xff]
        %v840 = vld [vmem:[%s276 + $0x1d0] sm:$0xff]
        %v841 = vld [vmem:[%s276 + $0x1d8] sm:$0xff]
        %v842 = vld [vmem:[%s276 + $0x1e0] sm:$0xff]
        %v843 = vld [vmem:[%s276 + $0x1e8] sm:$0xff]
        %v844 = vld [vmem:[%s276 + $0x1f0] sm:$0xff]
        %v845 = vld [vmem:[%s276 + $0x1f8] sm:$0xff]
        %v846 = vld [vmem:[%s276 + $0x200] sm:$0xff]
        %v847 = vld [vmem:[%s276 + $0x208] sm:$0xff]
        %v848 = vld [vmem:[%s276 + $0x210] sm:$0xff]
        %v849 = vld [vmem:[%s276 + $0x218] sm:$0xff]
        %v850 = vld [vmem:[%s276 + $0x220] sm:$0xff]
        %v851 = vld [vmem:[%s276 + $0x228] sm:$0xff]
        %v852 = vld [vmem:[%s276 + $0x230] sm:$0xff]
        %v853 = vld [vmem:[%s276 + $0x238] sm:$0xff]
        %v854 = vld [vmem:[%s276 + $0x240] sm:$0xff]
        %v855 = vld [vmem:[%s276 + $0x248] sm:$0xff]
        %v856 = vld [vmem:[%s276 + $0x250] sm:$0xff]
        %v857 = vld [vmem:[%s276 + $0x258] sm:$0xff]
        %v858 = vld [vmem:[%s276 + $0x260] sm:$0xff]
        %v859 = vld [vmem:[%s276 + $0x268] sm:$0xff]
        %v860 = vld [vmem:[%s276 + $0x270] sm:$0xff]
        %v861 = vld [vmem:[%s276 + $0x278] sm:$0xff]
        %v862 = vld [vmem:[%s276 + $0x280] sm:$0xff]
        %v863 = vld [vmem:[%s276 + $0x288] sm:$0xff]
        %v864 = vld [vmem:[%s276 + $0x290] sm:$0xff]
        %v865 = vld [vmem:[%s276 + $0x298] sm:$0xff]
        %v866 = vld [vmem:[%s276 + $0x2a0] sm:$0xff]
        %v867 = vld [vmem:[%s276 + $0x2a8] sm:$0xff]
        %v868 = vld [vmem:[%s276 + $0x2b0] sm:$0xff]
        %v869 = vld [vmem:[%s276 + $0x2b8] sm:$0xff]
        %v870 = vld [vmem:[%s276 + $0x2c0] sm:$0xff]
        %v871 = vld [vmem:[%s276 + $0x2c8] sm:$0xff]
        %v872 = vld [vmem:[%s276 + $0x2d0] sm:$0xff]
        %v873 = vld [vmem:[%s276 + $0x2d8] sm:$0xff]
        %v874 = vld [vmem:[%s276 + $0x2e0] sm:$0xff]
        %v875 = vld [vmem:[%s276 + $0x2e8] sm:$0xff]
        %v876 = vld [vmem:[%s276 + $0x2f0] sm:$0xff]
        %v877 = vld [vmem:[%s276 + $0x2f8] sm:$0xff]
        %v878 = vld [vmem:[%s1] sm:$0xff]
        %v879 = vld [vmem:[%s1 + $0x8] sm:$0xff]
        %v880 = vld [vmem:[%s1 + $0x10] sm:$0xff]
        %v881 = vld [vmem:[%s1 + $0x18] sm:$0xff]
        %v882 = vld [vmem:[%s1 + $0x20] sm:$0xff]
        %v883 = vld [vmem:[%s1 + $0x28] sm:$0xff]
        %v884 = vld [vmem:[%s1 + $0x30] sm:$0xff]
        %v885 = vld [vmem:[%s1 + $0x38] sm:$0xff]
        %v886 = vld [vmem:[%s1 + $0x40] sm:$0xff]
        %v887 = vld [vmem:[%s1 + $0x48] sm:$0xff]
        %v888 = vld [vmem:[%s1 + $0x50] sm:$0xff]
        %v889 = vld [vmem:[%s1 + $0x58] sm:$0xff]
        %v890 = vld [vmem:[%s1 + $0x60] sm:$0xff]
        %v891 = vld [vmem:[%s1 + $0x68] sm:$0xff]
        %v892 = vld [vmem:[%s1 + $0x70] sm:$0xff]
        %v893 = vld [vmem:[%s1 + $0x78] sm:$0xff]
        %v894 = vld [vmem:[%s1 + $0x80] sm:$0xff]
        %v895 = vld [vmem:[%s1 + $0x88] sm:$0xff]
        %v896 = vld [vmem:[%s1 + $0x90] sm:$0xff]
        %v897 = vld [vmem:[%s1 + $0x98] sm:$0xff]
        %v898 = vld [vmem:[%s1 + $0xa0] sm:$0xff]
        %v899 = vld [vmem:[%s1 + $0xa8] sm:$0xff]
        %v900 = vld [vmem:[%s1 + $0xb0] sm:$0xff]
        %v901 = vld [vmem:[%s1 + $0xb8] sm:$0xff]
        %v902 = vld [vmem:[%s1 + $0xc0] sm:$0xff]
        %v903 = vld [vmem:[%s1 + $0xc8] sm:$0xff]
        %v904 = vld [vmem:[%s1 + $0xd0] sm:$0xff]
        %v905 = vld [vmem:[%s1 + $0xd8] sm:$0xff]
        %v906 = vld [vmem:[%s1 + $0xe0] sm:$0xff]
        %v907 = vld [vmem:[%s1 + $0xe8] sm:$0xff]
        %v908 = vld [vmem:[%s1 + $0xf0] sm:$0xff]
        %v909 = vld [vmem:[%s1 + $0xf8] sm:$0xff]
        %v910 = vld [vmem:[%s1 + $0x100] sm:$0xff]
        %v911 = vld [vmem:[%s1 + $0x108] sm:$0xff]
        %v912 = vld [vmem:[%s1 + $0x110] sm:$0xff]
        %v913 = vld [vmem:[%s1 + $0x118] sm:$0xff]
        %v914 = vld [vmem:[%s1 + $0x120] sm:$0xff]
        %v915 = vld [vmem:[%s1 + $0x128] sm:$0xff]
        %v916 = vld [vmem:[%s1 + $0x130] sm:$0xff]
        %v917 = vld [vmem:[%s1 + $0x138] sm:$0xff]
        %v918 = vld [vmem:[%s1 + $0x140] sm:$0xff]
        %v919 = vld [vmem:[%s1 + $0x148] sm:$0xff]
        %v920 = vld [vmem:[%s1 + $0x150] sm:$0xff]
        %v921 = vld [vmem:[%s1 + $0x158] sm:$0xff]
        %v922 = vld [vmem:[%s1 + $0x160] sm:$0xff]
        %v923 = vld [vmem:[%s1 + $0x168] sm:$0xff]
        %v924 = vld [vmem:[%s1 + $0x170] sm:$0xff]
        %v925 = vld [vmem:[%s1 + $0x178] sm:$0xff]
        %v926 = vld [vmem:[%s1 + $0x180] sm:$0xff]
        %v927 = vld [vmem:[%s1 + $0x188] sm:$0xff]
        %v928 = vld [vmem:[%s1 + $0x190] sm:$0xff]
        %v929 = vld [vmem:[%s1 + $0x198] sm:$0xff]
        %v930 = vld [vmem:[%s1 + $0x1a0] sm:$0xff]
        %v931 = vld [vmem:[%s1 + $0x1a8] sm:$0xff]
        %v932 = vld [vmem:[%s1 + $0x1b0] sm:$0xff]
        %v933 = vld [vmem:[%s1 + $0x1b8] sm:$0xff]
        %v934 = vld [vmem:[%s1 + $0x1c0] sm:$0xff]
        %v935 = vld [vmem:[%s1 + $0x1c8] sm:$0xff]
        %v936 = vld [vmem:[%s1 + $0x1d0] sm:$0xff]
        %v937 = vld [vmem:[%s1 + $0x1d8] sm:$0xff]
        %v938 = vld [vmem:[%s1 + $0x1e0] sm:$0xff]
        %v939 = vld [vmem:[%s1 + $0x1e8] sm:$0xff]
        %v940 = vld [vmem:[%s1 + $0x1f0] sm:$0xff]
        %v941 = vld [vmem:[%s1 + $0x1f8] sm:$0xff]
        %v942 = vld [vmem:[%s1 + $0x200] sm:$0xff]
        %v943 = vld [vmem:[%s1 + $0x208] sm:$0xff]
        %v944 = vld [vmem:[%s1 + $0x210] sm:$0xff]
        %v945 = vld [vmem:[%s1 + $0x218] sm:$0xff]
        %v946 = vld [vmem:[%s1 + $0x220] sm:$0xff]
        %v947 = vld [vmem:[%s1 + $0x228] sm:$0xff]
        %v948 = vld [vmem:[%s1 + $0x230] sm:$0xff]
        %v949 = vld [vmem:[%s1 + $0x238] sm:$0xff]
        %v950 = vld [vmem:[%s1 + $0x240] sm:$0xff]
        %v951 = vld [vmem:[%s1 + $0x248] sm:$0xff]
        %v952 = vld [vmem:[%s1 + $0x250] sm:$0xff]
        %v953 = vld [vmem:[%s1 + $0x258] sm:$0xff]
        %v954 = vld [vmem:[%s1 + $0x260] sm:$0xff]
        %v955 = vld [vmem:[%s1 + $0x268] sm:$0xff]
        %v956 = vld [vmem:[%s1 + $0x270] sm:$0xff]
        %v957 = vld [vmem:[%s1 + $0x278] sm:$0xff]
        %v958 = vld [vmem:[%s6] ss:$8 sm:$0x3]
        %v960 = vlaneseq
        %v961 = vshrl.u32 %v960, 7
        %v962 = vsub.s32 0, %v961
        %v963 = vrot.slane %v958, %v962
        %v964 = vlaneseq
        %v965 = vshrl.u32 %v964, 7
        %v966 = vsub.s32 1, %v965
        %v967 = vrot.slane %v958, %v966
        %vm970 = vcmask 523264
        %v972 = vsel %vm970, %v784, 0
        %v975 = vsel %vm970, %v787, 0
        %v978 = vsel %vm970, %v790, 0
        %v981 = vsel %vm970, %v793, 0
        %v984 = vsel %vm970, %v796, 0
        %v987 = vsel %vm970, %v799, 0
        %v990 = vsel %vm970, %v802, 0
        %v993 = vsel %vm970, %v805, 0
        %v996 = vsel %vm970, %v808, 0
        %v999 = vsel %vm970, %v811, 0
        %v1002 = vsel %vm970, %v814, 0
        %v1005 = vsel %vm970, %v817, 0
        %v1008 = vsel %vm970, %v820, 0
        %v1011 = vsel %vm970, %v823, 0
        %v1014 = vsel %vm970, %v826, 0
        %v1017 = vsel %vm970, %v829, 0
        %v1020 = vsel %vm970, %v832, 0
        %v1023 = vsel %vm970, %v835, 0
        %v1026 = vsel %vm970, %v838, 0
        %v1029 = vsel %vm970, %v841, 0
        %v1032 = vsel %vm970, %v844, 0
        %v1035 = vsel %vm970, %v847, 0
        %v1038 = vsel %vm970, %v850, 0
        %v1041 = vsel %vm970, %v853, 0
        %v1044 = vsel %vm970, %v856, 0
        %v1047 = vsel %vm970, %v859, 0
        %v1050 = vsel %vm970, %v862, 0
        %v1053 = vsel %vm970, %v865, 0
        %v1056 = vsel %vm970, %v868, 0
        %v1059 = vsel %vm970, %v871, 0
        %v1062 = vsel %vm970, %v874, 0
        %v1065 = vsel %vm970, %v877, 0
        %1067 = vmatprep.subr.mxu0 %v879
        %1068 = vmatpush1.msra.mxu0 %v878
        %1069 = vmatprep.subr.mxu0 %v881
        %1070 = vmatpush1.msra.mxu0 %v880
        %1071 = vmatprep.subr.mxu0 %v883
        %1072 = vmatpush1.msra.mxu0 %v882
        %1073 = vmatprep.subr.mxu0 %v885
        %1074 = vmatpush1.msra.mxu0 %v884
        %1075 = vmatprep.subr.mxu0 %v887
        %1076 = vmatpush1.msra.mxu0 %v886
        %1077 = vmatprep.subr.mxu0 %v889
        %1078 = vmatpush1.msra.mxu0 %v888
        %1079 = vmatprep.subr.mxu0 %v891
        %1080 = vmatpush1.msra.mxu0 %v890
        %1081 = vmatprep.subr.mxu0 %v893
        %1082 = vmatpush1.msra.mxu0 %v892
        %1083 = vmatprep.subr.mxu0 %v895
        %1084 = vmatpush1.msra.mxu0 %v894
        %1085 = vmatprep.subr.mxu0 %v897
        %1086 = vmatpush1.msra.mxu0 %v896
        %1087 = vmatprep.subr.mxu0 %v899
        %1088 = vmatpush1.msra.mxu0 %v898
        %1089 = vmatprep.subr.mxu0 %v901
        %1090 = vmatpush1.msra.mxu0 %v900
        %1091 = vmatprep.subr.mxu0 %v903
        %1092 = vmatpush1.msra.mxu0 %v902
        %1093 = vmatprep.subr.mxu0 %v905
        %1094 = vmatpush1.msra.mxu0 %v904
        %1095 = vmatprep.subr.mxu0 %v907
        %1096 = vmatpush1.msra.mxu0 %v906
        %1097 = vmatprep.subr.mxu0 %v909
        %1098 = vmatpush1.msra.mxu0 %v908
        %1099 = vmatprep.subr.mxu0 %v911
        %1100 = vmatpush1.msra.mxu0 %v910
        %1101 = vmatprep.subr.mxu0 %v913
        %1102 = vmatpush1.msra.mxu0 %v912
        %1103 = vmatprep.subr.mxu0 %v915
        %1104 = vmatpush1.msra.mxu0 %v914
        %1105 = vmatprep.subr.mxu0 %v917
        %1106 = vmatpush1.msra.mxu0 %v916
        %1107 = vmatprep.subr.mxu0 %v919
        %1108 = vmatpush1.msra.mxu0 %v918
        %1109 = vmatprep.subr.mxu0 %v921
        %1110 = vmatpush1.msra.mxu0 %v920
        %1111 = vmatprep.subr.mxu0 %v923
        %1112 = vmatpush1.msra.mxu0 %v922
        %1113 = vmatprep.subr.mxu0 %v925
        %1114 = vmatpush1.msra.mxu0 %v924
        %1115 = vmatprep.subr.mxu0 %v927
        %1116 = vmatpush1.msra.mxu0 %v926
        %1117 = vmatprep.subr.mxu0 %v929
        %1118 = vmatpush1.msra.mxu0 %v928
        %1119 = vmatprep.subr.mxu0 %v931
        %1120 = vmatpush1.msra.mxu0 %v930
        %1121 = vmatprep.subr.mxu0 %v933
        %1122 = vmatpush1.msra.mxu0 %v932
        %1123 = vmatprep.subr.mxu0 %v935
        %1124 = vmatpush1.msra.mxu0 %v934
        %1125 = vmatprep.subr.mxu0 %v937
        %1126 = vmatpush1.msra.mxu0 %v936
        %1127 = vmatprep.subr.mxu0 %v939
        %1128 = vmatpush1.msra.mxu0 %v938
        %1129 = vmatprep.subr.mxu0 %v941
        %1130 = vmatpush1.msra.mxu0 %v940
        %1131 = vmatprep.mubr.f32.mxu0 %v783
        %1132 = vmatmul.mubr.f32.gmra.mrb[0].mxu0 %v782
        %v1133 = vpop.f32.mrb[0].mxu0
        %v1134 = vadd.f32 %v963, %v1133
        %v1135 = vpop.f32.mrb[0].mxu0
        %v1136 = vadd.f32 %v967, %v1135
        %1137 = vmatprep.mubr.f32.mxu0 %v786
        %1138 = vmatmul.mubr.f32.gmra.mrb[0].mxu0 %v785
        %v1139 = vpop.f32.mrb[0].mxu0
        %v1140 = vadd.f32 %v963, %v1139
        %v1141 = vpop.f32.mrb[0].mxu0
        %v1142 = vadd.f32 %v967, %v1141
        %1143 = vmatprep.mubr.f32.mxu0 %v789
        %1144 = vmatmul.mubr.f32.gmra.mrb[0].mxu0 %v788
        %v1145 = vpop.f32.mrb[0].mxu0
        %v1146 = vadd.f32 %v963, %v1145
        %v1147 = vpop.f32.mrb[0].mxu0
        %v1148 = vadd.f32 %v967, %v1147
        %1149 = vmatprep.mubr.f32.mxu0 %v792
        %1150 = vmatmul.mubr.f32.gmra.mrb[0].mxu0 %v791
        %v1151 = vpop.f32.mrb[0].mxu0
        %v1152 = vadd.f32 %v963, %v1151
        %v1153 = vpop.f32.mrb[0].mxu0
        %v1154 = vadd.f32 %v967, %v1153
        %1155 = vmatprep.mubr.f32.mxu0 %v795
        %1156 = vmatmul.mubr.f32.gmra.mrb[0].mxu0 %v794
        %v1157 = vpop.f32.mrb[0].mxu0
        %v1158 = vadd.f32 %v963, %v1157
        %v1159 = vpop.f32.mrb[0].mxu0
        %v1160 = vadd.f32 %v967, %v1159
        %1161 = vmatprep.mubr.f32.mxu0 %v798
        %1162 = vmatmul.mubr.f32.gmra.mrb[0].mxu0 %v797
        %v1163 = vpop.f32.mrb[0].mxu0
        %v1164 = vadd.f32 %v963, %v1163
        %v1165 = vpop.f32.mrb[0].mxu0
        %v1166 = vadd.f32 %v967, %v1165
        %1167 = vmatprep.mubr.f32.mxu0 %v801
        %1168 = vmatmul.mubr.f32.gmra.mrb[0].mxu0 %v800
        %v1169 = vpop.f32.mrb[0].mxu0
        %v1170 = vadd.f32 %v963, %v1169
        %v1171 = vpop.f32.mrb[0].mxu0
        %v1172 = vadd.f32 %v967, %v1171
        %1173 = vmatprep.mubr.f32.mxu0 %v804
        %1174 = vmatmul.mubr.f32.gmra.mrb[0].mxu0 %v803
        %v1175 = vpop.f32.mrb[0].mxu0
        %v1176 = vadd.f32 %v963, %v1175
        %v1177 = vpop.f32.mrb[0].mxu0
        %v1178 = vadd.f32 %v967, %v1177
        %1179 = vmatprep.mubr.f32.mxu0 %v807
        %1180 = vmatmul.mubr.f32.gmra.mrb[0].mxu0 %v806
        %v1181 = vpop.f32.mrb[0].mxu0
        %v1182 = vadd.f32 %v963, %v1181
        %v1183 = vpop.f32.mrb[0].mxu0
        %v1184 = vadd.f32 %v967, %v1183
        %1185 = vmatprep.mubr.f32.mxu0 %v810
        %1186 = vmatmul.mubr.f32.gmra.mrb[0].mxu0 %v809
        %v1187 = vpop.f32.mrb[0].mxu0
        %v1188 = vadd.f32 %v963, %v1187
        %v1189 = vpop.f32.mrb[0].mxu0
        %v1190 = vadd.f32 %v967, %v1189
        %1191 = vmatprep.mubr.f32.mxu0 %v813
        %1192 = vmatmul.mubr.f32.gmra.mrb[0].mxu0 %v812
        %v1193 = vpop.f32.mrb[0].mxu0
        %v1194 = vadd.f32 %v963, %v1193
        %v1195 = vpop.f32.mrb[0].mxu0
        %v1196 = vadd.f32 %v967, %v1195
        %1197 = vmatprep.mubr.f32.mxu0 %v816
        %1198 = vmatmul.mubr.f32.gmra.mrb[0].mxu0 %v815
        %v1199 = vpop.f32.mrb[0].mxu0
        %v1200 = vadd.f32 %v963, %v1199
        %v1201 = vpop.f32.mrb[0].mxu0
        %v1202 = vadd.f32 %v967, %v1201
        %1203 = vmatprep.mubr.f32.mxu0 %v819
        %1204 = vmatmul.mubr.f32.gmra.mrb[0].mxu0 %v818
        %v1205 = vpop.f32.mrb[0].mxu0
        %v1206 = vadd.f32 %v963, %v1205
        %v1207 = vpop.f32.mrb[0].mxu0
        %v1208 = vadd.f32 %v967, %v1207
        %1209 = vmatprep.mubr.f32.mxu0 %v822
        %1210 = vmatmul.mubr.f32.gmra.mrb[0].mxu0 %v821
        %v1211 = vpop.f32.mrb[0].mxu0
        %v1212 = vadd.f32 %v963, %v1211
        %v1213 = vpop.f32.mrb[0].mxu0
        %v1214 = vadd.f32 %v967, %v1213
        %1215 = vmatprep.mubr.f32.mxu0 %v825
        %1216 = vmatmul.mubr.f32.gmra.mrb[0].mxu0 %v824
        %v1217 = vpop.f32.mrb[0].mxu0
        %v1218 = vadd.f32 %v963, %v1217
        %v1219 = vpop.f32.mrb[0].mxu0
        %v1220 = vadd.f32 %v967, %v1219
        %1221 = vmatprep.mubr.f32.mxu0 %v828
        %1222 = vmatmul.mubr.f32.gmra.mrb[0].mxu0 %v827
        %v1223 = vpop.f32.mrb[0].mxu0
        %v1224 = vadd.f32 %v963, %v1223
        %v1225 = vpop.f32.mrb[0].mxu0
        %v1226 = vadd.f32 %v967, %v1225
        %1227 = vmatprep.mubr.f32.mxu0 %v831
        %1228 = vmatmul.mubr.f32.gmra.mrb[0].mxu0 %v830
        %v1229 = vpop.f32.mrb[0].mxu0
        %v1230 = vadd.f32 %v963, %v1229
        %v1231 = vpop.f32.mrb[0].mxu0
        %v1232 = vadd.f32 %v967, %v1231
        %1233 = vmatprep.mubr.f32.mxu0 %v834
        %1234 = vmatmul.mubr.f32.gmra.mrb[0].mxu0 %v833
        %v1235 = vpop.f32.mrb[0].mxu0
        %v1236 = vadd.f32 %v963, %v1235
        %v1237 = vpop.f32.mrb[0].mxu0
        %v1238 = vadd.f32 %v967, %v1237
        %1239 = vmatprep.mubr.f32.mxu0 %v837
        %1240 = vmatmul.mubr.f32.gmra.mrb[0].mxu0 %v836
        %v1241 = vpop.f32.mrb[0].mxu0
        %v1242 = vadd.f32 %v963, %v1241
        %v1243 = vpop.f32.mrb[0].mxu0
        %v1244 = vadd.f32 %v967, %v1243
        %1245 = vmatprep.mubr.f32.mxu0 %v840
        %1246 = vmatmul.mubr.f32.gmra.mrb[0].mxu0 %v839
        %v1247 = vpop.f32.mrb[0].mxu0
        %v1248 = vadd.f32 %v963, %v1247
        %v1249 = vpop.f32.mrb[0].mxu0
        %v1250 = vadd.f32 %v967, %v1249
        %1251 = vmatprep.mubr.f32.mxu0 %v843
        %1252 = vmatmul.mubr.f32.gmra.mrb[0].mxu0 %v842
        %v1253 = vpop.f32.mrb[0].mxu0
        %v1254 = vadd.f32 %v963, %v1253
        %v1255 = vpop.f32.mrb[0].mxu0
        %v1256 = vadd.f32 %v967, %v1255
        %1257 = vmatprep.mubr.f32.mxu0 %v846
        %1258 = vmatmul.mubr.f32.gmra.mrb[0].mxu0 %v845
        %v1259 = vpop.f32.mrb[0].mxu0
        %v1260 = vadd.f32 %v963, %v1259
        %v1261 = vpop.f32.mrb[0].mxu0
        %v1262 = vadd.f32 %v967, %v1261
        %1263 = vmatprep.mubr.f32.mxu0 %v849
        %1264 = vmatmul.mubr.f32.gmra.mrb[0].mxu0 %v848
        %v1265 = vpop.f32.mrb[0].mxu0
        %v1266 = vadd.f32 %v963, %v1265
        %v1267 = vpop.f32.mrb[0].mxu0
        %v1268 = vadd.f32 %v967, %v1267
        %1269 = vmatprep.mubr.f32.mxu0 %v852
        %1270 = vmatmul.mubr.f32.gmra.mrb[0].mxu0 %v851
        %v1271 = vpop.f32.mrb[0].mxu0
        %v1272 = vadd.f32 %v963, %v1271
        %v1273 = vpop.f32.mrb[0].mxu0
        %v1274 = vadd.f32 %v967, %v1273
        %1275 = vmatprep.mubr.f32.mxu0 %v855
        %1276 = vmatmul.mubr.f32.gmra.mrb[0].mxu0 %v854
        %v1277 = vpop.f32.mrb[0].mxu0
        %v1278 = vadd.f32 %v963, %v1277
        %v1279 = vpop.f32.mrb[0].mxu0
        %v1280 = vadd.f32 %v967, %v1279
        %1281 = vmatprep.mubr.f32.mxu0 %v858
        %1282 = vmatmul.mubr.f32.gmra.mrb[0].mxu0 %v857
        %v1283 = vpop.f32.mrb[0].mxu0
        %v1284 = vadd.f32 %v963, %v1283
        %v1285 = vpop.f32.mrb[0].mxu0
        %v1286 = vadd.f32 %v967, %v1285
        %1287 = vmatprep.mubr.f32.mxu0 %v861
        %1288 = vmatmul.mubr.f32.gmra.mrb[0].mxu0 %v860
        %v1289 = vpop.f32.mrb[0].mxu0
        %v1290 = vadd.f32 %v963, %v1289
        %v1291 = vpop.f32.mrb[0].mxu0
        %v1292 = vadd.f32 %v967, %v1291
        %1293 = vmatprep.mubr.f32.mxu0 %v864
        %1294 = vmatmul.mubr.f32.gmra.mrb[0].mxu0 %v863
        %v1295 = vpop.f32.mrb[0].mxu0
        %v1296 = vadd.f32 %v963, %v1295
        %v1297 = vpop.f32.mrb[0].mxu0
        %v1298 = vadd.f32 %v967, %v1297
        %1299 = vmatprep.mubr.f32.mxu0 %v867
        %1300 = vmatmul.mubr.f32.gmra.mrb[0].mxu0 %v866
        %v1301 = vpop.f32.mrb[0].mxu0
        %v1302 = vadd.f32 %v963, %v1301
        %v1303 = vpop.f32.mrb[0].mxu0
        %v1304 = vadd.f32 %v967, %v1303
        %1305 = vmatprep.mubr.f32.mxu0 %v870
        %1306 = vmatmul.mubr.f32.gmra.mrb[0].mxu0 %v869
        %v1307 = vpop.f32.mrb[0].mxu0
        %v1308 = vadd.f32 %v963, %v1307
        %v1309 = vpop.f32.mrb[0].mxu0
        %v1310 = vadd.f32 %v967, %v1309
        %1311 = vmatprep.mubr.f32.mxu0 %v873
        %1312 = vmatmul.mubr.f32.gmra.mrb[0].mxu0 %v872
        %v1313 = vpop.f32.mrb[0].mxu0
        %v1314 = vadd.f32 %v963, %v1313
        %v1315 = vpop.f32.mrb[0].mxu0
        %v1316 = vadd.f32 %v967, %v1315
        %1317 = vmatprep.mubr.f32.mxu0 %v876
        %1318 = vmatmul.mubr.f32.gmra.mrb[0].mxu0 %v875
        %v1319 = vpop.f32.mrb[0].mxu0
        %v1320 = vadd.f32 %v963, %v1319
        %v1321 = vpop.f32.mrb[0].mxu0
        %v1322 = vadd.f32 %v967, %v1321
        %1323 = vdwg.mxu0
        %1324 = vmatprep.subr.mxu0 %v943
        %1325 = vmatpush1.msra.mxu0 %v942
        %1326 = vmatprep.subr.mxu0 %v945
        %1327 = vmatpush1.msra.mxu0 %v944
        %1328 = vmatprep.subr.mxu0 %v947
        %1329 = vmatpush1.msra.mxu0 %v946
        %1330 = vmatprep.subr.mxu0 %v949
        %1331 = vmatpush1.msra.mxu0 %v948
        %1332 = vmatprep.subr.mxu0 %v951
        %1333 = vmatpush1.msra.mxu0 %v950
        %1334 = vmatprep.subr.mxu0 %v953
        %1335 = vmatpush1.msra.mxu0 %v952
        %1336 = vmatprep.subr.mxu0 %v955
        %1337 = vmatpush1.msra.mxu0 %v954
        %1338 = vmatprep.subr.mxu0 %v957
        %1339 = vmatpush1.msra.mxu0 %v956
        %1340 = vmatprep.subr.mxu0 0.0
        %1341 = vmatpush1.msra.mxu0 0.0
        %1342 = vmatprep.subr.mxu0 0.0
        %1343 = vmatpush1.msra.mxu0 0.0
        %1344 = vmatprep.subr.mxu0 0.0
        %1345 = vmatpush1.msra.mxu0 0.0
        %1346 = vmatprep.subr.mxu0 0.0
        %1347 = vmatpush1.msra.mxu0 0.0
        %1348 = vmatprep.subr.mxu0 0.0
        %1349 = vmatpush1.msra.mxu0 0.0
        %1350 = vmatprep.subr.mxu0 0.0
        %1351 = vmatpush1.msra.mxu0 0.0
        %1352 = vmatprep.subr.mxu0 0.0
        %1353 = vmatpush1.msra.mxu0 0.0
        %1354 = vmatprep.subr.mxu0 0.0
        %1355 = vmatpush1.msra.mxu0 0.0
        %1356 = vmatprep.subr.mxu0 0.0
        %1357 = vmatpush1.msra.mxu0 0.0
        %1358 = vmatprep.subr.mxu0 0.0
        %1359 = vmatpush1.msra.mxu0 0.0
        %1360 = vmatprep.subr.mxu0 0.0
        %1361 = vmatpush1.msra.mxu0 0.0
        %1362 = vmatprep.subr.mxu0 0.0
        %1363 = vmatpush1.msra.mxu0 0.0
        %1364 = vmatprep.subr.mxu0 0.0
        %1365 = vmatpush1.msra.mxu0 0.0
        %1366 = vmatprep.subr.mxu0 0.0
        %1367 = vmatpush1.msra.mxu0 0.0
        %1368 = vmatprep.subr.mxu0 0.0
        %1369 = vmatpush1.msra.mxu0 0.0
        %1370 = vmatprep.subr.mxu0 0.0
        %1371 = vmatpush1.msra.mxu0 0.0
        %1372 = vmatprep.subr.mxu0 0.0
        %1373 = vmatpush1.msra.mxu0 0.0
        %1374 = vmatprep.subr.mxu0 0.0
        %1375 = vmatpush1.msra.mxu0 0.0
        %1376 = vmatprep.subr.mxu0 0.0
        %1377 = vmatpush1.msra.mxu0 0.0
        %1378 = vmatprep.subr.mxu0 0.0
        %1379 = vmatpush1.msra.mxu0 0.0
        %1380 = vmatprep.subr.mxu0 0.0
        %1381 = vmatpush1.msra.mxu0 0.0
        %1382 = vmatprep.subr.mxu0 0.0
        %1383 = vmatpush1.msra.mxu0 0.0
        %1384 = vmatprep.subr.mxu0 0.0
        %1385 = vmatpush1.msra.mxu0 0.0
        %1386 = vmatprep.subr.mxu0 0.0
        %1387 = vmatpush1.msra.mxu0 0.0
        %1388 = vmatprep.mubr.f32.mxu0 0.0
        %1389 = vmatmul.mubr.f32.gmra.mrb[0].mxu0 %v972
        %v1390 = vpop.f32.mrb[0].mxu0
        %v1391 = vadd.f32 %v1134, %v1390
        %v1392 = vpop.f32.mrb[0].mxu0
        %v1393 = vadd.f32 %v1136, %v1392
        %1394 = vmatprep.mubr.f32.mxu0 0.0
        %1395 = vmatmul.mubr.f32.gmra.mrb[0].mxu0 %v975
        %v1396 = vpop.f32.mrb[0].mxu0
        %v1397 = vadd.f32 %v1140, %v1396
        %v1398 = vpop.f32.mrb[0].mxu0
        %v1399 = vadd.f32 %v1142, %v1398
        %1400 = vmatprep.mubr.f32.mxu0 0.0
        %1401 = vmatmul.mubr.f32.gmra.mrb[0].mxu0 %v978
        %v1402 = vpop.f32.mrb[0].mxu0
        %v1403 = vadd.f32 %v1146, %v1402
        %v1404 = vpop.f32.mrb[0].mxu0
        %v1405 = vadd.f32 %v1148, %v1404
        %1406 = vmatprep.mubr.f32.mxu0 0.0
        %1407 = vmatmul.mubr.f32.gmra.mrb[0].mxu0 %v981
        %v1408 = vpop.f32.mrb[0].mxu0
        %v1409 = vadd.f32 %v1152, %v1408
        %v1410 = vpop.f32.mrb[0].mxu0
        %v1411 = vadd.f32 %v1154, %v1410
        %1412 = vmatprep.mubr.f32.mxu0 0.0
        %1413 = vmatmul.mubr.f32.gmra.mrb[0].mxu0 %v984
        %v1414 = vpop.f32.mrb[0].mxu0
        %v1415 = vadd.f32 %v1158, %v1414
        %v1416 = vpop.f32.mrb[0].mxu0
        %v1417 = vadd.f32 %v1160, %v1416
        %1418 = vmatprep.mubr.f32.mxu0 0.0
        %1419 = vmatmul.mubr.f32.gmra.mrb[0].mxu0 %v987
        %v1420 = vpop.f32.mrb[0].mxu0
        %v1421 = vadd.f32 %v1164, %v1420
        %v1422 = vpop.f32.mrb[0].mxu0
        %v1423 = vadd.f32 %v1166, %v1422
        %1424 = vmatprep.mubr.f32.mxu0 0.0
        %1425 = vmatmul.mubr.f32.gmra.mrb[0].mxu0 %v990
        %v1426 = vpop.f32.mrb[0].mxu0
        %v1427 = vadd.f32 %v1170, %v1426
        %v1428 = vpop.f32.mrb[0].mxu0
        %v1429 = vadd.f32 %v1172, %v1428
        %1430 = vmatprep.mubr.f32.mxu0 0.0
        %1431 = vmatmul.mubr.f32.gmra.mrb[0].mxu0 %v993
        %v1432 = vpop.f32.mrb[0].mxu0
        %v1433 = vadd.f32 %v1176, %v1432
        %v1434 = vpop.f32.mrb[0].mxu0
        %v1435 = vadd.f32 %v1178, %v1434
        %1436 = vmatprep.mubr.f32.mxu0 0.0
        %1437 = vmatmul.mubr.f32.gmra.mrb[0].mxu0 %v996
        %v1438 = vpop.f32.mrb[0].mxu0
        %v1439 = vadd.f32 %v1182, %v1438
        %v1440 = vpop.f32.mrb[0].mxu0
        %v1441 = vadd.f32 %v1184, %v1440
        %1442 = vmatprep.mubr.f32.mxu0 0.0
        %1443 = vmatmul.mubr.f32.gmra.mrb[0].mxu0 %v999
        %v1444 = vpop.f32.mrb[0].mxu0
        %v1445 = vadd.f32 %v1188, %v1444
        %v1446 = vpop.f32.mrb[0].mxu0
        %v1447 = vadd.f32 %v1190, %v1446
        %1448 = vmatprep.mubr.f32.mxu0 0.0
        %1449 = vmatmul.mubr.f32.gmra.mrb[0].mxu0 %v1002
        %v1450 = vpop.f32.mrb[0].mxu0
        %v1451 = vadd.f32 %v1194, %v1450
        %v1452 = vpop.f32.mrb[0].mxu0
        %v1453 = vadd.f32 %v1196, %v1452
        %1454 = vmatprep.mubr.f32.mxu0 0.0
        %1455 = vmatmul.mubr.f32.gmra.mrb[0].mxu0 %v1005
        %v1456 = vpop.f32.mrb[0].mxu0
        %v1457 = vadd.f32 %v1200, %v1456
        %v1458 = vpop.f32.mrb[0].mxu0
        %v1459 = vadd.f32 %v1202, %v1458
        %1460 = vmatprep.mubr.f32.mxu0 0.0
        %1461 = vmatmul.mubr.f32.gmra.mrb[0].mxu0 %v1008
        %v1462 = vpop.f32.mrb[0].mxu0
        %v1463 = vadd.f32 %v1206, %v1462
        %v1464 = vpop.f32.mrb[0].mxu0
        %v1465 = vadd.f32 %v1208, %v1464
        %1466 = vmatprep.mubr.f32.mxu0 0.0
        %1467 = vmatmul.mubr.f32.gmra.mrb[0].mxu0 %v1011
        %v1468 = vpop.f32.mrb[0].mxu0
        %v1469 = vadd.f32 %v1212, %v1468
        %v1470 = vpop.f32.mrb[0].mxu0
        %v1471 = vadd.f32 %v1214, %v1470
        %1472 = vmatprep.mubr.f32.mxu0 0.0
        %1473 = vmatmul.mubr.f32.gmra.mrb[0].mxu0 %v1014
        %v1474 = vpop.f32.mrb[0].mxu0
        %v1475 = vadd.f32 %v1218, %v1474
        %v1476 = vpop.f32.mrb[0].mxu0
        %v1477 = vadd.f32 %v1220, %v1476
        %1478 = vmatprep.mubr.f32.mxu0 0.0
        %1479 = vmatmul.mubr.f32.gmra.mrb[0].mxu0 %v1017
        %v1480 = vpop.f32.mrb[0].mxu0
        %v1481 = vadd.f32 %v1224, %v1480
        %v1482 = vpop.f32.mrb[0].mxu0
        %v1483 = vadd.f32 %v1226, %v1482
        %1484 = vmatprep.mubr.f32.mxu0 0.0
        %1485 = vmatmul.mubr.f32.gmra.mrb[0].mxu0 %v1020
        %v1486 = vpop.f32.mrb[0].mxu0
        %v1487 = vadd.f32 %v1230, %v1486
        %v1488 = vpop.f32.mrb[0].mxu0
        %v1489 = vadd.f32 %v1232, %v1488
        %1490 = vmatprep.mubr.f32.mxu0 0.0
        %1491 = vmatmul.mubr.f32.gmra.mrb[0].mxu0 %v1023
        %v1492 = vpop.f32.mrb[0].mxu0
        %v1493 = vadd.f32 %v1236, %v1492
        %v1494 = vpop.f32.mrb[0].mxu0
        %v1495 = vadd.f32 %v1238, %v1494
        %1496 = vmatprep.mubr.f32.mxu0 0.0
        %1497 = vmatmul.mubr.f32.gmra.mrb[0].mxu0 %v1026
        %v1498 = vpop.f32.mrb[0].mxu0
        %v1499 = vadd.f32 %v1242, %v1498
        %v1500 = vpop.f32.mrb[0].mxu0
        %v1501 = vadd.f32 %v1244, %v1500
        %1502 = vmatprep.mubr.f32.mxu0 0.0
        %1503 = vmatmul.mubr.f32.gmra.mrb[0].mxu0 %v1029
        %v1504 = vpop.f32.mrb[0].mxu0
        %v1505 = vadd.f32 %v1248, %v1504
        %v1506 = vpop.f32.mrb[0].mxu0
        %v1507 = vadd.f32 %v1250, %v1506
        %1508 = vmatprep.mubr.f32.mxu0 0.0
        %1509 = vmatmul.mubr.f32.gmra.mrb[0].mxu0 %v1032
        %v1510 = vpop.f32.mrb[0].mxu0
        %v1511 = vadd.f32 %v1254, %v1510
        %v1512 = vpop.f32.mrb[0].mxu0
        %v1513 = vadd.f32 %v1256, %v1512
        %1514 = vmatprep.mubr.f32.mxu0 0.0
        %1515 = vmatmul.mubr.f32.gmra.mrb[0].mxu0 %v1035
        %v1516 = vpop.f32.mrb[0].mxu0
        %v1517 = vadd.f32 %v1260, %v1516
        %v1518 = vpop.f32.mrb[0].mxu0
        %v1519 = vadd.f32 %v1262, %v1518
        %1520 = vmatprep.mubr.f32.mxu0 0.0
        %1521 = vmatmul.mubr.f32.gmra.mrb[0].mxu0 %v1038
        %v1522 = vpop.f32.mrb[0].mxu0
        %v1523 = vadd.f32 %v1266, %v1522
        %v1524 = vpop.f32.mrb[0].mxu0
        %v1525 = vadd.f32 %v1268, %v1524
        %1526 = vmatprep.mubr.f32.mxu0 0.0
        %1527 = vmatmul.mubr.f32.gmra.mrb[0].mxu0 %v1041
        %v1528 = vpop.f32.mrb[0].mxu0
        %v1529 = vadd.f32 %v1272, %v1528
        %v1530 = vpop.f32.mrb[0].mxu0
        %v1531 = vadd.f32 %v1274, %v1530
        %1532 = vmatprep.mubr.f32.mxu0 0.0
        %1533 = vmatmul.mubr.f32.gmra.mrb[0].mxu0 %v1044
        %v1534 = vpop.f32.mrb[0].mxu0
        %v1535 = vadd.f32 %v1278, %v1534
        %v1536 = vpop.f32.mrb[0].mxu0
        %v1537 = vadd.f32 %v1280, %v1536
        %1538 = vmatprep.mubr.f32.mxu0 0.0
        %1539 = vmatmul.mubr.f32.gmra.mrb[0].mxu0 %v1047
        %v1540 = vpop.f32.mrb[0].mxu0
        %v1541 = vadd.f32 %v1284, %v1540
        %v1542 = vpop.f32.mrb[0].mxu0
        %v1543 = vadd.f32 %v1286, %v1542
        %1544 = vmatprep.mubr.f32.mxu0 0.0
        %1545 = vmatmul.mubr.f32.gmra.mrb[0].mxu0 %v1050
        %v1546 = vpop.f32.mrb[0].mxu0
        %v1547 = vadd.f32 %v1290, %v1546
        %v1548 = vpop.f32.mrb[0].mxu0
        %v1549 = vadd.f32 %v1292, %v1548
        %1550 = vmatprep.mubr.f32.mxu0 0.0
        %1551 = vmatmul.mubr.f32.gmra.mrb[0].mxu0 %v1053
        %v1552 = vpop.f32.mrb[0].mxu0
        %v1553 = vadd.f32 %v1296, %v1552
        %v1554 = vpop.f32.mrb[0].mxu0
        %v1555 = vadd.f32 %v1298, %v1554
        %1556 = vmatprep.mubr.f32.mxu0 0.0
        %1557 = vmatmul.mubr.f32.gmra.mrb[0].mxu0 %v1056
        %v1558 = vpop.f32.mrb[0].mxu0
        %v1559 = vadd.f32 %v1302, %v1558
        %v1560 = vpop.f32.mrb[0].mxu0
        %v1561 = vadd.f32 %v1304, %v1560
        %1562 = vmatprep.mubr.f32.mxu0 0.0
        %1563 = vmatmul.mubr.f32.gmra.mrb[0].mxu0 %v1059
        %v1564 = vpop.f32.mrb[0].mxu0
        %v1565 = vadd.f32 %v1308, %v1564
        %v1566 = vpop.f32.mrb[0].mxu0
        %v1567 = vadd.f32 %v1310, %v1566
        %1568 = vmatprep.mubr.f32.mxu0 0.0
        %1569 = vmatmul.mubr.f32.gmra.mrb[0].mxu0 %v1062
        %v1570 = vpop.f32.mrb[0].mxu0
        %v1571 = vadd.f32 %v1314, %v1570
        %v1572 = vpop.f32.mrb[0].mxu0
        %v1573 = vadd.f32 %v1316, %v1572
        %1574 = vmatprep.mubr.f32.mxu0 0.0
        %1575 = vmatmul.mubr.f32.gmra.mrb[0].mxu0 %v1065
        %v1576 = vpop.f32.mrb[0].mxu0
        %v1577 = vadd.f32 %v1320, %v1576
        %v1578 = vpop.f32.mrb[0].mxu0
        %v1579 = vadd.f32 %v1322, %v1578
        %1580 = vdwg.mxu0
        %v1581 = vmax.f32 %v1391, 0.0
        %v1582 = vmax.f32 %v1393, 0.0
        %v1583 = vmax.f32 %v1397, 0.0
        %v1584 = vmax.f32 %v1399, 0.0
        %v1585 = vmax.f32 %v1403, 0.0
        %v1586 = vmax.f32 %v1405, 0.0
        %v1587 = vmax.f32 %v1409, 0.0
        %v1588 = vmax.f32 %v1411, 0.0
        %v1589 = vmax.f32 %v1415, 0.0
        %v1590 = vmax.f32 %v1417, 0.0
        %v1591 = vmax.f32 %v1421, 0.0
        %v1592 = vmax.f32 %v1423, 0.0
        %v1593 = vmax.f32 %v1427, 0.0
        %v1594 = vmax.f32 %v1429, 0.0
        %v1595 = vmax.f32 %v1433, 0.0
        %v1596 = vmax.f32 %v1435, 0.0
        %v1597 = vmax.f32 %v1439, 0.0
        %v1598 = vmax.f32 %v1441, 0.0
        %v1599 = vmax.f32 %v1445, 0.0
        %v1600 = vmax.f32 %v1447, 0.0
        %v1601 = vmax.f32 %v1451, 0.0
        %v1602 = vmax.f32 %v1453, 0.0
        %v1603 = vmax.f32 %v1457, 0.0
        %v1604 = vmax.f32 %v1459, 0.0
        %v1605 = vmax.f32 %v1463, 0.0
        %v1606 = vmax.f32 %v1465, 0.0
        %v1607 = vmax.f32 %v1469, 0.0
        %v1608 = vmax.f32 %v1471, 0.0
        %v1609 = vmax.f32 %v1475, 0.0
        %v1610 = vmax.f32 %v1477, 0.0
        %v1611 = vmax.f32 %v1481, 0.0
        %v1612 = vmax.f32 %v1483, 0.0
        %v1613 = vmax.f32 %v1487, 0.0
        %v1614 = vmax.f32 %v1489, 0.0
        %v1615 = vmax.f32 %v1493, 0.0
        %v1616 = vmax.f32 %v1495, 0.0
        %v1617 = vmax.f32 %v1499, 0.0
        %v1618 = vmax.f32 %v1501, 0.0
        %v1619 = vmax.f32 %v1505, 0.0
        %v1620 = vmax.f32 %v1507, 0.0
        %v1621 = vmax.f32 %v1511, 0.0
        %v1622 = vmax.f32 %v1513, 0.0
        %v1623 = vmax.f32 %v1517, 0.0
        %v1624 = vmax.f32 %v1519, 0.0
        %v1625 = vmax.f32 %v1523, 0.0
        %v1626 = vmax.f32 %v1525, 0.0
        %v1627 = vmax.f32 %v1529, 0.0
        %v1628 = vmax.f32 %v1531, 0.0
        %v1629 = vmax.f32 %v1535, 0.0
        %v1630 = vmax.f32 %v1537, 0.0
        %v1631 = vmax.f32 %v1541, 0.0
        %v1632 = vmax.f32 %v1543, 0.0
        %v1633 = vmax.f32 %v1547, 0.0
        %v1634 = vmax.f32 %v1549, 0.0
        %v1635 = vmax.f32 %v1553, 0.0
        %v1636 = vmax.f32 %v1555, 0.0
        %v1637 = vmax.f32 %v1559, 0.0
        %v1638 = vmax.f32 %v1561, 0.0
        %v1639 = vmax.f32 %v1565, 0.0
        %v1640 = vmax.f32 %v1567, 0.0
        %v1641 = vmax.f32 %v1571, 0.0
        %v1642 = vmax.f32 %v1573, 0.0
        %v1643 = vmax.f32 %v1577, 0.0
        %v1644 = vmax.f32 %v1579, 0.0
        %1645 = vst [vmem:[#allocation2] sm:$0xff] %v1581
        %1646 = vst [vmem:[#allocation2 + $0x8] sm:$0xff] %v1582
        %1647 = vst [vmem:[#allocation2 + $0x10] sm:$0xff] %v1583
        %1648 = vst [vmem:[#allocation2 + $0x18] sm:$0xff] %v1584
        %1649 = vst [vmem:[#allocation2 + $0x20] sm:$0xff] %v1585
        %1650 = vst [vmem:[#allocation2 + $0x28] sm:$0xff] %v1586
        %1651 = vst [vmem:[#allocation2 + $0x30] sm:$0xff] %v1587
        %1652 = vst [vmem:[#allocation2 + $0x38] sm:$0xff] %v1588
        %1653 = vst [vmem:[#allocation2 + $0x40] sm:$0xff] %v1589
        %1654 = vst [vmem:[#allocation2 + $0x48] sm:$0xff] %v1590
        %1655 = vst [vmem:[#allocation2 + $0x50] sm:$0xff] %v1591
        %1656 = vst [vmem:[#allocation2 + $0x58] sm:$0xff] %v1592
        %1657 = vst [vmem:[#allocation2 + $0x60] sm:$0xff] %v1593
        %1658 = vst [vmem:[#allocation2 + $0x68] sm:$0xff] %v1594
        %1659 = vst [vmem:[#allocation2 + $0x70] sm:$0xff] %v1595
        %1660 = vst [vmem:[#allocation2 + $0x78] sm:$0xff] %v1596
        %1661 = vst [vmem:[#allocation2 + $0x80] sm:$0xff] %v1597
        %1662 = vst [vmem:[#allocation2 + $0x88] sm:$0xff] %v1598
        %1663 = vst [vmem:[#allocation2 + $0x90] sm:$0xff] %v1599
        %1664 = vst [vmem:[#allocation2 + $0x98] sm:$0xff] %v1600
        %1665 = vst [vmem:[#allocation2 + $0xa0] sm:$0xff] %v1601
        %1666 = vst [vmem:[#allocation2 + $0xa8] sm:$0xff] %v1602
        %1667 = vst [vmem:[#allocation2 + $0xb0] sm:$0xff] %v1603
        %1668 = vst [vmem:[#allocation2 + $0xb8] sm:$0xff] %v1604
        %1669 = vst [vmem:[#allocation2 + $0xc0] sm:$0xff] %v1605
        %1670 = vst [vmem:[#allocation2 + $0xc8] sm:$0xff] %v1606
        %1671 = vst [vmem:[#allocation2 + $0xd0] sm:$0xff] %v1607
        %1672 = vst [vmem:[#allocation2 + $0xd8] sm:$0xff] %v1608
        %1673 = vst [vmem:[#allocation2 + $0xe0] sm:$0xff] %v1609
        %1674 = vst [vmem:[#allocation2 + $0xe8] sm:$0xff] %v1610
        %1675 = vst [vmem:[#allocation2 + $0xf0] sm:$0xff] %v1611
        %1676 = vst [vmem:[#allocation2 + $0xf8] sm:$0xff] %v1612
        %1677 = vst [vmem:[#allocation2 + $0x100] sm:$0xff] %v1613
        %1678 = vst [vmem:[#allocation2 + $0x108] sm:$0xff] %v1614
        %1679 = vst [vmem:[#allocation2 + $0x110] sm:$0xff] %v1615
        %1680 = vst [vmem:[#allocation2 + $0x118] sm:$0xff] %v1616
        %1681 = vst [vmem:[#allocation2 + $0x120] sm:$0xff] %v1617
        %1682 = vst [vmem:[#allocation2 + $0x128] sm:$0xff] %v1618
        %1683 = vst [vmem:[#allocation2 + $0x130] sm:$0xff] %v1619
        %1684 = vst [vmem:[#allocation2 + $0x138] sm:$0xff] %v1620
        %1685 = vst [vmem:[#allocation2 + $0x140] sm:$0xff] %v1621
        %1686 = vst [vmem:[#allocation2 + $0x148] sm:$0xff] %v1622
        %1687 = vst [vmem:[#allocation2 + $0x150] sm:$0xff] %v1623
        %1688 = vst [vmem:[#allocation2 + $0x158] sm:$0xff] %v1624
        %1689 = vst [vmem:[#allocation2 + $0x160] sm:$0xff] %v1625
        %1690 = vst [vmem:[#allocation2 + $0x168] sm:$0xff] %v1626
        %1691 = vst [vmem:[#allocation2 + $0x170] sm:$0xff] %v1627
        %1692 = vst [vmem:[#allocation2 + $0x178] sm:$0xff] %v1628
        %1693 = vst [vmem:[#allocation2 + $0x180] sm:$0xff] %v1629
        %1694 = vst [vmem:[#allocation2 + $0x188] sm:$0xff] %v1630
        %1695 = vst [vmem:[#allocation2 + $0x190] sm:$0xff] %v1631
        %1696 = vst [vmem:[#allocation2 + $0x198] sm:$0xff] %v1632
        %1697 = vst [vmem:[#allocation2 + $0x1a0] sm:$0xff] %v1633
        %1698 = vst [vmem:[#allocation2 + $0x1a8] sm:$0xff] %v1634
        %1699 = vst [vmem:[#allocation2 + $0x1b0] sm:$0xff] %v1635
        %1700 = vst [vmem:[#allocation2 + $0x1b8] sm:$0xff] %v1636
        %1701 = vst [vmem:[#allocation2 + $0x1c0] sm:$0xff] %v1637
        %1702 = vst [vmem:[#allocation2 + $0x1c8] sm:$0xff] %v1638
        %1703 = vst [vmem:[#allocation2 + $0x1d0] sm:$0xff] %v1639
        %1704 = vst [vmem:[#allocation2 + $0x1d8] sm:$0xff] %v1640
        %1705 = vst [vmem:[#allocation2 + $0x1e0] sm:$0xff] %v1641
        %1706 = vst [vmem:[#allocation2 + $0x1e8] sm:$0xff] %v1642
        %1707 = vst [vmem:[#allocation2 + $0x1f0] sm:$0xff] %v1643
        %1708 = vst [vmem:[#allocation2 + $0x1f8] sm:$0xff] %v1644
        %v1709 = vld [vmem:[#allocation2] sm:$0xff]
        %v1710 = vld [vmem:[#allocation2 + $0x8] sm:$0xff]
        %v1711 = vld [vmem:[#allocation2 + $0x10] sm:$0xff]
        %v1712 = vld [vmem:[#allocation2 + $0x18] sm:$0xff]
        %v1713 = vld [vmem:[#allocation2 + $0x20] sm:$0xff]
        %v1714 = vld [vmem:[#allocation2 + $0x28] sm:$0xff]
        %v1715 = vld [vmem:[#allocation2 + $0x30] sm:$0xff]
        %v1716 = vld [vmem:[#allocation2 + $0x38] sm:$0xff]
        %v1717 = vld [vmem:[#allocation2 + $0x40] sm:$0xff]
        %v1718 = vld [vmem:[#allocation2 + $0x48] sm:$0xff]
        %v1719 = vld [vmem:[#allocation2 + $0x50] sm:$0xff]
        %v1720 = vld [vmem:[#allocation2 + $0x58] sm:$0xff]
        %v1721 = vld [vmem:[#allocation2 + $0x60] sm:$0xff]
        %v1722 = vld [vmem:[#allocation2 + $0x68] sm:$0xff]
        %v1723 = vld [vmem:[#allocation2 + $0x70] sm:$0xff]
        %v1724 = vld [vmem:[#allocation2 + $0x78] sm:$0xff]
        %v1725 = vld [vmem:[#allocation2 + $0x80] sm:$0xff]
        %v1726 = vld [vmem:[#allocation2 + $0x88] sm:$0xff]
        %v1727 = vld [vmem:[#allocation2 + $0x90] sm:$0xff]
        %v1728 = vld [vmem:[#allocation2 + $0x98] sm:$0xff]
        %v1729 = vld [vmem:[#allocation2 + $0xa0] sm:$0xff]
        %v1730 = vld [vmem:[#allocation2 + $0xa8] sm:$0xff]
        %v1731 = vld [vmem:[#allocation2 + $0xb0] sm:$0xff]
        %v1732 = vld [vmem:[#allocation2 + $0xb8] sm:$0xff]
        %v1733 = vld [vmem:[#allocation2 + $0xc0] sm:$0xff]
        %v1734 = vld [vmem:[#allocation2 + $0xc8] sm:$0xff]
        %v1735 = vld [vmem:[#allocation2 + $0xd0] sm:$0xff]
        %v1736 = vld [vmem:[#allocation2 + $0xd8] sm:$0xff]
        %v1737 = vld [vmem:[#allocation2 + $0xe0] sm:$0xff]
        %v1738 = vld [vmem:[#allocation2 + $0xe8] sm:$0xff]
        %v1739 = vld [vmem:[#allocation2 + $0xf0] sm:$0xff]
        %v1740 = vld [vmem:[#allocation2 + $0xf8] sm:$0xff]
        %v1741 = vld [vmem:[#allocation2 + $0x100] sm:$0xff]
        %v1742 = vld [vmem:[#allocation2 + $0x108] sm:$0xff]
        %v1743 = vld [vmem:[#allocation2 + $0x110] sm:$0xff]
        %v1744 = vld [vmem:[#allocation2 + $0x118] sm:$0xff]
        %v1745 = vld [vmem:[#allocation2 + $0x120] sm:$0xff]
        %v1746 = vld [vmem:[#allocation2 + $0x128] sm:$0xff]
        %v1747 = vld [vmem:[#allocation2 + $0x130] sm:$0xff]
        %v1748 = vld [vmem:[#allocation2 + $0x138] sm:$0xff]
        %v1749 = vld [vmem:[#allocation2 + $0x140] sm:$0xff]
        %v1750 = vld [vmem:[#allocation2 + $0x148] sm:$0xff]
        %v1751 = vld [vmem:[#allocation2 + $0x150] sm:$0xff]
        %v1752 = vld [vmem:[#allocation2 + $0x158] sm:$0xff]
        %v1753 = vld [vmem:[#allocation2 + $0x160] sm:$0xff]
        %v1754 = vld [vmem:[#allocation2 + $0x168] sm:$0xff]
        %v1755 = vld [vmem:[#allocation2 + $0x170] sm:$0xff]
        %v1756 = vld [vmem:[#allocation2 + $0x178] sm:$0xff]
        %v1757 = vld [vmem:[#allocation2 + $0x180] sm:$0xff]
        %v1758 = vld [vmem:[#allocation2 + $0x188] sm:$0xff]
        %v1759 = vld [vmem:[#allocation2 + $0x190] sm:$0xff]
        %v1760 = vld [vmem:[#allocation2 + $0x198] sm:$0xff]
        %v1761 = vld [vmem:[#allocation2 + $0x1a0] sm:$0xff]
        %v1762 = vld [vmem:[#allocation2 + $0x1a8] sm:$0xff]
        %v1763 = vld [vmem:[#allocation2 + $0x1b0] sm:$0xff]
        %v1764 = vld [vmem:[#allocation2 + $0x1b8] sm:$0xff]
        %v1765 = vld [vmem:[#allocation2 + $0x1c0] sm:$0xff]
        %v1766 = vld [vmem:[#allocation2 + $0x1c8] sm:$0xff]
        %v1767 = vld [vmem:[#allocation2 + $0x1d0] sm:$0xff]
        %v1768 = vld [vmem:[#allocation2 + $0x1d8] sm:$0xff]
        %v1769 = vld [vmem:[#allocation2 + $0x1e0] sm:$0xff]
        %v1770 = vld [vmem:[#allocation2 + $0x1e8] sm:$0xff]
        %v1771 = vld [vmem:[#allocation2 + $0x1f0] sm:$0xff]
        %v1772 = vld [vmem:[#allocation2 + $0x1f8] sm:$0xff]
        %v1773 = vadd.f32 %v1709, %v1711
        %v1774 = vadd.f32 %v1773, %v1713
        %v1775 = vadd.f32 %v1774, %v1715
        %v1776 = vadd.f32 %v1775, %v1717
        %v1777 = vadd.f32 %v1776, %v1719
        %v1778 = vadd.f32 %v1777, %v1721
        %v1779 = vadd.f32 %v1778, %v1723
        %v1780 = vadd.f32 %v1779, %v1725
        %v1781 = vadd.f32 %v1780, %v1727
        %v1782 = vadd.f32 %v1781, %v1729
        %v1783 = vadd.f32 %v1782, %v1731
        %v1784 = vadd.f32 %v1783, %v1733
        %v1785 = vadd.f32 %v1784, %v1735
        %v1786 = vadd.f32 %v1785, %v1737
        %v1787 = vadd.f32 %v1786, %v1739
        %v1788 = vadd.f32 %v1787, %v1741
        %v1789 = vadd.f32 %v1788, %v1743
        %v1790 = vadd.f32 %v1789, %v1745
        %v1791 = vadd.f32 %v1790, %v1747
        %v1792 = vadd.f32 %v1791, %v1749
        %v1793 = vadd.f32 %v1792, %v1751
        %v1794 = vadd.f32 %v1793, %v1753
        %v1795 = vadd.f32 %v1794, %v1755
        %v1796 = vadd.f32 %v1795, %v1757
        %v1797 = vadd.f32 %v1796, %v1759
        %v1798 = vadd.f32 %v1797, %v1761
        %v1799 = vadd.f32 %v1798, %v1763
        %v1800 = vadd.f32 %v1799, %v1765
        %v1801 = vadd.f32 %v1800, %v1767
        %v1802 = vadd.f32 %v1801, %v1769
        %v1803 = vadd.f32 %v1802, %v1771
        %v1804 = vrot.slane %v1803, 4
        %v1805 = vadd.f32 %v1803, %v1804
        %v1806 = vrot.slane %v1805, 2
        %v1807 = vadd.f32 %v1805, %v1806
        %v1808 = vrot.slane %v1807, 1
        %v1809 = vadd.f32 %v1807, %v1808
        %v1810 = vadd.f32 %v1710, %v1712
        %v1811 = vadd.f32 %v1810, %v1714
        %v1812 = vadd.f32 %v1811, %v1716
        %v1813 = vadd.f32 %v1812, %v1718
        %v1814 = vadd.f32 %v1813, %v1720
        %v1815 = vadd.f32 %v1814, %v1722
        %v1816 = vadd.f32 %v1815, %v1724
        %v1817 = vadd.f32 %v1816, %v1726
        %v1818 = vadd.f32 %v1817, %v1728
        %v1819 = vadd.f32 %v1818, %v1730
        %v1820 = vadd.f32 %v1819, %v1732
        %v1821 = vadd.f32 %v1820, %v1734
        %v1822 = vadd.f32 %v1821, %v1736
        %v1823 = vadd.f32 %v1822, %v1738
        %v1824 = vadd.f32 %v1823, %v1740
        %v1825 = vadd.f32 %v1824, %v1742
        %v1826 = vadd.f32 %v1825, %v1744
        %v1827 = vadd.f32 %v1826, %v1746
        %v1828 = vadd.f32 %v1827, %v1748
        %v1829 = vadd.f32 %v1828, %v1750
        %v1830 = vadd.f32 %v1829, %v1752
        %v1831 = vadd.f32 %v1830, %v1754
        %v1832 = vadd.f32 %v1831, %v1756
        %v1833 = vadd.f32 %v1832, %v1758
        %v1834 = vadd.f32 %v1833, %v1760
        %v1835 = vadd.f32 %v1834, %v1762
        %v1836 = vadd.f32 %v1835, %v1764
        %v1837 = vadd.f32 %v1836, %v1766
        %v1838 = vadd.f32 %v1837, %v1768
        %v1839 = vadd.f32 %v1838, %v1770
        %v1840 = vadd.f32 %v1839, %v1772
        %v1841 = vrot.slane %v1840, 4
        %v1842 = vadd.f32 %v1840, %v1841
        %v1843 = vrot.slane %v1842, 2
        %v1844 = vadd.f32 %v1842, %v1843
        %v1845 = vrot.slane %v1844, 1
        %v1846 = vadd.f32 %v1844, %v1845
        %v1847 = vmul.f32 %v1709, %v1709
        %v1848 = vmul.f32 %v1710, %v1710
        %v1849 = vmul.f32 %v1711, %v1711
        %v1850 = vmul.f32 %v1712, %v1712
        %v1851 = vmul.f32 %v1713, %v1713
        %v1852 = vmul.f32 %v1714, %v1714
        %v1853 = vmul.f32 %v1715, %v1715
        %v1854 = vmul.f32 %v1716, %v1716
        %v1855 = vmul.f32 %v1717, %v1717
        %v1856 = vmul.f32 %v1718, %v1718
        %v1857 = vmul.f32 %v1719, %v1719
        %v1858 = vmul.f32 %v1720, %v1720
        %v1859 = vmul.f32 %v1721, %v1721
        %v1860 = vmul.f32 %v1722, %v1722
        %v1861 = vmul.f32 %v1723, %v1723
        %v1862 = vmul.f32 %v1724, %v1724
        %v1863 = vmul.f32 %v1725, %v1725
        %v1864 = vmul.f32 %v1726, %v1726
        %v1865 = vmul.f32 %v1727, %v1727
        %v1866 = vmul.f32 %v1728, %v1728
        %v1867 = vmul.f32 %v1729, %v1729
        %v1868 = vmul.f32 %v1730, %v1730
        %v1869 = vmul.f32 %v1731, %v1731
        %v1870 = vmul.f32 %v1732, %v1732
        %v1871 = vmul.f32 %v1733, %v1733
        %v1872 = vmul.f32 %v1734, %v1734
        %v1873 = vmul.f32 %v1735, %v1735
        %v1874 = vmul.f32 %v1736, %v1736
        %v1875 = vmul.f32 %v1737, %v1737
        %v1876 = vmul.f32 %v1738, %v1738
        %v1877 = vmul.f32 %v1739, %v1739
        %v1878 = vmul.f32 %v1740, %v1740
        %v1879 = vmul.f32 %v1741, %v1741
        %v1880 = vmul.f32 %v1742, %v1742
        %v1881 = vmul.f32 %v1743, %v1743
        %v1882 = vmul.f32 %v1744, %v1744
        %v1883 = vmul.f32 %v1745, %v1745
        %v1884 = vmul.f32 %v1746, %v1746
        %v1885 = vmul.f32 %v1747, %v1747
        %v1886 = vmul.f32 %v1748, %v1748
        %v1887 = vmul.f32 %v1749, %v1749
        %v1888 = vmul.f32 %v1750, %v1750
        %v1889 = vmul.f32 %v1751, %v1751
        %v1890 = vmul.f32 %v1752, %v1752
        %v1891 = vmul.f32 %v1753, %v1753
        %v1892 = vmul.f32 %v1754, %v1754
        %v1893 = vmul.f32 %v1755, %v1755
        %v1894 = vmul.f32 %v1756, %v1756
        %v1895 = vmul.f32 %v1757, %v1757
        %v1896 = vmul.f32 %v1758, %v1758
        %v1897 = vmul.f32 %v1759, %v1759
        %v1898 = vmul.f32 %v1760, %v1760
        %v1899 = vmul.f32 %v1761, %v1761
        %v1900 = vmul.f32 %v1762, %v1762
        %v1901 = vmul.f32 %v1763, %v1763
        %v1902 = vmul.f32 %v1764, %v1764
        %v1903 = vmul.f32 %v1765, %v1765
        %v1904 = vmul.f32 %v1766, %v1766
        %v1905 = vmul.f32 %v1767, %v1767
        %v1906 = vmul.f32 %v1768, %v1768
        %v1907 = vmul.f32 %v1769, %v1769
        %v1908 = vmul.f32 %v1770, %v1770
        %v1909 = vmul.f32 %v1771, %v1771
        %v1910 = vmul.f32 %v1772, %v1772
        %v1911 = vadd.f32 %v1847, %v1849
        %v1912 = vadd.f32 %v1911, %v1851
        %v1913 = vadd.f32 %v1912, %v1853
        %v1914 = vadd.f32 %v1913, %v1855
        %v1915 = vadd.f32 %v1914, %v1857
        %v1916 = vadd.f32 %v1915, %v1859
        %v1917 = vadd.f32 %v1916, %v1861
        %v1918 = vadd.f32 %v1917, %v1863
        %v1919 = vadd.f32 %v1918, %v1865
        %v1920 = vadd.f32 %v1919, %v1867
        %v1921 = vadd.f32 %v1920, %v1869
        %v1922 = vadd.f32 %v1921, %v1871
        %v1923 = vadd.f32 %v1922, %v1873
        %v1924 = vadd.f32 %v1923, %v1875
        %v1925 = vadd.f32 %v1924, %v1877
        %v1926 = vadd.f32 %v1925, %v1879
        %v1927 = vadd.f32 %v1926, %v1881
        %v1928 = vadd.f32 %v1927, %v1883
        %v1929 = vadd.f32 %v1928, %v1885
        %v1930 = vadd.f32 %v1929, %v1887
        %v1931 = vadd.f32 %v1930, %v1889
        %v1932 = vadd.f32 %v1931, %v1891
        %v1933 = vadd.f32 %v1932, %v1893
        %v1934 = vadd.f32 %v1933, %v1895
        %v1935 = vadd.f32 %v1934, %v1897
        %v1936 = vadd.f32 %v1935, %v1899
        %v1937 = vadd.f32 %v1936, %v1901
        %v1938 = vadd.f32 %v1937, %v1903
        %v1939 = vadd.f32 %v1938, %v1905
        %v1940 = vadd.f32 %v1939, %v1907
        %v1941 = vadd.f32 %v1940, %v1909
        %v1942 = vrot.slane %v1941, 4
        %v1943 = vadd.f32 %v1941, %v1942
        %v1944 = vrot.slane %v1943, 2
        %v1945 = vadd.f32 %v1943, %v1944
        %v1946 = vrot.slane %v1945, 1
        %v1947 = vadd.f32 %v1945, %v1946
        %v1948 = vadd.f32 %v1848, %v1850
        %v1949 = vadd.f32 %v1948, %v1852
        %v1950 = vadd.f32 %v1949, %v1854
        %v1951 = vadd.f32 %v1950, %v1856
        %v1952 = vadd.f32 %v1951, %v1858
        %v1953 = vadd.f32 %v1952, %v1860
        %v1954 = vadd.f32 %v1953, %v1862
        %v1955 = vadd.f32 %v1954, %v1864
        %v1956 = vadd.f32 %v1955, %v1866
        %v1957 = vadd.f32 %v1956, %v1868
        %v1958 = vadd.f32 %v1957, %v1870
        %v1959 = vadd.f32 %v1958, %v1872
        %v1960 = vadd.f32 %v1959, %v1874
        %v1961 = vadd.f32 %v1960, %v1876
        %v1962 = vadd.f32 %v1961, %v1878
        %v1963 = vadd.f32 %v1962, %v1880
        %v1964 = vadd.f32 %v1963, %v1882
        %v1965 = vadd.f32 %v1964, %v1884
        %v1966 = vadd.f32 %v1965, %v1886
        %v1967 = vadd.f32 %v1966, %v1888
        %v1968 = vadd.f32 %v1967, %v1890
        %v1969 = vadd.f32 %v1968, %v1892
        %v1970 = vadd.f32 %v1969, %v1894
        %v1971 = vadd.f32 %v1970, %v1896
        %v1972 = vadd.f32 %v1971, %v1898
        %v1973 = vadd.f32 %v1972, %v1900
        %v1974 = vadd.f32 %v1973, %v1902
        %v1975 = vadd.f32 %v1974, %v1904
        %v1976 = vadd.f32 %v1975, %v1906
        %v1977 = vadd.f32 %v1976, %v1908
        %v1978 = vadd.f32 %v1977, %v1910
        %v1979 = vrot.slane %v1978, 4
        %v1980 = vadd.f32 %v1978, %v1979
        %v1981 = vrot.slane %v1980, 2
        %v1982 = vadd.f32 %v1980, %v1981
        %v1983 = vrot.slane %v1982, 1
        %v1984 = vadd.f32 %v1982, %v1983
        %vm1985 = vcmask 1040384
        %v1986 = vsel %vm1985, %v1809, %v1947
        %v1987 = vsel %vm1985, %v1846, %v1984
        %v1988 = vld [vmem:[%s4] sm:$0xff]
        %v1989 = vld [vmem:[%s4 + $0x8] sm:$0xff]
        %v1990 = vld [vmem:[%s4 + $0x10] sm:$0xff]
        %v1991 = vld [vmem:[%s4 + $0x18] sm:$0xff]
        %v1992 = vld [vmem:[%s4 + $0x20] sm:$0xff]
        %v1993 = vld [vmem:[%s4 + $0x28] sm:$0xff]
        %v1994 = vld [vmem:[%s4 + $0x30] sm:$0xff]
        %v1995 = vld [vmem:[%s4 + $0x38] sm:$0xff]
        %v1996 = vld [vmem:[%s4 + $0x40] sm:$0xff]
        %v1997 = vld [vmem:[%s4 + $0x48] sm:$0xff]
        %v1998 = vld [vmem:[%s4 + $0x50] sm:$0xff]
        %v1999 = vld [vmem:[%s4 + $0x58] sm:$0xff]
        %v2000 = vld [vmem:[%s4 + $0x60] sm:$0xff]
        %v2001 = vld [vmem:[%s4 + $0x68] sm:$0xff]
        %v2002 = vld [vmem:[%s4 + $0x70] sm:$0xff]
        %v2003 = vld [vmem:[%s4 + $0x78] sm:$0xff]
        %v2004 = vld [vmem:[%s4 + $0x80] sm:$0xff]
        %v2005 = vld [vmem:[%s4 + $0x88] sm:$0xff]
        %v2006 = vld [vmem:[%s4 + $0x90] sm:$0xff]
        %v2007 = vld [vmem:[%s4 + $0x98] sm:$0xff]
        %v2008 = vld [vmem:[%s4 + $0xa0] sm:$0xff]
        %v2009 = vld [vmem:[%s4 + $0xa8] sm:$0xff]
        %v2010 = vld [vmem:[%s4 + $0xb0] sm:$0xff]
        %v2011 = vld [vmem:[%s4 + $0xb8] sm:$0xff]
        %v2012 = vld [vmem:[%s4 + $0xc0] sm:$0xff]
        %v2013 = vld [vmem:[%s4 + $0xc8] sm:$0xff]
        %v2014 = vld [vmem:[%s4 + $0xd0] sm:$0xff]
        %v2015 = vld [vmem:[%s4 + $0xd8] sm:$0xff]
        %v2016 = vld [vmem:[%s4 + $0xe0] sm:$0xff]
        %v2017 = vld [vmem:[%s4 + $0xe8] sm:$0xff]
        %v2018 = vld [vmem:[%s4 + $0xf0] sm:$0xff]
        %v2019 = vld [vmem:[%s4 + $0xf8] sm:$0xff]
        %v2020 = vld [vmem:[%s4 + $0x100] sm:$0xff]
        %v2021 = vld [vmem:[%s4 + $0x108] sm:$0xff]
        %v2022 = vld [vmem:[%s4 + $0x110] sm:$0xff]
        %v2023 = vld [vmem:[%s4 + $0x118] sm:$0xff]
        %v2024 = vld [vmem:[%s4 + $0x120] sm:$0xff]
        %v2025 = vld [vmem:[%s4 + $0x128] sm:$0xff]
        %v2026 = vld [vmem:[%s4 + $0x130] sm:$0xff]
        %v2027 = vld [vmem:[%s4 + $0x138] sm:$0xff]
        %v2028 = vld [vmem:[%s4 + $0x140] sm:$0xff]
        %v2029 = vld [vmem:[%s4 + $0x148] sm:$0xff]
        %v2030 = vld [vmem:[%s4 + $0x150] sm:$0xff]
        %v2031 = vld [vmem:[%s4 + $0x158] sm:$0xff]
        %v2032 = vld [vmem:[%s4 + $0x160] sm:$0xff]
        %v2033 = vld [vmem:[%s4 + $0x168] sm:$0xff]
        %v2034 = vld [vmem:[%s4 + $0x170] sm:$0xff]
        %v2035 = vld [vmem:[%s4 + $0x178] sm:$0xff]
        %v2036 = vld [vmem:[%s4 + $0x180] sm:$0xff]
        %v2037 = vld [vmem:[%s4 + $0x188] sm:$0xff]
        %v2038 = vld [vmem:[%s4 + $0x190] sm:$0xff]
        %v2039 = vld [vmem:[%s4 + $0x198] sm:$0xff]
        %v2040 = vld [vmem:[%s4 + $0x1a0] sm:$0xff]
        %v2041 = vld [vmem:[%s4 + $0x1a8] sm:$0xff]
        %v2042 = vld [vmem:[%s4 + $0x1b0] sm:$0xff]
        %v2043 = vld [vmem:[%s4 + $0x1b8] sm:$0xff]
        %v2044 = vld [vmem:[%s4 + $0x1c0] sm:$0xff]
        %v2045 = vld [vmem:[%s4 + $0x1c8] sm:$0xff]
        %v2046 = vld [vmem:[%s4 + $0x1d0] sm:$0xff]
        %v2047 = vld [vmem:[%s4 + $0x1d8] sm:$0xff]
        %v2048 = vld [vmem:[%s4 + $0x1e0] sm:$0xff]
        %v2049 = vld [vmem:[%s4 + $0x1e8] sm:$0xff]
        %v2050 = vld [vmem:[%s4 + $0x1f0] sm:$0xff]
        %v2051 = vld [vmem:[%s4 + $0x1f8] sm:$0xff]
        %2052 = vmatprep.subr.mxu0 %v1989
        %2053 = vmatpush1.msra.mxu0 %v1988
        %2054 = vmatprep.subr.mxu0 %v1991
        %2055 = vmatpush1.msra.mxu0 %v1990
        %2056 = vmatprep.subr.mxu0 %v1993
        %2057 = vmatpush1.msra.mxu0 %v1992
        %2058 = vmatprep.subr.mxu0 %v1995
        %2059 = vmatpush1.msra.mxu0 %v1994
        %2060 = vmatprep.subr.mxu0 %v1997
        %2061 = vmatpush1.msra.mxu0 %v1996
        %2062 = vmatprep.subr.mxu0 %v1999
        %2063 = vmatpush1.msra.mxu0 %v1998
        %2064 = vmatprep.subr.mxu0 %v2001
        %2065 = vmatpush1.msra.mxu0 %v2000
        %2066 = vmatprep.subr.mxu0 %v2003
        %2067 = vmatpush1.msra.mxu0 %v2002
        %2068 = vmatprep.subr.mxu0 %v2005
        %2069 = vmatpush1.msra.mxu0 %v2004
        %2070 = vmatprep.subr.mxu0 %v2007
        %2071 = vmatpush1.msra.mxu0 %v2006
        %2072 = vmatprep.subr.mxu0 %v2009
        %2073 = vmatpush1.msra.mxu0 %v2008
        %2074 = vmatprep.subr.mxu0 %v2011
        %2075 = vmatpush1.msra.mxu0 %v2010
        %2076 = vmatprep.subr.mxu0 %v2013
        %2077 = vmatpush1.msra.mxu0 %v2012
        %2078 = vmatprep.subr.mxu0 %v2015
        %2079 = vmatpush1.msra.mxu0 %v2014
        %2080 = vmatprep.subr.mxu0 %v2017
        %2081 = vmatpush1.msra.mxu0 %v2016
        %2082 = vmatprep.subr.mxu0 %v2019
        %2083 = vmatpush1.msra.mxu0 %v2018
        %2084 = vmatprep.subr.mxu0 %v2021
        %2085 = vmatpush1.msra.mxu0 %v2020
        %2086 = vmatprep.subr.mxu0 %v2023
        %2087 = vmatpush1.msra.mxu0 %v2022
        %2088 = vmatprep.subr.mxu0 %v2025
        %2089 = vmatpush1.msra.mxu0 %v2024
        %2090 = vmatprep.subr.mxu0 %v2027
        %2091 = vmatpush1.msra.mxu0 %v2026
        %2092 = vmatprep.subr.mxu0 %v2029
        %2093 = vmatpush1.msra.mxu0 %v2028
        %2094 = vmatprep.subr.mxu0 %v2031
        %2095 = vmatpush1.msra.mxu0 %v2030
        %2096 = vmatprep.subr.mxu0 %v2033
        %2097 = vmatpush1.msra.mxu0 %v2032
        %2098 = vmatprep.subr.mxu0 %v2035
        %2099 = vmatpush1.msra.mxu0 %v2034
        %2100 = vmatprep.subr.mxu0 %v2037
        %2101 = vmatpush1.msra.mxu0 %v2036
        %2102 = vmatprep.subr.mxu0 %v2039
        %2103 = vmatpush1.msra.mxu0 %v2038
        %2104 = vmatprep.subr.mxu0 %v2041
        %2105 = vmatpush1.msra.mxu0 %v2040
        %2106 = vmatprep.subr.mxu0 %v2043
        %2107 = vmatpush1.msra.mxu0 %v2042
        %2108 = vmatprep.subr.mxu0 %v2045
        %2109 = vmatpush1.msra.mxu0 %v2044
        %2110 = vmatprep.subr.mxu0 %v2047
        %2111 = vmatpush1.msra.mxu0 %v2046
        %2112 = vmatprep.subr.mxu0 %v2049
        %2113 = vmatpush1.msra.mxu0 %v2048
        %2114 = vmatprep.subr.mxu0 %v2051
        %2115 = vmatpush1.msra.mxu0 %v2050
        %2116 = vmatprep.mubr.f32.mxu0 %v1987
        %2117 = vmatmul.mubr.f32.gmra.mrb[0].mxu0 %v1986
        %v2118 = vpop.f32.mrb[0].mxu0
        %v2119 = vadd.f32 0.0, %v2118
        %v2120 = vpop.f32.mrb[0].mxu0
        %v2121 = vadd.f32 0.0, %v2120
        %2122 = vdwg.mxu0
        %v2123 = vmul.f32 %v2119, %v2119
        %v2124 = vmul.f32 %v2121, %v2121
        %v2127 = vrot.slane %v2123, 7
        %v2128 = vrot.slane %v2124, 7
        %v2131 = vsub.f32 %v2119, %v2127
        %v2132 = vsub.f32 %v2121, %v2128
        %v2133 = vmax.f32 %v2131, 0.0
        %v2134 = vmax.f32 %v2132, 0.0
        %v2135 = vadd.f32 %v2133, 1e-05
        %v2136 = vadd.f32 %v2134, 1e-05
        %v2137 = vrsqrt.pop %v2135
        %v2138 = vrsqrt.pop %v2136
        %v2139 = vlaneseq
        %v2140 = vshrl.u32 %v2139, 7
        %v2141 = vsub.s32 0, %v2140
        %v2142 = vrot.slane %v2119, %v2141
        %v2143 = vlaneseq
        %v2144 = vshrl.u32 %v2143, 7
        %v2145 = vsub.s32 0, %v2144
        %v2146 = vrot.slane %v2121, %v2145
        %v2147 = vsub.f32 %v1709, %v2142
        %v2148 = vsub.f32 %v1710, %v2146
        %v2149 = vsub.f32 %v1711, %v2142
        %v2150 = vsub.f32 %v1712, %v2146
        %v2151 = vsub.f32 %v1713, %v2142
        %v2152 = vsub.f32 %v1714, %v2146
        %v2153 = vsub.f32 %v1715, %v2142
        %v2154 = vsub.f32 %v1716, %v2146
        %v2155 = vsub.f32 %v1717, %v2142
        %v2156 = vsub.f32 %v1718, %v2146
        %v2157 = vsub.f32 %v1719, %v2142
        %v2158 = vsub.f32 %v1720, %v2146
        %v2159 = vsub.f32 %v1721, %v2142
        %v2160 = vsub.f32 %v1722, %v2146
        %v2161 = vsub.f32 %v1723, %v2142
        %v2162 = vsub.f32 %v1724, %v2146
        %v2163 = vsub.f32 %v1725, %v2142
        %v2164 = vsub.f32 %v1726, %v2146
        %v2165 = vsub.f32 %v1727, %v2142
        %v2166 = vsub.f32 %v1728, %v2146
        %v2167 = vsub.f32 %v1729, %v2142
        %v2168 = vsub.f32 %v1730, %v2146
        %v2169 = vsub.f32 %v1731, %v2142
        %v2170 = vsub.f32 %v1732, %v2146
        %v2171 = vsub.f32 %v1733, %v2142
        %v2172 = vsub.f32 %v1734, %v2146
        %v2173 = vsub.f32 %v1735, %v2142
        %v2174 = vsub.f32 %v1736, %v2146
        %v2175 = vsub.f32 %v1737, %v2142
        %v2176 = vsub.f32 %v1738, %v2146
        %v2177 = vsub.f32 %v1739, %v2142
        %v2178 = vsub.f32 %v1740, %v2146
        %v2179 = vsub.f32 %v1741, %v2142
        %v2180 = vsub.f32 %v1742, %v2146
        %v2181 = vsub.f32 %v1743, %v2142
        %v2182 = vsub.f32 %v1744, %v2146
        %v2183 = vsub.f32 %v1745, %v2142
        %v2184 = vsub.f32 %v1746, %v2146
        %v2185 = vsub.f32 %v1747, %v2142
        %v2186 = vsub.f32 %v1748, %v2146
        %v2187 = vsub.f32 %v1749, %v2142
        %v2188 = vsub.f32 %v1750, %v2146
        %v2189 = vsub.f32 %v1751, %v2142
        %v2190 = vsub.f32 %v1752, %v2146
        %v2191 = vsub.f32 %v1753, %v2142
        %v2192 = vsub.f32 %v1754, %v2146
        %v2193 = vsub.f32 %v1755, %v2142
        %v2194 = vsub.f32 %v1756, %v2146
        %v2195 = vsub.f32 %v1757, %v2142
        %v2196 = vsub.f32 %v1758, %v2146
        %v2197 = vsub.f32 %v1759, %v2142
        %v2198 = vsub.f32 %v1760, %v2146
        %v2199 = vsub.f32 %v1761, %v2142
        %v2200 = vsub.f32 %v1762, %v2146
        %v2201 = vsub.f32 %v1763, %v2142
        %v2202 = vsub.f32 %v1764, %v2146
        %v2203 = vsub.f32 %v1765, %v2142
        %v2204 = vsub.f32 %v1766, %v2146
        %v2205 = vsub.f32 %v1767, %v2142
        %v2206 = vsub.f32 %v1768, %v2146
        %v2207 = vsub.f32 %v1769, %v2142
        %v2208 = vsub.f32 %v1770, %v2146
        %v2209 = vsub.f32 %v1771, %v2142
        %v2210 = vsub.f32 %v1772, %v2146
        %v2211 = vlaneseq
        %v2212 = vshrl.u32 %v2211, 7
        %v2213 = vsub.s32 1, %v2212
        %v2214 = vrot.slane %v2137, %v2213
        %v2215 = vlaneseq
        %v2216 = vshrl.u32 %v2215, 7
        %v2217 = vsub.s32 1, %v2216
        %v2218 = vrot.slane %v2138, %v2217
        %v2219 = vmul.f32 %v2147, %v2214
        %v2220 = vmul.f32 %v2148, %v2218
        %v2221 = vmul.f32 %v2149, %v2214
        %v2222 = vmul.f32 %v2150, %v2218
        %v2223 = vmul.f32 %v2151, %v2214
        %v2224 = vmul.f32 %v2152, %v2218
        %v2225 = vmul.f32 %v2153, %v2214
        %v2226 = vmul.f32 %v2154, %v2218
        %v2227 = vmul.f32 %v2155, %v2214
        %v2228 = vmul.f32 %v2156, %v2218
        %v2229 = vmul.f32 %v2157, %v2214
        %v2230 = vmul.f32 %v2158, %v2218
        %v2231 = vmul.f32 %v2159, %v2214
        %v2232 = vmul.f32 %v2160, %v2218
        %v2233 = vmul.f32 %v2161, %v2214
        %v2234 = vmul.f32 %v2162, %v2218
        %v2235 = vmul.f32 %v2163, %v2214
        %v2236 = vmul.f32 %v2164, %v2218
        %v2237 = vmul.f32 %v2165, %v2214
        %v2238 = vmul.f32 %v2166, %v2218
        %v2239 = vmul.f32 %v2167, %v2214
        %v2240 = vmul.f32 %v2168, %v2218
        %v2241 = vmul.f32 %v2169, %v2214
        %v2242 = vmul.f32 %v2170, %v2218
        %v2243 = vmul.f32 %v2171, %v2214
        %v2244 = vmul.f32 %v2172, %v2218
        %v2245 = vmul.f32 %v2173, %v2214
        %v2246 = vmul.f32 %v2174, %v2218
        %v2247 = vmul.f32 %v2175, %v2214
        %v2248 = vmul.f32 %v2176, %v2218
        %v2249 = vmul.f32 %v2177, %v2214
        %v2250 = vmul.f32 %v2178, %v2218
        %v2251 = vmul.f32 %v2179, %v2214
        %v2252 = vmul.f32 %v2180, %v2218
        %v2253 = vmul.f32 %v2181, %v2214
        %v2254 = vmul.f32 %v2182, %v2218
        %v2255 = vmul.f32 %v2183, %v2214
        %v2256 = vmul.f32 %v2184, %v2218
        %v2257 = vmul.f32 %v2185, %v2214
        %v2258 = vmul.f32 %v2186, %v2218
        %v2259 = vmul.f32 %v2187, %v2214
        %v2260 = vmul.f32 %v2188, %v2218
        %v2261 = vmul.f32 %v2189, %v2214
        %v2262 = vmul.f32 %v2190, %v2218
        %v2263 = vmul.f32 %v2191, %v2214
        %v2264 = vmul.f32 %v2192, %v2218
        %v2265 = vmul.f32 %v2193, %v2214
        %v2266 = vmul.f32 %v2194, %v2218
        %v2267 = vmul.f32 %v2195, %v2214
        %v2268 = vmul.f32 %v2196, %v2218
        %v2269 = vmul.f32 %v2197, %v2214
        %v2270 = vmul.f32 %v2198, %v2218
        %v2271 = vmul.f32 %v2199, %v2214
        %v2272 = vmul.f32 %v2200, %v2218
        %v2273 = vmul.f32 %v2201, %v2214
        %v2274 = vmul.f32 %v2202, %v2218
        %v2275 = vmul.f32 %v2203, %v2214
        %v2276 = vmul.f32 %v2204, %v2218
        %v2277 = vmul.f32 %v2205, %v2214
        %v2278 = vmul.f32 %v2206, %v2218
        %v2279 = vmul.f32 %v2207, %v2214
        %v2280 = vmul.f32 %v2208, %v2218
        %v2281 = vmul.f32 %v2209, %v2214
        %v2282 = vmul.f32 %v2210, %v2218
        %s2283 = scalar_lea.vmem %s6, 1
        %v2284 = vld [vmem:[%s2283] ss:$8 sm:$0x3]
        %v2286 = vlaneseq
        %v2287 = vshrl.u32 %v2286, 7
        %v2288 = vsub.s32 0, %v2287
        %v2289 = vrot.slane %v2284, %v2288
        %v2290 = vlaneseq
        %v2291 = vshrl.u32 %v2290, 7
        %v2292 = vsub.s32 1, %v2291
        %v2293 = vrot.slane %v2284, %v2292
        %v2296 = vmul.f32 %v2219, %v2289
        %v2297 = vmul.f32 %v2220, %v2293
        %v2298 = vmul.f32 %v2221, %v2289
        %v2299 = vmul.f32 %v2222, %v2293
        %v2300 = vmul.f32 %v2223, %v2289
        %v2301 = vmul.f32 %v2224, %v2293
        %v2302 = vmul.f32 %v2225, %v2289
        %v2303 = vmul.f32 %v2226, %v2293
        %v2304 = vmul.f32 %v2227, %v2289
        %v2305 = vmul.f32 %v2228, %v2293
        %v2306 = vmul.f32 %v2229, %v2289
        %v2307 = vmul.f32 %v2230, %v2293
        %v2308 = vmul.f32 %v2231, %v2289
        %v2309 = vmul.f32 %v2232, %v2293
        %v2310 = vmul.f32 %v2233, %v2289
        %v2311 = vmul.f32 %v2234, %v2293
        %v2312 = vmul.f32 %v2235, %v2289
        %v2313 = vmul.f32 %v2236, %v2293
        %v2314 = vmul.f32 %v2237, %v2289
        %v2315 = vmul.f32 %v2238, %v2293
        %v2316 = vmul.f32 %v2239, %v2289
        %v2317 = vmul.f32 %v2240, %v2293
        %v2318 = vmul.f32 %v2241, %v2289
        %v2319 = vmul.f32 %v2242, %v2293
        %v2320 = vmul.f32 %v2243, %v2289
        %v2321 = vmul.f32 %v2244, %v2293
        %v2322 = vmul.f32 %v2245, %v2289
        %v2323 = vmul.f32 %v2246, %v2293
        %v2324 = vmul.f32 %v2247, %v2289
        %v2325 = vmul.f32 %v2248, %v2293
        %v2326 = vmul.f32 %v2249, %v2289
        %v2327 = vmul.f32 %v2250, %v2293
        %v2328 = vmul.f32 %v2251, %v2289
        %v2329 = vmul.f32 %v2252, %v2293
        %v2330 = vmul.f32 %v2253, %v2289
        %v2331 = vmul.f32 %v2254, %v2293
        %v2332 = vmul.f32 %v2255, %v2289
        %v2333 = vmul.f32 %v2256, %v2293
        %v2334 = vmul.f32 %v2257, %v2289
        %v2335 = vmul.f32 %v2258, %v2293
        %v2336 = vmul.f32 %v2259, %v2289
        %v2337 = vmul.f32 %v2260, %v2293
        %v2338 = vmul.f32 %v2261, %v2289
        %v2339 = vmul.f32 %v2262, %v2293
        %v2340 = vmul.f32 %v2263, %v2289
        %v2341 = vmul.f32 %v2264, %v2293
        %v2342 = vmul.f32 %v2265, %v2289
        %v2343 = vmul.f32 %v2266, %v2293
        %v2344 = vmul.f32 %v2267, %v2289
        %v2345 = vmul.f32 %v2268, %v2293
        %v2346 = vmul.f32 %v2269, %v2289
        %v2347 = vmul.f32 %v2270, %v2293
        %v2348 = vmul.f32 %v2271, %v2289
        %v2349 = vmul.f32 %v2272, %v2293
        %v2350 = vmul.f32 %v2273, %v2289
        %v2351 = vmul.f32 %v2274, %v2293
        %v2352 = vmul.f32 %v2275, %v2289
        %v2353 = vmul.f32 %v2276, %v2293
        %v2354 = vmul.f32 %v2277, %v2289
        %v2355 = vmul.f32 %v2278, %v2293
        %v2356 = vmul.f32 %v2279, %v2289
        %v2357 = vmul.f32 %v2280, %v2293
        %v2358 = vmul.f32 %v2281, %v2289
        %v2359 = vmul.f32 %v2282, %v2293
        %s2360 = scalar_lea.vmem %s6, 2
        %v2361 = vld [vmem:[%s2360] ss:$8 sm:$0x3]
        %v2363 = vlaneseq
        %v2364 = vshrl.u32 %v2363, 7
        %v2365 = vsub.s32 0, %v2364
        %v2366 = vrot.slane %v2361, %v2365
        %v2367 = vlaneseq
        %v2368 = vshrl.u32 %v2367, 7
        %v2369 = vsub.s32 1, %v2368
        %v2370 = vrot.slane %v2361, %v2369
        %v2373 = vadd.f32 %v2296, %v2366
        %v2374 = vadd.f32 %v2297, %v2370
        %v2375 = vadd.f32 %v2298, %v2366
        %v2376 = vadd.f32 %v2299, %v2370
        %v2377 = vadd.f32 %v2300, %v2366
        %v2378 = vadd.f32 %v2301, %v2370
        %v2379 = vadd.f32 %v2302, %v2366
        %v2380 = vadd.f32 %v2303, %v2370
        %v2381 = vadd.f32 %v2304, %v2366
        %v2382 = vadd.f32 %v2305, %v2370
        %v2383 = vadd.f32 %v2306, %v2366
        %v2384 = vadd.f32 %v2307, %v2370
        %v2385 = vadd.f32 %v2308, %v2366
        %v2386 = vadd.f32 %v2309, %v2370
        %v2387 = vadd.f32 %v2310, %v2366
        %v2388 = vadd.f32 %v2311, %v2370
        %v2389 = vadd.f32 %v2312, %v2366
        %v2390 = vadd.f32 %v2313, %v2370
        %v2391 = vadd.f32 %v2314, %v2366
        %v2392 = vadd.f32 %v2315, %v2370
        %v2393 = vadd.f32 %v2316, %v2366
        %v2394 = vadd.f32 %v2317, %v2370
        %v2395 = vadd.f32 %v2318, %v2366
        %v2396 = vadd.f32 %v2319, %v2370
        %v2397 = vadd.f32 %v2320, %v2366
        %v2398 = vadd.f32 %v2321, %v2370
        %v2399 = vadd.f32 %v2322, %v2366
        %v2400 = vadd.f32 %v2323, %v2370
        %v2401 = vadd.f32 %v2324, %v2366
        %v2402 = vadd.f32 %v2325, %v2370
        %v2403 = vadd.f32 %v2326, %v2366
        %v2404 = vadd.f32 %v2327, %v2370
        %v2405 = vadd.f32 %v2328, %v2366
        %v2406 = vadd.f32 %v2329, %v2370
        %v2407 = vadd.f32 %v2330, %v2366
        %v2408 = vadd.f32 %v2331, %v2370
        %v2409 = vadd.f32 %v2332, %v2366
        %v2410 = vadd.f32 %v2333, %v2370
        %v2411 = vadd.f32 %v2334, %v2366
        %v2412 = vadd.f32 %v2335, %v2370
        %v2413 = vadd.f32 %v2336, %v2366
        %v2414 = vadd.f32 %v2337, %v2370
        %v2415 = vadd.f32 %v2338, %v2366
        %v2416 = vadd.f32 %v2339, %v2370
        %v2417 = vadd.f32 %v2340, %v2366
        %v2418 = vadd.f32 %v2341, %v2370
        %v2419 = vadd.f32 %v2342, %v2366
        %v2420 = vadd.f32 %v2343, %v2370
        %v2421 = vadd.f32 %v2344, %v2366
        %v2422 = vadd.f32 %v2345, %v2370
        %v2423 = vadd.f32 %v2346, %v2366
        %v2424 = vadd.f32 %v2347, %v2370
        %v2425 = vadd.f32 %v2348, %v2366
        %v2426 = vadd.f32 %v2349, %v2370
        %v2427 = vadd.f32 %v2350, %v2366
        %v2428 = vadd.f32 %v2351, %v2370
        %v2429 = vadd.f32 %v2352, %v2366
        %v2430 = vadd.f32 %v2353, %v2370
        %v2431 = vadd.f32 %v2354, %v2366
        %v2432 = vadd.f32 %v2355, %v2370
        %v2433 = vadd.f32 %v2356, %v2366
        %v2434 = vadd.f32 %v2357, %v2370
        %v2435 = vadd.f32 %v2358, %v2366
        %v2436 = vadd.f32 %v2359, %v2370
        %2437 = vst [vmem:[#allocation3 + $0x20] sm:$0xff] %v2373
        %2438 = vst [vmem:[#allocation3 + $0x28] sm:$0xff] %v2374
        %2439 = vst [vmem:[#allocation3 + $0x30] sm:$0xff] %v2375
        %2440 = vst [vmem:[#allocation3 + $0x38] sm:$0xff] %v2376
        %2441 = vst [vmem:[#allocation3 + $0x40] sm:$0xff] %v2377
        %2442 = vst [vmem:[#allocation3 + $0x48] sm:$0xff] %v2378
        %2443 = vst [vmem:[#allocation3 + $0x50] sm:$0xff] %v2379
        %2444 = vst [vmem:[#allocation3 + $0x58] sm:$0xff] %v2380
        %2445 = vst [vmem:[#allocation3 + $0x60] sm:$0xff] %v2381
        %2446 = vst [vmem:[#allocation3 + $0x68] sm:$0xff] %v2382
        %2447 = vst [vmem:[#allocation3 + $0x70] sm:$0xff] %v2383
        %2448 = vst [vmem:[#allocation3 + $0x78] sm:$0xff] %v2384
        %2449 = vst [vmem:[#allocation3 + $0x80] sm:$0xff] %v2385
        %2450 = vst [vmem:[#allocation3 + $0x88] sm:$0xff] %v2386
        %2451 = vst [vmem:[#allocation3 + $0x90] sm:$0xff] %v2387
        %2452 = vst [vmem:[#allocation3 + $0x98] sm:$0xff] %v2388
        %2453 = vst [vmem:[#allocation3 + $0xa0] sm:$0xff] %v2389
        %2454 = vst [vmem:[#allocation3 + $0xa8] sm:$0xff] %v2390
        %2455 = vst [vmem:[#allocation3 + $0xb0] sm:$0xff] %v2391
        %2456 = vst [vmem:[#allocation3 + $0xb8] sm:$0xff] %v2392
        %2457 = vst [vmem:[#allocation3 + $0xc0] sm:$0xff] %v2393
        %2458 = vst [vmem:[#allocation3 + $0xc8] sm:$0xff] %v2394
        %2459 = vst [vmem:[#allocation3 + $0xd0] sm:$0xff] %v2395
        %2460 = vst [vmem:[#allocation3 + $0xd8] sm:$0xff] %v2396
        %2461 = vst [vmem:[#allocation3 + $0xe0] sm:$0xff] %v2397
        %2462 = vst [vmem:[#allocation3 + $0xe8] sm:$0xff] %v2398
        %2463 = vst [vmem:[#allocation3 + $0xf0] sm:$0xff] %v2399
        %2464 = vst [vmem:[#allocation3 + $0xf8] sm:$0xff] %v2400
        %2465 = vst [vmem:[#allocation3 + $0x100] sm:$0xff] %v2401
        %2466 = vst [vmem:[#allocation3 + $0x108] sm:$0xff] %v2402
        %2467 = vst [vmem:[#allocation3 + $0x110] sm:$0xff] %v2403
        %2468 = vst [vmem:[#allocation3 + $0x118] sm:$0xff] %v2404
        %2469 = vst [vmem:[#allocation3 + $0x120] sm:$0xff] %v2405
        %2470 = vst [vmem:[#allocation3 + $0x128] sm:$0xff] %v2406
        %2471 = vst [vmem:[#allocation3 + $0x130] sm:$0xff] %v2407
        %2472 = vst [vmem:[#allocation3 + $0x138] sm:$0xff] %v2408
        %2473 = vst [vmem:[#allocation3 + $0x140] sm:$0xff] %v2409
        %2474 = vst [vmem:[#allocation3 + $0x148] sm:$0xff] %v2410
        %2475 = vst [vmem:[#allocation3 + $0x150] sm:$0xff] %v2411
        %2476 = vst [vmem:[#allocation3 + $0x158] sm:$0xff] %v2412
        %2477 = vst [vmem:[#allocation3 + $0x160] sm:$0xff] %v2413
        %2478 = vst [vmem:[#allocation3 + $0x168] sm:$0xff] %v2414
        %2479 = vst [vmem:[#allocation3 + $0x170] sm:$0xff] %v2415
        %2480 = vst [vmem:[#allocation3 + $0x178] sm:$0xff] %v2416
        %2481 = vst [vmem:[#allocation3 + $0x180] sm:$0xff] %v2417
        %2482 = vst [vmem:[#allocation3 + $0x188] sm:$0xff] %v2418
        %2483 = vst [vmem:[#allocation3 + $0x190] sm:$0xff] %v2419
        %2484 = vst [vmem:[#allocation3 + $0x198] sm:$0xff] %v2420
        %2485 = vst [vmem:[#allocation3 + $0x1a0] sm:$0xff] %v2421
        %2486 = vst [vmem:[#allocation3 + $0x1a8] sm:$0xff] %v2422
        %2487 = vst [vmem:[#allocation3 + $0x1b0] sm:$0xff] %v2423
        %2488 = vst [vmem:[#allocation3 + $0x1b8] sm:$0xff] %v2424
        %2489 = vst [vmem:[#allocation3 + $0x1c0] sm:$0xff] %v2425
        %2490 = vst [vmem:[#allocation3 + $0x1c8] sm:$0xff] %v2426
        %2491 = vst [vmem:[#allocation3 + $0x1d0] sm:$0xff] %v2427
        %2492 = vst [vmem:[#allocation3 + $0x1d8] sm:$0xff] %v2428
        %2493 = vst [vmem:[#allocation3 + $0x1e0] sm:$0xff] %v2429
        %2494 = vst [vmem:[#allocation3 + $0x1e8] sm:$0xff] %v2430
        %2495 = vst [vmem:[#allocation3 + $0x1f0] sm:$0xff] %v2431
        %2496 = vst [vmem:[#allocation3 + $0x1f8] sm:$0xff] %v2432
        %2497 = vst [vmem:[#allocation3 + $0x200] sm:$0xff] %v2433
        %2498 = vst [vmem:[#allocation3 + $0x208] sm:$0xff] %v2434
        %2499 = vst [vmem:[#allocation3 + $0x210] sm:$0xff] %v2435
        %2500 = vst [vmem:[#allocation3 + $0x218] sm:$0xff] %v2436
        %v2501 = vld [vmem:[#allocation3 + $0x20] sm:$0xff]
        %v2502 = vld [vmem:[#allocation3 + $0x28] sm:$0xff]
        %v2503 = vld [vmem:[#allocation3 + $0x30] sm:$0xff]
        %v2504 = vld [vmem:[#allocation3 + $0x38] sm:$0xff]
        %v2505 = vld [vmem:[#allocation3 + $0x40] sm:$0xff]
        %v2506 = vld [vmem:[#allocation3 + $0x48] sm:$0xff]
        %v2507 = vld [vmem:[#allocation3 + $0x50] sm:$0xff]
        %v2508 = vld [vmem:[#allocation3 + $0x58] sm:$0xff]
        %v2509 = vld [vmem:[#allocation3 + $0x60] sm:$0xff]
        %v2510 = vld [vmem:[#allocation3 + $0x68] sm:$0xff]
        %v2511 = vld [vmem:[#allocation3 + $0x70] sm:$0xff]
        %v2512 = vld [vmem:[#allocation3 + $0x78] sm:$0xff]
        %v2513 = vld [vmem:[#allocation3 + $0x80] sm:$0xff]
        %v2514 = vld [vmem:[#allocation3 + $0x88] sm:$0xff]
        %v2515 = vld [vmem:[#allocation3 + $0x90] sm:$0xff]
        %v2516 = vld [vmem:[#allocation3 + $0x98] sm:$0xff]
        %v2517 = vld [vmem:[#allocation3 + $0xa0] sm:$0xff]
        %v2518 = vld [vmem:[#allocation3 + $0xa8] sm:$0xff]
        %v2519 = vld [vmem:[#allocation3 + $0xb0] sm:$0xff]
        %v2520 = vld [vmem:[#allocation3 + $0xb8] sm:$0xff]
        %v2521 = vld [vmem:[#allocation3 + $0xc0] sm:$0xff]
        %v2522 = vld [vmem:[#allocation3 + $0xc8] sm:$0xff]
        %v2523 = vld [vmem:[#allocation3 + $0xd0] sm:$0xff]
        %v2524 = vld [vmem:[#allocation3 + $0xd8] sm:$0xff]
        %v2525 = vld [vmem:[#allocation3 + $0xe0] sm:$0xff]
        %v2526 = vld [vmem:[#allocation3 + $0xe8] sm:$0xff]
        %v2527 = vld [vmem:[#allocation3 + $0xf0] sm:$0xff]
        %v2528 = vld [vmem:[#allocation3 + $0xf8] sm:$0xff]
        %v2529 = vld [vmem:[#allocation3 + $0x100] sm:$0xff]
        %v2530 = vld [vmem:[#allocation3 + $0x108] sm:$0xff]
        %v2531 = vld [vmem:[#allocation3 + $0x110] sm:$0xff]
        %v2532 = vld [vmem:[#allocation3 + $0x118] sm:$0xff]
        %v2533 = vld [vmem:[#allocation3 + $0x120] sm:$0xff]
        %v2534 = vld [vmem:[#allocation3 + $0x128] sm:$0xff]
        %v2535 = vld [vmem:[#allocation3 + $0x130] sm:$0xff]
        %v2536 = vld [vmem:[#allocation3 + $0x138] sm:$0xff]
        %v2537 = vld [vmem:[#allocation3 + $0x140] sm:$0xff]
        %v2538 = vld [vmem:[#allocation3 + $0x148] sm:$0xff]
        %v2539 = vld [vmem:[#allocation3 + $0x150] sm:$0xff]
        %v2540 = vld [vmem:[#allocation3 + $0x158] sm:$0xff]
        %v2541 = vld [vmem:[#allocation3 + $0x160] sm:$0xff]
        %v2542 = vld [vmem:[#allocation3 + $0x168] sm:$0xff]
        %v2543 = vld [vmem:[#allocation3 + $0x170] sm:$0xff]
        %v2544 = vld [vmem:[#allocation3 + $0x178] sm:$0xff]
        %v2545 = vld [vmem:[#allocation3 + $0x180] sm:$0xff]
        %v2546 = vld [vmem:[#allocation3 + $0x188] sm:$0xff]
        %v2547 = vld [vmem:[#allocation3 + $0x190] sm:$0xff]
        %v2548 = vld [vmem:[#allocation3 + $0x198] sm:$0xff]
        %v2549 = vld [vmem:[#allocation3 + $0x1a0] sm:$0xff]
        %v2550 = vld [vmem:[#allocation3 + $0x1a8] sm:$0xff]
        %v2551 = vld [vmem:[#allocation3 + $0x1b0] sm:$0xff]
        %v2552 = vld [vmem:[#allocation3 + $0x1b8] sm:$0xff]
        %v2553 = vld [vmem:[#allocation3 + $0x1c0] sm:$0xff]
        %v2554 = vld [vmem:[#allocation3 + $0x1c8] sm:$0xff]
        %v2555 = vld [vmem:[#allocation3 + $0x1d0] sm:$0xff]
        %v2556 = vld [vmem:[#allocation3 + $0x1d8] sm:$0xff]
        %v2557 = vld [vmem:[#allocation3 + $0x1e0] sm:$0xff]
        %v2558 = vld [vmem:[#allocation3 + $0x1e8] sm:$0xff]
        %v2559 = vld [vmem:[#allocation3 + $0x1f0] sm:$0xff]
        %v2560 = vld [vmem:[#allocation3 + $0x1f8] sm:$0xff]
        %v2561 = vld [vmem:[#allocation3 + $0x200] sm:$0xff]
        %v2562 = vld [vmem:[#allocation3 + $0x208] sm:$0xff]
        %v2563 = vld [vmem:[#allocation3 + $0x210] sm:$0xff]
        %v2564 = vld [vmem:[#allocation3 + $0x218] sm:$0xff]
        %v2565 = vrot.slane %v2501, 7
        %v2566 = vrot.slane %v2502, 7
        %v2567 = vrot.slane %v2503, 7
        %v2568 = vrot.slane %v2504, 7
        %v2569 = vrot.slane %v2505, 7
        %v2570 = vrot.slane %v2506, 7
        %v2571 = vrot.slane %v2507, 7
        %v2572 = vrot.slane %v2508, 7
        %v2573 = vrot.slane %v2509, 7
        %v2574 = vrot.slane %v2510, 7
        %v2575 = vrot.slane %v2511, 7
        %v2576 = vrot.slane %v2512, 7
        %v2577 = vrot.slane %v2513, 7
        %v2578 = vrot.slane %v2514, 7
        %v2579 = vrot.slane %v2515, 7
        %v2580 = vrot.slane %v2516, 7
        %v2581 = vrot.slane %v2517, 7
        %v2582 = vrot.slane %v2518, 7
        %v2583 = vrot.slane %v2519, 7
        %v2584 = vrot.slane %v2520, 7
        %v2585 = vrot.slane %v2521, 7
        %v2586 = vrot.slane %v2522, 7
        %v2587 = vrot.slane %v2523, 7
        %v2588 = vrot.slane %v2524, 7
        %v2589 = vrot.slane %v2525, 7
        %v2590 = vrot.slane %v2526, 7
        %v2591 = vrot.slane %v2527, 7
        %v2592 = vrot.slane %v2528, 7
        %v2593 = vrot.slane %v2529, 7
        %v2594 = vrot.slane %v2530, 7
        %v2595 = vrot.slane %v2531, 7
        %v2596 = vrot.slane %v2532, 7
        %v2597 = vrot.slane %v2533, 7
        %v2598 = vrot.slane %v2534, 7
        %v2599 = vrot.slane %v2535, 7
        %v2600 = vrot.slane %v2536, 7
        %v2601 = vrot.slane %v2537, 7
        %v2602 = vrot.slane %v2538, 7
        %v2603 = vrot.slane %v2539, 7
        %v2604 = vrot.slane %v2540, 7
        %v2605 = vrot.slane %v2541, 7
        %v2606 = vrot.slane %v2542, 7
        %v2607 = vrot.slane %v2543, 7
        %v2608 = vrot.slane %v2544, 7
        %v2609 = vrot.slane %v2545, 7
        %v2610 = vrot.slane %v2546, 7
        %v2611 = vrot.slane %v2547, 7
        %v2612 = vrot.slane %v2548, 7
        %v2613 = vrot.slane %v2549, 7
        %v2614 = vrot.slane %v2550, 7
        %v2615 = vrot.slane %v2551, 7
        %v2616 = vrot.slane %v2552, 7
        %v2617 = vrot.slane %v2553, 7
        %v2618 = vrot.slane %v2554, 7
        %v2619 = vrot.slane %v2555, 7
        %v2620 = vrot.slane %v2556, 7
        %v2621 = vrot.slane %v2557, 7
        %v2622 = vrot.slane %v2558, 7
        %v2623 = vrot.slane %v2559, 7
        %v2624 = vrot.slane %v2560, 7
        %v2625 = vrot.slane %v2561, 7
        %v2626 = vrot.slane %v2562, 7
        %v2627 = vrot.slane %v2563, 7
        %v2628 = vrot.slane %v2564, 7
        %vm2629 = vcmp.lt.s32.totalorder %v278, 1
        %v2630 = vsel %vm2629, %v2625, %v2627
        %v2631 = vsel %vm2629, %v2626, %v2628
        %v2632 = vsel %vm2629, %v2623, %v2625
        %v2633 = vsel %vm2629, %v2624, %v2626
        %v2634 = vsel %vm2629, %v2621, %v2623
        %v2635 = vsel %vm2629, %v2622, %v2624
        %v2636 = vsel %vm2629, %v2619, %v2621
        %v2637 = vsel %vm2629, %v2620, %v2622
        %v2638 = vsel %vm2629, %v2617, %v2619
        %v2639 = vsel %vm2629, %v2618, %v2620
        %v2640 = vsel %vm2629, %v2615, %v2617
        %v2641 = vsel %vm2629, %v2616, %v2618
        %v2642 = vsel %vm2629, %v2613, %v2615
        %v2643 = vsel %vm2629, %v2614, %v2616
        %v2644 = vsel %vm2629, %v2611, %v2613
        %v2645 = vsel %vm2629, %v2612, %v2614
        %v2646 = vsel %vm2629, %v2609, %v2611
        %v2647 = vsel %vm2629, %v2610, %v2612
        %v2648 = vsel %vm2629, %v2607, %v2609
        %v2649 = vsel %vm2629, %v2608, %v2610
        %v2650 = vsel %vm2629, %v2605, %v2607
        %v2651 = vsel %vm2629, %v2606, %v2608
        %v2652 = vsel %vm2629, %v2603, %v2605
        %v2653 = vsel %vm2629, %v2604, %v2606
        %v2654 = vsel %vm2629, %v2601, %v2603
        %v2655 = vsel %vm2629, %v2602, %v2604
        %v2656 = vsel %vm2629, %v2599, %v2601
        %v2657 = vsel %vm2629, %v2600, %v2602
        %v2658 = vsel %vm2629, %v2597, %v2599
        %v2659 = vsel %vm2629, %v2598, %v2600
        %v2660 = vsel %vm2629, %v2595, %v2597
        %v2661 = vsel %vm2629, %v2596, %v2598
        %v2662 = vsel %vm2629, %v2593, %v2595
        %v2663 = vsel %vm2629, %v2594, %v2596
        %v2664 = vsel %vm2629, %v2591, %v2593
        %v2665 = vsel %vm2629, %v2592, %v2594
        %v2666 = vsel %vm2629, %v2589, %v2591
        %v2667 = vsel %vm2629, %v2590, %v2592
        %v2668 = vsel %vm2629, %v2587, %v2589
        %v2669 = vsel %vm2629, %v2588, %v2590
        %v2670 = vsel %vm2629, %v2585, %v2587
        %v2671 = vsel %vm2629, %v2586, %v2588
        %v2672 = vsel %vm2629, %v2583, %v2585
        %v2673 = vsel %vm2629, %v2584, %v2586
        %v2674 = vsel %vm2629, %v2581, %v2583
        %v2675 = vsel %vm2629, %v2582, %v2584
        %v2676 = vsel %vm2629, %v2579, %v2581
        %v2677 = vsel %vm2629, %v2580, %v2582
        %v2678 = vsel %vm2629, %v2577, %v2579
        %v2679 = vsel %vm2629, %v2578, %v2580
        %v2680 = vsel %vm2629, %v2575, %v2577
        %v2681 = vsel %vm2629, %v2576, %v2578
        %v2682 = vsel %vm2629, %v2573, %v2575
        %v2683 = vsel %vm2629, %v2574, %v2576
        %v2684 = vsel %vm2629, %v2571, %v2573
        %v2685 = vsel %vm2629, %v2572, %v2574
        %v2686 = vsel %vm2629, %v2569, %v2571
        %v2687 = vsel %vm2629, %v2570, %v2572
        %v2688 = vsel %vm2629, %v2567, %v2569
        %v2689 = vsel %vm2629, %v2568, %v2570
        %v2690 = vsel %vm2629, %v2565, %v2567
        %v2691 = vsel %vm2629, %v2566, %v2568
        %v2692 = vsel %vm2629, %v2627, %v2565
        %v2693 = vsel %vm2629, %v2628, %v2566
        %v2694 = vsel %vm694, 1, 0
        %v2695 = vsel %vm695, 1, 0
        %v2696 = vsel %vm696, 1, 0
        %v2697 = vsel %vm697, 1, 0
        %v2698 = vsel %vm698, 1, 0
        %v2699 = vsel %vm699, 1, 0
        %v2700 = vsel %vm700, 1, 0
        %v2701 = vsel %vm701, 1, 0
        %v2702 = vsel %vm702, 1, 0
        %v2703 = vsel %vm703, 1, 0
        %v2704 = vsel %vm704, 1, 0
        %v2705 = vsel %vm705, 1, 0
        %v2706 = vsel %vm706, 1, 0
        %v2707 = vsel %vm707, 1, 0
        %v2708 = vsel %vm708, 1, 0
        %v2709 = vsel %vm709, 1, 0
        %v2710 = vsel %vm710, 1, 0
        %v2711 = vsel %vm711, 1, 0
        %v2712 = vsel %vm712, 1, 0
        %v2713 = vsel %vm713, 1, 0
        %v2714 = vsel %vm714, 1, 0
        %v2715 = vsel %vm715, 1, 0
        %v2716 = vsel %vm716, 1, 0
        %v2717 = vsel %vm717, 1, 0
        %v2718 = vsel %vm718, 1, 0
        %v2719 = vsel %vm719, 1, 0
        %v2720 = vsel %vm720, 1, 0
        %v2721 = vsel %vm721, 1, 0
        %v2722 = vsel %vm722, 1, 0
        %v2723 = vsel %vm723, 1, 0
        %v2724 = vsel %vm724, 1, 0
        %v2725 = vsel %vm725, 1, 0
        %vm2726 = vcmp.eq.s32.totalorder %v2694, 1
        %vm2727 = vcmp.eq.s32.totalorder %v2695, 1
        %vm2728 = vcmp.eq.s32.totalorder %v2696, 1
        %vm2729 = vcmp.eq.s32.totalorder %v2697, 1
        %vm2730 = vcmp.eq.s32.totalorder %v2698, 1
        %vm2731 = vcmp.eq.s32.totalorder %v2699, 1
        %vm2732 = vcmp.eq.s32.totalorder %v2700, 1
        %vm2733 = vcmp.eq.s32.totalorder %v2701, 1
        %vm2734 = vcmp.eq.s32.totalorder %v2702, 1
        %vm2735 = vcmp.eq.s32.totalorder %v2703, 1
        %vm2736 = vcmp.eq.s32.totalorder %v2704, 1
        %vm2737 = vcmp.eq.s32.totalorder %v2705, 1
        %vm2738 = vcmp.eq.s32.totalorder %v2706, 1
        %vm2739 = vcmp.eq.s32.totalorder %v2707, 1
        %vm2740 = vcmp.eq.s32.totalorder %v2708, 1
        %vm2741 = vcmp.eq.s32.totalorder %v2709, 1
        %vm2742 = vcmp.eq.s32.totalorder %v2710, 1
        %vm2743 = vcmp.eq.s32.totalorder %v2711, 1
        %vm2744 = vcmp.eq.s32.totalorder %v2712, 1
        %vm2745 = vcmp.eq.s32.totalorder %v2713, 1
        %vm2746 = vcmp.eq.s32.totalorder %v2714, 1
        %vm2747 = vcmp.eq.s32.totalorder %v2715, 1
        %vm2748 = vcmp.eq.s32.totalorder %v2716, 1
        %vm2749 = vcmp.eq.s32.totalorder %v2717, 1
        %vm2750 = vcmp.eq.s32.totalorder %v2718, 1
        %vm2751 = vcmp.eq.s32.totalorder %v2719, 1
        %vm2752 = vcmp.eq.s32.totalorder %v2720, 1
        %vm2753 = vcmp.eq.s32.totalorder %v2721, 1
        %vm2754 = vcmp.eq.s32.totalorder %v2722, 1
        %vm2755 = vcmp.eq.s32.totalorder %v2723, 1
        %vm2756 = vcmp.eq.s32.totalorder %v2724, 1
        %vm2757 = vcmp.eq.s32.totalorder %v2725, 1
        %v2758 = vsel %vm2726, %v2692, 0.0
        %v2759 = vsel %vm2726, %v2693, 0.0
        %v2760 = vsel %vm2727, %v2690, 0.0
        %v2761 = vsel %vm2727, %v2691, 0.0
        %v2762 = vsel %vm2728, %v2688, 0.0
        %v2763 = vsel %vm2728, %v2689, 0.0
        %v2764 = vsel %vm2729, %v2686, 0.0
        %v2765 = vsel %vm2729, %v2687, 0.0
        %v2766 = vsel %vm2730, %v2684, 0.0
        %v2767 = vsel %vm2730, %v2685, 0.0
        %v2768 = vsel %vm2731, %v2682, 0.0
        %v2769 = vsel %vm2731, %v2683, 0.0
        %v2770 = vsel %vm2732, %v2680, 0.0
        %v2771 = vsel %vm2732, %v2681, 0.0
        %v2772 = vsel %vm2733, %v2678, 0.0
        %v2773 = vsel %vm2733, %v2679, 0.0
        %v2774 = vsel %vm2734, %v2676, 0.0
        %v2775 = vsel %vm2734, %v2677, 0.0
        %v2776 = vsel %vm2735, %v2674, 0.0
        %v2777 = vsel %vm2735, %v2675, 0.0
        %v2778 = vsel %vm2736, %v2672, 0.0
        %v2779 = vsel %vm2736, %v2673, 0.0
        %v2780 = vsel %vm2737, %v2670, 0.0
        %v2781 = vsel %vm2737, %v2671, 0.0
        %v2782 = vsel %vm2738, %v2668, 0.0
        %v2783 = vsel %vm2738, %v2669, 0.0
        %v2784 = vsel %vm2739, %v2666, 0.0
        %v2785 = vsel %vm2739, %v2667, 0.0
        %v2786 = vsel %vm2740, %v2664, 0.0
        %v2787 = vsel %vm2740, %v2665, 0.0
        %v2788 = vsel %vm2741, %v2662, 0.0
        %v2789 = vsel %vm2741, %v2663, 0.0
        %v2790 = vsel %vm2742, %v2660, 0.0
        %v2791 = vsel %vm2742, %v2661, 0.0
        %v2792 = vsel %vm2743, %v2658, 0.0
        %v2793 = vsel %vm2743, %v2659, 0.0
        %v2794 = vsel %vm2744, %v2656, 0.0
        %v2795 = vsel %vm2744, %v2657, 0.0
        %v2796 = vsel %vm2745, %v2654, 0.0
        %v2797 = vsel %vm2745, %v2655, 0.0
        %v2798 = vsel %vm2746, %v2652, 0.0
        %v2799 = vsel %vm2746, %v2653, 0.0
        %v2800 = vsel %vm2747, %v2650, 0.0
        %v2801 = vsel %vm2747, %v2651, 0.0
        %v2802 = vsel %vm2748, %v2648, 0.0
        %v2803 = vsel %vm2748, %v2649, 0.0
        %v2804 = vsel %vm2749, %v2646, 0.0
        %v2805 = vsel %vm2749, %v2647, 0.0
        %v2806 = vsel %vm2750, %v2644, 0.0
        %v2807 = vsel %vm2750, %v2645, 0.0
        %v2808 = vsel %vm2751, %v2642, 0.0
        %v2809 = vsel %vm2751, %v2643, 0.0
        %v2810 = vsel %vm2752, %v2640, 0.0
        %v2811 = vsel %vm2752, %v2641, 0.0
        %v2812 = vsel %vm2753, %v2638, 0.0
        %v2813 = vsel %vm2753, %v2639, 0.0
        %v2814 = vsel %vm2754, %v2636, 0.0
        %v2815 = vsel %vm2754, %v2637, 0.0
        %v2816 = vsel %vm2755, %v2634, 0.0
        %v2817 = vsel %vm2755, %v2635, 0.0
        %v2818 = vsel %vm2756, %v2632, 0.0
        %v2819 = vsel %vm2756, %v2633, 0.0
        %v2820 = vsel %vm2757, %v2630, 0.0
        %v2821 = vsel %vm2757, %v2631, 0.0
        %2822 = vst [vmem:[#allocation4 + $0x20] sm:$0xff] %v2758
        %2823 = vst [vmem:[#allocation4 + $0x28] sm:$0xff] %v2759
        %2824 = vst [vmem:[#allocation4 + $0x30] sm:$0xff] %v2760
        %2825 = vst [vmem:[#allocation4 + $0x38] sm:$0xff] %v2761
        %2826 = vst [vmem:[#allocation4 + $0x40] sm:$0xff] %v2762
        %2827 = vst [vmem:[#allocation4 + $0x48] sm:$0xff] %v2763
        %2828 = vst [vmem:[#allocation4 + $0x50] sm:$0xff] %v2764
        %2829 = vst [vmem:[#allocation4 + $0x58] sm:$0xff] %v2765
        %2830 = vst [vmem:[#allocation4 + $0x60] sm:$0xff] %v2766
        %2831 = vst [vmem:[#allocation4 + $0x68] sm:$0xff] %v2767
        %2832 = vst [vmem:[#allocation4 + $0x70] sm:$0xff] %v2768
        %2833 = vst [vmem:[#allocation4 + $0x78] sm:$0xff] %v2769
        %2834 = vst [vmem:[#allocation4 + $0x80] sm:$0xff] %v2770
        %2835 = vst [vmem:[#allocation4 + $0x88] sm:$0xff] %v2771
        %2836 = vst [vmem:[#allocation4 + $0x90] sm:$0xff] %v2772
        %2837 = vst [vmem:[#allocation4 + $0x98] sm:$0xff] %v2773
        %2838 = vst [vmem:[#allocation4 + $0xa0] sm:$0xff] %v2774
        %2839 = vst [vmem:[#allocation4 + $0xa8] sm:$0xff] %v2775
        %2840 = vst [vmem:[#allocation4 + $0xb0] sm:$0xff] %v2776
        %2841 = vst [vmem:[#allocation4 + $0xb8] sm:$0xff] %v2777
        %2842 = vst [vmem:[#allocation4 + $0xc0] sm:$0xff] %v2778
        %2843 = vst [vmem:[#allocation4 + $0xc8] sm:$0xff] %v2779
        %2844 = vst [vmem:[#allocation4 + $0xd0] sm:$0xff] %v2780
        %2845 = vst [vmem:[#allocation4 + $0xd8] sm:$0xff] %v2781
        %2846 = vst [vmem:[#allocation4 + $0xe0] sm:$0xff] %v2782
        %2847 = vst [vmem:[#allocation4 + $0xe8] sm:$0xff] %v2783
        %2848 = vst [vmem:[#allocation4 + $0xf0] sm:$0xff] %v2784
        %2849 = vst [vmem:[#allocation4 + $0xf8] sm:$0xff] %v2785
        %2850 = vst [vmem:[#allocation4 + $0x100] sm:$0xff] %v2786
        %2851 = vst [vmem:[#allocation4 + $0x108] sm:$0xff] %v2787
        %2852 = vst [vmem:[#allocation4 + $0x110] sm:$0xff] %v2788
        %2853 = vst [vmem:[#allocation4 + $0x118] sm:$0xff] %v2789
        %2854 = vst [vmem:[#allocation4 + $0x120] sm:$0xff] %v2790
        %2855 = vst [vmem:[#allocation4 + $0x128] sm:$0xff] %v2791
        %2856 = vst [vmem:[#allocation4 + $0x130] sm:$0xff] %v2792
        %2857 = vst [vmem:[#allocation4 + $0x138] sm:$0xff] %v2793
        %2858 = vst [vmem:[#allocation4 + $0x140] sm:$0xff] %v2794
        %2859 = vst [vmem:[#allocation4 + $0x148] sm:$0xff] %v2795
        %2860 = vst [vmem:[#allocation4 + $0x150] sm:$0xff] %v2796
        %2861 = vst [vmem:[#allocation4 + $0x158] sm:$0xff] %v2797
        %2862 = vst [vmem:[#allocation4 + $0x160] sm:$0xff] %v2798
        %2863 = vst [vmem:[#allocation4 + $0x168] sm:$0xff] %v2799
        %2864 = vst [vmem:[#allocation4 + $0x170] sm:$0xff] %v2800
        %2865 = vst [vmem:[#allocation4 + $0x178] sm:$0xff] %v2801
        %2866 = vst [vmem:[#allocation4 + $0x180] sm:$0xff] %v2802
        %2867 = vst [vmem:[#allocation4 + $0x188] sm:$0xff] %v2803
        %2868 = vst [vmem:[#allocation4 + $0x190] sm:$0xff] %v2804
        %2869 = vst [vmem:[#allocation4 + $0x198] sm:$0xff] %v2805
        %2870 = vst [vmem:[#allocation4 + $0x1a0] sm:$0xff] %v2806
        %2871 = vst [vmem:[#allocation4 + $0x1a8] sm:$0xff] %v2807
        %2872 = vst [vmem:[#allocation4 + $0x1b0] sm:$0xff] %v2808
        %2873 = vst [vmem:[#allocation4 + $0x1b8] sm:$0xff] %v2809
        %2874 = vst [vmem:[#allocation4 + $0x1c0] sm:$0xff] %v2810
        %2875 = vst [vmem:[#allocation4 + $0x1c8] sm:$0xff] %v2811
        %2876 = vst [vmem:[#allocation4 + $0x1d0] sm:$0xff] %v2812
        %2877 = vst [vmem:[#allocation4 + $0x1d8] sm:$0xff] %v2813
        %2878 = vst [vmem:[#allocation4 + $0x1e0] sm:$0xff] %v2814
        %2879 = vst [vmem:[#allocation4 + $0x1e8] sm:$0xff] %v2815
        %2880 = vst [vmem:[#allocation4 + $0x1f0] sm:$0xff] %v2816
        %2881 = vst [vmem:[#allocation4 + $0x1f8] sm:$0xff] %v2817
        %2882 = vst [vmem:[#allocation4 + $0x200] sm:$0xff] %v2818
        %2883 = vst [vmem:[#allocation4 + $0x208] sm:$0xff] %v2819
        %2884 = vst [vmem:[#allocation4 + $0x210] sm:$0xff] %v2820
        %2885 = vst [vmem:[#allocation4 + $0x218] sm:$0xff] %v2821
        %v2886 = vrot.slane %v2501, 1
        %v2887 = vrot.slane %v2502, 1
        %v2888 = vrot.slane %v2503, 1
        %v2889 = vrot.slane %v2504, 1
        %v2890 = vrot.slane %v2505, 1
        %v2891 = vrot.slane %v2506, 1
        %v2892 = vrot.slane %v2507, 1
        %v2893 = vrot.slane %v2508, 1
        %v2894 = vrot.slane %v2509, 1
        %v2895 = vrot.slane %v2510, 1
        %v2896 = vrot.slane %v2511, 1
        %v2897 = vrot.slane %v2512, 1
        %v2898 = vrot.slane %v2513, 1
        %v2899 = vrot.slane %v2514, 1
        %v2900 = vrot.slane %v2515, 1
        %v2901 = vrot.slane %v2516, 1
        %v2902 = vrot.slane %v2517, 1
        %v2903 = vrot.slane %v2518, 1
        %v2904 = vrot.slane %v2519, 1
        %v2905 = vrot.slane %v2520, 1
        %v2906 = vrot.slane %v2521, 1
        %v2907 = vrot.slane %v2522, 1
        %v2908 = vrot.slane %v2523, 1
        %v2909 = vrot.slane %v2524, 1
        %v2910 = vrot.slane %v2525, 1
        %v2911 = vrot.slane %v2526, 1
        %v2912 = vrot.slane %v2527, 1
        %v2913 = vrot.slane %v2528, 1
        %v2914 = vrot.slane %v2529, 1
        %v2915 = vrot.slane %v2530, 1
        %v2916 = vrot.slane %v2531, 1
        %v2917 = vrot.slane %v2532, 1
        %v2918 = vrot.slane %v2533, 1
        %v2919 = vrot.slane %v2534, 1
        %v2920 = vrot.slane %v2535, 1
        %v2921 = vrot.slane %v2536, 1
        %v2922 = vrot.slane %v2537, 1
        %v2923 = vrot.slane %v2538, 1
        %v2924 = vrot.slane %v2539, 1
        %v2925 = vrot.slane %v2540, 1
        %v2926 = vrot.slane %v2541, 1
        %v2927 = vrot.slane %v2542, 1
        %v2928 = vrot.slane %v2543, 1
        %v2929 = vrot.slane %v2544, 1
        %v2930 = vrot.slane %v2545, 1
        %v2931 = vrot.slane %v2546, 1
        %v2932 = vrot.slane %v2547, 1
        %v2933 = vrot.slane %v2548, 1
        %v2934 = vrot.slane %v2549, 1
        %v2935 = vrot.slane %v2550, 1
        %v2936 = vrot.slane %v2551, 1
        %v2937 = vrot.slane %v2552, 1
        %v2938 = vrot.slane %v2553, 1
        %v2939 = vrot.slane %v2554, 1
        %v2940 = vrot.slane %v2555, 1
        %v2941 = vrot.slane %v2556, 1
        %v2942 = vrot.slane %v2557, 1
        %v2943 = vrot.slane %v2558, 1
        %v2944 = vrot.slane %v2559, 1
        %v2945 = vrot.slane %v2560, 1
        %v2946 = vrot.slane %v2561, 1
        %v2947 = vrot.slane %v2562, 1
        %v2948 = vrot.slane %v2563, 1
        %v2949 = vrot.slane %v2564, 1
        %vm2950 = vcmp.lt.s32.totalorder %v278, 7
        %v2951 = vsel %vm2950, %v2946, %v2948
        %v2952 = vsel %vm2950, %v2947, %v2949
        %v2953 = vsel %vm2950, %v2944, %v2946
        %v2954 = vsel %vm2950, %v2945, %v2947
        %v2955 = vsel %vm2950, %v2942, %v2944
        %v2956 = vsel %vm2950, %v2943, %v2945
        %v2957 = vsel %vm2950, %v2940, %v2942
        %v2958 = vsel %vm2950, %v2941, %v2943
        %v2959 = vsel %vm2950, %v2938, %v2940
        %v2960 = vsel %vm2950, %v2939, %v2941
        %v2961 = vsel %vm2950, %v2936, %v2938
        %v2962 = vsel %vm2950, %v2937, %v2939
        %v2963 = vsel %vm2950, %v2934, %v2936
        %v2964 = vsel %vm2950, %v2935, %v2937
        %v2965 = vsel %vm2950, %v2932, %v2934
        %v2966 = vsel %vm2950, %v2933, %v2935
        %v2967 = vsel %vm2950, %v2930, %v2932
        %v2968 = vsel %vm2950, %v2931, %v2933
        %v2969 = vsel %vm2950, %v2928, %v2930
        %v2970 = vsel %vm2950, %v2929, %v2931
        %v2971 = vsel %vm2950, %v2926, %v2928
        %v2972 = vsel %vm2950, %v2927, %v2929
        %v2973 = vsel %vm2950, %v2924, %v2926
        %v2974 = vsel %vm2950, %v2925, %v2927
        %v2975 = vsel %vm2950, %v2922, %v2924
        %v2976 = vsel %vm2950, %v2923, %v2925
        %v2977 = vsel %vm2950, %v2920, %v2922
        %v2978 = vsel %vm2950, %v2921, %v2923
        %v2979 = vsel %vm2950, %v2918, %v2920
        %v2980 = vsel %vm2950, %v2919, %v2921
        %v2981 = vsel %vm2950, %v2916, %v2918
        %v2982 = vsel %vm2950, %v2917, %v2919
        %v2983 = vsel %vm2950, %v2914, %v2916
        %v2984 = vsel %vm2950, %v2915, %v2917
        %v2985 = vsel %vm2950, %v2912, %v2914
        %v2986 = vsel %vm2950, %v2913, %v2915
        %v2987 = vsel %vm2950, %v2910, %v2912
        %v2988 = vsel %vm2950, %v2911, %v2913
        %v2989 = vsel %vm2950, %v2908, %v2910
        %v2990 = vsel %vm2950, %v2909, %v2911
        %v2991 = vsel %vm2950, %v2906, %v2908
        %v2992 = vsel %vm2950, %v2907, %v2909
        %v2993 = vsel %vm2950, %v2904, %v2906
        %v2994 = vsel %vm2950, %v2905, %v2907
        %v2995 = vsel %vm2950, %v2902, %v2904
        %v2996 = vsel %vm2950, %v2903, %v2905
        %v2997 = vsel %vm2950, %v2900, %v2902
        %v2998 = vsel %vm2950, %v2901, %v2903
        %v2999 = vsel %vm2950, %v2898, %v2900
        %v3000 = vsel %vm2950, %v2899, %v2901
        %v3001 = vsel %vm2950, %v2896, %v2898
        %v3002 = vsel %vm2950, %v2897, %v2899
        %v3003 = vsel %vm2950, %v2894, %v2896
        %v3004 = vsel %vm2950, %v2895, %v2897
        %v3005 = vsel %vm2950, %v2892, %v2894
        %v3006 = vsel %vm2950, %v2893, %v2895
        %v3007 = vsel %vm2950, %v2890, %v2892
        %v3008 = vsel %vm2950, %v2891, %v2893
        %v3009 = vsel %vm2950, %v2888, %v2890
        %v3010 = vsel %vm2950, %v2889, %v2891
        %v3011 = vsel %vm2950, %v2886, %v2888
        %v3012 = vsel %vm2950, %v2887, %v2889
        %v3013 = vsel %vm2950, %v2948, %v2886
        %v3014 = vsel %vm2950, %v2949, %v2887
        %v3015 = vsel %vm726, 1, 0
        %v3016 = vsel %vm727, 1, 0
        %v3017 = vsel %vm728, 1, 0
        %v3018 = vsel %vm729, 1, 0
        %v3019 = vsel %vm730, 1, 0
        %v3020 = vsel %vm731, 1, 0
        %v3021 = vsel %vm732, 1, 0
        %v3022 = vsel %vm733, 1, 0
        %v3023 = vsel %vm734, 1, 0
        %v3024 = vsel %vm735, 1, 0
        %v3025 = vsel %vm736, 1, 0
        %v3026 = vsel %vm737, 1, 0
        %v3027 = vsel %vm738, 1, 0
        %v3028 = vsel %vm739, 1, 0
        %v3029 = vsel %vm740, 1, 0
        %v3030 = vsel %vm741, 1, 0
        %v3031 = vsel %vm742, 1, 0
        %v3032 = vsel %vm743, 1, 0
        %v3033 = vsel %vm744, 1, 0
        %v3034 = vsel %vm745, 1, 0
        %v3035 = vsel %vm746, 1, 0
        %v3036 = vsel %vm747, 1, 0
        %v3037 = vsel %vm748, 1, 0
        %v3038 = vsel %vm749, 1, 0
        %v3039 = vsel %vm750, 1, 0
        %v3040 = vsel %vm751, 1, 0
        %v3041 = vsel %vm752, 1, 0
        %v3042 = vsel %vm753, 1, 0
        %v3043 = vsel %vm754, 1, 0
        %v3044 = vsel %vm755, 1, 0
        %v3045 = vsel %vm756, 1, 0
        %v3046 = vsel %vm757, 1, 0
        %vm3047 = vcmp.eq.s32.totalorder %v3015, 1
        %vm3048 = vcmp.eq.s32.totalorder %v3016, 1
        %vm3049 = vcmp.eq.s32.totalorder %v3017, 1
        %vm3050 = vcmp.eq.s32.totalorder %v3018, 1
        %vm3051 = vcmp.eq.s32.totalorder %v3019, 1
        %vm3052 = vcmp.eq.s32.totalorder %v3020, 1
        %vm3053 = vcmp.eq.s32.totalorder %v3021, 1
        %vm3054 = vcmp.eq.s32.totalorder %v3022, 1
        %vm3055 = vcmp.eq.s32.totalorder %v3023, 1
        %vm3056 = vcmp.eq.s32.totalorder %v3024, 1
        %vm3057 = vcmp.eq.s32.totalorder %v3025, 1
        %vm3058 = vcmp.eq.s32.totalorder %v3026, 1
        %vm3059 = vcmp.eq.s32.totalorder %v3027, 1
        %vm3060 = vcmp.eq.s32.totalorder %v3028, 1
        %vm3061 = vcmp.eq.s32.totalorder %v3029, 1
        %vm3062 = vcmp.eq.s32.totalorder %v3030, 1
        %vm3063 = vcmp.eq.s32.totalorder %v3031, 1
        %vm3064 = vcmp.eq.s32.totalorder %v3032, 1
        %vm3065 = vcmp.eq.s32.totalorder %v3033, 1
        %vm3066 = vcmp.eq.s32.totalorder %v3034, 1
        %vm3067 = vcmp.eq.s32.totalorder %v3035, 1
        %vm3068 = vcmp.eq.s32.totalorder %v3036, 1
        %vm3069 = vcmp.eq.s32.totalorder %v3037, 1
        %vm3070 = vcmp.eq.s32.totalorder %v3038, 1
        %vm3071 = vcmp.eq.s32.totalorder %v3039, 1
        %vm3072 = vcmp.eq.s32.totalorder %v3040, 1
        %vm3073 = vcmp.eq.s32.totalorder %v3041, 1
        %vm3074 = vcmp.eq.s32.totalorder %v3042, 1
        %vm3075 = vcmp.eq.s32.totalorder %v3043, 1
        %vm3076 = vcmp.eq.s32.totalorder %v3044, 1
        %vm3077 = vcmp.eq.s32.totalorder %v3045, 1
        %vm3078 = vcmp.eq.s32.totalorder %v3046, 1
        %v3079 = vsel %vm3047, %v3011, 0.0
        %v3080 = vsel %vm3047, %v3012, 0.0
        %v3081 = vsel %vm3048, %v3009, 0.0
        %v3082 = vsel %vm3048, %v3010, 0.0
        %v3083 = vsel %vm3049, %v3007, 0.0
        %v3084 = vsel %vm3049, %v3008, 0.0
        %v3085 = vsel %vm3050, %v3005, 0.0
        %v3086 = vsel %vm3050, %v3006, 0.0
        %v3087 = vsel %vm3051, %v3003, 0.0
        %v3088 = vsel %vm3051, %v3004, 0.0
        %v3089 = vsel %vm3052, %v3001, 0.0
        %v3090 = vsel %vm3052, %v3002, 0.0
        %v3091 = vsel %vm3053, %v2999, 0.0
        %v3092 = vsel %vm3053, %v3000, 0.0
        %v3093 = vsel %vm3054, %v2997, 0.0
        %v3094 = vsel %vm3054, %v2998, 0.0
        %v3095 = vsel %vm3055, %v2995, 0.0
        %v3096 = vsel %vm3055, %v2996, 0.0
        %v3097 = vsel %vm3056, %v2993, 0.0
        %v3098 = vsel %vm3056, %v2994, 0.0
        %v3099 = vsel %vm3057, %v2991, 0.0
        %v3100 = vsel %vm3057, %v2992, 0.0
        %v3101 = vsel %vm3058, %v2989, 0.0
        %v3102 = vsel %vm3058, %v2990, 0.0
        %v3103 = vsel %vm3059, %v2987, 0.0
        %v3104 = vsel %vm3059, %v2988, 0.0
        %v3105 = vsel %vm3060, %v2985, 0.0
        %v3106 = vsel %vm3060, %v2986, 0.0
        %v3107 = vsel %vm3061, %v2983, 0.0
        %v3108 = vsel %vm3061, %v2984, 0.0
        %v3109 = vsel %vm3062, %v2981, 0.0
        %v3110 = vsel %vm3062, %v2982, 0.0
        %v3111 = vsel %vm3063, %v2979, 0.0
        %v3112 = vsel %vm3063, %v2980, 0.0
        %v3113 = vsel %vm3064, %v2977, 0.0
        %v3114 = vsel %vm3064, %v2978, 0.0
        %v3115 = vsel %vm3065, %v2975, 0.0
        %v3116 = vsel %vm3065, %v2976, 0.0
        %v3117 = vsel %vm3066, %v2973, 0.0
        %v3118 = vsel %vm3066, %v2974, 0.0
        %v3119 = vsel %vm3067, %v2971, 0.0
        %v3120 = vsel %vm3067, %v2972, 0.0
        %v3121 = vsel %vm3068, %v2969, 0.0
        %v3122 = vsel %vm3068, %v2970, 0.0
        %v3123 = vsel %vm3069, %v2967, 0.0
        %v3124 = vsel %vm3069, %v2968, 0.0
        %v3125 = vsel %vm3070, %v2965, 0.0
        %v3126 = vsel %vm3070, %v2966, 0.0
        %v3127 = vsel %vm3071, %v2963, 0.0
        %v3128 = vsel %vm3071, %v2964, 0.0
        %v3129 = vsel %vm3072, %v2961, 0.0
        %v3130 = vsel %vm3072, %v2962, 0.0
        %v3131 = vsel %vm3073, %v2959, 0.0
        %v3132 = vsel %vm3073, %v2960, 0.0
        %v3133 = vsel %vm3074, %v2957, 0.0
        %v3134 = vsel %vm3074, %v2958, 0.0
        %v3135 = vsel %vm3075, %v2955, 0.0
        %v3136 = vsel %vm3075, %v2956, 0.0
        %v3137 = vsel %vm3076, %v2953, 0.0
        %v3138 = vsel %vm3076, %v2954, 0.0
        %v3139 = vsel %vm3077, %v2951, 0.0
        %v3140 = vsel %vm3077, %v2952, 0.0
        %v3141 = vsel %vm3078, %v3013, 0.0
        %v3142 = vsel %vm3078, %v3014, 0.0
        %3143 = vst [vmem:[#allocation5 + $0x20] sm:$0xff] %v3079
        %3144 = vst [vmem:[#allocation5 + $0x28] sm:$0xff] %v3080
        %3145 = vst [vmem:[#allocation5 + $0x30] sm:$0xff] %v3081
        %3146 = vst [vmem:[#allocation5 + $0x38] sm:$0xff] %v3082
        %3147 = vst [vmem:[#allocation5 + $0x40] sm:$0xff] %v3083
        %3148 = vst [vmem:[#allocation5 + $0x48] sm:$0xff] %v3084
        %3149 = vst [vmem:[#allocation5 + $0x50] sm:$0xff] %v3085
        %3150 = vst [vmem:[#allocation5 + $0x58] sm:$0xff] %v3086
        %3151 = vst [vmem:[#allocation5 + $0x60] sm:$0xff] %v3087
        %3152 = vst [vmem:[#allocation5 + $0x68] sm:$0xff] %v3088
        %3153 = vst [vmem:[#allocation5 + $0x70] sm:$0xff] %v3089
        %3154 = vst [vmem:[#allocation5 + $0x78] sm:$0xff] %v3090
        %3155 = vst [vmem:[#allocation5 + $0x80] sm:$0xff] %v3091
        %3156 = vst [vmem:[#allocation5 + $0x88] sm:$0xff] %v3092
        %3157 = vst [vmem:[#allocation5 + $0x90] sm:$0xff] %v3093
        %3158 = vst [vmem:[#allocation5 + $0x98] sm:$0xff] %v3094
        %3159 = vst [vmem:[#allocation5 + $0xa0] sm:$0xff] %v3095
        %3160 = vst [vmem:[#allocation5 + $0xa8] sm:$0xff] %v3096
        %3161 = vst [vmem:[#allocation5 + $0xb0] sm:$0xff] %v3097
        %3162 = vst [vmem:[#allocation5 + $0xb8] sm:$0xff] %v3098
        %3163 = vst [vmem:[#allocation5 + $0xc0] sm:$0xff] %v3099
        %3164 = vst [vmem:[#allocation5 + $0xc8] sm:$0xff] %v3100
        %3165 = vst [vmem:[#allocation5 + $0xd0] sm:$0xff] %v3101
        %3166 = vst [vmem:[#allocation5 + $0xd8] sm:$0xff] %v3102
        %3167 = vst [vmem:[#allocation5 + $0xe0] sm:$0xff] %v3103
        %3168 = vst [vmem:[#allocation5 + $0xe8] sm:$0xff] %v3104
        %3169 = vst [vmem:[#allocation5 + $0xf0] sm:$0xff] %v3105
        %3170 = vst [vmem:[#allocation5 + $0xf8] sm:$0xff] %v3106
        %3171 = vst [vmem:[#allocation5 + $0x100] sm:$0xff] %v3107
        %3172 = vst [vmem:[#allocation5 + $0x108] sm:$0xff] %v3108
        %3173 = vst [vmem:[#allocation5 + $0x110] sm:$0xff] %v3109
        %3174 = vst [vmem:[#allocation5 + $0x118] sm:$0xff] %v3110
        %3175 = vst [vmem:[#allocation5 + $0x120] sm:$0xff] %v3111
        %3176 = vst [vmem:[#allocation5 + $0x128] sm:$0xff] %v3112
        %3177 = vst [vmem:[#allocation5 + $0x130] sm:$0xff] %v3113
        %3178 = vst [vmem:[#allocation5 + $0x138] sm:$0xff] %v3114
        %3179 = vst [vmem:[#allocation5 + $0x140] sm:$0xff] %v3115
        %3180 = vst [vmem:[#allocation5 + $0x148] sm:$0xff] %v3116
        %3181 = vst [vmem:[#allocation5 + $0x150] sm:$0xff] %v3117
        %3182 = vst [vmem:[#allocation5 + $0x158] sm:$0xff] %v3118
        %3183 = vst [vmem:[#allocation5 + $0x160] sm:$0xff] %v3119
        %3184 = vst [vmem:[#allocation5 + $0x168] sm:$0xff] %v3120
        %3185 = vst [vmem:[#allocation5 + $0x170] sm:$0xff] %v3121
        %3186 = vst [vmem:[#allocation5 + $0x178] sm:$0xff] %v3122
        %3187 = vst [vmem:[#allocation5 + $0x180] sm:$0xff] %v3123
        %3188 = vst [vmem:[#allocation5 + $0x188] sm:$0xff] %v3124
        %3189 = vst [vmem:[#allocation5 + $0x190] sm:$0xff] %v3125
        %3190 = vst [vmem:[#allocation5 + $0x198] sm:$0xff] %v3126
        %3191 = vst [vmem:[#allocation5 + $0x1a0] sm:$0xff] %v3127
        %3192 = vst [vmem:[#allocation5 + $0x1a8] sm:$0xff] %v3128
        %3193 = vst [vmem:[#allocation5 + $0x1b0] sm:$0xff] %v3129
        %3194 = vst [vmem:[#allocation5 + $0x1b8] sm:$0xff] %v3130
        %3195 = vst [vmem:[#allocation5 + $0x1c0] sm:$0xff] %v3131
        %3196 = vst [vmem:[#allocation5 + $0x1c8] sm:$0xff] %v3132
        %3197 = vst [vmem:[#allocation5 + $0x1d0] sm:$0xff] %v3133
        %3198 = vst [vmem:[#allocation5 + $0x1d8] sm:$0xff] %v3134
        %3199 = vst [vmem:[#allocation5 + $0x1e0] sm:$0xff] %v3135
        %3200 = vst [vmem:[#allocation5 + $0x1e8] sm:$0xff] %v3136
        %3201 = vst [vmem:[#allocation5 + $0x1f0] sm:$0xff] %v3137
        %3202 = vst [vmem:[#allocation5 + $0x1f8] sm:$0xff] %v3138
        %3203 = vst [vmem:[#allocation5 + $0x200] sm:$0xff] %v3139
        %3204 = vst [vmem:[#allocation5 + $0x208] sm:$0xff] %v3140
        %3205 = vst [vmem:[#allocation5 + $0x210] sm:$0xff] %v3141
        %3206 = vst [vmem:[#allocation5 + $0x218] sm:$0xff] %v3142
        %v3207 = vld [vmem:[%s6] sm:$0xf8]
        %v3208 = vld [vmem:[%s6 + $0x8] sm:$0xf8]
        %v3209 = vld [vmem:[%s6 + $0x10] sm:$0xf]
        %v3210 = vld [vmem:[%s6 + $0x18] sm:$0xf]
        %s3211 = scalar_lea.vmem %s6, 20
        %v3212 = vld [vmem:[%s3211] ss:$8 sm:$0x3]
        %v3213 = vld [vmem:[#allocation4] sm:$0xff]
        %v3214 = vld [vmem:[#allocation4 + $0x8] sm:$0xff]
        %v3215 = vld [vmem:[#allocation4 + $0x10] sm:$0xff]
        %v3216 = vld [vmem:[#allocation4 + $0x18] sm:$0xff]
        %v3217 = vld [vmem:[#allocation4 + $0x20] sm:$0xff]
        %v3218 = vld [vmem:[#allocation4 + $0x28] sm:$0xff]
        %v3219 = vld [vmem:[#allocation4 + $0x30] sm:$0xff]
        %v3220 = vld [vmem:[#allocation4 + $0x38] sm:$0xff]
        %v3221 = vld [vmem:[#allocation4 + $0x40] sm:$0xff]
        %v3222 = vld [vmem:[#allocation4 + $0x48] sm:$0xff]
        %v3223 = vld [vmem:[#allocation4 + $0x50] sm:$0xff]
        %v3224 = vld [vmem:[#allocation4 + $0x58] sm:$0xff]
        %v3225 = vld [vmem:[#allocation4 + $0x60] sm:$0xff]
        %v3226 = vld [vmem:[#allocation4 + $0x68] sm:$0xff]
        %v3227 = vld [vmem:[#allocation4 + $0x70] sm:$0xff]
        %v3228 = vld [vmem:[#allocation4 + $0x78] sm:$0xff]
        %v3229 = vlaneseq
        %v3230 = vshrl.u32 %v3229, 7
        %v3231 = vsub.s32 3, %v3230
        %v3232 = vrot.slane %v3207, %v3231
        %v3233 = vlaneseq
        %v3234 = vshrl.u32 %v3233, 7
        %v3235 = vsub.s32 3, %v3234
        %v3236 = vrot.slane %v3208, %v3235
        %v3237 = vmul.f32 %v3213, %v3232
        %v3238 = vmul.f32 %v3214, %v3236
        %v3239 = vmul.f32 %v3215, %v3232
        %v3240 = vmul.f32 %v3216, %v3236
        %v3241 = vmul.f32 %v3217, %v3232
        %v3242 = vmul.f32 %v3218, %v3236
        %v3243 = vmul.f32 %v3219, %v3232
        %v3244 = vmul.f32 %v3220, %v3236
        %v3245 = vmul.f32 %v3221, %v3232
        %v3246 = vmul.f32 %v3222, %v3236
        %v3247 = vmul.f32 %v3223, %v3232
        %v3248 = vmul.f32 %v3224, %v3236
        %v3249 = vmul.f32 %v3225, %v3232
        %v3250 = vmul.f32 %v3226, %v3236
        %v3251 = vmul.f32 %v3227, %v3232
        %v3252 = vmul.f32 %v3228, %v3236
        %v3253 = vadd.f32 %v3237, 0.0
        %v3254 = vadd.f32 %v3238, 0.0
        %v3255 = vadd.f32 %v3239, 0.0
        %v3256 = vadd.f32 %v3240, 0.0
        %v3257 = vadd.f32 %v3241, 0.0
        %v3258 = vadd.f32 %v3242, 0.0
        %v3259 = vadd.f32 %v3243, 0.0
        %v3260 = vadd.f32 %v3244, 0.0
        %v3261 = vadd.f32 %v3245, 0.0
        %v3262 = vadd.f32 %v3246, 0.0
        %v3263 = vadd.f32 %v3247, 0.0
        %v3264 = vadd.f32 %v3248, 0.0
        %v3265 = vadd.f32 %v3249, 0.0
        %v3266 = vadd.f32 %v3250, 0.0
        %v3267 = vadd.f32 %v3251, 0.0
        %v3268 = vadd.f32 %v3252, 0.0
        %v3269 = vld [vmem:[#allocation3] sm:$0xff]
        %v3270 = vld [vmem:[#allocation3 + $0x8] sm:$0xff]
        %v3271 = vld [vmem:[#allocation3 + $0x10] sm:$0xff]
        %v3272 = vld [vmem:[#allocation3 + $0x18] sm:$0xff]
        %v3273 = vld [vmem:[#allocation3 + $0x20] sm:$0xff]
        %v3274 = vld [vmem:[#allocation3 + $0x28] sm:$0xff]
        %v3275 = vld [vmem:[#allocation3 + $0x30] sm:$0xff]
        %v3276 = vld [vmem:[#allocation3 + $0x38] sm:$0xff]
        %v3277 = vld [vmem:[#allocation3 + $0x40] sm:$0xff]
        %v3278 = vld [vmem:[#allocation3 + $0x48] sm:$0xff]
        %v3279 = vld [vmem:[#allocation3 + $0x50] sm:$0xff]
        %v3280 = vld [vmem:[#allocation3 + $0x58] sm:$0xff]
        %v3281 = vld [vmem:[#allocation3 + $0x60] sm:$0xff]
        %v3282 = vld [vmem:[#allocation3 + $0x68] sm:$0xff]
        %v3283 = vld [vmem:[#allocation3 + $0x70] sm:$0xff]
        %v3284 = vld [vmem:[#allocation3 + $0x78] sm:$0xff]
        %v3285 = vlaneseq
        %v3286 = vshrl.u32 %v3285, 7
        %v3287 = vsub.s32 4, %v3286
        %v3288 = vrot.slane %v3207, %v3287
        %v3289 = vlaneseq
        %v3290 = vshrl.u32 %v3289, 7
        %v3291 = vsub.s32 4, %v3290
        %v3292 = vrot.slane %v3208, %v3291
        %v3293 = vmul.f32 %v3269, %v3288
        %v3294 = vmul.f32 %v3270, %v3292
        %v3295 = vmul.f32 %v3271, %v3288
        %v3296 = vmul.f32 %v3272, %v3292
        %v3297 = vmul.f32 %v3273, %v3288
        %v3298 = vmul.f32 %v3274, %v3292
        %v3299 = vmul.f32 %v3275, %v3288
        %v3300 = vmul.f32 %v3276, %v3292
        %v3301 = vmul.f32 %v3277, %v3288
        %v3302 = vmul.f32 %v3278, %v3292
        %v3303 = vmul.f32 %v3279, %v3288
        %v3304 = vmul.f32 %v3280, %v3292
        %v3305 = vmul.f32 %v3281, %v3288
        %v3306 = vmul.f32 %v3282, %v3292
        %v3307 = vmul.f32 %v3283, %v3288
        %v3308 = vmul.f32 %v3284, %v3292
        %v3309 = vadd.f32 %v3253, %v3293
        %v3310 = vadd.f32 %v3254, %v3294
        %v3311 = vadd.f32 %v3255, %v3295
        %v3312 = vadd.f32 %v3256, %v3296
        %v3313 = vadd.f32 %v3257, %v3297
        %v3314 = vadd.f32 %v3258, %v3298
        %v3315 = vadd.f32 %v3259, %v3299
        %v3316 = vadd.f32 %v3260, %v3300
        %v3317 = vadd.f32 %v3261, %v3301
        %v3318 = vadd.f32 %v3262, %v3302
        %v3319 = vadd.f32 %v3263, %v3303
        %v3320 = vadd.f32 %v3264, %v3304
        %v3321 = vadd.f32 %v3265, %v3305
        %v3322 = vadd.f32 %v3266, %v3306
        %v3323 = vadd.f32 %v3267, %v3307
        %v3324 = vadd.f32 %v3268, %v3308
        %v3325 = vld [vmem:[#allocation5] sm:$0xff]
        %v3326 = vld [vmem:[#allocation5 + $0x8] sm:$0xff]
        %v3327 = vld [vmem:[#allocation5 + $0x10] sm:$0xff]
        %v3328 = vld [vmem:[#allocation5 + $0x18] sm:$0xff]
        %v3329 = vld [vmem:[#allocation5 + $0x20] sm:$0xff]
        %v3330 = vld [vmem:[#allocation5 + $0x28] sm:$0xff]
        %v3331 = vld [vmem:[#allocation5 + $0x30] sm:$0xff]
        %v3332 = vld [vmem:[#allocation5 + $0x38] sm:$0xff]
        %v3333 = vld [vmem:[#allocation5 + $0x40] sm:$0xff]
        %v3334 = vld [vmem:[#allocation5 + $0x48] sm:$0xff]
        %v3335 = vld [vmem:[#allocation5 + $0x50] sm:$0xff]
        %v3336 = vld [vmem:[#allocation5 + $0x58] sm:$0xff]
        %v3337 = vld [vmem:[#allocation5 + $0x60] sm:$0xff]
        %v3338 = vld [vmem:[#allocation5 + $0x68] sm:$0xff]
        %v3339 = vld [vmem:[#allocation5 + $0x70] sm:$0xff]
        %v3340 = vld [vmem:[#allocation5 + $0x78] sm:$0xff]
        %v3341 = vlaneseq
        %v3342 = vshrl.u32 %v3341, 7
        %v3343 = vsub.s32 5, %v3342
        %v3344 = vrot.slane %v3207, %v3343
        %v3345 = vlaneseq
        %v3346 = vshrl.u32 %v3345, 7
        %v3347 = vsub.s32 5, %v3346
        %v3348 = vrot.slane %v3208, %v3347
        %v3349 = vmul.f32 %v3325, %v3344
        %v3350 = vmul.f32 %v3326, %v3348
        %v3351 = vmul.f32 %v3327, %v3344
        %v3352 = vmul.f32 %v3328, %v3348
        %v3353 = vmul.f32 %v3329, %v3344
        %v3354 = vmul.f32 %v3330, %v3348
        %v3355 = vmul.f32 %v3331, %v3344
        %v3356 = vmul.f32 %v3332, %v3348
        %v3357 = vmul.f32 %v3333, %v3344
        %v3358 = vmul.f32 %v3334, %v3348
        %v3359 = vmul.f32 %v3335, %v3344
        %v3360 = vmul.f32 %v3336, %v3348
        %v3361 = vmul.f32 %v3337, %v3344
        %v3362 = vmul.f32 %v3338, %v3348
        %v3363 = vmul.f32 %v3339, %v3344
        %v3364 = vmul.f32 %v3340, %v3348
        %v3365 = vadd.f32 %v3309, %v3349
        %v3366 = vadd.f32 %v3310, %v3350
        %v3367 = vadd.f32 %v3311, %v3351
        %v3368 = vadd.f32 %v3312, %v3352
        %v3369 = vadd.f32 %v3313, %v3353
        %v3370 = vadd.f32 %v3314, %v3354
        %v3371 = vadd.f32 %v3315, %v3355
        %v3372 = vadd.f32 %v3316, %v3356
        %v3373 = vadd.f32 %v3317, %v3357
        %v3374 = vadd.f32 %v3318, %v3358
        %v3375 = vadd.f32 %v3319, %v3359
        %v3376 = vadd.f32 %v3320, %v3360
        %v3377 = vadd.f32 %v3321, %v3361
        %v3378 = vadd.f32 %v3322, %v3362
        %v3379 = vadd.f32 %v3323, %v3363
        %v3380 = vadd.f32 %v3324, %v3364
        %v3381 = vld [vmem:[#allocation4 + $0x80] sm:$0xff]
        %v3382 = vld [vmem:[#allocation4 + $0x88] sm:$0xff]
        %v3383 = vld [vmem:[#allocation4 + $0x90] sm:$0xff]
        %v3384 = vld [vmem:[#allocation4 + $0x98] sm:$0xff]
        %v3385 = vlaneseq
        %v3386 = vshrl.u32 %v3385, 7
        %v3387 = vsub.s32 6, %v3386
        %v3388 = vrot.slane %v3207, %v3387
        %v3389 = vlaneseq
        %v3390 = vshrl.u32 %v3389, 7
        %v3391 = vsub.s32 6, %v3390
        %v3392 = vrot.slane %v3208, %v3391
        %v3393 = vmul.f32 %v3217, %v3388
        %v3394 = vmul.f32 %v3218, %v3392
        %v3395 = vmul.f32 %v3219, %v3388
        %v3396 = vmul.f32 %v3220, %v3392
        %v3397 = vmul.f32 %v3221, %v3388
        %v3398 = vmul.f32 %v3222, %v3392
        %v3399 = vmul.f32 %v3223, %v3388
        %v3400 = vmul.f32 %v3224, %v3392
        %v3401 = vmul.f32 %v3225, %v3388
        %v3402 = vmul.f32 %v3226, %v3392
        %v3403 = vmul.f32 %v3227, %v3388
        %v3404 = vmul.f32 %v3228, %v3392
        %v3405 = vmul.f32 %v3381, %v3388
        %v3406 = vmul.f32 %v3382, %v3392
        %v3407 = vmul.f32 %v3383, %v3388
        %v3408 = vmul.f32 %v3384, %v3392
        %v3409 = vadd.f32 %v3365, %v3393
        %v3410 = vadd.f32 %v3366, %v3394
        %v3411 = vadd.f32 %v3367, %v3395
        %v3412 = vadd.f32 %v3368, %v3396
        %v3413 = vadd.f32 %v3369, %v3397
        %v3414 = vadd.f32 %v3370, %v3398
        %v3415 = vadd.f32 %v3371, %v3399
        %v3416 = vadd.f32 %v3372, %v3400
        %v3417 = vadd.f32 %v3373, %v3401
        %v3418 = vadd.f32 %v3374, %v3402
        %v3419 = vadd.f32 %v3375, %v3403
        %v3420 = vadd.f32 %v3376, %v3404
        %v3421 = vadd.f32 %v3377, %v3405
        %v3422 = vadd.f32 %v3378, %v3406
        %v3423 = vadd.f32 %v3379, %v3407
        %v3424 = vadd.f32 %v3380, %v3408
        %v3425 = vld [vmem:[#allocation3 + $0x80] sm:$0xff]
        %v3426 = vld [vmem:[#allocation3 + $0x88] sm:$0xff]
        %v3427 = vld [vmem:[#allocation3 + $0x90] sm:$0xff]
        %v3428 = vld [vmem:[#allocation3 + $0x98] sm:$0xff]
        %v3429 = vlaneseq
        %v3430 = vshrl.u32 %v3429, 7
        %v3431 = vsub.s32 7, %v3430
        %v3432 = vrot.slane %v3207, %v3431
        %v3433 = vlaneseq
        %v3434 = vshrl.u32 %v3433, 7
        %v3435 = vsub.s32 7, %v3434
        %v3436 = vrot.slane %v3208, %v3435
        %v3437 = vmul.f32 %v3273, %v3432
        %v3438 = vmul.f32 %v3274, %v3436
        %v3439 = vmul.f32 %v3275, %v3432
        %v3440 = vmul.f32 %v3276, %v3436
        %v3441 = vmul.f32 %v3277, %v3432
        %v3442 = vmul.f32 %v3278, %v3436
        %v3443 = vmul.f32 %v3279, %v3432
        %v3444 = vmul.f32 %v3280, %v3436
        %v3445 = vmul.f32 %v3281, %v3432
        %v3446 = vmul.f32 %v3282, %v3436
        %v3447 = vmul.f32 %v3283, %v3432
        %v3448 = vmul.f32 %v3284, %v3436
        %v3449 = vmul.f32 %v3425, %v3432
        %v3450 = vmul.f32 %v3426, %v3436
        %v3451 = vmul.f32 %v3427, %v3432
        %v3452 = vmul.f32 %v3428, %v3436
        %v3453 = vadd.f32 %v3409, %v3437
        %v3454 = vadd.f32 %v3410, %v3438
        %v3455 = vadd.f32 %v3411, %v3439
        %v3456 = vadd.f32 %v3412, %v3440
        %v3457 = vadd.f32 %v3413, %v3441
        %v3458 = vadd.f32 %v3414, %v3442
        %v3459 = vadd.f32 %v3415, %v3443
        %v3460 = vadd.f32 %v3416, %v3444
        %v3461 = vadd.f32 %v3417, %v3445
        %v3462 = vadd.f32 %v3418, %v3446
        %v3463 = vadd.f32 %v3419, %v3447
        %v3464 = vadd.f32 %v3420, %v3448
        %v3465 = vadd.f32 %v3421, %v3449
        %v3466 = vadd.f32 %v3422, %v3450
        %v3467 = vadd.f32 %v3423, %v3451
        %v3468 = vadd.f32 %v3424, %v3452
        %v3469 = vld [vmem:[#allocation5 + $0x80] sm:$0xff]
        %v3470 = vld [vmem:[#allocation5 + $0x88] sm:$0xff]
        %v3471 = vld [vmem:[#allocation5 + $0x90] sm:$0xff]
        %v3472 = vld [vmem:[#allocation5 + $0x98] sm:$0xff]
        %v3473 = vlaneseq
        %v3474 = vshrl.u32 %v3473, 7
        %v3475 = vsub.s32 0, %v3474
        %v3476 = vrot.slane %v3209, %v3475
        %v3477 = vlaneseq
        %v3478 = vshrl.u32 %v3477, 7
        %v3479 = vsub.s32 0, %v3478
        %v3480 = vrot.slane %v3210, %v3479
        %v3481 = vmul.f32 %v3329, %v3476
        %v3482 = vmul.f32 %v3330, %v3480
        %v3483 = vmul.f32 %v3331, %v3476
        %v3484 = vmul.f32 %v3332, %v3480
        %v3485 = vmul.f32 %v3333, %v3476
        %v3486 = vmul.f32 %v3334, %v3480
        %v3487 = vmul.f32 %v3335, %v3476
        %v3488 = vmul.f32 %v3336, %v3480
        %v3489 = vmul.f32 %v3337, %v3476
        %v3490 = vmul.f32 %v3338, %v3480
        %v3491 = vmul.f32 %v3339, %v3476
        %v3492 = vmul.f32 %v3340, %v3480
        %v3493 = vmul.f32 %v3469, %v3476
        %v3494 = vmul.f32 %v3470, %v3480
        %v3495 = vmul.f32 %v3471, %v3476
        %v3496 = vmul.f32 %v3472, %v3480
        %v3497 = vadd.f32 %v3453, %v3481
        %v3498 = vadd.f32 %v3454, %v3482
        %v3499 = vadd.f32 %v3455, %v3483
        %v3500 = vadd.f32 %v3456, %v3484
        %v3501 = vadd.f32 %v3457, %v3485
        %v3502 = vadd.f32 %v3458, %v3486
        %v3503 = vadd.f32 %v3459, %v3487
        %v3504 = vadd.f32 %v3460, %v3488
        %v3505 = vadd.f32 %v3461, %v3489
        %v3506 = vadd.f32 %v3462, %v3490
        %v3507 = vadd.f32 %v3463, %v3491
        %v3508 = vadd.f32 %v3464, %v3492
        %v3509 = vadd.f32 %v3465, %v3493
        %v3510 = vadd.f32 %v3466, %v3494
        %v3511 = vadd.f32 %v3467, %v3495
        %v3512 = vadd.f32 %v3468, %v3496
        %v3513 = vld [vmem:[#allocation4 + $0xa0] sm:$0xff]
        %v3514 = vld [vmem:[#allocation4 + $0xa8] sm:$0xff]
        %v3515 = vld [vmem:[#allocation4 + $0xb0] sm:$0xff]
        %v3516 = vld [vmem:[#allocation4 + $0xb8] sm:$0xff]
        %v3517 = vlaneseq
        %v3518 = vshrl.u32 %v3517, 7
        %v3519 = vsub.s32 1, %v3518
        %v3520 = vrot.slane %v3209, %v3519
        %v3521 = vlaneseq
        %v3522 = vshrl.u32 %v3521, 7
        %v3523 = vsub.s32 1, %v3522
        %v3524 = vrot.slane %v3210, %v3523
        %v3525 = vmul.f32 %v3221, %v3520
        %v3526 = vmul.f32 %v3222, %v3524
        %v3527 = vmul.f32 %v3223, %v3520
        %v3528 = vmul.f32 %v3224, %v3524
        %v3529 = vmul.f32 %v3225, %v3520
        %v3530 = vmul.f32 %v3226, %v3524
        %v3531 = vmul.f32 %v3227, %v3520
        %v3532 = vmul.f32 %v3228, %v3524
        %v3533 = vmul.f32 %v3381, %v3520
        %v3534 = vmul.f32 %v3382, %v3524
        %v3535 = vmul.f32 %v3383, %v3520
        %v3536 = vmul.f32 %v3384, %v3524
        %v3537 = vmul.f32 %v3513, %v3520
        %v3538 = vmul.f32 %v3514, %v3524
        %v3539 = vmul.f32 %v3515, %v3520
        %v3540 = vmul.f32 %v3516, %v3524
        %v3541 = vadd.f32 %v3497, %v3525
        %v3542 = vadd.f32 %v3498, %v3526
        %v3543 = vadd.f32 %v3499, %v3527
        %v3544 = vadd.f32 %v3500, %v3528
        %v3545 = vadd.f32 %v3501, %v3529
        %v3546 = vadd.f32 %v3502, %v3530
        %v3547 = vadd.f32 %v3503, %v3531
        %v3548 = vadd.f32 %v3504, %v3532
        %v3549 = vadd.f32 %v3505, %v3533
        %v3550 = vadd.f32 %v3506, %v3534
        %v3551 = vadd.f32 %v3507, %v3535
        %v3552 = vadd.f32 %v3508, %v3536
        %v3553 = vadd.f32 %v3509, %v3537
        %v3554 = vadd.f32 %v3510, %v3538
        %v3555 = vadd.f32 %v3511, %v3539
        %v3556 = vadd.f32 %v3512, %v3540
        %v3557 = vld [vmem:[#allocation3 + $0xa0] sm:$0xff]
        %v3558 = vld [vmem:[#allocation3 + $0xa8] sm:$0xff]
        %v3559 = vld [vmem:[#allocation3 + $0xb0] sm:$0xff]
        %v3560 = vld [vmem:[#allocation3 + $0xb8] sm:$0xff]
        %v3561 = vlaneseq
        %v3562 = vshrl.u32 %v3561, 7
        %v3563 = vsub.s32 2, %v3562
        %v3564 = vrot.slane %v3209, %v3563
        %v3565 = vlaneseq
        %v3566 = vshrl.u32 %v3565, 7
        %v3567 = vsub.s32 2, %v3566
        %v3568 = vrot.slane %v3210, %v3567
        %v3569 = vmul.f32 %v3277, %v3564
        %v3570 = vmul.f32 %v3278, %v3568
        %v3571 = vmul.f32 %v3279, %v3564
        %v3572 = vmul.f32 %v3280, %v3568
        %v3573 = vmul.f32 %v3281, %v3564
        %v3574 = vmul.f32 %v3282, %v3568
        %v3575 = vmul.f32 %v3283, %v3564
        %v3576 = vmul.f32 %v3284, %v3568
        %v3577 = vmul.f32 %v3425, %v3564
        %v3578 = vmul.f32 %v3426, %v3568
        %v3579 = vmul.f32 %v3427, %v3564
        %v3580 = vmul.f32 %v3428, %v3568
        %v3581 = vmul.f32 %v3557, %v3564
        %v3582 = vmul.f32 %v3558, %v3568
        %v3583 = vmul.f32 %v3559, %v3564
        %v3584 = vmul.f32 %v3560, %v3568
        %v3585 = vadd.f32 %v3541, %v3569
        %v3586 = vadd.f32 %v3542, %v3570
        %v3587 = vadd.f32 %v3543, %v3571
        %v3588 = vadd.f32 %v3544, %v3572
        %v3589 = vadd.f32 %v3545, %v3573
        %v3590 = vadd.f32 %v3546, %v3574
        %v3591 = vadd.f32 %v3547, %v3575
        %v3592 = vadd.f32 %v3548, %v3576
        %v3593 = vadd.f32 %v3549, %v3577
        %v3594 = vadd.f32 %v3550, %v3578
        %v3595 = vadd.f32 %v3551, %v3579
        %v3596 = vadd.f32 %v3552, %v3580
        %v3597 = vadd.f32 %v3553, %v3581
        %v3598 = vadd.f32 %v3554, %v3582
        %v3599 = vadd.f32 %v3555, %v3583
        %v3600 = vadd.f32 %v3556, %v3584
        %v3601 = vld [vmem:[#allocation5 + $0xa0] sm:$0xff]
        %v3602 = vld [vmem:[#allocation5 + $0xa8] sm:$0xff]
        %v3603 = vld [vmem:[#allocation5 + $0xb0] sm:$0xff]
        %v3604 = vld [vmem:[#allocation5 + $0xb8] sm:$0xff]
        %v3605 = vlaneseq
        %v3606 = vshrl.u32 %v3605, 7
        %v3607 = vsub.s32 3, %v3606
        %v3608 = vrot.slane %v3209, %v3607
        %v3609 = vlaneseq
        %v3610 = vshrl.u32 %v3609, 7
        %v3611 = vsub.s32 3, %v3610
        %v3612 = vrot.slane %v3210, %v3611
        %v3613 = vmul.f32 %v3333, %v3608
        %v3614 = vmul.f32 %v3334, %v3612
        %v3615 = vmul.f32 %v3335, %v3608
        %v3616 = vmul.f32 %v3336, %v3612
        %v3617 = vmul.f32 %v3337, %v3608
        %v3618 = vmul.f32 %v3338, %v3612
        %v3619 = vmul.f32 %v3339, %v3608
        %v3620 = vmul.f32 %v3340, %v3612
        %v3621 = vmul.f32 %v3469, %v3608
        %v3622 = vmul.f32 %v3470, %v3612
        %v3623 = vmul.f32 %v3471, %v3608
        %v3624 = vmul.f32 %v3472, %v3612
        %v3625 = vmul.f32 %v3601, %v3608
        %v3626 = vmul.f32 %v3602, %v3612
        %v3627 = vmul.f32 %v3603, %v3608
        %v3628 = vmul.f32 %v3604, %v3612
        %v3629 = vadd.f32 %v3585, %v3613
        %v3630 = vadd.f32 %v3586, %v3614
        %v3631 = vadd.f32 %v3587, %v3615
        %v3632 = vadd.f32 %v3588, %v3616
        %v3633 = vadd.f32 %v3589, %v3617
        %v3634 = vadd.f32 %v3590, %v3618
        %v3635 = vadd.f32 %v3591, %v3619
        %v3636 = vadd.f32 %v3592, %v3620
        %v3637 = vadd.f32 %v3593, %v3621
        %v3638 = vadd.f32 %v3594, %v3622
        %v3639 = vadd.f32 %v3595, %v3623
        %v3640 = vadd.f32 %v3596, %v3624
        %v3641 = vadd.f32 %v3597, %v3625
        %v3642 = vadd.f32 %v3598, %v3626
        %v3643 = vadd.f32 %v3599, %v3627
        %v3644 = vadd.f32 %v3600, %v3628
        %v3646 = vlaneseq
        %v3647 = vshrl.u32 %v3646, 7
        %v3648 = vsub.s32 0, %v3647
        %v3649 = vrot.slane %v3212, %v3648
        %v3650 = vlaneseq
        %v3651 = vshrl.u32 %v3650, 7
        %v3652 = vsub.s32 1, %v3651
        %v3653 = vrot.slane %v3212, %v3652
        %v3656 = vadd.f32 %v3629, %v3649
        %v3657 = vadd.f32 %v3630, %v3653
        %v3658 = vadd.f32 %v3631, %v3649
        %v3659 = vadd.f32 %v3632, %v3653
        %v3660 = vadd.f32 %v3633, %v3649
        %v3661 = vadd.f32 %v3634, %v3653
        %v3662 = vadd.f32 %v3635, %v3649
        %v3663 = vadd.f32 %v3636, %v3653
        %v3664 = vadd.f32 %v3637, %v3649
        %v3665 = vadd.f32 %v3638, %v3653
        %v3666 = vadd.f32 %v3639, %v3649
        %v3667 = vadd.f32 %v3640, %v3653
        %v3668 = vadd.f32 %v3641, %v3649
        %v3669 = vadd.f32 %v3642, %v3653
        %v3670 = vadd.f32 %v3643, %v3649
        %v3671 = vadd.f32 %v3644, %v3653
        %3672 = vst [vmem:[#allocation6] sm:$0xff] %v3656
        %3673 = vst [vmem:[#allocation6 + $0x8] sm:$0xff] %v3657
        %3674 = vst [vmem:[#allocation6 + $0x10] sm:$0xff] %v3658
        %3675 = vst [vmem:[#allocation6 + $0x18] sm:$0xff] %v3659
        %3676 = vst [vmem:[#allocation6 + $0x20] sm:$0xff] %v3660
        %3677 = vst [vmem:[#allocation6 + $0x28] sm:$0xff] %v3661
        %3678 = vst [vmem:[#allocation6 + $0x30] sm:$0xff] %v3662
        %3679 = vst [vmem:[#allocation6 + $0x38] sm:$0xff] %v3663
        %3680 = vst [vmem:[#allocation6 + $0x40] sm:$0xff] %v3664
        %3681 = vst [vmem:[#allocation6 + $0x48] sm:$0xff] %v3665
        %3682 = vst [vmem:[#allocation6 + $0x50] sm:$0xff] %v3666
        %3683 = vst [vmem:[#allocation6 + $0x58] sm:$0xff] %v3667
        %3684 = vst [vmem:[#allocation6 + $0x60] sm:$0xff] %v3668
        %3685 = vst [vmem:[#allocation6 + $0x68] sm:$0xff] %v3669
        %3686 = vst [vmem:[#allocation6 + $0x70] sm:$0xff] %v3670
        %3687 = vst [vmem:[#allocation6 + $0x78] sm:$0xff] %v3671
        %v3688 = vld [vmem:[#allocation4 + $0x80] sm:$0xff]
        %v3689 = vld [vmem:[#allocation4 + $0x88] sm:$0xff]
        %v3690 = vld [vmem:[#allocation4 + $0x90] sm:$0xff]
        %v3691 = vld [vmem:[#allocation4 + $0x98] sm:$0xff]
        %v3692 = vld [vmem:[#allocation4 + $0xa0] sm:$0xff]
        %v3693 = vld [vmem:[#allocation4 + $0xa8] sm:$0xff]
        %v3694 = vld [vmem:[#allocation4 + $0xb0] sm:$0xff]
        %v3695 = vld [vmem:[#allocation4 + $0xb8] sm:$0xff]
        %v3696 = vld [vmem:[#allocation4 + $0xc0] sm:$0xff]
        %v3697 = vld [vmem:[#allocation4 + $0xc8] sm:$0xff]
        %v3698 = vld [vmem:[#allocation4 + $0xd0] sm:$0xff]
        %v3699 = vld [vmem:[#allocation4 + $0xd8] sm:$0xff]
        %v3700 = vld [vmem:[#allocation4 + $0xe0] sm:$0xff]
        %v3701 = vld [vmem:[#allocation4 + $0xe8] sm:$0xff]
        %v3702 = vld [vmem:[#allocation4 + $0xf0] sm:$0xff]
        %v3703 = vld [vmem:[#allocation4 + $0xf8] sm:$0xff]
        %v3704 = vmul.f32 %v3688, %v3232
        %v3705 = vmul.f32 %v3689, %v3236
        %v3706 = vmul.f32 %v3690, %v3232
        %v3707 = vmul.f32 %v3691, %v3236
        %v3708 = vmul.f32 %v3692, %v3232
        %v3709 = vmul.f32 %v3693, %v3236
        %v3710 = vmul.f32 %v3694, %v3232
        %v3711 = vmul.f32 %v3695, %v3236
        %v3712 = vmul.f32 %v3696, %v3232
        %v3713 = vmul.f32 %v3697, %v3236
        %v3714 = vmul.f32 %v3698, %v3232
        %v3715 = vmul.f32 %v3699, %v3236
        %v3716 = vmul.f32 %v3700, %v3232
        %v3717 = vmul.f32 %v3701, %v3236
        %v3718 = vmul.f32 %v3702, %v3232
        %v3719 = vmul.f32 %v3703, %v3236
        %v3720 = vadd.f32 %v3704, 0.0
        %v3721 = vadd.f32 %v3705, 0.0
        %v3722 = vadd.f32 %v3706, 0.0
        %v3723 = vadd.f32 %v3707, 0.0
        %v3724 = vadd.f32 %v3708, 0.0
        %v3725 = vadd.f32 %v3709, 0.0
        %v3726 = vadd.f32 %v3710, 0.0
        %v3727 = vadd.f32 %v3711, 0.0
        %v3728 = vadd.f32 %v3712, 0.0
        %v3729 = vadd.f32 %v3713, 0.0
        %v3730 = vadd.f32 %v3714, 0.0
        %v3731 = vadd.f32 %v3715, 0.0
        %v3732 = vadd.f32 %v3716, 0.0
        %v3733 = vadd.f32 %v3717, 0.0
        %v3734 = vadd.f32 %v3718, 0.0
        %v3735 = vadd.f32 %v3719, 0.0
        %v3736 = vld [vmem:[#allocation3 + $0x80] sm:$0xff]
        %v3737 = vld [vmem:[#allocation3 + $0x88] sm:$0xff]
        %v3738 = vld [vmem:[#allocation3 + $0x90] sm:$0xff]
        %v3739 = vld [vmem:[#allocation3 + $0x98] sm:$0xff]
        %v3740 = vld [vmem:[#allocation3 + $0xa0] sm:$0xff]
        %v3741 = vld [vmem:[#allocation3 + $0xa8] sm:$0xff]
        %v3742 = vld [vmem:[#allocation3 + $0xb0] sm:$0xff]
        %v3743 = vld [vmem:[#allocation3 + $0xb8] sm:$0xff]
        %v3744 = vld [vmem:[#allocation3 + $0xc0] sm:$0xff]
        %v3745 = vld [vmem:[#allocation3 + $0xc8] sm:$0xff]
        %v3746 = vld [vmem:[#allocation3 + $0xd0] sm:$0xff]
        %v3747 = vld [vmem:[#allocation3 + $0xd8] sm:$0xff]
        %v3748 = vld [vmem:[#allocation3 + $0xe0] sm:$0xff]
        %v3749 = vld [vmem:[#allocation3 + $0xe8] sm:$0xff]
        %v3750 = vld [vmem:[#allocation3 + $0xf0] sm:$0xff]
        %v3751 = vld [vmem:[#allocation3 + $0xf8] sm:$0xff]
        %v3752 = vmul.f32 %v3736, %v3288
        %v3753 = vmul.f32 %v3737, %v3292
        %v3754 = vmul.f32 %v3738, %v3288
        %v3755 = vmul.f32 %v3739, %v3292
        %v3756 = vmul.f32 %v3740, %v3288
        %v3757 = vmul.f32 %v3741, %v3292
        %v3758 = vmul.f32 %v3742, %v3288
        %v3759 = vmul.f32 %v3743, %v3292
        %v3760 = vmul.f32 %v3744, %v3288
        %v3761 = vmul.f32 %v3745, %v3292
        %v3762 = vmul.f32 %v3746, %v3288
        %v3763 = vmul.f32 %v3747, %v3292
        %v3764 = vmul.f32 %v3748, %v3288
        %v3765 = vmul.f32 %v3749, %v3292
        %v3766 = vmul.f32 %v3750, %v3288
        %v3767 = vmul.f32 %v3751, %v3292
        %v3768 = vadd.f32 %v3720, %v3752
        %v3769 = vadd.f32 %v3721, %v3753
        %v3770 = vadd.f32 %v3722, %v3754
        %v3771 = vadd.f32 %v3723, %v3755
        %v3772 = vadd.f32 %v3724, %v3756
        %v3773 = vadd.f32 %v3725, %v3757
        %v3774 = vadd.f32 %v3726, %v3758
        %v3775 = vadd.f32 %v3727, %v3759
        %v3776 = vadd.f32 %v3728, %v3760
        %v3777 = vadd.f32 %v3729, %v3761
        %v3778 = vadd.f32 %v3730, %v3762
        %v3779 = vadd.f32 %v3731, %v3763
        %v3780 = vadd.f32 %v3732, %v3764
        %v3781 = vadd.f32 %v3733, %v3765
        %v3782 = vadd.f32 %v3734, %v3766
        %v3783 = vadd.f32 %v3735, %v3767
        %v3784 = vld [vmem:[#allocation5 + $0x80] sm:$0xff]
        %v3785 = vld [vmem:[#allocation5 + $0x88] sm:$0xff]
        %v3786 = vld [vmem:[#allocation5 + $0x90] sm:$0xff]
        %v3787 = vld [vmem:[#allocation5 + $0x98] sm:$0xff]
        %v3788 = vld [vmem:[#allocation5 + $0xa0] sm:$0xff]
        %v3789 = vld [vmem:[#allocation5 + $0xa8] sm:$0xff]
        %v3790 = vld [vmem:[#allocation5 + $0xb0] sm:$0xff]
        %v3791 = vld [vmem:[#allocation5 + $0xb8] sm:$0xff]
        %v3792 = vld [vmem:[#allocation5 + $0xc0] sm:$0xff]
        %v3793 = vld [vmem:[#allocation5 + $0xc8] sm:$0xff]
        %v3794 = vld [vmem:[#allocation5 + $0xd0] sm:$0xff]
        %v3795 = vld [vmem:[#allocation5 + $0xd8] sm:$0xff]
        %v3796 = vld [vmem:[#allocation5 + $0xe0] sm:$0xff]
        %v3797 = vld [vmem:[#allocation5 + $0xe8] sm:$0xff]
        %v3798 = vld [vmem:[#allocation5 + $0xf0] sm:$0xff]
        %v3799 = vld [vmem:[#allocation5 + $0xf8] sm:$0xff]
        %v3800 = vmul.f32 %v3784, %v3344
        %v3801 = vmul.f32 %v3785, %v3348
        %v3802 = vmul.f32 %v3786, %v3344
        %v3803 = vmul.f32 %v3787, %v3348
        %v3804 = vmul.f32 %v3788, %v3344
        %v3805 = vmul.f32 %v3789, %v3348
        %v3806 = vmul.f32 %v3790, %v3344
        %v3807 = vmul.f32 %v3791, %v3348
        %v3808 = vmul.f32 %v3792, %v3344
        %v3809 = vmul.f32 %v3793, %v3348
        %v3810 = vmul.f32 %v3794, %v3344
        %v3811 = vmul.f32 %v3795, %v3348
        %v3812 = vmul.f32 %v3796, %v3344
        %v3813 = vmul.f32 %v3797, %v3348
        %v3814 = vmul.f32 %v3798, %v3344
        %v3815 = vmul.f32 %v3799, %v3348
        %v3816 = vadd.f32 %v3768, %v3800
        %v3817 = vadd.f32 %v3769, %v3801
        %v3818 = vadd.f32 %v3770, %v3802
        %v3819 = vadd.f32 %v3771, %v3803
        %v3820 = vadd.f32 %v3772, %v3804
        %v3821 = vadd.f32 %v3773, %v3805
        %v3822 = vadd.f32 %v3774, %v3806
        %v3823 = vadd.f32 %v3775, %v3807
        %v3824 = vadd.f32 %v3776, %v3808
        %v3825 = vadd.f32 %v3777, %v3809
        %v3826 = vadd.f32 %v3778, %v3810
        %v3827 = vadd.f32 %v3779, %v3811
        %v3828 = vadd.f32 %v3780, %v3812
        %v3829 = vadd.f32 %v3781, %v3813
        %v3830 = vadd.f32 %v3782, %v3814
        %v3831 = vadd.f32 %v3783, %v3815
        %v3832 = vld [vmem:[#allocation4 + $0x100] sm:$0xff]
        %v3833 = vld [vmem:[#allocation4 + $0x108] sm:$0xff]
        %v3834 = vld [vmem:[#allocation4 + $0x110] sm:$0xff]
        %v3835 = vld [vmem:[#allocation4 + $0x118] sm:$0xff]
        %v3836 = vmul.f32 %v3692, %v3388
        %v3837 = vmul.f32 %v3693, %v3392
        %v3838 = vmul.f32 %v3694, %v3388
        %v3839 = vmul.f32 %v3695, %v3392
        %v3840 = vmul.f32 %v3696, %v3388
        %v3841 = vmul.f32 %v3697, %v3392
        %v3842 = vmul.f32 %v3698, %v3388
        %v3843 = vmul.f32 %v3699, %v3392
        %v3844 = vmul.f32 %v3700, %v3388
        %v3845 = vmul.f32 %v3701, %v3392
        %v3846 = vmul.f32 %v3702, %v3388
        %v3847 = vmul.f32 %v3703, %v3392
        %v3848 = vmul.f32 %v3832, %v3388
        %v3849 = vmul.f32 %v3833, %v3392
        %v3850 = vmul.f32 %v3834, %v3388
        %v3851 = vmul.f32 %v3835, %v3392
        %v3852 = vadd.f32 %v3816, %v3836
        %v3853 = vadd.f32 %v3817, %v3837
        %v3854 = vadd.f32 %v3818, %v3838
        %v3855 = vadd.f32 %v3819, %v3839
        %v3856 = vadd.f32 %v3820, %v3840
        %v3857 = vadd.f32 %v3821, %v3841
        %v3858 = vadd.f32 %v3822, %v3842
        %v3859 = vadd.f32 %v3823, %v3843
        %v3860 = vadd.f32 %v3824, %v3844
        %v3861 = vadd.f32 %v3825, %v3845
        %v3862 = vadd.f32 %v3826, %v3846
        %v3863 = vadd.f32 %v3827, %v3847
        %v3864 = vadd.f32 %v3828, %v3848
        %v3865 = vadd.f32 %v3829, %v3849
        %v3866 = vadd.f32 %v3830, %v3850
        %v3867 = vadd.f32 %v3831, %v3851
        %v3868 = vld [vmem:[#allocation3 + $0x100] sm:$0xff]
        %v3869 = vld [vmem:[#allocation3 + $0x108] sm:$0xff]
        %v3870 = vld [vmem:[#allocation3 + $0x110] sm:$0xff]
        %v3871 = vld [vmem:[#allocation3 + $0x118] sm:$0xff]
        %v3872 = vmul.f32 %v3740, %v3432
        %v3873 = vmul.f32 %v3741, %v3436
        %v3874 = vmul.f32 %v3742, %v3432
        %v3875 = vmul.f32 %v3743, %v3436
        %v3876 = vmul.f32 %v3744, %v3432
        %v3877 = vmul.f32 %v3745, %v3436
        %v3878 = vmul.f32 %v3746, %v3432
        %v3879 = vmul.f32 %v3747, %v3436
        %v3880 = vmul.f32 %v3748, %v3432
        %v3881 = vmul.f32 %v3749, %v3436
        %v3882 = vmul.f32 %v3750, %v3432
        %v3883 = vmul.f32 %v3751, %v3436
        %v3884 = vmul.f32 %v3868, %v3432
        %v3885 = vmul.f32 %v3869, %v3436
        %v3886 = vmul.f32 %v3870, %v3432
        %v3887 = vmul.f32 %v3871, %v3436
        %v3888 = vadd.f32 %v3852, %v3872
        %v3889 = vadd.f32 %v3853, %v3873
        %v3890 = vadd.f32 %v3854, %v3874
        %v3891 = vadd.f32 %v3855, %v3875
        %v3892 = vadd.f32 %v3856, %v3876
        %v3893 = vadd.f32 %v3857, %v3877
        %v3894 = vadd.f32 %v3858, %v3878
        %v3895 = vadd.f32 %v3859, %v3879
        %v3896 = vadd.f32 %v3860, %v3880
        %v3897 = vadd.f32 %v3861, %v3881
        %v3898 = vadd.f32 %v3862, %v3882
        %v3899 = vadd.f32 %v3863, %v3883
        %v3900 = vadd.f32 %v3864, %v3884
        %v3901 = vadd.f32 %v3865, %v3885
        %v3902 = vadd.f32 %v3866, %v3886
        %v3903 = vadd.f32 %v3867, %v3887
        %v3904 = vld [vmem:[#allocation5 + $0x100] sm:$0xff]
        %v3905 = vld [vmem:[#allocation5 + $0x108] sm:$0xff]
        %v3906 = vld [vmem:[#allocation5 + $0x110] sm:$0xff]
        %v3907 = vld [vmem:[#allocation5 + $0x118] sm:$0xff]
        %v3908 = vmul.f32 %v3788, %v3476
        %v3909 = vmul.f32 %v3789, %v3480
        %v3910 = vmul.f32 %v3790, %v3476
        %v3911 = vmul.f32 %v3791, %v3480
        %v3912 = vmul.f32 %v3792, %v3476
        %v3913 = vmul.f32 %v3793, %v3480
        %v3914 = vmul.f32 %v3794, %v3476
        %v3915 = vmul.f32 %v3795, %v3480
        %v3916 = vmul.f32 %v3796, %v3476
        %v3917 = vmul.f32 %v3797, %v3480
        %v3918 = vmul.f32 %v3798, %v3476
        %v3919 = vmul.f32 %v3799, %v3480
        %v3920 = vmul.f32 %v3904, %v3476
        %v3921 = vmul.f32 %v3905, %v3480
        %v3922 = vmul.f32 %v3906, %v3476
        %v3923 = vmul.f32 %v3907, %v3480
        %v3924 = vadd.f32 %v3888, %v3908
        %v3925 = vadd.f32 %v3889, %v3909
        %v3926 = vadd.f32 %v3890, %v3910
        %v3927 = vadd.f32 %v3891, %v3911
        %v3928 = vadd.f32 %v3892, %v3912
        %v3929 = vadd.f32 %v3893, %v3913
        %v3930 = vadd.f32 %v3894, %v3914
        %v3931 = vadd.f32 %v3895, %v3915
        %v3932 = vadd.f32 %v3896, %v3916
        %v3933 = vadd.f32 %v3897, %v3917
        %v3934 = vadd.f32 %v3898, %v3918
        %v3935 = vadd.f32 %v3899, %v3919
        %v3936 = vadd.f32 %v3900, %v3920
        %v3937 = vadd.f32 %v3901, %v3921
        %v3938 = vadd.f32 %v3902, %v3922
        %v3939 = vadd.f32 %v3903, %v3923
        %v3940 = vld [vmem:[#allocation4 + $0x120] sm:$0xff]
        %v3941 = vld [vmem:[#allocation4 + $0x128] sm:$0xff]
        %v3942 = vld [vmem:[#allocation4 + $0x130] sm:$0xff]
        %v3943 = vld [vmem:[#allocation4 + $0x138] sm:$0xff]
        %v3944 = vmul.f32 %v3696, %v3520
        %v3945 = vmul.f32 %v3697, %v3524
        %v3946 = vmul.f32 %v3698, %v3520
        %v3947 = vmul.f32 %v3699, %v3524
        %v3948 = vmul.f32 %v3700, %v3520
        %v3949 = vmul.f32 %v3701, %v3524
        %v3950 = vmul.f32 %v3702, %v3520
        %v3951 = vmul.f32 %v3703, %v3524
        %v3952 = vmul.f32 %v3832, %v3520
        %v3953 = vmul.f32 %v3833, %v3524
        %v3954 = vmul.f32 %v3834, %v3520
        %v3955 = vmul.f32 %v3835, %v3524
        %v3956 = vmul.f32 %v3940, %v3520
        %v3957 = vmul.f32 %v3941, %v3524
        %v3958 = vmul.f32 %v3942, %v3520
        %v3959 = vmul.f32 %v3943, %v3524
        %v3960 = vadd.f32 %v3924, %v3944
        %v3961 = vadd.f32 %v3925, %v3945
        %v3962 = vadd.f32 %v3926, %v3946
        %v3963 = vadd.f32 %v3927, %v3947
        %v3964 = vadd.f32 %v3928, %v3948
        %v3965 = vadd.f32 %v3929, %v3949
        %v3966 = vadd.f32 %v3930, %v3950
        %v3967 = vadd.f32 %v3931, %v3951
        %v3968 = vadd.f32 %v3932, %v3952
        %v3969 = vadd.f32 %v3933, %v3953
        %v3970 = vadd.f32 %v3934, %v3954
        %v3971 = vadd.f32 %v3935, %v3955
        %v3972 = vadd.f32 %v3936, %v3956
        %v3973 = vadd.f32 %v3937, %v3957
        %v3974 = vadd.f32 %v3938, %v3958
        %v3975 = vadd.f32 %v3939, %v3959
        %v3976 = vld [vmem:[#allocation3 + $0x120] sm:$0xff]
        %v3977 = vld [vmem:[#allocation3 + $0x128] sm:$0xff]
        %v3978 = vld [vmem:[#allocation3 + $0x130] sm:$0xff]
        %v3979 = vld [vmem:[#allocation3 + $0x138] sm:$0xff]
        %v3980 = vmul.f32 %v3744, %v3564
        %v3981 = vmul.f32 %v3745, %v3568
        %v3982 = vmul.f32 %v3746, %v3564
        %v3983 = vmul.f32 %v3747, %v3568
        %v3984 = vmul.f32 %v3748, %v3564
        %v3985 = vmul.f32 %v3749, %v3568
        %v3986 = vmul.f32 %v3750, %v3564
        %v3987 = vmul.f32 %v3751, %v3568
        %v3988 = vmul.f32 %v3868, %v3564
        %v3989 = vmul.f32 %v3869, %v3568
        %v3990 = vmul.f32 %v3870, %v3564
        %v3991 = vmul.f32 %v3871, %v3568
        %v3992 = vmul.f32 %v3976, %v3564
        %v3993 = vmul.f32 %v3977, %v3568
        %v3994 = vmul.f32 %v3978, %v3564
        %v3995 = vmul.f32 %v3979, %v3568
        %v3996 = vadd.f32 %v3960, %v3980
        %v3997 = vadd.f32 %v3961, %v3981
        %v3998 = vadd.f32 %v3962, %v3982
        %v3999 = vadd.f32 %v3963, %v3983
        %v4000 = vadd.f32 %v3964, %v3984
        %v4001 = vadd.f32 %v3965, %v3985
        %v4002 = vadd.f32 %v3966, %v3986
        %v4003 = vadd.f32 %v3967, %v3987
        %v4004 = vadd.f32 %v3968, %v3988
        %v4005 = vadd.f32 %v3969, %v3989
        %v4006 = vadd.f32 %v3970, %v3990
        %v4007 = vadd.f32 %v3971, %v3991
        %v4008 = vadd.f32 %v3972, %v3992
        %v4009 = vadd.f32 %v3973, %v3993
        %v4010 = vadd.f32 %v3974, %v3994
        %v4011 = vadd.f32 %v3975, %v3995
        %v4012 = vld [vmem:[#allocation5 + $0x120] sm:$0xff]
        %v4013 = vld [vmem:[#allocation5 + $0x128] sm:$0xff]
        %v4014 = vld [vmem:[#allocation5 + $0x130] sm:$0xff]
        %v4015 = vld [vmem:[#allocation5 + $0x138] sm:$0xff]
        %v4016 = vmul.f32 %v3792, %v3608
        %v4017 = vmul.f32 %v3793, %v3612
        %v4018 = vmul.f32 %v3794, %v3608
        %v4019 = vmul.f32 %v3795, %v3612
        %v4020 = vmul.f32 %v3796, %v3608
        %v4021 = vmul.f32 %v3797, %v3612
        %v4022 = vmul.f32 %v3798, %v3608
        %v4023 = vmul.f32 %v3799, %v3612
        %v4024 = vmul.f32 %v3904, %v3608
        %v4025 = vmul.f32 %v3905, %v3612
        %v4026 = vmul.f32 %v3906, %v3608
        %v4027 = vmul.f32 %v3907, %v3612
        %v4028 = vmul.f32 %v4012, %v3608
        %v4029 = vmul.f32 %v4013, %v3612
        %v4030 = vmul.f32 %v4014, %v3608
        %v4031 = vmul.f32 %v4015, %v3612
        %v4032 = vadd.f32 %v3996, %v4016
        %v4033 = vadd.f32 %v3997, %v4017
        %v4034 = vadd.f32 %v3998, %v4018
        %v4035 = vadd.f32 %v3999, %v4019
        %v4036 = vadd.f32 %v4000, %v4020
        %v4037 = vadd.f32 %v4001, %v4021
        %v4038 = vadd.f32 %v4002, %v4022
        %v4039 = vadd.f32 %v4003, %v4023
        %v4040 = vadd.f32 %v4004, %v4024
        %v4041 = vadd.f32 %v4005, %v4025
        %v4042 = vadd.f32 %v4006, %v4026
        %v4043 = vadd.f32 %v4007, %v4027
        %v4044 = vadd.f32 %v4008, %v4028
        %v4045 = vadd.f32 %v4009, %v4029
        %v4046 = vadd.f32 %v4010, %v4030
        %v4047 = vadd.f32 %v4011, %v4031
        %v4048 = vadd.f32 %v4032, %v3649
        %v4049 = vadd.f32 %v4033, %v3653
        %v4050 = vadd.f32 %v4034, %v3649
        %v4051 = vadd.f32 %v4035, %v3653
        %v4052 = vadd.f32 %v4036, %v3649
        %v4053 = vadd.f32 %v4037, %v3653
        %v4054 = vadd.f32 %v4038, %v3649
        %v4055 = vadd.f32 %v4039, %v3653
        %v4056 = vadd.f32 %v4040, %v3649
        %v4057 = vadd.f32 %v4041, %v3653
        %v4058 = vadd.f32 %v4042, %v3649
        %v4059 = vadd.f32 %v4043, %v3653
        %v4060 = vadd.f32 %v4044, %v3649
        %v4061 = vadd.f32 %v4045, %v3653
        %v4062 = vadd.f32 %v4046, %v3649
        %v4063 = vadd.f32 %v4047, %v3653
        %4064 = vst [vmem:[#allocation6 + $0x80] sm:$0xff] %v4048
        %4065 = vst [vmem:[#allocation6 + $0x88] sm:$0xff] %v4049
        %4066 = vst [vmem:[#allocation6 + $0x90] sm:$0xff] %v4050
        %4067 = vst [vmem:[#allocation6 + $0x98] sm:$0xff] %v4051
        %4068 = vst [vmem:[#allocation6 + $0xa0] sm:$0xff] %v4052
        %4069 = vst [vmem:[#allocation6 + $0xa8] sm:$0xff] %v4053
        %4070 = vst [vmem:[#allocation6 + $0xb0] sm:$0xff] %v4054
        %4071 = vst [vmem:[#allocation6 + $0xb8] sm:$0xff] %v4055
        %4072 = vst [vmem:[#allocation6 + $0xc0] sm:$0xff] %v4056
        %4073 = vst [vmem:[#allocation6 + $0xc8] sm:$0xff] %v4057
        %4074 = vst [vmem:[#allocation6 + $0xd0] sm:$0xff] %v4058
        %4075 = vst [vmem:[#allocation6 + $0xd8] sm:$0xff] %v4059
        %4076 = vst [vmem:[#allocation6 + $0xe0] sm:$0xff] %v4060
        %4077 = vst [vmem:[#allocation6 + $0xe8] sm:$0xff] %v4061
        %4078 = vst [vmem:[#allocation6 + $0xf0] sm:$0xff] %v4062
        %4079 = vst [vmem:[#allocation6 + $0xf8] sm:$0xff] %v4063
        %v4080 = vld [vmem:[#allocation4 + $0x100] sm:$0xff]
        %v4081 = vld [vmem:[#allocation4 + $0x108] sm:$0xff]
        %v4082 = vld [vmem:[#allocation4 + $0x110] sm:$0xff]
        %v4083 = vld [vmem:[#allocation4 + $0x118] sm:$0xff]
        %v4084 = vld [vmem:[#allocation4 + $0x120] sm:$0xff]
        %v4085 = vld [vmem:[#allocation4 + $0x128] sm:$0xff]
        %v4086 = vld [vmem:[#allocation4 + $0x130] sm:$0xff]
        %v4087 = vld [vmem:[#allocation4 + $0x138] sm:$0xff]
        %v4088 = vld [vmem:[#allocation4 + $0x140] sm:$0xff]
        %v4089 = vld [vmem:[#allocation4 + $0x148] sm:$0xff]
        %v4090 = vld [vmem:[#allocation4 + $0x150] sm:$0xff]
        %v4091 = vld [vmem:[#allocation4 + $0x158] sm:$0xff]
        %v4092 = vld [vmem:[#allocation4 + $0x160] sm:$0xff]
        %v4093 = vld [vmem:[#allocation4 + $0x168] sm:$0xff]
        %v4094 = vld [vmem:[#allocation4 + $0x170] sm:$0xff]
        %v4095 = vld [vmem:[#allocation4 + $0x178] sm:$0xff]
        %v4096 = vmul.f32 %v4080, %v3232
        %v4097 = vmul.f32 %v4081, %v3236
        %v4098 = vmul.f32 %v4082, %v3232
        %v4099 = vmul.f32 %v4083, %v3236
        %v4100 = vmul.f32 %v4084, %v3232
        %v4101 = vmul.f32 %v4085, %v3236
        %v4102 = vmul.f32 %v4086, %v3232
        %v4103 = vmul.f32 %v4087, %v3236
        %v4104 = vmul.f32 %v4088, %v3232
        %v4105 = vmul.f32 %v4089, %v3236
        %v4106 = vmul.f32 %v4090, %v3232
        %v4107 = vmul.f32 %v4091, %v3236
        %v4108 = vmul.f32 %v4092, %v3232
        %v4109 = vmul.f32 %v4093, %v3236
        %v4110 = vmul.f32 %v4094, %v3232
        %v4111 = vmul.f32 %v4095, %v3236
        %v4112 = vadd.f32 %v4096, 0.0
        %v4113 = vadd.f32 %v4097, 0.0
        %v4114 = vadd.f32 %v4098, 0.0
        %v4115 = vadd.f32 %v4099, 0.0
        %v4116 = vadd.f32 %v4100, 0.0
        %v4117 = vadd.f32 %v4101, 0.0
        %v4118 = vadd.f32 %v4102, 0.0
        %v4119 = vadd.f32 %v4103, 0.0
        %v4120 = vadd.f32 %v4104, 0.0
        %v4121 = vadd.f32 %v4105, 0.0
        %v4122 = vadd.f32 %v4106, 0.0
        %v4123 = vadd.f32 %v4107, 0.0
        %v4124 = vadd.f32 %v4108, 0.0
        %v4125 = vadd.f32 %v4109, 0.0
        %v4126 = vadd.f32 %v4110, 0.0
        %v4127 = vadd.f32 %v4111, 0.0
        %v4128 = vld [vmem:[#allocation3 + $0x100] sm:$0xff]
        %v4129 = vld [vmem:[#allocation3 + $0x108] sm:$0xff]
        %v4130 = vld [vmem:[#allocation3 + $0x110] sm:$0xff]
        %v4131 = vld [vmem:[#allocation3 + $0x118] sm:$0xff]
        %v4132 = vld [vmem:[#allocation3 + $0x120] sm:$0xff]
        %v4133 = vld [vmem:[#allocation3 + $0x128] sm:$0xff]
        %v4134 = vld [vmem:[#allocation3 + $0x130] sm:$0xff]
        %v4135 = vld [vmem:[#allocation3 + $0x138] sm:$0xff]
        %v4136 = vld [vmem:[#allocation3 + $0x140] sm:$0xff]
        %v4137 = vld [vmem:[#allocation3 + $0x148] sm:$0xff]
        %v4138 = vld [vmem:[#allocation3 + $0x150] sm:$0xff]
        %v4139 = vld [vmem:[#allocation3 + $0x158] sm:$0xff]
        %v4140 = vld [vmem:[#allocation3 + $0x160] sm:$0xff]
        %v4141 = vld [vmem:[#allocation3 + $0x168] sm:$0xff]
        %v4142 = vld [vmem:[#allocation3 + $0x170] sm:$0xff]
        %v4143 = vld [vmem:[#allocation3 + $0x178] sm:$0xff]
        %v4144 = vmul.f32 %v4128, %v3288
        %v4145 = vmul.f32 %v4129, %v3292
        %v4146 = vmul.f32 %v4130, %v3288
        %v4147 = vmul.f32 %v4131, %v3292
        %v4148 = vmul.f32 %v4132, %v3288
        %v4149 = vmul.f32 %v4133, %v3292
        %v4150 = vmul.f32 %v4134, %v3288
        %v4151 = vmul.f32 %v4135, %v3292
        %v4152 = vmul.f32 %v4136, %v3288
        %v4153 = vmul.f32 %v4137, %v3292
        %v4154 = vmul.f32 %v4138, %v3288
        %v4155 = vmul.f32 %v4139, %v3292
        %v4156 = vmul.f32 %v4140, %v3288
        %v4157 = vmul.f32 %v4141, %v3292
        %v4158 = vmul.f32 %v4142, %v3288
        %v4159 = vmul.f32 %v4143, %v3292
        %v4160 = vadd.f32 %v4112, %v4144
        %v4161 = vadd.f32 %v4113, %v4145
        %v4162 = vadd.f32 %v4114, %v4146
        %v4163 = vadd.f32 %v4115, %v4147
        %v4164 = vadd.f32 %v4116, %v4148
        %v4165 = vadd.f32 %v4117, %v4149
        %v4166 = vadd.f32 %v4118, %v4150
        %v4167 = vadd.f32 %v4119, %v4151
        %v4168 = vadd.f32 %v4120, %v4152
        %v4169 = vadd.f32 %v4121, %v4153
        %v4170 = vadd.f32 %v4122, %v4154
        %v4171 = vadd.f32 %v4123, %v4155
        %v4172 = vadd.f32 %v4124, %v4156
        %v4173 = vadd.f32 %v4125, %v4157
        %v4174 = vadd.f32 %v4126, %v4158
        %v4175 = vadd.f32 %v4127, %v4159
        %v4176 = vld [vmem:[#allocation5 + $0x100] sm:$0xff]
        %v4177 = vld [vmem:[#allocation5 + $0x108] sm:$0xff]
        %v4178 = vld [vmem:[#allocation5 + $0x110] sm:$0xff]
        %v4179 = vld [vmem:[#allocation5 + $0x118] sm:$0xff]
        %v4180 = vld [vmem:[#allocation5 + $0x120] sm:$0xff]
        %v4181 = vld [vmem:[#allocation5 + $0x128] sm:$0xff]
        %v4182 = vld [vmem:[#allocation5 + $0x130] sm:$0xff]
        %v4183 = vld [vmem:[#allocation5 + $0x138] sm:$0xff]
        %v4184 = vld [vmem:[#allocation5 + $0x140] sm:$0xff]
        %v4185 = vld [vmem:[#allocation5 + $0x148] sm:$0xff]
        %v4186 = vld [vmem:[#allocation5 + $0x150] sm:$0xff]
        %v4187 = vld [vmem:[#allocation5 + $0x158] sm:$0xff]
        %v4188 = vld [vmem:[#allocation5 + $0x160] sm:$0xff]
        %v4189 = vld [vmem:[#allocation5 + $0x168] sm:$0xff]
        %v4190 = vld [vmem:[#allocation5 + $0x170] sm:$0xff]
        %v4191 = vld [vmem:[#allocation5 + $0x178] sm:$0xff]
        %v4192 = vmul.f32 %v4176, %v3344
        %v4193 = vmul.f32 %v4177, %v3348
        %v4194 = vmul.f32 %v4178, %v3344
        %v4195 = vmul.f32 %v4179, %v3348
        %v4196 = vmul.f32 %v4180, %v3344
        %v4197 = vmul.f32 %v4181, %v3348
        %v4198 = vmul.f32 %v4182, %v3344
        %v4199 = vmul.f32 %v4183, %v3348
        %v4200 = vmul.f32 %v4184, %v3344
        %v4201 = vmul.f32 %v4185, %v3348
        %v4202 = vmul.f32 %v4186, %v3344
        %v4203 = vmul.f32 %v4187, %v3348
        %v4204 = vmul.f32 %v4188, %v3344
        %v4205 = vmul.f32 %v4189, %v3348
        %v4206 = vmul.f32 %v4190, %v3344
        %v4207 = vmul.f32 %v4191, %v3348
        %v4208 = vadd.f32 %v4160, %v4192
        %v4209 = vadd.f32 %v4161, %v4193
        %v4210 = vadd.f32 %v4162, %v4194
        %v4211 = vadd.f32 %v4163, %v4195
        %v4212 = vadd.f32 %v4164, %v4196
        %v4213 = vadd.f32 %v4165, %v4197
        %v4214 = vadd.f32 %v4166, %v4198
        %v4215 = vadd.f32 %v4167, %v4199
        %v4216 = vadd.f32 %v4168, %v4200
        %v4217 = vadd.f32 %v4169, %v4201
        %v4218 = vadd.f32 %v4170, %v4202
        %v4219 = vadd.f32 %v4171, %v4203
        %v4220 = vadd.f32 %v4172, %v4204
        %v4221 = vadd.f32 %v4173, %v4205
        %v4222 = vadd.f32 %v4174, %v4206
        %v4223 = vadd.f32 %v4175, %v4207
        %v4224 = vld [vmem:[#allocation4 + $0x180] sm:$0xff]
        %v4225 = vld [vmem:[#allocation4 + $0x188] sm:$0xff]
        %v4226 = vld [vmem:[#allocation4 + $0x190] sm:$0xff]
        %v4227 = vld [vmem:[#allocation4 + $0x198] sm:$0xff]
        %v4228 = vmul.f32 %v4084, %v3388
        %v4229 = vmul.f32 %v4085, %v3392
        %v4230 = vmul.f32 %v4086, %v3388
        %v4231 = vmul.f32 %v4087, %v3392
        %v4232 = vmul.f32 %v4088, %v3388
        %v4233 = vmul.f32 %v4089, %v3392
        %v4234 = vmul.f32 %v4090, %v3388
        %v4235 = vmul.f32 %v4091, %v3392
        %v4236 = vmul.f32 %v4092, %v3388
        %v4237 = vmul.f32 %v4093, %v3392
        %v4238 = vmul.f32 %v4094, %v3388
        %v4239 = vmul.f32 %v4095, %v3392
        %v4240 = vmul.f32 %v4224, %v3388
        %v4241 = vmul.f32 %v4225, %v3392
        %v4242 = vmul.f32 %v4226, %v3388
        %v4243 = vmul.f32 %v4227, %v3392
        %v4244 = vadd.f32 %v4208, %v4228
        %v4245 = vadd.f32 %v4209, %v4229
        %v4246 = vadd.f32 %v4210, %v4230
        %v4247 = vadd.f32 %v4211, %v4231
        %v4248 = vadd.f32 %v4212, %v4232
        %v4249 = vadd.f32 %v4213, %v4233
        %v4250 = vadd.f32 %v4214, %v4234
        %v4251 = vadd.f32 %v4215, %v4235
        %v4252 = vadd.f32 %v4216, %v4236
        %v4253 = vadd.f32 %v4217, %v4237
        %v4254 = vadd.f32 %v4218, %v4238
        %v4255 = vadd.f32 %v4219, %v4239
        %v4256 = vadd.f32 %v4220, %v4240
        %v4257 = vadd.f32 %v4221, %v4241
        %v4258 = vadd.f32 %v4222, %v4242
        %v4259 = vadd.f32 %v4223, %v4243
        %v4260 = vld [vmem:[#allocation3 + $0x180] sm:$0xff]
        %v4261 = vld [vmem:[#allocation3 + $0x188] sm:$0xff]
        %v4262 = vld [vmem:[#allocation3 + $0x190] sm:$0xff]
        %v4263 = vld [vmem:[#allocation3 + $0x198] sm:$0xff]
        %v4264 = vmul.f32 %v4132, %v3432
        %v4265 = vmul.f32 %v4133, %v3436
        %v4266 = vmul.f32 %v4134, %v3432
        %v4267 = vmul.f32 %v4135, %v3436
        %v4268 = vmul.f32 %v4136, %v3432
        %v4269 = vmul.f32 %v4137, %v3436
        %v4270 = vmul.f32 %v4138, %v3432
        %v4271 = vmul.f32 %v4139, %v3436
        %v4272 = vmul.f32 %v4140, %v3432
        %v4273 = vmul.f32 %v4141, %v3436
        %v4274 = vmul.f32 %v4142, %v3432
        %v4275 = vmul.f32 %v4143, %v3436
        %v4276 = vmul.f32 %v4260, %v3432
        %v4277 = vmul.f32 %v4261, %v3436
        %v4278 = vmul.f32 %v4262, %v3432
        %v4279 = vmul.f32 %v4263, %v3436
        %v4280 = vadd.f32 %v4244, %v4264
        %v4281 = vadd.f32 %v4245, %v4265
        %v4282 = vadd.f32 %v4246, %v4266
        %v4283 = vadd.f32 %v4247, %v4267
        %v4284 = vadd.f32 %v4248, %v4268
        %v4285 = vadd.f32 %v4249, %v4269
        %v4286 = vadd.f32 %v4250, %v4270
        %v4287 = vadd.f32 %v4251, %v4271
        %v4288 = vadd.f32 %v4252, %v4272
        %v4289 = vadd.f32 %v4253, %v4273
        %v4290 = vadd.f32 %v4254, %v4274
        %v4291 = vadd.f32 %v4255, %v4275
        %v4292 = vadd.f32 %v4256, %v4276
        %v4293 = vadd.f32 %v4257, %v4277
        %v4294 = vadd.f32 %v4258, %v4278
        %v4295 = vadd.f32 %v4259, %v4279
        %v4296 = vld [vmem:[#allocation5 + $0x180] sm:$0xff]
        %v4297 = vld [vmem:[#allocation5 + $0x188] sm:$0xff]
        %v4298 = vld [vmem:[#allocation5 + $0x190] sm:$0xff]
        %v4299 = vld [vmem:[#allocation5 + $0x198] sm:$0xff]
        %v4300 = vmul.f32 %v4180, %v3476
        %v4301 = vmul.f32 %v4181, %v3480
        %v4302 = vmul.f32 %v4182, %v3476
        %v4303 = vmul.f32 %v4183, %v3480
        %v4304 = vmul.f32 %v4184, %v3476
        %v4305 = vmul.f32 %v4185, %v3480
        %v4306 = vmul.f32 %v4186, %v3476
        %v4307 = vmul.f32 %v4187, %v3480
        %v4308 = vmul.f32 %v4188, %v3476
        %v4309 = vmul.f32 %v4189, %v3480
        %v4310 = vmul.f32 %v4190, %v3476
        %v4311 = vmul.f32 %v4191, %v3480
        %v4312 = vmul.f32 %v4296, %v3476
        %v4313 = vmul.f32 %v4297, %v3480
        %v4314 = vmul.f32 %v4298, %v3476
        %v4315 = vmul.f32 %v4299, %v3480
        %v4316 = vadd.f32 %v4280, %v4300
        %v4317 = vadd.f32 %v4281, %v4301
        %v4318 = vadd.f32 %v4282, %v4302
        %v4319 = vadd.f32 %v4283, %v4303
        %v4320 = vadd.f32 %v4284, %v4304
        %v4321 = vadd.f32 %v4285, %v4305
        %v4322 = vadd.f32 %v4286, %v4306
        %v4323 = vadd.f32 %v4287, %v4307
        %v4324 = vadd.f32 %v4288, %v4308
        %v4325 = vadd.f32 %v4289, %v4309
        %v4326 = vadd.f32 %v4290, %v4310
        %v4327 = vadd.f32 %v4291, %v4311
        %v4328 = vadd.f32 %v4292, %v4312
        %v4329 = vadd.f32 %v4293, %v4313
        %v4330 = vadd.f32 %v4294, %v4314
        %v4331 = vadd.f32 %v4295, %v4315
        %v4332 = vld [vmem:[#allocation4 + $0x1a0] sm:$0xff]
        %v4333 = vld [vmem:[#allocation4 + $0x1a8] sm:$0xff]
        %v4334 = vld [vmem:[#allocation4 + $0x1b0] sm:$0xff]
        %v4335 = vld [vmem:[#allocation4 + $0x1b8] sm:$0xff]
        %v4336 = vmul.f32 %v4088, %v3520
        %v4337 = vmul.f32 %v4089, %v3524
        %v4338 = vmul.f32 %v4090, %v3520
        %v4339 = vmul.f32 %v4091, %v3524
        %v4340 = vmul.f32 %v4092, %v3520
        %v4341 = vmul.f32 %v4093, %v3524
        %v4342 = vmul.f32 %v4094, %v3520
        %v4343 = vmul.f32 %v4095, %v3524
        %v4344 = vmul.f32 %v4224, %v3520
        %v4345 = vmul.f32 %v4225, %v3524
        %v4346 = vmul.f32 %v4226, %v3520
        %v4347 = vmul.f32 %v4227, %v3524
        %v4348 = vmul.f32 %v4332, %v3520
        %v4349 = vmul.f32 %v4333, %v3524
        %v4350 = vmul.f32 %v4334, %v3520
        %v4351 = vmul.f32 %v4335, %v3524
        %v4352 = vadd.f32 %v4316, %v4336
        %v4353 = vadd.f32 %v4317, %v4337
        %v4354 = vadd.f32 %v4318, %v4338
        %v4355 = vadd.f32 %v4319, %v4339
        %v4356 = vadd.f32 %v4320, %v4340
        %v4357 = vadd.f32 %v4321, %v4341
        %v4358 = vadd.f32 %v4322, %v4342
        %v4359 = vadd.f32 %v4323, %v4343
        %v4360 = vadd.f32 %v4324, %v4344
        %v4361 = vadd.f32 %v4325, %v4345
        %v4362 = vadd.f32 %v4326, %v4346
        %v4363 = vadd.f32 %v4327, %v4347
        %v4364 = vadd.f32 %v4328, %v4348
        %v4365 = vadd.f32 %v4329, %v4349
        %v4366 = vadd.f32 %v4330, %v4350
        %v4367 = vadd.f32 %v4331, %v4351
        %v4368 = vld [vmem:[#allocation3 + $0x1a0] sm:$0xff]
        %v4369 = vld [vmem:[#allocation3 + $0x1a8] sm:$0xff]
        %v4370 = vld [vmem:[#allocation3 + $0x1b0] sm:$0xff]
        %v4371 = vld [vmem:[#allocation3 + $0x1b8] sm:$0xff]
        %v4372 = vmul.f32 %v4136, %v3564
        %v4373 = vmul.f32 %v4137, %v3568
        %v4374 = vmul.f32 %v4138, %v3564
        %v4375 = vmul.f32 %v4139, %v3568
        %v4376 = vmul.f32 %v4140, %v3564
        %v4377 = vmul.f32 %v4141, %v3568
        %v4378 = vmul.f32 %v4142, %v3564
        %v4379 = vmul.f32 %v4143, %v3568
        %v4380 = vmul.f32 %v4260, %v3564
        %v4381 = vmul.f32 %v4261, %v3568
        %v4382 = vmul.f32 %v4262, %v3564
        %v4383 = vmul.f32 %v4263, %v3568
        %v4384 = vmul.f32 %v4368, %v3564
        %v4385 = vmul.f32 %v4369, %v3568
        %v4386 = vmul.f32 %v4370, %v3564
        %v4387 = vmul.f32 %v4371, %v3568
        %v4388 = vadd.f32 %v4352, %v4372
        %v4389 = vadd.f32 %v4353, %v4373
        %v4390 = vadd.f32 %v4354, %v4374
        %v4391 = vadd.f32 %v4355, %v4375
        %v4392 = vadd.f32 %v4356, %v4376
        %v4393 = vadd.f32 %v4357, %v4377
        %v4394 = vadd.f32 %v4358, %v4378
        %v4395 = vadd.f32 %v4359, %v4379
        %v4396 = vadd.f32 %v4360, %v4380
        %v4397 = vadd.f32 %v4361, %v4381
        %v4398 = vadd.f32 %v4362, %v4382
        %v4399 = vadd.f32 %v4363, %v4383
        %v4400 = vadd.f32 %v4364, %v4384
        %v4401 = vadd.f32 %v4365, %v4385
        %v4402 = vadd.f32 %v4366, %v4386
        %v4403 = vadd.f32 %v4367, %v4387
        %v4404 = vld [vmem:[#allocation5 + $0x1a0] sm:$0xff]
        %v4405 = vld [vmem:[#allocation5 + $0x1a8] sm:$0xff]
        %v4406 = vld [vmem:[#allocation5 + $0x1b0] sm:$0xff]
        %v4407 = vld [vmem:[#allocation5 + $0x1b8] sm:$0xff]
        %v4408 = vmul.f32 %v4184, %v3608
        %v4409 = vmul.f32 %v4185, %v3612
        %v4410 = vmul.f32 %v4186, %v3608
        %v4411 = vmul.f32 %v4187, %v3612
        %v4412 = vmul.f32 %v4188, %v3608
        %v4413 = vmul.f32 %v4189, %v3612
        %v4414 = vmul.f32 %v4190, %v3608
        %v4415 = vmul.f32 %v4191, %v3612
        %v4416 = vmul.f32 %v4296, %v3608
        %v4417 = vmul.f32 %v4297, %v3612
        %v4418 = vmul.f32 %v4298, %v3608
        %v4419 = vmul.f32 %v4299, %v3612
        %v4420 = vmul.f32 %v4404, %v3608
        %v4421 = vmul.f32 %v4405, %v3612
        %v4422 = vmul.f32 %v4406, %v3608
        %v4423 = vmul.f32 %v4407, %v3612
        %v4424 = vadd.f32 %v4388, %v4408
        %v4425 = vadd.f32 %v4389, %v4409
        %v4426 = vadd.f32 %v4390, %v4410
        %v4427 = vadd.f32 %v4391, %v4411
        %v4428 = vadd.f32 %v4392, %v4412
        %v4429 = vadd.f32 %v4393, %v4413
        %v4430 = vadd.f32 %v4394, %v4414
        %v4431 = vadd.f32 %v4395, %v4415
        %v4432 = vadd.f32 %v4396, %v4416
        %v4433 = vadd.f32 %v4397, %v4417
        %v4434 = vadd.f32 %v4398, %v4418
        %v4435 = vadd.f32 %v4399, %v4419
        %v4436 = vadd.f32 %v4400, %v4420
        %v4437 = vadd.f32 %v4401, %v4421
        %v4438 = vadd.f32 %v4402, %v4422
        %v4439 = vadd.f32 %v4403, %v4423
        %v4440 = vadd.f32 %v4424, %v3649
        %v4441 = vadd.f32 %v4425, %v3653
        %v4442 = vadd.f32 %v4426, %v3649
        %v4443 = vadd.f32 %v4427, %v3653
        %v4444 = vadd.f32 %v4428, %v3649
        %v4445 = vadd.f32 %v4429, %v3653
        %v4446 = vadd.f32 %v4430, %v3649
        %v4447 = vadd.f32 %v4431, %v3653
        %v4448 = vadd.f32 %v4432, %v3649
        %v4449 = vadd.f32 %v4433, %v3653
        %v4450 = vadd.f32 %v4434, %v3649
        %v4451 = vadd.f32 %v4435, %v3653
        %v4452 = vadd.f32 %v4436, %v3649
        %v4453 = vadd.f32 %v4437, %v3653
        %v4454 = vadd.f32 %v4438, %v3649
        %v4455 = vadd.f32 %v4439, %v3653
        %4456 = vst [vmem:[#allocation6 + $0x100] sm:$0xff] %v4440
        %4457 = vst [vmem:[#allocation6 + $0x108] sm:$0xff] %v4441
        %4458 = vst [vmem:[#allocation6 + $0x110] sm:$0xff] %v4442
        %4459 = vst [vmem:[#allocation6 + $0x118] sm:$0xff] %v4443
        %4460 = vst [vmem:[#allocation6 + $0x120] sm:$0xff] %v4444
        %4461 = vst [vmem:[#allocation6 + $0x128] sm:$0xff] %v4445
        %4462 = vst [vmem:[#allocation6 + $0x130] sm:$0xff] %v4446
        %4463 = vst [vmem:[#allocation6 + $0x138] sm:$0xff] %v4447
        %4464 = vst [vmem:[#allocation6 + $0x140] sm:$0xff] %v4448
        %4465 = vst [vmem:[#allocation6 + $0x148] sm:$0xff] %v4449
        %4466 = vst [vmem:[#allocation6 + $0x150] sm:$0xff] %v4450
        %4467 = vst [vmem:[#allocation6 + $0x158] sm:$0xff] %v4451
        %4468 = vst [vmem:[#allocation6 + $0x160] sm:$0xff] %v4452
        %4469 = vst [vmem:[#allocation6 + $0x168] sm:$0xff] %v4453
        %4470 = vst [vmem:[#allocation6 + $0x170] sm:$0xff] %v4454
        %4471 = vst [vmem:[#allocation6 + $0x178] sm:$0xff] %v4455
        %v4472 = vld [vmem:[#allocation4 + $0x180] sm:$0xff]
        %v4473 = vld [vmem:[#allocation4 + $0x188] sm:$0xff]
        %v4474 = vld [vmem:[#allocation4 + $0x190] sm:$0xff]
        %v4475 = vld [vmem:[#allocation4 + $0x198] sm:$0xff]
        %v4476 = vld [vmem:[#allocation4 + $0x1a0] sm:$0xff]
        %v4477 = vld [vmem:[#allocation4 + $0x1a8] sm:$0xff]
        %v4478 = vld [vmem:[#allocation4 + $0x1b0] sm:$0xff]
        %v4479 = vld [vmem:[#allocation4 + $0x1b8] sm:$0xff]
        %v4480 = vld [vmem:[#allocation4 + $0x1c0] sm:$0xff]
        %v4481 = vld [vmem:[#allocation4 + $0x1c8] sm:$0xff]
        %v4482 = vld [vmem:[#allocation4 + $0x1d0] sm:$0xff]
        %v4483 = vld [vmem:[#allocation4 + $0x1d8] sm:$0xff]
        %v4484 = vld [vmem:[#allocation4 + $0x1e0] sm:$0xff]
        %v4485 = vld [vmem:[#allocation4 + $0x1e8] sm:$0xff]
        %v4486 = vld [vmem:[#allocation4 + $0x1f0] sm:$0xff]
        %v4487 = vld [vmem:[#allocation4 + $0x1f8] sm:$0xff]
        %v4488 = vmul.f32 %v4472, %v3232
        %v4489 = vmul.f32 %v4473, %v3236
        %v4490 = vmul.f32 %v4474, %v3232
        %v4491 = vmul.f32 %v4475, %v3236
        %v4492 = vmul.f32 %v4476, %v3232
        %v4493 = vmul.f32 %v4477, %v3236
        %v4494 = vmul.f32 %v4478, %v3232
        %v4495 = vmul.f32 %v4479, %v3236
        %v4496 = vmul.f32 %v4480, %v3232
        %v4497 = vmul.f32 %v4481, %v3236
        %v4498 = vmul.f32 %v4482, %v3232
        %v4499 = vmul.f32 %v4483, %v3236
        %v4500 = vmul.f32 %v4484, %v3232
        %v4501 = vmul.f32 %v4485, %v3236
        %v4502 = vmul.f32 %v4486, %v3232
        %v4503 = vmul.f32 %v4487, %v3236
        %v4504 = vadd.f32 %v4488, 0.0
        %v4505 = vadd.f32 %v4489, 0.0
        %v4506 = vadd.f32 %v4490, 0.0
        %v4507 = vadd.f32 %v4491, 0.0
        %v4508 = vadd.f32 %v4492, 0.0
        %v4509 = vadd.f32 %v4493, 0.0
        %v4510 = vadd.f32 %v4494, 0.0
        %v4511 = vadd.f32 %v4495, 0.0
        %v4512 = vadd.f32 %v4496, 0.0
        %v4513 = vadd.f32 %v4497, 0.0
        %v4514 = vadd.f32 %v4498, 0.0
        %v4515 = vadd.f32 %v4499, 0.0
        %v4516 = vadd.f32 %v4500, 0.0
        %v4517 = vadd.f32 %v4501, 0.0
        %v4518 = vadd.f32 %v4502, 0.0
        %v4519 = vadd.f32 %v4503, 0.0
        %v4520 = vld [vmem:[#allocation3 + $0x180] sm:$0xff]
        %v4521 = vld [vmem:[#allocation3 + $0x188] sm:$0xff]
        %v4522 = vld [vmem:[#allocation3 + $0x190] sm:$0xff]
        %v4523 = vld [vmem:[#allocation3 + $0x198] sm:$0xff]
        %v4524 = vld [vmem:[#allocation3 + $0x1a0] sm:$0xff]
        %v4525 = vld [vmem:[#allocation3 + $0x1a8] sm:$0xff]
        %v4526 = vld [vmem:[#allocation3 + $0x1b0] sm:$0xff]
        %v4527 = vld [vmem:[#allocation3 + $0x1b8] sm:$0xff]
        %v4528 = vld [vmem:[#allocation3 + $0x1c0] sm:$0xff]
        %v4529 = vld [vmem:[#allocation3 + $0x1c8] sm:$0xff]
        %v4530 = vld [vmem:[#allocation3 + $0x1d0] sm:$0xff]
        %v4531 = vld [vmem:[#allocation3 + $0x1d8] sm:$0xff]
        %v4532 = vld [vmem:[#allocation3 + $0x1e0] sm:$0xff]
        %v4533 = vld [vmem:[#allocation3 + $0x1e8] sm:$0xff]
        %v4534 = vld [vmem:[#allocation3 + $0x1f0] sm:$0xff]
        %v4535 = vld [vmem:[#allocation3 + $0x1f8] sm:$0xff]
        %v4536 = vmul.f32 %v4520, %v3288
        %v4537 = vmul.f32 %v4521, %v3292
        %v4538 = vmul.f32 %v4522, %v3288
        %v4539 = vmul.f32 %v4523, %v3292
        %v4540 = vmul.f32 %v4524, %v3288
        %v4541 = vmul.f32 %v4525, %v3292
        %v4542 = vmul.f32 %v4526, %v3288
        %v4543 = vmul.f32 %v4527, %v3292
        %v4544 = vmul.f32 %v4528, %v3288
        %v4545 = vmul.f32 %v4529, %v3292
        %v4546 = vmul.f32 %v4530, %v3288
        %v4547 = vmul.f32 %v4531, %v3292
        %v4548 = vmul.f32 %v4532, %v3288
        %v4549 = vmul.f32 %v4533, %v3292
        %v4550 = vmul.f32 %v4534, %v3288
        %v4551 = vmul.f32 %v4535, %v3292
        %v4552 = vadd.f32 %v4504, %v4536
        %v4553 = vadd.f32 %v4505, %v4537
        %v4554 = vadd.f32 %v4506, %v4538
        %v4555 = vadd.f32 %v4507, %v4539
        %v4556 = vadd.f32 %v4508, %v4540
        %v4557 = vadd.f32 %v4509, %v4541
        %v4558 = vadd.f32 %v4510, %v4542
        %v4559 = vadd.f32 %v4511, %v4543
        %v4560 = vadd.f32 %v4512, %v4544
        %v4561 = vadd.f32 %v4513, %v4545
        %v4562 = vadd.f32 %v4514, %v4546
        %v4563 = vadd.f32 %v4515, %v4547
        %v4564 = vadd.f32 %v4516, %v4548
        %v4565 = vadd.f32 %v4517, %v4549
        %v4566 = vadd.f32 %v4518, %v4550
        %v4567 = vadd.f32 %v4519, %v4551
        %v4568 = vld [vmem:[#allocation5 + $0x180] sm:$0xff]
        %v4569 = vld [vmem:[#allocation5 + $0x188] sm:$0xff]
        %v4570 = vld [vmem:[#allocation5 + $0x190] sm:$0xff]
        %v4571 = vld [vmem:[#allocation5 + $0x198] sm:$0xff]
        %v4572 = vld [vmem:[#allocation5 + $0x1a0] sm:$0xff]
        %v4573 = vld [vmem:[#allocation5 + $0x1a8] sm:$0xff]
        %v4574 = vld [vmem:[#allocation5 + $0x1b0] sm:$0xff]
        %v4575 = vld [vmem:[#allocation5 + $0x1b8] sm:$0xff]
        %v4576 = vld [vmem:[#allocation5 + $0x1c0] sm:$0xff]
        %v4577 = vld [vmem:[#allocation5 + $0x1c8] sm:$0xff]
        %v4578 = vld [vmem:[#allocation5 + $0x1d0] sm:$0xff]
        %v4579 = vld [vmem:[#allocation5 + $0x1d8] sm:$0xff]
        %v4580 = vld [vmem:[#allocation5 + $0x1e0] sm:$0xff]
        %v4581 = vld [vmem:[#allocation5 + $0x1e8] sm:$0xff]
        %v4582 = vld [vmem:[#allocation5 + $0x1f0] sm:$0xff]
        %v4583 = vld [vmem:[#allocation5 + $0x1f8] sm:$0xff]
        %v4584 = vmul.f32 %v4568, %v3344
        %v4585 = vmul.f32 %v4569, %v3348
        %v4586 = vmul.f32 %v4570, %v3344
        %v4587 = vmul.f32 %v4571, %v3348
        %v4588 = vmul.f32 %v4572, %v3344
        %v4589 = vmul.f32 %v4573, %v3348
        %v4590 = vmul.f32 %v4574, %v3344
        %v4591 = vmul.f32 %v4575, %v3348
        %v4592 = vmul.f32 %v4576, %v3344
        %v4593 = vmul.f32 %v4577, %v3348
        %v4594 = vmul.f32 %v4578, %v3344
        %v4595 = vmul.f32 %v4579, %v3348
        %v4596 = vmul.f32 %v4580, %v3344
        %v4597 = vmul.f32 %v4581, %v3348
        %v4598 = vmul.f32 %v4582, %v3344
        %v4599 = vmul.f32 %v4583, %v3348
        %v4600 = vadd.f32 %v4552, %v4584
        %v4601 = vadd.f32 %v4553, %v4585
        %v4602 = vadd.f32 %v4554, %v4586
        %v4603 = vadd.f32 %v4555, %v4587
        %v4604 = vadd.f32 %v4556, %v4588
        %v4605 = vadd.f32 %v4557, %v4589
        %v4606 = vadd.f32 %v4558, %v4590
        %v4607 = vadd.f32 %v4559, %v4591
        %v4608 = vadd.f32 %v4560, %v4592
        %v4609 = vadd.f32 %v4561, %v4593
        %v4610 = vadd.f32 %v4562, %v4594
        %v4611 = vadd.f32 %v4563, %v4595
        %v4612 = vadd.f32 %v4564, %v4596
        %v4613 = vadd.f32 %v4565, %v4597
        %v4614 = vadd.f32 %v4566, %v4598
        %v4615 = vadd.f32 %v4567, %v4599
        %v4616 = vld [vmem:[#allocation4 + $0x200] sm:$0xff]
        %v4617 = vld [vmem:[#allocation4 + $0x208] sm:$0xff]
        %v4618 = vld [vmem:[#allocation4 + $0x210] sm:$0xff]
        %v4619 = vld [vmem:[#allocation4 + $0x218] sm:$0xff]
        %v4620 = vmul.f32 %v4476, %v3388
        %v4621 = vmul.f32 %v4477, %v3392
        %v4622 = vmul.f32 %v4478, %v3388
        %v4623 = vmul.f32 %v4479, %v3392
        %v4624 = vmul.f32 %v4480, %v3388
        %v4625 = vmul.f32 %v4481, %v3392
        %v4626 = vmul.f32 %v4482, %v3388
        %v4627 = vmul.f32 %v4483, %v3392
        %v4628 = vmul.f32 %v4484, %v3388
        %v4629 = vmul.f32 %v4485, %v3392
        %v4630 = vmul.f32 %v4486, %v3388
        %v4631 = vmul.f32 %v4487, %v3392
        %v4632 = vmul.f32 %v4616, %v3388
        %v4633 = vmul.f32 %v4617, %v3392
        %v4634 = vmul.f32 %v4618, %v3388
        %v4635 = vmul.f32 %v4619, %v3392
        %v4636 = vadd.f32 %v4600, %v4620
        %v4637 = vadd.f32 %v4601, %v4621
        %v4638 = vadd.f32 %v4602, %v4622
        %v4639 = vadd.f32 %v4603, %v4623
        %v4640 = vadd.f32 %v4604, %v4624
        %v4641 = vadd.f32 %v4605, %v4625
        %v4642 = vadd.f32 %v4606, %v4626
        %v4643 = vadd.f32 %v4607, %v4627
        %v4644 = vadd.f32 %v4608, %v4628
        %v4645 = vadd.f32 %v4609, %v4629
        %v4646 = vadd.f32 %v4610, %v4630
        %v4647 = vadd.f32 %v4611, %v4631
        %v4648 = vadd.f32 %v4612, %v4632
        %v4649 = vadd.f32 %v4613, %v4633
        %v4650 = vadd.f32 %v4614, %v4634
        %v4651 = vadd.f32 %v4615, %v4635
        %v4652 = vld [vmem:[#allocation3 + $0x200] sm:$0xff]
        %v4653 = vld [vmem:[#allocation3 + $0x208] sm:$0xff]
        %v4654 = vld [vmem:[#allocation3 + $0x210] sm:$0xff]
        %v4655 = vld [vmem:[#allocation3 + $0x218] sm:$0xff]
        %v4656 = vmul.f32 %v4524, %v3432
        %v4657 = vmul.f32 %v4525, %v3436
        %v4658 = vmul.f32 %v4526, %v3432
        %v4659 = vmul.f32 %v4527, %v3436
        %v4660 = vmul.f32 %v4528, %v3432
        %v4661 = vmul.f32 %v4529, %v3436
        %v4662 = vmul.f32 %v4530, %v3432
        %v4663 = vmul.f32 %v4531, %v3436
        %v4664 = vmul.f32 %v4532, %v3432
        %v4665 = vmul.f32 %v4533, %v3436
        %v4666 = vmul.f32 %v4534, %v3432
        %v4667 = vmul.f32 %v4535, %v3436
        %v4668 = vmul.f32 %v4652, %v3432
        %v4669 = vmul.f32 %v4653, %v3436
        %v4670 = vmul.f32 %v4654, %v3432
        %v4671 = vmul.f32 %v4655, %v3436
        %v4672 = vadd.f32 %v4636, %v4656
        %v4673 = vadd.f32 %v4637, %v4657
        %v4674 = vadd.f32 %v4638, %v4658
        %v4675 = vadd.f32 %v4639, %v4659
        %v4676 = vadd.f32 %v4640, %v4660
        %v4677 = vadd.f32 %v4641, %v4661
        %v4678 = vadd.f32 %v4642, %v4662
        %v4679 = vadd.f32 %v4643, %v4663
        %v4680 = vadd.f32 %v4644, %v4664
        %v4681 = vadd.f32 %v4645, %v4665
        %v4682 = vadd.f32 %v4646, %v4666
        %v4683 = vadd.f32 %v4647, %v4667
        %v4684 = vadd.f32 %v4648, %v4668
        %v4685 = vadd.f32 %v4649, %v4669
        %v4686 = vadd.f32 %v4650, %v4670
        %v4687 = vadd.f32 %v4651, %v4671
        %v4688 = vld [vmem:[#allocation5 + $0x200] sm:$0xff]
        %v4689 = vld [vmem:[#allocation5 + $0x208] sm:$0xff]
        %v4690 = vld [vmem:[#allocation5 + $0x210] sm:$0xff]
        %v4691 = vld [vmem:[#allocation5 + $0x218] sm:$0xff]
        %v4692 = vmul.f32 %v4572, %v3476
        %v4693 = vmul.f32 %v4573, %v3480
        %v4694 = vmul.f32 %v4574, %v3476
        %v4695 = vmul.f32 %v4575, %v3480
        %v4696 = vmul.f32 %v4576, %v3476
        %v4697 = vmul.f32 %v4577, %v3480
        %v4698 = vmul.f32 %v4578, %v3476
        %v4699 = vmul.f32 %v4579, %v3480
        %v4700 = vmul.f32 %v4580, %v3476
        %v4701 = vmul.f32 %v4581, %v3480
        %v4702 = vmul.f32 %v4582, %v3476
        %v4703 = vmul.f32 %v4583, %v3480
        %v4704 = vmul.f32 %v4688, %v3476
        %v4705 = vmul.f32 %v4689, %v3480
        %v4706 = vmul.f32 %v4690, %v3476
        %v4707 = vmul.f32 %v4691, %v3480
        %v4708 = vadd.f32 %v4672, %v4692
        %v4709 = vadd.f32 %v4673, %v4693
        %v4710 = vadd.f32 %v4674, %v4694
        %v4711 = vadd.f32 %v4675, %v4695
        %v4712 = vadd.f32 %v4676, %v4696
        %v4713 = vadd.f32 %v4677, %v4697
        %v4714 = vadd.f32 %v4678, %v4698
        %v4715 = vadd.f32 %v4679, %v4699
        %v4716 = vadd.f32 %v4680, %v4700
        %v4717 = vadd.f32 %v4681, %v4701
        %v4718 = vadd.f32 %v4682, %v4702
        %v4719 = vadd.f32 %v4683, %v4703
        %v4720 = vadd.f32 %v4684, %v4704
        %v4721 = vadd.f32 %v4685, %v4705
        %v4722 = vadd.f32 %v4686, %v4706
        %v4723 = vadd.f32 %v4687, %v4707
        %v4724 = vld [vmem:[#allocation4 + $0x1c0] sm:$0xff]
        %v4725 = vld [vmem:[#allocation4 + $0x1c8] sm:$0xff]
        %v4726 = vld [vmem:[#allocation4 + $0x1d0] sm:$0xff]
        %v4727 = vld [vmem:[#allocation4 + $0x1d8] sm:$0xff]
        %v4728 = vld [vmem:[#allocation4 + $0x1e0] sm:$0xff]
        %v4729 = vld [vmem:[#allocation4 + $0x1e8] sm:$0xff]
        %v4730 = vld [vmem:[#allocation4 + $0x1f0] sm:$0xff]
        %v4731 = vld [vmem:[#allocation4 + $0x1f8] sm:$0xff]
        %v4732 = vld [vmem:[#allocation4 + $0x200] sm:$0xff]
        %v4733 = vld [vmem:[#allocation4 + $0x208] sm:$0xff]
        %v4734 = vld [vmem:[#allocation4 + $0x210] sm:$0xff]
        %v4735 = vld [vmem:[#allocation4 + $0x218] sm:$0xff]
        %v4736 = vld [vmem:[#allocation4 + $0x220] sm:$0xff]
        %v4737 = vld [vmem:[#allocation4 + $0x228] sm:$0xff]
        %v4738 = vld [vmem:[#allocation4 + $0x230] sm:$0xff]
        %v4739 = vld [vmem:[#allocation4 + $0x238] sm:$0xff]
        %v4740 = vmul.f32 %v4724, %v3520
        %v4741 = vmul.f32 %v4725, %v3524
        %v4742 = vmul.f32 %v4726, %v3520
        %v4743 = vmul.f32 %v4727, %v3524
        %v4744 = vmul.f32 %v4728, %v3520
        %v4745 = vmul.f32 %v4729, %v3524
        %v4746 = vmul.f32 %v4730, %v3520
        %v4747 = vmul.f32 %v4731, %v3524
        %v4748 = vmul.f32 %v4732, %v3520
        %v4749 = vmul.f32 %v4733, %v3524
        %v4750 = vmul.f32 %v4734, %v3520
        %v4751 = vmul.f32 %v4735, %v3524
        %v4752 = vmul.f32 %v4736, %v3520
        %v4753 = vmul.f32 %v4737, %v3524
        %v4754 = vmul.f32 %v4738, %v3520
        %v4755 = vmul.f32 %v4739, %v3524
        %v4756 = vadd.f32 %v4708, %v4740
        %v4757 = vadd.f32 %v4709, %v4741
        %v4758 = vadd.f32 %v4710, %v4742
        %v4759 = vadd.f32 %v4711, %v4743
        %v4760 = vadd.f32 %v4712, %v4744
        %v4761 = vadd.f32 %v4713, %v4745
        %v4762 = vadd.f32 %v4714, %v4746
        %v4763 = vadd.f32 %v4715, %v4747
        %v4764 = vadd.f32 %v4716, %v4748
        %v4765 = vadd.f32 %v4717, %v4749
        %v4766 = vadd.f32 %v4718, %v4750
        %v4767 = vadd.f32 %v4719, %v4751
        %v4768 = vadd.f32 %v4720, %v4752
        %v4769 = vadd.f32 %v4721, %v4753
        %v4770 = vadd.f32 %v4722, %v4754
        %v4771 = vadd.f32 %v4723, %v4755
        %v4772 = vld [vmem:[#allocation3 + $0x1c0] sm:$0xff]
        %v4773 = vld [vmem:[#allocation3 + $0x1c8] sm:$0xff]
        %v4774 = vld [vmem:[#allocation3 + $0x1d0] sm:$0xff]
        %v4775 = vld [vmem:[#allocation3 + $0x1d8] sm:$0xff]
        %v4776 = vld [vmem:[#allocation3 + $0x1e0] sm:$0xff]
        %v4777 = vld [vmem:[#allocation3 + $0x1e8] sm:$0xff]
        %v4778 = vld [vmem:[#allocation3 + $0x1f0] sm:$0xff]
        %v4779 = vld [vmem:[#allocation3 + $0x1f8] sm:$0xff]
        %v4780 = vld [vmem:[#allocation3 + $0x200] sm:$0xff]
        %v4781 = vld [vmem:[#allocation3 + $0x208] sm:$0xff]
        %v4782 = vld [vmem:[#allocation3 + $0x210] sm:$0xff]
        %v4783 = vld [vmem:[#allocation3 + $0x218] sm:$0xff]
        %v4784 = vld [vmem:[#allocation3 + $0x220] sm:$0xff]
        %v4785 = vld [vmem:[#allocation3 + $0x228] sm:$0xff]
        %v4786 = vld [vmem:[#allocation3 + $0x230] sm:$0xff]
        %v4787 = vld [vmem:[#allocation3 + $0x238] sm:$0xff]
        %v4788 = vmul.f32 %v4772, %v3564
        %v4789 = vmul.f32 %v4773, %v3568
        %v4790 = vmul.f32 %v4774, %v3564
        %v4791 = vmul.f32 %v4775, %v3568
        %v4792 = vmul.f32 %v4776, %v3564
        %v4793 = vmul.f32 %v4777, %v3568
        %v4794 = vmul.f32 %v4778, %v3564
        %v4795 = vmul.f32 %v4779, %v3568
        %v4796 = vmul.f32 %v4780, %v3564
        %v4797 = vmul.f32 %v4781, %v3568
        %v4798 = vmul.f32 %v4782, %v3564
        %v4799 = vmul.f32 %v4783, %v3568
        %v4800 = vmul.f32 %v4784, %v3564
        %v4801 = vmul.f32 %v4785, %v3568
        %v4802 = vmul.f32 %v4786, %v3564
        %v4803 = vmul.f32 %v4787, %v3568
        %v4804 = vadd.f32 %v4756, %v4788
        %v4805 = vadd.f32 %v4757, %v4789
        %v4806 = vadd.f32 %v4758, %v4790
        %v4807 = vadd.f32 %v4759, %v4791
        %v4808 = vadd.f32 %v4760, %v4792
        %v4809 = vadd.f32 %v4761, %v4793
        %v4810 = vadd.f32 %v4762, %v4794
        %v4811 = vadd.f32 %v4763, %v4795
        %v4812 = vadd.f32 %v4764, %v4796
        %v4813 = vadd.f32 %v4765, %v4797
        %v4814 = vadd.f32 %v4766, %v4798
        %v4815 = vadd.f32 %v4767, %v4799
        %v4816 = vadd.f32 %v4768, %v4800
        %v4817 = vadd.f32 %v4769, %v4801
        %v4818 = vadd.f32 %v4770, %v4802
        %v4819 = vadd.f32 %v4771, %v4803
        %v4820 = vld [vmem:[#allocation5 + $0x1c0] sm:$0xff]
        %v4821 = vld [vmem:[#allocation5 + $0x1c8] sm:$0xff]
        %v4822 = vld [vmem:[#allocation5 + $0x1d0] sm:$0xff]
        %v4823 = vld [vmem:[#allocation5 + $0x1d8] sm:$0xff]
        %v4824 = vld [vmem:[#allocation5 + $0x1e0] sm:$0xff]
        %v4825 = vld [vmem:[#allocation5 + $0x1e8] sm:$0xff]
        %v4826 = vld [vmem:[#allocation5 + $0x1f0] sm:$0xff]
        %v4827 = vld [vmem:[#allocation5 + $0x1f8] sm:$0xff]
        %v4828 = vld [vmem:[#allocation5 + $0x200] sm:$0xff]
        %v4829 = vld [vmem:[#allocation5 + $0x208] sm:$0xff]
        %v4830 = vld [vmem:[#allocation5 + $0x210] sm:$0xff]
        %v4831 = vld [vmem:[#allocation5 + $0x218] sm:$0xff]
        %v4832 = vld [vmem:[#allocation5 + $0x220] sm:$0xff]
        %v4833 = vld [vmem:[#allocation5 + $0x228] sm:$0xff]
        %v4834 = vld [vmem:[#allocation5 + $0x230] sm:$0xff]
        %v4835 = vld [vmem:[#allocation5 + $0x238] sm:$0xff]
        %v4836 = vmul.f32 %v4820, %v3608
        %v4837 = vmul.f32 %v4821, %v3612
        %v4838 = vmul.f32 %v4822, %v3608
        %v4839 = vmul.f32 %v4823, %v3612
        %v4840 = vmul.f32 %v4824, %v3608
        %v4841 = vmul.f32 %v4825, %v3612
        %v4842 = vmul.f32 %v4826, %v3608
        %v4843 = vmul.f32 %v4827, %v3612
        %v4844 = vmul.f32 %v4828, %v3608
        %v4845 = vmul.f32 %v4829, %v3612
        %v4846 = vmul.f32 %v4830, %v3608
        %v4847 = vmul.f32 %v4831, %v3612
        %v4848 = vmul.f32 %v4832, %v3608
        %v4849 = vmul.f32 %v4833, %v3612
        %v4850 = vmul.f32 %v4834, %v3608
        %v4851 = vmul.f32 %v4835, %v3612
        %v4852 = vadd.f32 %v4804, %v4836
        %v4853 = vadd.f32 %v4805, %v4837
        %v4854 = vadd.f32 %v4806, %v4838
        %v4855 = vadd.f32 %v4807, %v4839
        %v4856 = vadd.f32 %v4808, %v4840
        %v4857 = vadd.f32 %v4809, %v4841
        %v4858 = vadd.f32 %v4810, %v4842
        %v4859 = vadd.f32 %v4811, %v4843
        %v4860 = vadd.f32 %v4812, %v4844
        %v4861 = vadd.f32 %v4813, %v4845
        %v4862 = vadd.f32 %v4814, %v4846
        %v4863 = vadd.f32 %v4815, %v4847
        %v4864 = vadd.f32 %v4816, %v4848
        %v4865 = vadd.f32 %v4817, %v4849
        %v4866 = vadd.f32 %v4818, %v4850
        %v4867 = vadd.f32 %v4819, %v4851
        %v4868 = vadd.f32 %v4852, %v3649
        %v4869 = vadd.f32 %v4853, %v3653
        %v4870 = vadd.f32 %v4854, %v3649
        %v4871 = vadd.f32 %v4855, %v3653
        %v4872 = vadd.f32 %v4856, %v3649
        %v4873 = vadd.f32 %v4857, %v3653
        %v4874 = vadd.f32 %v4858, %v3649
        %v4875 = vadd.f32 %v4859, %v3653
        %v4876 = vadd.f32 %v4860, %v3649
        %v4877 = vadd.f32 %v4861, %v3653
        %v4878 = vadd.f32 %v4862, %v3649
        %v4879 = vadd.f32 %v4863, %v3653
        %v4880 = vadd.f32 %v4864, %v3649
        %v4881 = vadd.f32 %v4865, %v3653
        %v4882 = vadd.f32 %v4866, %v3649
        %v4883 = vadd.f32 %v4867, %v3653
        %4884 = vst [vmem:[#allocation6 + $0x180] sm:$0xff] %v4868
        %4885 = vst [vmem:[#allocation6 + $0x188] sm:$0xff] %v4869
        %4886 = vst [vmem:[#allocation6 + $0x190] sm:$0xff] %v4870
        %4887 = vst [vmem:[#allocation6 + $0x198] sm:$0xff] %v4871
        %4888 = vst [vmem:[#allocation6 + $0x1a0] sm:$0xff] %v4872
        %4889 = vst [vmem:[#allocation6 + $0x1a8] sm:$0xff] %v4873
        %4890 = vst [vmem:[#allocation6 + $0x1b0] sm:$0xff] %v4874
        %4891 = vst [vmem:[#allocation6 + $0x1b8] sm:$0xff] %v4875
        %4892 = vst [vmem:[#allocation6 + $0x1c0] sm:$0xff] %v4876
        %4893 = vst [vmem:[#allocation6 + $0x1c8] sm:$0xff] %v4877
        %4894 = vst [vmem:[#allocation6 + $0x1d0] sm:$0xff] %v4878
        %4895 = vst [vmem:[#allocation6 + $0x1d8] sm:$0xff] %v4879
        %4896 = vst [vmem:[#allocation6 + $0x1e0] sm:$0xff] %v4880
        %4897 = vst [vmem:[#allocation6 + $0x1e8] sm:$0xff] %v4881
        %4898 = vst [vmem:[#allocation6 + $0x1f0] sm:$0xff] %v4882
        %4899 = vst [vmem:[#allocation6 + $0x1f8] sm:$0xff] %v4883
        %v4900 = vld [vmem:[#allocation6] sm:$0xff]
        %v4901 = vld [vmem:[#allocation6 + $0x8] sm:$0xff]
        %v4902 = vld [vmem:[#allocation6 + $0x10] sm:$0xff]
        %v4903 = vld [vmem:[#allocation6 + $0x18] sm:$0xff]
        %v4904 = vld [vmem:[#allocation6 + $0x20] sm:$0xff]
        %v4905 = vld [vmem:[#allocation6 + $0x28] sm:$0xff]
        %v4906 = vld [vmem:[#allocation6 + $0x30] sm:$0xff]
        %v4907 = vld [vmem:[#allocation6 + $0x38] sm:$0xff]
        %v4908 = vld [vmem:[#allocation6 + $0x40] sm:$0xff]
        %v4909 = vld [vmem:[#allocation6 + $0x48] sm:$0xff]
        %v4910 = vld [vmem:[#allocation6 + $0x50] sm:$0xff]
        %v4911 = vld [vmem:[#allocation6 + $0x58] sm:$0xff]
        %v4912 = vld [vmem:[#allocation6 + $0x60] sm:$0xff]
        %v4913 = vld [vmem:[#allocation6 + $0x68] sm:$0xff]
        %v4914 = vld [vmem:[#allocation6 + $0x70] sm:$0xff]
        %v4915 = vld [vmem:[#allocation6 + $0x78] sm:$0xff]
        %v4916 = vld [vmem:[#allocation6 + $0x80] sm:$0xff]
        %v4917 = vld [vmem:[#allocation6 + $0x88] sm:$0xff]
        %v4918 = vld [vmem:[#allocation6 + $0x90] sm:$0xff]
        %v4919 = vld [vmem:[#allocation6 + $0x98] sm:$0xff]
        %v4920 = vld [vmem:[#allocation6 + $0xa0] sm:$0xff]
        %v4921 = vld [vmem:[#allocation6 + $0xa8] sm:$0xff]
        %v4922 = vld [vmem:[#allocation6 + $0xb0] sm:$0xff]
        %v4923 = vld [vmem:[#allocation6 + $0xb8] sm:$0xff]
        %v4924 = vld [vmem:[#allocation6 + $0xc0] sm:$0xff]
        %v4925 = vld [vmem:[#allocation6 + $0xc8] sm:$0xff]
        %v4926 = vld [vmem:[#allocation6 + $0xd0] sm:$0xff]
        %v4927 = vld [vmem:[#allocation6 + $0xd8] sm:$0xff]
        %v4928 = vld [vmem:[#allocation6 + $0xe0] sm:$0xff]
        %v4929 = vld [vmem:[#allocation6 + $0xe8] sm:$0xff]
        %v4930 = vld [vmem:[#allocation6 + $0xf0] sm:$0xff]
        %v4931 = vld [vmem:[#allocation6 + $0xf8] sm:$0xff]
        %v4932 = vld [vmem:[#allocation6 + $0x100] sm:$0xff]
        %v4933 = vld [vmem:[#allocation6 + $0x108] sm:$0xff]
        %v4934 = vld [vmem:[#allocation6 + $0x110] sm:$0xff]
        %v4935 = vld [vmem:[#allocation6 + $0x118] sm:$0xff]
        %v4936 = vld [vmem:[#allocation6 + $0x120] sm:$0xff]
        %v4937 = vld [vmem:[#allocation6 + $0x128] sm:$0xff]
        %v4938 = vld [vmem:[#allocation6 + $0x130] sm:$0xff]
        %v4939 = vld [vmem:[#allocation6 + $0x138] sm:$0xff]
        %v4940 = vld [vmem:[#allocation6 + $0x140] sm:$0xff]
        %v4941 = vld [vmem:[#allocation6 + $0x148] sm:$0xff]
        %v4942 = vld [vmem:[#allocation6 + $0x150] sm:$0xff]
        %v4943 = vld [vmem:[#allocation6 + $0x158] sm:$0xff]
        %v4944 = vld [vmem:[#allocation6 + $0x160] sm:$0xff]
        %v4945 = vld [vmem:[#allocation6 + $0x168] sm:$0xff]
        %v4946 = vld [vmem:[#allocation6 + $0x170] sm:$0xff]
        %v4947 = vld [vmem:[#allocation6 + $0x178] sm:$0xff]
        %v4948 = vld [vmem:[#allocation6 + $0x180] sm:$0xff]
        %v4949 = vld [vmem:[#allocation6 + $0x188] sm:$0xff]
        %v4950 = vld [vmem:[#allocation6 + $0x190] sm:$0xff]
        %v4951 = vld [vmem:[#allocation6 + $0x198] sm:$0xff]
        %v4952 = vld [vmem:[#allocation6 + $0x1a0] sm:$0xff]
        %v4953 = vld [vmem:[#allocation6 + $0x1a8] sm:$0xff]
        %v4954 = vld [vmem:[#allocation6 + $0x1b0] sm:$0xff]
        %v4955 = vld [vmem:[#allocation6 + $0x1b8] sm:$0xff]
        %v4956 = vld [vmem:[#allocation6 + $0x1c0] sm:$0xff]
        %v4957 = vld [vmem:[#allocation6 + $0x1c8] sm:$0xff]
        %v4958 = vld [vmem:[#allocation6 + $0x1d0] sm:$0xff]
        %v4959 = vld [vmem:[#allocation6 + $0x1d8] sm:$0xff]
        %v4960 = vld [vmem:[#allocation6 + $0x1e0] sm:$0xff]
        %v4961 = vld [vmem:[#allocation6 + $0x1e8] sm:$0xff]
        %v4962 = vld [vmem:[#allocation6 + $0x1f0] sm:$0xff]
        %v4963 = vld [vmem:[#allocation6 + $0x1f8] sm:$0xff]
        %v4964 = vld [vmem:[%s2] sm:$0xff]
        %v4965 = vld [vmem:[%s2 + $0x8] sm:$0xff]
        %v4966 = vld [vmem:[%s2 + $0x10] sm:$0xff]
        %v4967 = vld [vmem:[%s2 + $0x18] sm:$0xff]
        %v4968 = vld [vmem:[%s2 + $0x20] sm:$0xff]
        %v4969 = vld [vmem:[%s2 + $0x28] sm:$0xff]
        %v4970 = vld [vmem:[%s2 + $0x30] sm:$0xff]
        %v4971 = vld [vmem:[%s2 + $0x38] sm:$0xff]
        %v4972 = vld [vmem:[%s2 + $0x40] sm:$0xff]
        %v4973 = vld [vmem:[%s2 + $0x48] sm:$0xff]
        %v4974 = vld [vmem:[%s2 + $0x50] sm:$0xff]
        %v4975 = vld [vmem:[%s2 + $0x58] sm:$0xff]
        %v4976 = vld [vmem:[%s2 + $0x60] sm:$0xff]
        %v4977 = vld [vmem:[%s2 + $0x68] sm:$0xff]
        %v4978 = vld [vmem:[%s2 + $0x70] sm:$0xff]
        %v4979 = vld [vmem:[%s2 + $0x78] sm:$0xff]
        %v4980 = vld [vmem:[%s2 + $0x80] sm:$0xff]
        %v4981 = vld [vmem:[%s2 + $0x88] sm:$0xff]
        %v4982 = vld [vmem:[%s2 + $0x90] sm:$0xff]
        %v4983 = vld [vmem:[%s2 + $0x98] sm:$0xff]
        %v4984 = vld [vmem:[%s2 + $0xa0] sm:$0xff]
        %v4985 = vld [vmem:[%s2 + $0xa8] sm:$0xff]
        %v4986 = vld [vmem:[%s2 + $0xb0] sm:$0xff]
        %v4987 = vld [vmem:[%s2 + $0xb8] sm:$0xff]
        %v4988 = vld [vmem:[%s2 + $0xc0] sm:$0xff]
        %v4989 = vld [vmem:[%s2 + $0xc8] sm:$0xff]
        %v4990 = vld [vmem:[%s2 + $0xd0] sm:$0xff]
        %v4991 = vld [vmem:[%s2 + $0xd8] sm:$0xff]
        %v4992 = vld [vmem:[%s2 + $0xe0] sm:$0xff]
        %v4993 = vld [vmem:[%s2 + $0xe8] sm:$0xff]
        %v4994 = vld [vmem:[%s2 + $0xf0] sm:$0xff]
        %v4995 = vld [vmem:[%s2 + $0xf8] sm:$0xff]
        %v4996 = vld [vmem:[%s2 + $0x100] sm:$0xff]
        %v4997 = vld [vmem:[%s2 + $0x108] sm:$0xff]
        %v4998 = vld [vmem:[%s2 + $0x110] sm:$0xff]
        %v4999 = vld [vmem:[%s2 + $0x118] sm:$0xff]
        %v5000 = vld [vmem:[%s2 + $0x120] sm:$0xff]
        %v5001 = vld [vmem:[%s2 + $0x128] sm:$0xff]
        %v5002 = vld [vmem:[%s2 + $0x130] sm:$0xff]
        %v5003 = vld [vmem:[%s2 + $0x138] sm:$0xff]
        %v5004 = vld [vmem:[%s2 + $0x140] sm:$0xff]
        %v5005 = vld [vmem:[%s2 + $0x148] sm:$0xff]
        %v5006 = vld [vmem:[%s2 + $0x150] sm:$0xff]
        %v5007 = vld [vmem:[%s2 + $0x158] sm:$0xff]
        %v5008 = vld [vmem:[%s2 + $0x160] sm:$0xff]
        %v5009 = vld [vmem:[%s2 + $0x168] sm:$0xff]
        %v5010 = vld [vmem:[%s2 + $0x170] sm:$0xff]
        %v5011 = vld [vmem:[%s2 + $0x178] sm:$0xff]
        %v5012 = vld [vmem:[%s2 + $0x180] sm:$0xff]
        %v5013 = vld [vmem:[%s2 + $0x188] sm:$0xff]
        %v5014 = vld [vmem:[%s2 + $0x190] sm:$0xff]
        %v5015 = vld [vmem:[%s2 + $0x198] sm:$0xff]
        %v5016 = vld [vmem:[%s2 + $0x1a0] sm:$0xff]
        %v5017 = vld [vmem:[%s2 + $0x1a8] sm:$0xff]
        %v5018 = vld [vmem:[%s2 + $0x1b0] sm:$0xff]
        %v5019 = vld [vmem:[%s2 + $0x1b8] sm:$0xff]
        %v5020 = vld [vmem:[%s2 + $0x1c0] sm:$0xff]
        %v5021 = vld [vmem:[%s2 + $0x1c8] sm:$0xff]
        %v5022 = vld [vmem:[%s2 + $0x1d0] sm:$0xff]
        %v5023 = vld [vmem:[%s2 + $0x1d8] sm:$0xff]
        %v5024 = vld [vmem:[%s2 + $0x1e0] sm:$0xff]
        %v5025 = vld [vmem:[%s2 + $0x1e8] sm:$0xff]
        %v5026 = vld [vmem:[%s2 + $0x1f0] sm:$0xff]
        %v5027 = vld [vmem:[%s2 + $0x1f8] sm:$0xff]
        %s5028 = scalar_lea.vmem %s6, 21
        %v5029 = vld [vmem:[%s5028] ss:$8 sm:$0x3]
        %v5031 = vlaneseq
        %v5032 = vshrl.u32 %v5031, 7
        %v5033 = vsub.s32 0, %v5032
        %v5034 = vrot.slane %v5029, %v5033
        %v5035 = vlaneseq
        %v5036 = vshrl.u32 %v5035, 7
        %v5037 = vsub.s32 1, %v5036
        %v5038 = vrot.slane %v5029, %v5037
        %5041 = vmatprep.subr.mxu0 %v4965
        %5042 = vmatpush1.msra.mxu0 %v4964
        %5043 = vmatprep.subr.mxu0 %v4967
        %5044 = vmatpush1.msra.mxu0 %v4966
        %5045 = vmatprep.subr.mxu0 %v4969
        %5046 = vmatpush1.msra.mxu0 %v4968
        %5047 = vmatprep.subr.mxu0 %v4971
        %5048 = vmatpush1.msra.mxu0 %v4970
        %5049 = vmatprep.subr.mxu0 %v4973
        %5050 = vmatpush1.msra.mxu0 %v4972
        %5051 = vmatprep.subr.mxu0 %v4975
        %5052 = vmatpush1.msra.mxu0 %v4974
        %5053 = vmatprep.subr.mxu0 %v4977
        %5054 = vmatpush1.msra.mxu0 %v4976
        %5055 = vmatprep.subr.mxu0 %v4979
        %5056 = vmatpush1.msra.mxu0 %v4978
        %5057 = vmatprep.subr.mxu0 %v4981
        %5058 = vmatpush1.msra.mxu0 %v4980
        %5059 = vmatprep.subr.mxu0 %v4983
        %5060 = vmatpush1.msra.mxu0 %v4982
        %5061 = vmatprep.subr.mxu0 %v4985
        %5062 = vmatpush1.msra.mxu0 %v4984
        %5063 = vmatprep.subr.mxu0 %v4987
        %5064 = vmatpush1.msra.mxu0 %v4986
        %5065 = vmatprep.subr.mxu0 %v4989
        %5066 = vmatpush1.msra.mxu0 %v4988
        %5067 = vmatprep.subr.mxu0 %v4991
        %5068 = vmatpush1.msra.mxu0 %v4990
        %5069 = vmatprep.subr.mxu0 %v4993
        %5070 = vmatpush1.msra.mxu0 %v4992
        %5071 = vmatprep.subr.mxu0 %v4995
        %5072 = vmatpush1.msra.mxu0 %v4994
        %5073 = vmatprep.subr.mxu0 %v4997
        %5074 = vmatpush1.msra.mxu0 %v4996
        %5075 = vmatprep.subr.mxu0 %v4999
        %5076 = vmatpush1.msra.mxu0 %v4998
        %5077 = vmatprep.subr.mxu0 %v5001
        %5078 = vmatpush1.msra.mxu0 %v5000
        %5079 = vmatprep.subr.mxu0 %v5003
        %5080 = vmatpush1.msra.mxu0 %v5002
        %5081 = vmatprep.subr.mxu0 %v5005
        %5082 = vmatpush1.msra.mxu0 %v5004
        %5083 = vmatprep.subr.mxu0 %v5007
        %5084 = vmatpush1.msra.mxu0 %v5006
        %5085 = vmatprep.subr.mxu0 %v5009
        %5086 = vmatpush1.msra.mxu0 %v5008
        %5087 = vmatprep.subr.mxu0 %v5011
        %5088 = vmatpush1.msra.mxu0 %v5010
        %5089 = vmatprep.subr.mxu0 %v5013
        %5090 = vmatpush1.msra.mxu0 %v5012
        %5091 = vmatprep.subr.mxu0 %v5015
        %5092 = vmatpush1.msra.mxu0 %v5014
        %5093 = vmatprep.subr.mxu0 %v5017
        %5094 = vmatpush1.msra.mxu0 %v5016
        %5095 = vmatprep.subr.mxu0 %v5019
        %5096 = vmatpush1.msra.mxu0 %v5018
        %5097 = vmatprep.subr.mxu0 %v5021
        %5098 = vmatpush1.msra.mxu0 %v5020
        %5099 = vmatprep.subr.mxu0 %v5023
        %5100 = vmatpush1.msra.mxu0 %v5022
        %5101 = vmatprep.subr.mxu0 %v5025
        %5102 = vmatpush1.msra.mxu0 %v5024
        %5103 = vmatprep.subr.mxu0 %v5027
        %5104 = vmatpush1.msra.mxu0 %v5026
        %5105 = vmatprep.mubr.f32.mxu0 %v4901
        %5106 = vmatmul.mubr.f32.gmra.mrb[0].mxu0 %v4900
        %v5107 = vpop.f32.mrb[0].mxu0
        %v5108 = vadd.f32 %v5034, %v5107
        %v5109 = vpop.f32.mrb[0].mxu0
        %v5110 = vadd.f32 %v5038, %v5109
        %5111 = vmatprep.mubr.f32.mxu0 %v4903
        %5112 = vmatmul.mubr.f32.gmra.mrb[0].mxu0 %v4902
        %v5113 = vpop.f32.mrb[0].mxu0
        %v5114 = vadd.f32 %v5034, %v5113
        %v5115 = vpop.f32.mrb[0].mxu0
        %v5116 = vadd.f32 %v5038, %v5115
        %5117 = vmatprep.mubr.f32.mxu0 %v4905
        %5118 = vmatmul.mubr.f32.gmra.mrb[0].mxu0 %v4904
        %v5119 = vpop.f32.mrb[0].mxu0
        %v5120 = vadd.f32 %v5034, %v5119
        %v5121 = vpop.f32.mrb[0].mxu0
        %v5122 = vadd.f32 %v5038, %v5121
        %5123 = vmatprep.mubr.f32.mxu0 %v4907
        %5124 = vmatmul.mubr.f32.gmra.mrb[0].mxu0 %v4906
        %v5125 = vpop.f32.mrb[0].mxu0
        %v5126 = vadd.f32 %v5034, %v5125
        %v5127 = vpop.f32.mrb[0].mxu0
        %v5128 = vadd.f32 %v5038, %v5127
        %5129 = vmatprep.mubr.f32.mxu0 %v4909
        %5130 = vmatmul.mubr.f32.gmra.mrb[0].mxu0 %v4908
        %v5131 = vpop.f32.mrb[0].mxu0
        %v5132 = vadd.f32 %v5034, %v5131
        %v5133 = vpop.f32.mrb[0].mxu0
        %v5134 = vadd.f32 %v5038, %v5133
        %5135 = vmatprep.mubr.f32.mxu0 %v4911
        %5136 = vmatmul.mubr.f32.gmra.mrb[0].mxu0 %v4910
        %v5137 = vpop.f32.mrb[0].mxu0
        %v5138 = vadd.f32 %v5034, %v5137
        %v5139 = vpop.f32.mrb[0].mxu0
        %v5140 = vadd.f32 %v5038, %v5139
        %5141 = vmatprep.mubr.f32.mxu0 %v4913
        %5142 = vmatmul.mubr.f32.gmra.mrb[0].mxu0 %v4912
        %v5143 = vpop.f32.mrb[0].mxu0
        %v5144 = vadd.f32 %v5034, %v5143
        %v5145 = vpop.f32.mrb[0].mxu0
        %v5146 = vadd.f32 %v5038, %v5145
        %5147 = vmatprep.mubr.f32.mxu0 %v4915
        %5148 = vmatmul.mubr.f32.gmra.mrb[0].mxu0 %v4914
        %v5149 = vpop.f32.mrb[0].mxu0
        %v5150 = vadd.f32 %v5034, %v5149
        %v5151 = vpop.f32.mrb[0].mxu0
        %v5152 = vadd.f32 %v5038, %v5151
        %5153 = vmatprep.mubr.f32.mxu0 %v4917
        %5154 = vmatmul.mubr.f32.gmra.mrb[0].mxu0 %v4916
        %v5155 = vpop.f32.mrb[0].mxu0
        %v5156 = vadd.f32 %v5034, %v5155
        %v5157 = vpop.f32.mrb[0].mxu0
        %v5158 = vadd.f32 %v5038, %v5157
        %5159 = vmatprep.mubr.f32.mxu0 %v4919
        %5160 = vmatmul.mubr.f32.gmra.mrb[0].mxu0 %v4918
        %v5161 = vpop.f32.mrb[0].mxu0
        %v5162 = vadd.f32 %v5034, %v5161
        %v5163 = vpop.f32.mrb[0].mxu0
        %v5164 = vadd.f32 %v5038, %v5163
        %5165 = vmatprep.mubr.f32.mxu0 %v4921
        %5166 = vmatmul.mubr.f32.gmra.mrb[0].mxu0 %v4920
        %v5167 = vpop.f32.mrb[0].mxu0
        %v5168 = vadd.f32 %v5034, %v5167
        %v5169 = vpop.f32.mrb[0].mxu0
        %v5170 = vadd.f32 %v5038, %v5169
        %5171 = vmatprep.mubr.f32.mxu0 %v4923
        %5172 = vmatmul.mubr.f32.gmra.mrb[0].mxu0 %v4922
        %v5173 = vpop.f32.mrb[0].mxu0
        %v5174 = vadd.f32 %v5034, %v5173
        %v5175 = vpop.f32.mrb[0].mxu0
        %v5176 = vadd.f32 %v5038, %v5175
        %5177 = vmatprep.mubr.f32.mxu0 %v4925
        %5178 = vmatmul.mubr.f32.gmra.mrb[0].mxu0 %v4924
        %v5179 = vpop.f32.mrb[0].mxu0
        %v5180 = vadd.f32 %v5034, %v5179
        %v5181 = vpop.f32.mrb[0].mxu0
        %v5182 = vadd.f32 %v5038, %v5181
        %5183 = vmatprep.mubr.f32.mxu0 %v4927
        %5184 = vmatmul.mubr.f32.gmra.mrb[0].mxu0 %v4926
        %v5185 = vpop.f32.mrb[0].mxu0
        %v5186 = vadd.f32 %v5034, %v5185
        %v5187 = vpop.f32.mrb[0].mxu0
        %v5188 = vadd.f32 %v5038, %v5187
        %5189 = vmatprep.mubr.f32.mxu0 %v4929
        %5190 = vmatmul.mubr.f32.gmra.mrb[0].mxu0 %v4928
        %v5191 = vpop.f32.mrb[0].mxu0
        %v5192 = vadd.f32 %v5034, %v5191
        %v5193 = vpop.f32.mrb[0].mxu0
        %v5194 = vadd.f32 %v5038, %v5193
        %5195 = vmatprep.mubr.f32.mxu0 %v4931
        %5196 = vmatmul.mubr.f32.gmra.mrb[0].mxu0 %v4930
        %v5197 = vpop.f32.mrb[0].mxu0
        %v5198 = vadd.f32 %v5034, %v5197
        %v5199 = vpop.f32.mrb[0].mxu0
        %v5200 = vadd.f32 %v5038, %v5199
        %5201 = vmatprep.mubr.f32.mxu0 %v4933
        %5202 = vmatmul.mubr.f32.gmra.mrb[0].mxu0 %v4932
        %v5203 = vpop.f32.mrb[0].mxu0
        %v5204 = vadd.f32 %v5034, %v5203
        %v5205 = vpop.f32.mrb[0].mxu0
        %v5206 = vadd.f32 %v5038, %v5205
        %5207 = vmatprep.mubr.f32.mxu0 %v4935
        %5208 = vmatmul.mubr.f32.gmra.mrb[0].mxu0 %v4934
        %v5209 = vpop.f32.mrb[0].mxu0
        %v5210 = vadd.f32 %v5034, %v5209
        %v5211 = vpop.f32.mrb[0].mxu0
        %v5212 = vadd.f32 %v5038, %v5211
        %5213 = vmatprep.mubr.f32.mxu0 %v4937
        %5214 = vmatmul.mubr.f32.gmra.mrb[0].mxu0 %v4936
        %v5215 = vpop.f32.mrb[0].mxu0
        %v5216 = vadd.f32 %v5034, %v5215
        %v5217 = vpop.f32.mrb[0].mxu0
        %v5218 = vadd.f32 %v5038, %v5217
        %5219 = vmatprep.mubr.f32.mxu0 %v4939
        %5220 = vmatmul.mubr.f32.gmra.mrb[0].mxu0 %v4938
        %v5221 = vpop.f32.mrb[0].mxu0
        %v5222 = vadd.f32 %v5034, %v5221
        %v5223 = vpop.f32.mrb[0].mxu0
        %v5224 = vadd.f32 %v5038, %v5223
        %5225 = vmatprep.mubr.f32.mxu0 %v4941
        %5226 = vmatmul.mubr.f32.gmra.mrb[0].mxu0 %v4940
        %v5227 = vpop.f32.mrb[0].mxu0
        %v5228 = vadd.f32 %v5034, %v5227
        %v5229 = vpop.f32.mrb[0].mxu0
        %v5230 = vadd.f32 %v5038, %v5229
        %5231 = vmatprep.mubr.f32.mxu0 %v4943
        %5232 = vmatmul.mubr.f32.gmra.mrb[0].mxu0 %v4942
        %v5233 = vpop.f32.mrb[0].mxu0
        %v5234 = vadd.f32 %v5034, %v5233
        %v5235 = vpop.f32.mrb[0].mxu0
        %v5236 = vadd.f32 %v5038, %v5235
        %5237 = vmatprep.mubr.f32.mxu0 %v4945
        %5238 = vmatmul.mubr.f32.gmra.mrb[0].mxu0 %v4944
        %v5239 = vpop.f32.mrb[0].mxu0
        %v5240 = vadd.f32 %v5034, %v5239
        %v5241 = vpop.f32.mrb[0].mxu0
        %v5242 = vadd.f32 %v5038, %v5241
        %5243 = vmatprep.mubr.f32.mxu0 %v4947
        %5244 = vmatmul.mubr.f32.gmra.mrb[0].mxu0 %v4946
        %v5245 = vpop.f32.mrb[0].mxu0
        %v5246 = vadd.f32 %v5034, %v5245
        %v5247 = vpop.f32.mrb[0].mxu0
        %v5248 = vadd.f32 %v5038, %v5247
        %5249 = vmatprep.mubr.f32.mxu0 %v4949
        %5250 = vmatmul.mubr.f32.gmra.mrb[0].mxu0 %v4948
        %v5251 = vpop.f32.mrb[0].mxu0
        %v5252 = vadd.f32 %v5034, %v5251
        %v5253 = vpop.f32.mrb[0].mxu0
        %v5254 = vadd.f32 %v5038, %v5253
        %5255 = vmatprep.mubr.f32.mxu0 %v4951
        %5256 = vmatmul.mubr.f32.gmra.mrb[0].mxu0 %v4950
        %v5257 = vpop.f32.mrb[0].mxu0
        %v5258 = vadd.f32 %v5034, %v5257
        %v5259 = vpop.f32.mrb[0].mxu0
        %v5260 = vadd.f32 %v5038, %v5259
        %5261 = vmatprep.mubr.f32.mxu0 %v4953
        %5262 = vmatmul.mubr.f32.gmra.mrb[0].mxu0 %v4952
        %v5263 = vpop.f32.mrb[0].mxu0
        %v5264 = vadd.f32 %v5034, %v5263
        %v5265 = vpop.f32.mrb[0].mxu0
        %v5266 = vadd.f32 %v5038, %v5265
        %5267 = vmatprep.mubr.f32.mxu0 %v4955
        %5268 = vmatmul.mubr.f32.gmra.mrb[0].mxu0 %v4954
        %v5269 = vpop.f32.mrb[0].mxu0
        %v5270 = vadd.f32 %v5034, %v5269
        %v5271 = vpop.f32.mrb[0].mxu0
        %v5272 = vadd.f32 %v5038, %v5271
        %5273 = vmatprep.mubr.f32.mxu0 %v4957
        %5274 = vmatmul.mubr.f32.gmra.mrb[0].mxu0 %v4956
        %v5275 = vpop.f32.mrb[0].mxu0
        %v5276 = vadd.f32 %v5034, %v5275
        %v5277 = vpop.f32.mrb[0].mxu0
        %v5278 = vadd.f32 %v5038, %v5277
        %5279 = vmatprep.mubr.f32.mxu0 %v4959
        %5280 = vmatmul.mubr.f32.gmra.mrb[0].mxu0 %v4958
        %v5281 = vpop.f32.mrb[0].mxu0
        %v5282 = vadd.f32 %v5034, %v5281
        %v5283 = vpop.f32.mrb[0].mxu0
        %v5284 = vadd.f32 %v5038, %v5283
        %5285 = vmatprep.mubr.f32.mxu0 %v4961
        %5286 = vmatmul.mubr.f32.gmra.mrb[0].mxu0 %v4960
        %v5287 = vpop.f32.mrb[0].mxu0
        %v5288 = vadd.f32 %v5034, %v5287
        %v5289 = vpop.f32.mrb[0].mxu0
        %v5290 = vadd.f32 %v5038, %v5289
        %5291 = vmatprep.mubr.f32.mxu0 %v4963
        %5292 = vmatmul.mubr.f32.gmra.mrb[0].mxu0 %v4962
        %v5293 = vpop.f32.mrb[0].mxu0
        %v5294 = vadd.f32 %v5034, %v5293
        %v5295 = vpop.f32.mrb[0].mxu0
        %v5296 = vadd.f32 %v5038, %v5295
        %5297 = vdwg.mxu0
        %5298 = vst [vmem:[#allocation7] sm:$0xff] %v5108
        %5299 = vst [vmem:[#allocation7 + $0x8] sm:$0xff] %v5110
        %5300 = vst [vmem:[#allocation7 + $0x10] sm:$0xff] %v5114
        %5301 = vst [vmem:[#allocation7 + $0x18] sm:$0xff] %v5116
        %5302 = vst [vmem:[#allocation7 + $0x20] sm:$0xff] %v5120
        %5303 = vst [vmem:[#allocation7 + $0x28] sm:$0xff] %v5122
        %5304 = vst [vmem:[#allocation7 + $0x30] sm:$0xff] %v5126
        %5305 = vst [vmem:[#allocation7 + $0x38] sm:$0xff] %v5128
        %5306 = vst [vmem:[#allocation7 + $0x40] sm:$0xff] %v5132
        %5307 = vst [vmem:[#allocation7 + $0x48] sm:$0xff] %v5134
        %5308 = vst [vmem:[#allocation7 + $0x50] sm:$0xff] %v5138
        %5309 = vst [vmem:[#allocation7 + $0x58] sm:$0xff] %v5140
        %5310 = vst [vmem:[#allocation7 + $0x60] sm:$0xff] %v5144
        %5311 = vst [vmem:[#allocation7 + $0x68] sm:$0xff] %v5146
        %5312 = vst [vmem:[#allocation7 + $0x70] sm:$0xff] %v5150
        %5313 = vst [vmem:[#allocation7 + $0x78] sm:$0xff] %v5152
        %5314 = vst [vmem:[#allocation7 + $0x80] sm:$0xff] %v5156
        %5315 = vst [vmem:[#allocation7 + $0x88] sm:$0xff] %v5158
        %5316 = vst [vmem:[#allocation7 + $0x90] sm:$0xff] %v5162
        %5317 = vst [vmem:[#allocation7 + $0x98] sm:$0xff] %v5164
        %5318 = vst [vmem:[#allocation7 + $0xa0] sm:$0xff] %v5168
        %5319 = vst [vmem:[#allocation7 + $0xa8] sm:$0xff] %v5170
        %5320 = vst [vmem:[#allocation7 + $0xb0] sm:$0xff] %v5174
        %5321 = vst [vmem:[#allocation7 + $0xb8] sm:$0xff] %v5176
        %5322 = vst [vmem:[#allocation7 + $0xc0] sm:$0xff] %v5180
        %5323 = vst [vmem:[#allocation7 + $0xc8] sm:$0xff] %v5182
        %5324 = vst [vmem:[#allocation7 + $0xd0] sm:$0xff] %v5186
        %5325 = vst [vmem:[#allocation7 + $0xd8] sm:$0xff] %v5188
        %5326 = vst [vmem:[#allocation7 + $0xe0] sm:$0xff] %v5192
        %5327 = vst [vmem:[#allocation7 + $0xe8] sm:$0xff] %v5194
        %5328 = vst [vmem:[#allocation7 + $0xf0] sm:$0xff] %v5198
        %5329 = vst [vmem:[#allocation7 + $0xf8] sm:$0xff] %v5200
        %5330 = vst [vmem:[#allocation7 + $0x100] sm:$0xff] %v5204
        %5331 = vst [vmem:[#allocation7 + $0x108] sm:$0xff] %v5206
        %5332 = vst [vmem:[#allocation7 + $0x110] sm:$0xff] %v5210
        %5333 = vst [vmem:[#allocation7 + $0x118] sm:$0xff] %v5212
        %5334 = vst [vmem:[#allocation7 + $0x120] sm:$0xff] %v5216
        %5335 = vst [vmem:[#allocation7 + $0x128] sm:$0xff] %v5218
        %5336 = vst [vmem:[#allocation7 + $0x130] sm:$0xff] %v5222
        %5337 = vst [vmem:[#allocation7 + $0x138] sm:$0xff] %v5224
        %5338 = vst [vmem:[#allocation7 + $0x140] sm:$0xff] %v5228
        %5339 = vst [vmem:[#allocation7 + $0x148] sm:$0xff] %v5230
        %5340 = vst [vmem:[#allocation7 + $0x150] sm:$0xff] %v5234
        %5341 = vst [vmem:[#allocation7 + $0x158] sm:$0xff] %v5236
        %5342 = vst [vmem:[#allocation7 + $0x160] sm:$0xff] %v5240
        %5343 = vst [vmem:[#allocation7 + $0x168] sm:$0xff] %v5242
        %5344 = vst [vmem:[#allocation7 + $0x170] sm:$0xff] %v5246
        %5345 = vst [vmem:[#allocation7 + $0x178] sm:$0xff] %v5248
        %5346 = vst [vmem:[#allocation7 + $0x180] sm:$0xff] %v5252
        %5347 = vst [vmem:[#allocation7 + $0x188] sm:$0xff] %v5254
        %5348 = vst [vmem:[#allocation7 + $0x190] sm:$0xff] %v5258
        %5349 = vst [vmem:[#allocation7 + $0x198] sm:$0xff] %v5260
        %5350 = vst [vmem:[#allocation7 + $0x1a0] sm:$0xff] %v5264
        %5351 = vst [vmem:[#allocation7 + $0x1a8] sm:$0xff] %v5266
        %5352 = vst [vmem:[#allocation7 + $0x1b0] sm:$0xff] %v5270
        %5353 = vst [vmem:[#allocation7 + $0x1b8] sm:$0xff] %v5272
        %5354 = vst [vmem:[#allocation7 + $0x1c0] sm:$0xff] %v5276
        %5355 = vst [vmem:[#allocation7 + $0x1c8] sm:$0xff] %v5278
        %5356 = vst [vmem:[#allocation7 + $0x1d0] sm:$0xff] %v5282
        %5357 = vst [vmem:[#allocation7 + $0x1d8] sm:$0xff] %v5284
        %5358 = vst [vmem:[#allocation7 + $0x1e0] sm:$0xff] %v5288
        %5359 = vst [vmem:[#allocation7 + $0x1e8] sm:$0xff] %v5290
        %5360 = vst [vmem:[#allocation7 + $0x1f0] sm:$0xff] %v5294
        %5361 = vst [vmem:[#allocation7 + $0x1f8] sm:$0xff] %v5296
        %v5362 = vld [vmem:[#allocation7] sm:$0xff]
        %v5363 = vld [vmem:[#allocation7 + $0x8] sm:$0xff]
        %v5364 = vld [vmem:[#allocation7 + $0x10] sm:$0xff]
        %v5365 = vld [vmem:[#allocation7 + $0x18] sm:$0xff]
        %v5366 = vld [vmem:[#allocation7 + $0x20] sm:$0xff]
        %v5367 = vld [vmem:[#allocation7 + $0x28] sm:$0xff]
        %v5368 = vld [vmem:[#allocation7 + $0x30] sm:$0xff]
        %v5369 = vld [vmem:[#allocation7 + $0x38] sm:$0xff]
        %v5370 = vld [vmem:[#allocation7 + $0x40] sm:$0xff]
        %v5371 = vld [vmem:[#allocation7 + $0x48] sm:$0xff]
        %v5372 = vld [vmem:[#allocation7 + $0x50] sm:$0xff]
        %v5373 = vld [vmem:[#allocation7 + $0x58] sm:$0xff]
        %v5374 = vld [vmem:[#allocation7 + $0x60] sm:$0xff]
        %v5375 = vld [vmem:[#allocation7 + $0x68] sm:$0xff]
        %v5376 = vld [vmem:[#allocation7 + $0x70] sm:$0xff]
        %v5377 = vld [vmem:[#allocation7 + $0x78] sm:$0xff]
        %v5378 = vld [vmem:[#allocation7 + $0x80] sm:$0xff]
        %v5379 = vld [vmem:[#allocation7 + $0x88] sm:$0xff]
        %v5380 = vld [vmem:[#allocation7 + $0x90] sm:$0xff]
        %v5381 = vld [vmem:[#allocation7 + $0x98] sm:$0xff]
        %v5382 = vld [vmem:[#allocation7 + $0xa0] sm:$0xff]
        %v5383 = vld [vmem:[#allocation7 + $0xa8] sm:$0xff]
        %v5384 = vld [vmem:[#allocation7 + $0xb0] sm:$0xff]
        %v5385 = vld [vmem:[#allocation7 + $0xb8] sm:$0xff]
        %v5386 = vld [vmem:[#allocation7 + $0xc0] sm:$0xff]
        %v5387 = vld [vmem:[#allocation7 + $0xc8] sm:$0xff]
        %v5388 = vld [vmem:[#allocation7 + $0xd0] sm:$0xff]
        %v5389 = vld [vmem:[#allocation7 + $0xd8] sm:$0xff]
        %v5390 = vld [vmem:[#allocation7 + $0xe0] sm:$0xff]
        %v5391 = vld [vmem:[#allocation7 + $0xe8] sm:$0xff]
        %v5392 = vld [vmem:[#allocation7 + $0xf0] sm:$0xff]
        %v5393 = vld [vmem:[#allocation7 + $0xf8] sm:$0xff]
        %v5394 = vld [vmem:[#allocation7 + $0x100] sm:$0xff]
        %v5395 = vld [vmem:[#allocation7 + $0x108] sm:$0xff]
        %v5396 = vld [vmem:[#allocation7 + $0x110] sm:$0xff]
        %v5397 = vld [vmem:[#allocation7 + $0x118] sm:$0xff]
        %v5398 = vld [vmem:[#allocation7 + $0x120] sm:$0xff]
        %v5399 = vld [vmem:[#allocation7 + $0x128] sm:$0xff]
        %v5400 = vld [vmem:[#allocation7 + $0x130] sm:$0xff]
        %v5401 = vld [vmem:[#allocation7 + $0x138] sm:$0xff]
        %v5402 = vld [vmem:[#allocation7 + $0x140] sm:$0xff]
        %v5403 = vld [vmem:[#allocation7 + $0x148] sm:$0xff]
        %v5404 = vld [vmem:[#allocation7 + $0x150] sm:$0xff]
        %v5405 = vld [vmem:[#allocation7 + $0x158] sm:$0xff]
        %v5406 = vld [vmem:[#allocation7 + $0x160] sm:$0xff]
        %v5407 = vld [vmem:[#allocation7 + $0x168] sm:$0xff]
        %v5408 = vld [vmem:[#allocation7 + $0x170] sm:$0xff]
        %v5409 = vld [vmem:[#allocation7 + $0x178] sm:$0xff]
        %v5410 = vld [vmem:[#allocation7 + $0x180] sm:$0xff]
        %v5411 = vld [vmem:[#allocation7 + $0x188] sm:$0xff]
        %v5412 = vld [vmem:[#allocation7 + $0x190] sm:$0xff]
        %v5413 = vld [vmem:[#allocation7 + $0x198] sm:$0xff]
        %v5414 = vld [vmem:[#allocation7 + $0x1a0] sm:$0xff]
        %v5415 = vld [vmem:[#allocation7 + $0x1a8] sm:$0xff]
        %v5416 = vld [vmem:[#allocation7 + $0x1b0] sm:$0xff]
        %v5417 = vld [vmem:[#allocation7 + $0x1b8] sm:$0xff]
        %v5418 = vld [vmem:[#allocation7 + $0x1c0] sm:$0xff]
        %v5419 = vld [vmem:[#allocation7 + $0x1c8] sm:$0xff]
        %v5420 = vld [vmem:[#allocation7 + $0x1d0] sm:$0xff]
        %v5421 = vld [vmem:[#allocation7 + $0x1d8] sm:$0xff]
        %v5422 = vld [vmem:[#allocation7 + $0x1e0] sm:$0xff]
        %v5423 = vld [vmem:[#allocation7 + $0x1e8] sm:$0xff]
        %v5424 = vld [vmem:[#allocation7 + $0x1f0] sm:$0xff]
        %v5425 = vld [vmem:[#allocation7 + $0x1f8] sm:$0xff]
        %v5426 = vadd.f32 %v5362, %v5364
        %v5427 = vadd.f32 %v5426, %v5366
        %v5428 = vadd.f32 %v5427, %v5368
        %v5429 = vadd.f32 %v5428, %v5370
        %v5430 = vadd.f32 %v5429, %v5372
        %v5431 = vadd.f32 %v5430, %v5374
        %v5432 = vadd.f32 %v5431, %v5376
        %v5433 = vadd.f32 %v5432, %v5378
        %v5434 = vadd.f32 %v5433, %v5380
        %v5435 = vadd.f32 %v5434, %v5382
        %v5436 = vadd.f32 %v5435, %v5384
        %v5437 = vadd.f32 %v5436, %v5386
        %v5438 = vadd.f32 %v5437, %v5388
        %v5439 = vadd.f32 %v5438, %v5390
        %v5440 = vadd.f32 %v5439, %v5392
        %v5441 = vadd.f32 %v5440, %v5394
        %v5442 = vadd.f32 %v5441, %v5396
        %v5443 = vadd.f32 %v5442, %v5398
        %v5444 = vadd.f32 %v5443, %v5400
        %v5445 = vadd.f32 %v5444, %v5402
        %v5446 = vadd.f32 %v5445, %v5404
        %v5447 = vadd.f32 %v5446, %v5406
        %v5448 = vadd.f32 %v5447, %v5408
        %v5449 = vadd.f32 %v5448, %v5410
        %v5450 = vadd.f32 %v5449, %v5412
        %v5451 = vadd.f32 %v5450, %v5414
        %v5452 = vadd.f32 %v5451, %v5416
        %v5453 = vadd.f32 %v5452, %v5418
        %v5454 = vadd.f32 %v5453, %v5420
        %v5455 = vadd.f32 %v5454, %v5422
        %v5456 = vadd.f32 %v5455, %v5424
        %v5457 = vrot.slane %v5456, 4
        %v5458 = vadd.f32 %v5456, %v5457
        %v5459 = vrot.slane %v5458, 2
        %v5460 = vadd.f32 %v5458, %v5459
        %v5461 = vrot.slane %v5460, 1
        %v5462 = vadd.f32 %v5460, %v5461
        %v5463 = vadd.f32 %v5363, %v5365
        %v5464 = vadd.f32 %v5463, %v5367
        %v5465 = vadd.f32 %v5464, %v5369
        %v5466 = vadd.f32 %v5465, %v5371
        %v5467 = vadd.f32 %v5466, %v5373
        %v5468 = vadd.f32 %v5467, %v5375
        %v5469 = vadd.f32 %v5468, %v5377
        %v5470 = vadd.f32 %v5469, %v5379
        %v5471 = vadd.f32 %v5470, %v5381
        %v5472 = vadd.f32 %v5471, %v5383
        %v5473 = vadd.f32 %v5472, %v5385
        %v5474 = vadd.f32 %v5473, %v5387
        %v5475 = vadd.f32 %v5474, %v5389
        %v5476 = vadd.f32 %v5475, %v5391
        %v5477 = vadd.f32 %v5476, %v5393
        %v5478 = vadd.f32 %v5477, %v5395
        %v5479 = vadd.f32 %v5478, %v5397
        %v5480 = vadd.f32 %v5479, %v5399
        %v5481 = vadd.f32 %v5480, %v5401
        %v5482 = vadd.f32 %v5481, %v5403
        %v5483 = vadd.f32 %v5482, %v5405
        %v5484 = vadd.f32 %v5483, %v5407
        %v5485 = vadd.f32 %v5484, %v5409
        %v5486 = vadd.f32 %v5485, %v5411
        %v5487 = vadd.f32 %v5486, %v5413
        %v5488 = vadd.f32 %v5487, %v5415
        %v5489 = vadd.f32 %v5488, %v5417
        %v5490 = vadd.f32 %v5489, %v5419
        %v5491 = vadd.f32 %v5490, %v5421
        %v5492 = vadd.f32 %v5491, %v5423
        %v5493 = vadd.f32 %v5492, %v5425
        %v5494 = vrot.slane %v5493, 4
        %v5495 = vadd.f32 %v5493, %v5494
        %v5496 = vrot.slane %v5495, 2
        %v5497 = vadd.f32 %v5495, %v5496
        %v5498 = vrot.slane %v5497, 1
        %v5499 = vadd.f32 %v5497, %v5498
        %v5500 = vmul.f32 %v5362, %v5362
        %v5501 = vmul.f32 %v5363, %v5363
        %v5502 = vmul.f32 %v5364, %v5364
        %v5503 = vmul.f32 %v5365, %v5365
        %v5504 = vmul.f32 %v5366, %v5366
        %v5505 = vmul.f32 %v5367, %v5367
        %v5506 = vmul.f32 %v5368, %v5368
        %v5507 = vmul.f32 %v5369, %v5369
        %v5508 = vmul.f32 %v5370, %v5370
        %v5509 = vmul.f32 %v5371, %v5371
        %v5510 = vmul.f32 %v5372, %v5372
        %v5511 = vmul.f32 %v5373, %v5373
        %v5512 = vmul.f32 %v5374, %v5374
        %v5513 = vmul.f32 %v5375, %v5375
        %v5514 = vmul.f32 %v5376, %v5376
        %v5515 = vmul.f32 %v5377, %v5377
        %v5516 = vmul.f32 %v5378, %v5378
        %v5517 = vmul.f32 %v5379, %v5379
        %v5518 = vmul.f32 %v5380, %v5380
        %v5519 = vmul.f32 %v5381, %v5381
        %v5520 = vmul.f32 %v5382, %v5382
        %v5521 = vmul.f32 %v5383, %v5383
        %v5522 = vmul.f32 %v5384, %v5384
        %v5523 = vmul.f32 %v5385, %v5385
        %v5524 = vmul.f32 %v5386, %v5386
        %v5525 = vmul.f32 %v5387, %v5387
        %v5526 = vmul.f32 %v5388, %v5388
        %v5527 = vmul.f32 %v5389, %v5389
        %v5528 = vmul.f32 %v5390, %v5390
        %v5529 = vmul.f32 %v5391, %v5391
        %v5530 = vmul.f32 %v5392, %v5392
        %v5531 = vmul.f32 %v5393, %v5393
        %v5532 = vmul.f32 %v5394, %v5394
        %v5533 = vmul.f32 %v5395, %v5395
        %v5534 = vmul.f32 %v5396, %v5396
        %v5535 = vmul.f32 %v5397, %v5397
        %v5536 = vmul.f32 %v5398, %v5398
        %v5537 = vmul.f32 %v5399, %v5399
        %v5538 = vmul.f32 %v5400, %v5400
        %v5539 = vmul.f32 %v5401, %v5401
        %v5540 = vmul.f32 %v5402, %v5402
        %v5541 = vmul.f32 %v5403, %v5403
        %v5542 = vmul.f32 %v5404, %v5404
        %v5543 = vmul.f32 %v5405, %v5405
        %v5544 = vmul.f32 %v5406, %v5406
        %v5545 = vmul.f32 %v5407, %v5407
        %v5546 = vmul.f32 %v5408, %v5408
        %v5547 = vmul.f32 %v5409, %v5409
        %v5548 = vmul.f32 %v5410, %v5410
        %v5549 = vmul.f32 %v5411, %v5411
        %v5550 = vmul.f32 %v5412, %v5412
        %v5551 = vmul.f32 %v5413, %v5413
        %v5552 = vmul.f32 %v5414, %v5414
        %v5553 = vmul.f32 %v5415, %v5415
        %v5554 = vmul.f32 %v5416, %v5416
        %v5555 = vmul.f32 %v5417, %v5417
        %v5556 = vmul.f32 %v5418, %v5418
        %v5557 = vmul.f32 %v5419, %v5419
        %v5558 = vmul.f32 %v5420, %v5420
        %v5559 = vmul.f32 %v5421, %v5421
        %v5560 = vmul.f32 %v5422, %v5422
        %v5561 = vmul.f32 %v5423, %v5423
        %v5562 = vmul.f32 %v5424, %v5424
        %v5563 = vmul.f32 %v5425, %v5425
        %v5564 = vadd.f32 %v5500, %v5502
        %v5565 = vadd.f32 %v5564, %v5504
        %v5566 = vadd.f32 %v5565, %v5506
        %v5567 = vadd.f32 %v5566, %v5508
        %v5568 = vadd.f32 %v5567, %v5510
        %v5569 = vadd.f32 %v5568, %v5512
        %v5570 = vadd.f32 %v5569, %v5514
        %v5571 = vadd.f32 %v5570, %v5516
        %v5572 = vadd.f32 %v5571, %v5518
        %v5573 = vadd.f32 %v5572, %v5520
        %v5574 = vadd.f32 %v5573, %v5522
        %v5575 = vadd.f32 %v5574, %v5524
        %v5576 = vadd.f32 %v5575, %v5526
        %v5577 = vadd.f32 %v5576, %v5528
        %v5578 = vadd.f32 %v5577, %v5530
        %v5579 = vadd.f32 %v5578, %v5532
        %v5580 = vadd.f32 %v5579, %v5534
        %v5581 = vadd.f32 %v5580, %v5536
        %v5582 = vadd.f32 %v5581, %v5538
        %v5583 = vadd.f32 %v5582, %v5540
        %v5584 = vadd.f32 %v5583, %v5542
        %v5585 = vadd.f32 %v5584, %v5544
        %v5586 = vadd.f32 %v5585, %v5546
        %v5587 = vadd.f32 %v5586, %v5548
        %v5588 = vadd.f32 %v5587, %v5550
        %v5589 = vadd.f32 %v5588, %v5552
        %v5590 = vadd.f32 %v5589, %v5554
        %v5591 = vadd.f32 %v5590, %v5556
        %v5592 = vadd.f32 %v5591, %v5558
        %v5593 = vadd.f32 %v5592, %v5560
        %v5594 = vadd.f32 %v5593, %v5562
        %v5595 = vrot.slane %v5594, 4
        %v5596 = vadd.f32 %v5594, %v5595
        %v5597 = vrot.slane %v5596, 2
        %v5598 = vadd.f32 %v5596, %v5597
        %v5599 = vrot.slane %v5598, 1
        %v5600 = vadd.f32 %v5598, %v5599
        %v5601 = vadd.f32 %v5501, %v5503
        %v5602 = vadd.f32 %v5601, %v5505
        %v5603 = vadd.f32 %v5602, %v5507
        %v5604 = vadd.f32 %v5603, %v5509
        %v5605 = vadd.f32 %v5604, %v5511
        %v5606 = vadd.f32 %v5605, %v5513
        %v5607 = vadd.f32 %v5606, %v5515
        %v5608 = vadd.f32 %v5607, %v5517
        %v5609 = vadd.f32 %v5608, %v5519
        %v5610 = vadd.f32 %v5609, %v5521
        %v5611 = vadd.f32 %v5610, %v5523
        %v5612 = vadd.f32 %v5611, %v5525
        %v5613 = vadd.f32 %v5612, %v5527
        %v5614 = vadd.f32 %v5613, %v5529
        %v5615 = vadd.f32 %v5614, %v5531
        %v5616 = vadd.f32 %v5615, %v5533
        %v5617 = vadd.f32 %v5616, %v5535
        %v5618 = vadd.f32 %v5617, %v5537
        %v5619 = vadd.f32 %v5618, %v5539
        %v5620 = vadd.f32 %v5619, %v5541
        %v5621 = vadd.f32 %v5620, %v5543
        %v5622 = vadd.f32 %v5621, %v5545
        %v5623 = vadd.f32 %v5622, %v5547
        %v5624 = vadd.f32 %v5623, %v5549
        %v5625 = vadd.f32 %v5624, %v5551
        %v5626 = vadd.f32 %v5625, %v5553
        %v5627 = vadd.f32 %v5626, %v5555
        %v5628 = vadd.f32 %v5627, %v5557
        %v5629 = vadd.f32 %v5628, %v5559
        %v5630 = vadd.f32 %v5629, %v5561
        %v5631 = vadd.f32 %v5630, %v5563
        %v5632 = vrot.slane %v5631, 4
        %v5633 = vadd.f32 %v5631, %v5632
        %v5634 = vrot.slane %v5633, 2
        %v5635 = vadd.f32 %v5633, %v5634
        %v5636 = vrot.slane %v5635, 1
        %v5637 = vadd.f32 %v5635, %v5636
        %v5638 = vsel %vm1985, %v5462, %v5600
        %v5639 = vsel %vm1985, %v5499, %v5637
        %v5640 = vld [vmem:[%s4] sm:$0xff]
        %v5641 = vld [vmem:[%s4 + $0x8] sm:$0xff]
        %v5642 = vld [vmem:[%s4 + $0x10] sm:$0xff]
        %v5643 = vld [vmem:[%s4 + $0x18] sm:$0xff]
        %v5644 = vld [vmem:[%s4 + $0x20] sm:$0xff]
        %v5645 = vld [vmem:[%s4 + $0x28] sm:$0xff]
        %v5646 = vld [vmem:[%s4 + $0x30] sm:$0xff]
        %v5647 = vld [vmem:[%s4 + $0x38] sm:$0xff]
        %v5648 = vld [vmem:[%s4 + $0x40] sm:$0xff]
        %v5649 = vld [vmem:[%s4 + $0x48] sm:$0xff]
        %v5650 = vld [vmem:[%s4 + $0x50] sm:$0xff]
        %v5651 = vld [vmem:[%s4 + $0x58] sm:$0xff]
        %v5652 = vld [vmem:[%s4 + $0x60] sm:$0xff]
        %v5653 = vld [vmem:[%s4 + $0x68] sm:$0xff]
        %v5654 = vld [vmem:[%s4 + $0x70] sm:$0xff]
        %v5655 = vld [vmem:[%s4 + $0x78] sm:$0xff]
        %v5656 = vld [vmem:[%s4 + $0x80] sm:$0xff]
        %v5657 = vld [vmem:[%s4 + $0x88] sm:$0xff]
        %v5658 = vld [vmem:[%s4 + $0x90] sm:$0xff]
        %v5659 = vld [vmem:[%s4 + $0x98] sm:$0xff]
        %v5660 = vld [vmem:[%s4 + $0xa0] sm:$0xff]
        %v5661 = vld [vmem:[%s4 + $0xa8] sm:$0xff]
        %v5662 = vld [vmem:[%s4 + $0xb0] sm:$0xff]
        %v5663 = vld [vmem:[%s4 + $0xb8] sm:$0xff]
        %v5664 = vld [vmem:[%s4 + $0xc0] sm:$0xff]
        %v5665 = vld [vmem:[%s4 + $0xc8] sm:$0xff]
        %v5666 = vld [vmem:[%s4 + $0xd0] sm:$0xff]
        %v5667 = vld [vmem:[%s4 + $0xd8] sm:$0xff]
        %v5668 = vld [vmem:[%s4 + $0xe0] sm:$0xff]
        %v5669 = vld [vmem:[%s4 + $0xe8] sm:$0xff]
        %v5670 = vld [vmem:[%s4 + $0xf0] sm:$0xff]
        %v5671 = vld [vmem:[%s4 + $0xf8] sm:$0xff]
        %v5672 = vld [vmem:[%s4 + $0x100] sm:$0xff]
        %v5673 = vld [vmem:[%s4 + $0x108] sm:$0xff]
        %v5674 = vld [vmem:[%s4 + $0x110] sm:$0xff]
        %v5675 = vld [vmem:[%s4 + $0x118] sm:$0xff]
        %v5676 = vld [vmem:[%s4 + $0x120] sm:$0xff]
        %v5677 = vld [vmem:[%s4 + $0x128] sm:$0xff]
        %v5678 = vld [vmem:[%s4 + $0x130] sm:$0xff]
        %v5679 = vld [vmem:[%s4 + $0x138] sm:$0xff]
        %v5680 = vld [vmem:[%s4 + $0x140] sm:$0xff]
        %v5681 = vld [vmem:[%s4 + $0x148] sm:$0xff]
        %v5682 = vld [vmem:[%s4 + $0x150] sm:$0xff]
        %v5683 = vld [vmem:[%s4 + $0x158] sm:$0xff]
        %v5684 = vld [vmem:[%s4 + $0x160] sm:$0xff]
        %v5685 = vld [vmem:[%s4 + $0x168] sm:$0xff]
        %v5686 = vld [vmem:[%s4 + $0x170] sm:$0xff]
        %v5687 = vld [vmem:[%s4 + $0x178] sm:$0xff]
        %v5688 = vld [vmem:[%s4 + $0x180] sm:$0xff]
        %v5689 = vld [vmem:[%s4 + $0x188] sm:$0xff]
        %v5690 = vld [vmem:[%s4 + $0x190] sm:$0xff]
        %v5691 = vld [vmem:[%s4 + $0x198] sm:$0xff]
        %v5692 = vld [vmem:[%s4 + $0x1a0] sm:$0xff]
        %v5693 = vld [vmem:[%s4 + $0x1a8] sm:$0xff]
        %v5694 = vld [vmem:[%s4 + $0x1b0] sm:$0xff]
        %v5695 = vld [vmem:[%s4 + $0x1b8] sm:$0xff]
        %v5696 = vld [vmem:[%s4 + $0x1c0] sm:$0xff]
        %v5697 = vld [vmem:[%s4 + $0x1c8] sm:$0xff]
        %v5698 = vld [vmem:[%s4 + $0x1d0] sm:$0xff]
        %v5699 = vld [vmem:[%s4 + $0x1d8] sm:$0xff]
        %v5700 = vld [vmem:[%s4 + $0x1e0] sm:$0xff]
        %v5701 = vld [vmem:[%s4 + $0x1e8] sm:$0xff]
        %v5702 = vld [vmem:[%s4 + $0x1f0] sm:$0xff]
        %v5703 = vld [vmem:[%s4 + $0x1f8] sm:$0xff]
        %5704 = vmatprep.subr.mxu0 %v5641
        %5705 = vmatpush1.msra.mxu0 %v5640
        %5706 = vmatprep.subr.mxu0 %v5643
        %5707 = vmatpush1.msra.mxu0 %v5642
        %5708 = vmatprep.subr.mxu0 %v5645
        %5709 = vmatpush1.msra.mxu0 %v5644
        %5710 = vmatprep.subr.mxu0 %v5647
        %5711 = vmatpush1.msra.mxu0 %v5646
        %5712 = vmatprep.subr.mxu0 %v5649
        %5713 = vmatpush1.msra.mxu0 %v5648
        %5714 = vmatprep.subr.mxu0 %v5651
        %5715 = vmatpush1.msra.mxu0 %v5650
        %5716 = vmatprep.subr.mxu0 %v5653
        %5717 = vmatpush1.msra.mxu0 %v5652
        %5718 = vmatprep.subr.mxu0 %v5655
        %5719 = vmatpush1.msra.mxu0 %v5654
        %5720 = vmatprep.subr.mxu0 %v5657
        %5721 = vmatpush1.msra.mxu0 %v5656
        %5722 = vmatprep.subr.mxu0 %v5659
        %5723 = vmatpush1.msra.mxu0 %v5658
        %5724 = vmatprep.subr.mxu0 %v5661
        %5725 = vmatpush1.msra.mxu0 %v5660
        %5726 = vmatprep.subr.mxu0 %v5663
        %5727 = vmatpush1.msra.mxu0 %v5662
        %5728 = vmatprep.subr.mxu0 %v5665
        %5729 = vmatpush1.msra.mxu0 %v5664
        %5730 = vmatprep.subr.mxu0 %v5667
        %5731 = vmatpush1.msra.mxu0 %v5666
        %5732 = vmatprep.subr.mxu0 %v5669
        %5733 = vmatpush1.msra.mxu0 %v5668
        %5734 = vmatprep.subr.mxu0 %v5671
        %5735 = vmatpush1.msra.mxu0 %v5670
        %5736 = vmatprep.subr.mxu0 %v5673
        %5737 = vmatpush1.msra.mxu0 %v5672
        %5738 = vmatprep.subr.mxu0 %v5675
        %5739 = vmatpush1.msra.mxu0 %v5674
        %5740 = vmatprep.subr.mxu0 %v5677
        %5741 = vmatpush1.msra.mxu0 %v5676
        %5742 = vmatprep.subr.mxu0 %v5679
        %5743 = vmatpush1.msra.mxu0 %v5678
        %5744 = vmatprep.subr.mxu0 %v5681
        %5745 = vmatpush1.msra.mxu0 %v5680
        %5746 = vmatprep.subr.mxu0 %v5683
        %5747 = vmatpush1.msra.mxu0 %v5682
        %5748 = vmatprep.subr.mxu0 %v5685
        %5749 = vmatpush1.msra.mxu0 %v5684
        %5750 = vmatprep.subr.mxu0 %v5687
        %5751 = vmatpush1.msra.mxu0 %v5686
        %5752 = vmatprep.subr.mxu0 %v5689
        %5753 = vmatpush1.msra.mxu0 %v5688
        %5754 = vmatprep.subr.mxu0 %v5691
        %5755 = vmatpush1.msra.mxu0 %v5690
        %5756 = vmatprep.subr.mxu0 %v5693
        %5757 = vmatpush1.msra.mxu0 %v5692
        %5758 = vmatprep.subr.mxu0 %v5695
        %5759 = vmatpush1.msra.mxu0 %v5694
        %5760 = vmatprep.subr.mxu0 %v5697
        %5761 = vmatpush1.msra.mxu0 %v5696
        %5762 = vmatprep.subr.mxu0 %v5699
        %5763 = vmatpush1.msra.mxu0 %v5698
        %5764 = vmatprep.subr.mxu0 %v5701
        %5765 = vmatpush1.msra.mxu0 %v5700
        %5766 = vmatprep.subr.mxu0 %v5703
        %5767 = vmatpush1.msra.mxu0 %v5702
        %5768 = vmatprep.mubr.f32.mxu0 %v5639
        %5769 = vmatmul.mubr.f32.gmra.mrb[0].mxu0 %v5638
        %v5770 = vpop.f32.mrb[0].mxu0
        %v5771 = vadd.f32 0.0, %v5770
        %v5772 = vpop.f32.mrb[0].mxu0
        %v5773 = vadd.f32 0.0, %v5772
        %5774 = vdwg.mxu0
        %v5775 = vmul.f32 %v5771, %v5771
        %v5776 = vmul.f32 %v5773, %v5773
        %v5779 = vrot.slane %v5775, 7
        %v5780 = vrot.slane %v5776, 7
        %v5783 = vsub.f32 %v5771, %v5779
        %v5784 = vsub.f32 %v5773, %v5780
        %v5785 = vmax.f32 %v5783, 0.0
        %v5786 = vmax.f32 %v5784, 0.0
        %v5787 = vadd.f32 %v5785, 1e-05
        %v5788 = vadd.f32 %v5786, 1e-05
        %v5789 = vrsqrt.pop %v5787
        %v5790 = vrsqrt.pop %v5788
        %v5791 = vld [vmem:[#allocation7] sm:$0xff]
        %v5792 = vld [vmem:[#allocation7 + $0x10] sm:$0xff]
        %v5793 = vld [vmem:[#allocation7 + $0x20] sm:$0xff]
        %v5794 = vld [vmem:[#allocation7 + $0x30] sm:$0xff]
        %v5795 = vld [vmem:[#allocation7 + $0x40] sm:$0xff]
        %v5796 = vld [vmem:[#allocation7 + $0x50] sm:$0xff]
        %v5797 = vld [vmem:[#allocation7 + $0x60] sm:$0xff]
        %v5798 = vld [vmem:[#allocation7 + $0x70] sm:$0xff]
        %v5799 = vld [vmem:[#allocation7 + $0x80] sm:$0xff]
        %v5800 = vld [vmem:[#allocation7 + $0x90] sm:$0xff]
        %v5801 = vld [vmem:[#allocation7 + $0xa0] sm:$0xff]
        %v5802 = vld [vmem:[#allocation7 + $0xb0] sm:$0xff]
        %v5803 = vld [vmem:[#allocation7 + $0xc0] sm:$0xff]
        %v5804 = vld [vmem:[#allocation7 + $0xd0] sm:$0xff]
        %v5805 = vld [vmem:[#allocation7 + $0xe0] sm:$0xff]
        %v5806 = vld [vmem:[#allocation7 + $0xf0] sm:$0xff]
        %v5807 = vld [vmem:[#allocation7 + $0x100] sm:$0xff]
        %v5808 = vld [vmem:[#allocation7 + $0x110] sm:$0xff]
        %v5809 = vld [vmem:[#allocation7 + $0x120] sm:$0xff]
        %v5810 = vld [vmem:[#allocation7 + $0x130] sm:$0xff]
        %v5811 = vld [vmem:[#allocation7 + $0x140] sm:$0xff]
        %v5812 = vld [vmem:[#allocation7 + $0x150] sm:$0xff]
        %v5813 = vld [vmem:[#allocation7 + $0x160] sm:$0xff]
        %v5814 = vld [vmem:[#allocation7 + $0x170] sm:$0xff]
        %v5815 = vld [vmem:[#allocation7 + $0x180] sm:$0xff]
        %v5816 = vld [vmem:[#allocation7 + $0x190] sm:$0xff]
        %v5817 = vld [vmem:[#allocation7 + $0x1a0] sm:$0xff]
        %v5818 = vld [vmem:[#allocation7 + $0x1b0] sm:$0xff]
        %v5819 = vld [vmem:[#allocation7 + $0x1c0] sm:$0xff]
        %v5820 = vld [vmem:[#allocation7 + $0x1d0] sm:$0xff]
        %v5821 = vld [vmem:[#allocation7 + $0x1e0] sm:$0xff]
        %v5822 = vld [vmem:[#allocation7 + $0x1f0] sm:$0xff]
        %v5823 = vlaneseq
        %v5824 = vshrl.u32 %v5823, 7
        %v5825 = vsub.s32 0, %v5824
        %v5826 = vrot.slane %v5771, %v5825
        %v5827 = vsub.f32 %v5791, %v5826
        %v5828 = vsub.f32 %v5792, %v5826
        %v5829 = vsub.f32 %v5793, %v5826
        %v5830 = vsub.f32 %v5794, %v5826
        %v5831 = vsub.f32 %v5795, %v5826
        %v5832 = vsub.f32 %v5796, %v5826
        %v5833 = vsub.f32 %v5797, %v5826
        %v5834 = vsub.f32 %v5798, %v5826
        %v5835 = vsub.f32 %v5799, %v5826
        %v5836 = vsub.f32 %v5800, %v5826
        %v5837 = vsub.f32 %v5801, %v5826
        %v5838 = vsub.f32 %v5802, %v5826
        %v5839 = vsub.f32 %v5803, %v5826
        %v5840 = vsub.f32 %v5804, %v5826
        %v5841 = vsub.f32 %v5805, %v5826
        %v5842 = vsub.f32 %v5806, %v5826
        %v5843 = vsub.f32 %v5807, %v5826
        %v5844 = vsub.f32 %v5808, %v5826
        %v5845 = vsub.f32 %v5809, %v5826
        %v5846 = vsub.f32 %v5810, %v5826
        %v5847 = vsub.f32 %v5811, %v5826
        %v5848 = vsub.f32 %v5812, %v5826
        %v5849 = vsub.f32 %v5813, %v5826
        %v5850 = vsub.f32 %v5814, %v5826
        %v5851 = vsub.f32 %v5815, %v5826
        %v5852 = vsub.f32 %v5816, %v5826
        %v5853 = vsub.f32 %v5817, %v5826
        %v5854 = vsub.f32 %v5818, %v5826
        %v5855 = vsub.f32 %v5819, %v5826
        %v5856 = vsub.f32 %v5820, %v5826
        %v5857 = vsub.f32 %v5821, %v5826
        %v5858 = vsub.f32 %v5822, %v5826
        %v5859 = vlaneseq
        %v5860 = vshrl.u32 %v5859, 7
        %v5861 = vsub.s32 1, %v5860
        %v5862 = vrot.slane %v5789, %v5861
        %v5863 = vmul.f32 %v5827, %v5862
        %v5864 = vmul.f32 %v5828, %v5862
        %v5865 = vmul.f32 %v5829, %v5862
        %v5866 = vmul.f32 %v5830, %v5862
        %v5867 = vmul.f32 %v5831, %v5862
        %v5868 = vmul.f32 %v5832, %v5862
        %v5869 = vmul.f32 %v5833, %v5862
        %v5870 = vmul.f32 %v5834, %v5862
        %v5871 = vmul.f32 %v5835, %v5862
        %v5872 = vmul.f32 %v5836, %v5862
        %v5873 = vmul.f32 %v5837, %v5862
        %v5874 = vmul.f32 %v5838, %v5862
        %v5875 = vmul.f32 %v5839, %v5862
        %v5876 = vmul.f32 %v5840, %v5862
        %v5877 = vmul.f32 %v5841, %v5862
        %v5878 = vmul.f32 %v5842, %v5862
        %v5879 = vmul.f32 %v5843, %v5862
        %v5880 = vmul.f32 %v5844, %v5862
        %v5881 = vmul.f32 %v5845, %v5862
        %v5882 = vmul.f32 %v5846, %v5862
        %v5883 = vmul.f32 %v5847, %v5862
        %v5884 = vmul.f32 %v5848, %v5862
        %v5885 = vmul.f32 %v5849, %v5862
        %v5886 = vmul.f32 %v5850, %v5862
        %v5887 = vmul.f32 %v5851, %v5862
        %v5888 = vmul.f32 %v5852, %v5862
        %v5889 = vmul.f32 %v5853, %v5862
        %v5890 = vmul.f32 %v5854, %v5862
        %v5891 = vmul.f32 %v5855, %v5862
        %v5892 = vmul.f32 %v5856, %v5862
        %v5893 = vmul.f32 %v5857, %v5862
        %v5894 = vmul.f32 %v5858, %v5862
        %v5895 = vld [vmem:[%s6 + $0x16] ss:$0 sm:$0xff]
        %v5896 = vmul.f32 %v5863, %v5895
        %v5897 = vmul.f32 %v5864, %v5895
        %v5898 = vmul.f32 %v5865, %v5895
        %v5899 = vmul.f32 %v5866, %v5895
        %v5900 = vmul.f32 %v5867, %v5895
        %v5901 = vmul.f32 %v5868, %v5895
        %v5902 = vmul.f32 %v5869, %v5895
        %v5903 = vmul.f32 %v5870, %v5895
        %v5904 = vmul.f32 %v5871, %v5895
        %v5905 = vmul.f32 %v5872, %v5895
        %v5906 = vmul.f32 %v5873, %v5895
        %v5907 = vmul.f32 %v5874, %v5895
        %v5908 = vmul.f32 %v5875, %v5895
        %v5909 = vmul.f32 %v5876, %v5895
        %v5910 = vmul.f32 %v5877, %v5895
        %v5911 = vmul.f32 %v5878, %v5895
        %v5912 = vmul.f32 %v5879, %v5895
        %v5913 = vmul.f32 %v5880, %v5895
        %v5914 = vmul.f32 %v5881, %v5895
        %v5915 = vmul.f32 %v5882, %v5895
        %v5916 = vmul.f32 %v5883, %v5895
        %v5917 = vmul.f32 %v5884, %v5895
        %v5918 = vmul.f32 %v5885, %v5895
        %v5919 = vmul.f32 %v5886, %v5895
        %v5920 = vmul.f32 %v5887, %v5895
        %v5921 = vmul.f32 %v5888, %v5895
        %v5922 = vmul.f32 %v5889, %v5895
        %v5923 = vmul.f32 %v5890, %v5895
        %v5924 = vmul.f32 %v5891, %v5895
        %v5925 = vmul.f32 %v5892, %v5895
        %v5926 = vmul.f32 %v5893, %v5895
        %v5927 = vmul.f32 %v5894, %v5895
        %v5928 = vld [vmem:[%s6 + $0x17] ss:$0 sm:$0xff]
        %v5929 = vadd.f32 %v5896, %v5928
        %v5930 = vadd.f32 %v5897, %v5928
        %v5931 = vadd.f32 %v5898, %v5928
        %v5932 = vadd.f32 %v5899, %v5928
        %v5933 = vadd.f32 %v5900, %v5928
        %v5934 = vadd.f32 %v5901, %v5928
        %v5935 = vadd.f32 %v5902, %v5928
        %v5936 = vadd.f32 %v5903, %v5928
        %v5937 = vadd.f32 %v5904, %v5928
        %v5938 = vadd.f32 %v5905, %v5928
        %v5939 = vadd.f32 %v5906, %v5928
        %v5940 = vadd.f32 %v5907, %v5928
        %v5941 = vadd.f32 %v5908, %v5928
        %v5942 = vadd.f32 %v5909, %v5928
        %v5943 = vadd.f32 %v5910, %v5928
        %v5944 = vadd.f32 %v5911, %v5928
        %v5945 = vadd.f32 %v5912, %v5928
        %v5946 = vadd.f32 %v5913, %v5928
        %v5947 = vadd.f32 %v5914, %v5928
        %v5948 = vadd.f32 %v5915, %v5928
        %v5949 = vadd.f32 %v5916, %v5928
        %v5950 = vadd.f32 %v5917, %v5928
        %v5951 = vadd.f32 %v5918, %v5928
        %v5952 = vadd.f32 %v5919, %v5928
        %v5953 = vadd.f32 %v5920, %v5928
        %v5954 = vadd.f32 %v5921, %v5928
        %v5955 = vadd.f32 %v5922, %v5928
        %v5956 = vadd.f32 %v5923, %v5928
        %v5957 = vadd.f32 %v5924, %v5928
        %v5958 = vadd.f32 %v5925, %v5928
        %v5959 = vadd.f32 %v5926, %v5928
        %v5960 = vadd.f32 %v5927, %v5928
        %v5961 = vmax.f32 %v5929, 0.0
        %v5962 = vmax.f32 %v5930, 0.0
        %v5963 = vmax.f32 %v5931, 0.0
        %v5964 = vmax.f32 %v5932, 0.0
        %v5965 = vmax.f32 %v5933, 0.0
        %v5966 = vmax.f32 %v5934, 0.0
        %v5967 = vmax.f32 %v5935, 0.0
        %v5968 = vmax.f32 %v5936, 0.0
        %v5969 = vmax.f32 %v5937, 0.0
        %v5970 = vmax.f32 %v5938, 0.0
        %v5971 = vmax.f32 %v5939, 0.0
        %v5972 = vmax.f32 %v5940, 0.0
        %v5973 = vmax.f32 %v5941, 0.0
        %v5974 = vmax.f32 %v5942, 0.0
        %v5975 = vmax.f32 %v5943, 0.0
        %v5976 = vmax.f32 %v5944, 0.0
        %v5977 = vmax.f32 %v5945, 0.0
        %v5978 = vmax.f32 %v5946, 0.0
        %v5979 = vmax.f32 %v5947, 0.0
        %v5980 = vmax.f32 %v5948, 0.0
        %v5981 = vmax.f32 %v5949, 0.0
        %v5982 = vmax.f32 %v5950, 0.0
        %v5983 = vmax.f32 %v5951, 0.0
        %v5984 = vmax.f32 %v5952, 0.0
        %v5985 = vmax.f32 %v5953, 0.0
        %v5986 = vmax.f32 %v5954, 0.0
        %v5987 = vmax.f32 %v5955, 0.0
        %v5988 = vmax.f32 %v5956, 0.0
        %v5989 = vmax.f32 %v5957, 0.0
        %v5990 = vmax.f32 %v5958, 0.0
        %v5991 = vmax.f32 %v5959, 0.0
        %v5992 = vmax.f32 %v5960, 0.0
        %v5993 = vld [vmem:[#allocation2] sm:$0xff]
        %v5994 = vld [vmem:[#allocation2 + $0x10] sm:$0xff]
        %v5995 = vld [vmem:[#allocation2 + $0x20] sm:$0xff]
        %v5996 = vld [vmem:[#allocation2 + $0x30] sm:$0xff]
        %v5997 = vld [vmem:[#allocation2 + $0x40] sm:$0xff]
        %v5998 = vld [vmem:[#allocation2 + $0x50] sm:$0xff]
        %v5999 = vld [vmem:[#allocation2 + $0x60] sm:$0xff]
        %v6000 = vld [vmem:[#allocation2 + $0x70] sm:$0xff]
        %v6001 = vld [vmem:[#allocation2 + $0x80] sm:$0xff]
        %v6002 = vld [vmem:[#allocation2 + $0x90] sm:$0xff]
        %v6003 = vld [vmem:[#allocation2 + $0xa0] sm:$0xff]
        %v6004 = vld [vmem:[#allocation2 + $0xb0] sm:$0xff]
        %v6005 = vld [vmem:[#allocation2 + $0xc0] sm:$0xff]
        %v6006 = vld [vmem:[#allocation2 + $0xd0] sm:$0xff]
        %v6007 = vld [vmem:[#allocation2 + $0xe0] sm:$0xff]
        %v6008 = vld [vmem:[#allocation2 + $0xf0] sm:$0xff]
        %v6009 = vld [vmem:[#allocation2 + $0x100] sm:$0xff]
        %v6010 = vld [vmem:[#allocation2 + $0x110] sm:$0xff]
        %v6011 = vld [vmem:[#allocation2 + $0x120] sm:$0xff]
        %v6012 = vld [vmem:[#allocation2 + $0x130] sm:$0xff]
        %v6013 = vld [vmem:[#allocation2 + $0x140] sm:$0xff]
        %v6014 = vld [vmem:[#allocation2 + $0x150] sm:$0xff]
        %v6015 = vld [vmem:[#allocation2 + $0x160] sm:$0xff]
        %v6016 = vld [vmem:[#allocation2 + $0x170] sm:$0xff]
        %v6017 = vld [vmem:[#allocation2 + $0x180] sm:$0xff]
        %v6018 = vld [vmem:[#allocation2 + $0x190] sm:$0xff]
        %v6019 = vld [vmem:[#allocation2 + $0x1a0] sm:$0xff]
        %v6020 = vld [vmem:[#allocation2 + $0x1b0] sm:$0xff]
        %v6021 = vld [vmem:[#allocation2 + $0x1c0] sm:$0xff]
        %v6022 = vld [vmem:[#allocation2 + $0x1d0] sm:$0xff]
        %v6023 = vld [vmem:[#allocation2 + $0x1e0] sm:$0xff]
        %v6024 = vld [vmem:[#allocation2 + $0x1f0] sm:$0xff]
        %v6025 = vxor.u32 %v5961, 2147483648
        %v6026 = vxor.u32 %v5962, 2147483648
        %v6027 = vxor.u32 %v5963, 2147483648
        %v6028 = vxor.u32 %v5964, 2147483648
        %v6029 = vxor.u32 %v5965, 2147483648
        %v6030 = vxor.u32 %v5966, 2147483648
        %v6031 = vxor.u32 %v5967, 2147483648
        %v6032 = vxor.u32 %v5968, 2147483648
        %v6033 = vxor.u32 %v5969, 2147483648
        %v6034 = vxor.u32 %v5970, 2147483648
        %v6035 = vxor.u32 %v5971, 2147483648
        %v6036 = vxor.u32 %v5972, 2147483648
        %v6037 = vxor.u32 %v5973, 2147483648
        %v6038 = vxor.u32 %v5974, 2147483648
        %v6039 = vxor.u32 %v5975, 2147483648
        %v6040 = vxor.u32 %v5976, 2147483648
        %v6041 = vxor.u32 %v5977, 2147483648
        %v6042 = vxor.u32 %v5978, 2147483648
        %v6043 = vxor.u32 %v5979, 2147483648
        %v6044 = vxor.u32 %v5980, 2147483648
        %v6045 = vxor.u32 %v5981, 2147483648
        %v6046 = vxor.u32 %v5982, 2147483648
        %v6047 = vxor.u32 %v5983, 2147483648
        %v6048 = vxor.u32 %v5984, 2147483648
        %v6049 = vxor.u32 %v5985, 2147483648
        %v6050 = vxor.u32 %v5986, 2147483648
        %v6051 = vxor.u32 %v5987, 2147483648
        %v6052 = vxor.u32 %v5988, 2147483648
        %v6053 = vxor.u32 %v5989, 2147483648
        %v6054 = vxor.u32 %v5990, 2147483648
        %v6055 = vxor.u32 %v5991, 2147483648
        %v6056 = vxor.u32 %v5992, 2147483648
        %v6057 = vmul.f32 %v6025, 1.442695
        %v6058 = vpow.pop %v6057
        %v6059 = vmul.f32 %v6026, 1.442695
        %v6060 = vpow.pop %v6059
        %v6061 = vmul.f32 %v6027, 1.442695
        %v6062 = vpow.pop %v6061
        %v6063 = vmul.f32 %v6028, 1.442695
        %v6064 = vpow.pop %v6063
        %v6065 = vmul.f32 %v6029, 1.442695
        %v6066 = vpow.pop %v6065
        %v6067 = vmul.f32 %v6030, 1.442695
        %v6068 = vpow.pop %v6067
        %v6069 = vmul.f32 %v6031, 1.442695
        %v6070 = vpow.pop %v6069
        %v6071 = vmul.f32 %v6032, 1.442695
        %v6072 = vpow.pop %v6071
        %v6073 = vmul.f32 %v6033, 1.442695
        %v6074 = vpow.pop %v6073
        %v6075 = vmul.f32 %v6034, 1.442695
        %v6076 = vpow.pop %v6075
        %v6077 = vmul.f32 %v6035, 1.442695
        %v6078 = vpow.pop %v6077
        %v6079 = vmul.f32 %v6036, 1.442695
        %v6080 = vpow.pop %v6079
        %v6081 = vmul.f32 %v6037, 1.442695
        %v6082 = vpow.pop %v6081
        %v6083 = vmul.f32 %v6038, 1.442695
        %v6084 = vpow.pop %v6083
        %v6085 = vmul.f32 %v6039, 1.442695
        %v6086 = vpow.pop %v6085
        %v6087 = vmul.f32 %v6040, 1.442695
        %v6088 = vpow.pop %v6087
        %v6089 = vmul.f32 %v6041, 1.442695
        %v6090 = vpow.pop %v6089
        %v6091 = vmul.f32 %v6042, 1.442695
        %v6092 = vpow.pop %v6091
        %v6093 = vmul.f32 %v6043, 1.442695
        %v6094 = vpow.pop %v6093
        %v6095 = vmul.f32 %v6044, 1.442695
        %v6096 = vpow.pop %v6095
        %v6097 = vmul.f32 %v6045, 1.442695
        %v6098 = vpow.pop %v6097
        %v6099 = vmul.f32 %v6046, 1.442695
        %v6100 = vpow.pop %v6099
        %v6101 = vmul.f32 %v6047, 1.442695
        %v6102 = vpow.pop %v6101
        %v6103 = vmul.f32 %v6048, 1.442695
        %v6104 = vpow.pop %v6103
        %v6105 = vmul.f32 %v6049, 1.442695
        %v6106 = vpow.pop %v6105
        %v6107 = vmul.f32 %v6050, 1.442695
        %v6108 = vpow.pop %v6107
        %v6109 = vmul.f32 %v6051, 1.442695
        %v6110 = vpow.pop %v6109
        %v6111 = vmul.f32 %v6052, 1.442695
        %v6112 = vpow.pop %v6111
        %v6113 = vmul.f32 %v6053, 1.442695
        %v6114 = vpow.pop %v6113
        %v6115 = vmul.f32 %v6054, 1.442695
        %v6116 = vpow.pop %v6115
        %v6117 = vmul.f32 %v6055, 1.442695
        %v6118 = vpow.pop %v6117
        %v6119 = vmul.f32 %v6056, 1.442695
        %v6120 = vpow.pop %v6119
        %v6121 = vadd.f32 %v6058, 1.0
        %v6122 = vadd.f32 %v6060, 1.0
        %v6123 = vadd.f32 %v6062, 1.0
        %v6124 = vadd.f32 %v6064, 1.0
        %v6125 = vadd.f32 %v6066, 1.0
        %v6126 = vadd.f32 %v6068, 1.0
        %v6127 = vadd.f32 %v6070, 1.0
        %v6128 = vadd.f32 %v6072, 1.0
        %v6129 = vadd.f32 %v6074, 1.0
        %v6130 = vadd.f32 %v6076, 1.0
        %v6131 = vadd.f32 %v6078, 1.0
        %v6132 = vadd.f32 %v6080, 1.0
        %v6133 = vadd.f32 %v6082, 1.0
        %v6134 = vadd.f32 %v6084, 1.0
        %v6135 = vadd.f32 %v6086, 1.0
        %v6136 = vadd.f32 %v6088, 1.0
        %v6137 = vadd.f32 %v6090, 1.0
        %v6138 = vadd.f32 %v6092, 1.0
        %v6139 = vadd.f32 %v6094, 1.0
        %v6140 = vadd.f32 %v6096, 1.0
        %v6141 = vadd.f32 %v6098, 1.0
        %v6142 = vadd.f32 %v6100, 1.0
        %v6143 = vadd.f32 %v6102, 1.0
        %v6144 = vadd.f32 %v6104, 1.0
        %v6145 = vadd.f32 %v6106, 1.0
        %v6146 = vadd.f32 %v6108, 1.0
        %v6147 = vadd.f32 %v6110, 1.0
        %v6148 = vadd.f32 %v6112, 1.0
        %v6149 = vadd.f32 %v6114, 1.0
        %v6150 = vadd.f32 %v6116, 1.0
        %v6151 = vadd.f32 %v6118, 1.0
        %v6152 = vadd.f32 %v6120, 1.0
        %v6153 = vrcp.pop %v6121
        %v6154 = vmul.f32 1.0, %v6153
        %v6155 = vrcp.pop %v6122
        %v6156 = vmul.f32 1.0, %v6155
        %v6157 = vrcp.pop %v6123
        %v6158 = vmul.f32 1.0, %v6157
        %v6159 = vrcp.pop %v6124
        %v6160 = vmul.f32 1.0, %v6159
        %v6161 = vrcp.pop %v6125
        %v6162 = vmul.f32 1.0, %v6161
        %v6163 = vrcp.pop %v6126
        %v6164 = vmul.f32 1.0, %v6163
        %v6165 = vrcp.pop %v6127
        %v6166 = vmul.f32 1.0, %v6165
        %v6167 = vrcp.pop %v6128
        %v6168 = vmul.f32 1.0, %v6167
        %v6169 = vrcp.pop %v6129
        %v6170 = vmul.f32 1.0, %v6169
        %v6171 = vrcp.pop %v6130
        %v6172 = vmul.f32 1.0, %v6171
        %v6173 = vrcp.pop %v6131
        %v6174 = vmul.f32 1.0, %v6173
        %v6175 = vrcp.pop %v6132
        %v6176 = vmul.f32 1.0, %v6175
        %v6177 = vrcp.pop %v6133
        %v6178 = vmul.f32 1.0, %v6177
        %v6179 = vrcp.pop %v6134
        %v6180 = vmul.f32 1.0, %v6179
        %v6181 = vrcp.pop %v6135
        %v6182 = vmul.f32 1.0, %v6181
        %v6183 = vrcp.pop %v6136
        %v6184 = vmul.f32 1.0, %v6183
        %v6185 = vrcp.pop %v6137
        %v6186 = vmul.f32 1.0, %v6185
        %v6187 = vrcp.pop %v6138
        %v6188 = vmul.f32 1.0, %v6187
        %v6189 = vrcp.pop %v6139
        %v6190 = vmul.f32 1.0, %v6189
        %v6191 = vrcp.pop %v6140
        %v6192 = vmul.f32 1.0, %v6191
        %v6193 = vrcp.pop %v6141
        %v6194 = vmul.f32 1.0, %v6193
        %v6195 = vrcp.pop %v6142
        %v6196 = vmul.f32 1.0, %v6195
        %v6197 = vrcp.pop %v6143
        %v6198 = vmul.f32 1.0, %v6197
        %v6199 = vrcp.pop %v6144
        %v6200 = vmul.f32 1.0, %v6199
        %v6201 = vrcp.pop %v6145
        %v6202 = vmul.f32 1.0, %v6201
        %v6203 = vrcp.pop %v6146
        %v6204 = vmul.f32 1.0, %v6203
        %v6205 = vrcp.pop %v6147
        %v6206 = vmul.f32 1.0, %v6205
        %v6207 = vrcp.pop %v6148
        %v6208 = vmul.f32 1.0, %v6207
        %v6209 = vrcp.pop %v6149
        %v6210 = vmul.f32 1.0, %v6209
        %v6211 = vrcp.pop %v6150
        %v6212 = vmul.f32 1.0, %v6211
        %v6213 = vrcp.pop %v6151
        %v6214 = vmul.f32 1.0, %v6213
        %v6215 = vrcp.pop %v6152
        %v6216 = vmul.f32 1.0, %v6215
        %v6217 = vmul.f32 %v5993, %v6154
        %v6218 = vmul.f32 %v5994, %v6156
        %v6219 = vmul.f32 %v5995, %v6158
        %v6220 = vmul.f32 %v5996, %v6160
        %v6221 = vmul.f32 %v5997, %v6162
        %v6222 = vmul.f32 %v5998, %v6164
        %v6223 = vmul.f32 %v5999, %v6166
        %v6224 = vmul.f32 %v6000, %v6168
        %v6225 = vmul.f32 %v6001, %v6170
        %v6226 = vmul.f32 %v6002, %v6172
        %v6227 = vmul.f32 %v6003, %v6174
        %v6228 = vmul.f32 %v6004, %v6176
        %v6229 = vmul.f32 %v6005, %v6178
        %v6230 = vmul.f32 %v6006, %v6180
        %v6231 = vmul.f32 %v6007, %v6182
        %v6232 = vmul.f32 %v6008, %v6184
        %v6233 = vmul.f32 %v6009, %v6186
        %v6234 = vmul.f32 %v6010, %v6188
        %v6235 = vmul.f32 %v6011, %v6190
        %v6236 = vmul.f32 %v6012, %v6192
        %v6237 = vmul.f32 %v6013, %v6194
        %v6238 = vmul.f32 %v6014, %v6196
        %v6239 = vmul.f32 %v6015, %v6198
        %v6240 = vmul.f32 %v6016, %v6200
        %v6241 = vmul.f32 %v6017, %v6202
        %v6242 = vmul.f32 %v6018, %v6204
        %v6243 = vmul.f32 %v6019, %v6206
        %v6244 = vmul.f32 %v6020, %v6208
        %v6245 = vmul.f32 %v6021, %v6210
        %v6246 = vmul.f32 %v6022, %v6212
        %v6247 = vmul.f32 %v6023, %v6214
        %v6248 = vmul.f32 %v6024, %v6216
        %v6249 = vlaneseq
        %v6250 = vshrl.u32 %v6249, 7
        %v6251 = vsub.s32 0, %v6250
        %v6252 = vrot.slane %v5773, %v6251
        %v6253 = vsub.f32 %v5363, %v6252
        %v6254 = vsub.f32 %v5365, %v6252
        %v6255 = vsub.f32 %v5367, %v6252
        %v6256 = vsub.f32 %v5369, %v6252
        %v6257 = vsub.f32 %v5371, %v6252
        %v6258 = vsub.f32 %v5373, %v6252
        %v6259 = vsub.f32 %v5375, %v6252
        %v6260 = vsub.f32 %v5377, %v6252
        %v6261 = vsub.f32 %v5379, %v6252
        %v6262 = vsub.f32 %v5381, %v6252
        %v6263 = vsub.f32 %v5383, %v6252
        %v6264 = vsub.f32 %v5385, %v6252
        %v6265 = vsub.f32 %v5387, %v6252
        %v6266 = vsub.f32 %v5389, %v6252
        %v6267 = vsub.f32 %v5391, %v6252
        %v6268 = vsub.f32 %v5393, %v6252
        %v6269 = vsub.f32 %v5395, %v6252
        %v6270 = vsub.f32 %v5397, %v6252
        %v6271 = vsub.f32 %v5399, %v6252
        %v6272 = vsub.f32 %v5401, %v6252
        %v6273 = vsub.f32 %v5403, %v6252
        %v6274 = vsub.f32 %v5405, %v6252
        %v6275 = vsub.f32 %v5407, %v6252
        %v6276 = vsub.f32 %v5409, %v6252
        %v6277 = vsub.f32 %v5411, %v6252
        %v6278 = vsub.f32 %v5413, %v6252
        %v6279 = vsub.f32 %v5415, %v6252
        %v6280 = vsub.f32 %v5417, %v6252
        %v6281 = vsub.f32 %v5419, %v6252
        %v6282 = vsub.f32 %v5421, %v6252
        %v6283 = vsub.f32 %v5423, %v6252
        %v6284 = vsub.f32 %v5425, %v6252
        %v6285 = vlaneseq
        %v6286 = vshrl.u32 %v6285, 7
        %v6287 = vsub.s32 1, %v6286
        %v6288 = vrot.slane %v5790, %v6287
        %v6289 = vmul.f32 %v6253, %v6288
        %v6290 = vmul.f32 %v6254, %v6288
        %v6291 = vmul.f32 %v6255, %v6288
        %v6292 = vmul.f32 %v6256, %v6288
        %v6293 = vmul.f32 %v6257, %v6288
        %v6294 = vmul.f32 %v6258, %v6288
        %v6295 = vmul.f32 %v6259, %v6288
        %v6296 = vmul.f32 %v6260, %v6288
        %v6297 = vmul.f32 %v6261, %v6288
        %v6298 = vmul.f32 %v6262, %v6288
        %v6299 = vmul.f32 %v6263, %v6288
        %v6300 = vmul.f32 %v6264, %v6288
        %v6301 = vmul.f32 %v6265, %v6288
        %v6302 = vmul.f32 %v6266, %v6288
        %v6303 = vmul.f32 %v6267, %v6288
        %v6304 = vmul.f32 %v6268, %v6288
        %v6305 = vmul.f32 %v6269, %v6288
        %v6306 = vmul.f32 %v6270, %v6288
        %v6307 = vmul.f32 %v6271, %v6288
        %v6308 = vmul.f32 %v6272, %v6288
        %v6309 = vmul.f32 %v6273, %v6288
        %v6310 = vmul.f32 %v6274, %v6288
        %v6311 = vmul.f32 %v6275, %v6288
        %v6312 = vmul.f32 %v6276, %v6288
        %v6313 = vmul.f32 %v6277, %v6288
        %v6314 = vmul.f32 %v6278, %v6288
        %v6315 = vmul.f32 %v6279, %v6288
        %v6316 = vmul.f32 %v6280, %v6288
        %v6317 = vmul.f32 %v6281, %v6288
        %v6318 = vmul.f32 %v6282, %v6288
        %v6319 = vmul.f32 %v6283, %v6288
        %v6320 = vmul.f32 %v6284, %v6288
        %v6321 = vld [vmem:[%s6 + $0x1e] ss:$0 sm:$0xff]
        %v6322 = vmul.f32 %v6289, %v6321
        %v6323 = vmul.f32 %v6290, %v6321
        %v6324 = vmul.f32 %v6291, %v6321
        %v6325 = vmul.f32 %v6292, %v6321
        %v6326 = vmul.f32 %v6293, %v6321
        %v6327 = vmul.f32 %v6294, %v6321
        %v6328 = vmul.f32 %v6295, %v6321
        %v6329 = vmul.f32 %v6296, %v6321
        %v6330 = vmul.f32 %v6297, %v6321
        %v6331 = vmul.f32 %v6298, %v6321
        %v6332 = vmul.f32 %v6299, %v6321
        %v6333 = vmul.f32 %v6300, %v6321
        %v6334 = vmul.f32 %v6301, %v6321
        %v6335 = vmul.f32 %v6302, %v6321
        %v6336 = vmul.f32 %v6303, %v6321
        %v6337 = vmul.f32 %v6304, %v6321
        %v6338 = vmul.f32 %v6305, %v6321
        %v6339 = vmul.f32 %v6306, %v6321
        %v6340 = vmul.f32 %v6307, %v6321
        %v6341 = vmul.f32 %v6308, %v6321
        %v6342 = vmul.f32 %v6309, %v6321
        %v6343 = vmul.f32 %v6310, %v6321
        %v6344 = vmul.f32 %v6311, %v6321
        %v6345 = vmul.f32 %v6312, %v6321
        %v6346 = vmul.f32 %v6313, %v6321
        %v6347 = vmul.f32 %v6314, %v6321
        %v6348 = vmul.f32 %v6315, %v6321
        %v6349 = vmul.f32 %v6316, %v6321
        %v6350 = vmul.f32 %v6317, %v6321
        %v6351 = vmul.f32 %v6318, %v6321
        %v6352 = vmul.f32 %v6319, %v6321
        %v6353 = vmul.f32 %v6320, %v6321
        %v6354 = vld [vmem:[%s6 + $0x1f] ss:$0 sm:$0xff]
        %v6355 = vadd.f32 %v6322, %v6354
        %v6356 = vadd.f32 %v6323, %v6354
        %v6357 = vadd.f32 %v6324, %v6354
        %v6358 = vadd.f32 %v6325, %v6354
        %v6359 = vadd.f32 %v6326, %v6354
        %v6360 = vadd.f32 %v6327, %v6354
        %v6361 = vadd.f32 %v6328, %v6354
        %v6362 = vadd.f32 %v6329, %v6354
        %v6363 = vadd.f32 %v6330, %v6354
        %v6364 = vadd.f32 %v6331, %v6354
        %v6365 = vadd.f32 %v6332, %v6354
        %v6366 = vadd.f32 %v6333, %v6354
        %v6367 = vadd.f32 %v6334, %v6354
        %v6368 = vadd.f32 %v6335, %v6354
        %v6369 = vadd.f32 %v6336, %v6354
        %v6370 = vadd.f32 %v6337, %v6354
        %v6371 = vadd.f32 %v6338, %v6354
        %v6372 = vadd.f32 %v6339, %v6354
        %v6373 = vadd.f32 %v6340, %v6354
        %v6374 = vadd.f32 %v6341, %v6354
        %v6375 = vadd.f32 %v6342, %v6354
        %v6376 = vadd.f32 %v6343, %v6354
        %v6377 = vadd.f32 %v6344, %v6354
        %v6378 = vadd.f32 %v6345, %v6354
        %v6379 = vadd.f32 %v6346, %v6354
        %v6380 = vadd.f32 %v6347, %v6354
        %v6381 = vadd.f32 %v6348, %v6354
        %v6382 = vadd.f32 %v6349, %v6354
        %v6383 = vadd.f32 %v6350, %v6354
        %v6384 = vadd.f32 %v6351, %v6354
        %v6385 = vadd.f32 %v6352, %v6354
        %v6386 = vadd.f32 %v6353, %v6354
        %v6387 = vmax.f32 %v6355, 0.0
        %v6388 = vmax.f32 %v6356, 0.0
        %v6389 = vmax.f32 %v6357, 0.0
        %v6390 = vmax.f32 %v6358, 0.0
        %v6391 = vmax.f32 %v6359, 0.0
        %v6392 = vmax.f32 %v6360, 0.0
        %v6393 = vmax.f32 %v6361, 0.0
        %v6394 = vmax.f32 %v6362, 0.0
        %v6395 = vmax.f32 %v6363, 0.0
        %v6396 = vmax.f32 %v6364, 0.0
        %v6397 = vmax.f32 %v6365, 0.0
        %v6398 = vmax.f32 %v6366, 0.0
        %v6399 = vmax.f32 %v6367, 0.0
        %v6400 = vmax.f32 %v6368, 0.0
        %v6401 = vmax.f32 %v6369, 0.0
        %v6402 = vmax.f32 %v6370, 0.0
        %v6403 = vmax.f32 %v6371, 0.0
        %v6404 = vmax.f32 %v6372, 0.0
        %v6405 = vmax.f32 %v6373, 0.0
        %v6406 = vmax.f32 %v6374, 0.0
        %v6407 = vmax.f32 %v6375, 0.0
        %v6408 = vmax.f32 %v6376, 0.0
        %v6409 = vmax.f32 %v6377, 0.0
        %v6410 = vmax.f32 %v6378, 0.0
        %v6411 = vmax.f32 %v6379, 0.0
        %v6412 = vmax.f32 %v6380, 0.0
        %v6413 = vmax.f32 %v6381, 0.0
        %v6414 = vmax.f32 %v6382, 0.0
        %v6415 = vmax.f32 %v6383, 0.0
        %v6416 = vmax.f32 %v6384, 0.0
        %v6417 = vmax.f32 %v6385, 0.0
        %v6418 = vmax.f32 %v6386, 0.0
        %v6419 = vld [vmem:[#allocation2 + $0x8] sm:$0xff]
        %v6420 = vld [vmem:[#allocation2 + $0x18] sm:$0xff]
        %v6421 = vld [vmem:[#allocation2 + $0x28] sm:$0xff]
        %v6422 = vld [vmem:[#allocation2 + $0x38] sm:$0xff]
        %v6423 = vld [vmem:[#allocation2 + $0x48] sm:$0xff]
        %v6424 = vld [vmem:[#allocation2 + $0x58] sm:$0xff]
        %v6425 = vld [vmem:[#allocation2 + $0x68] sm:$0xff]
        %v6426 = vld [vmem:[#allocation2 + $0x78] sm:$0xff]
        %v6427 = vld [vmem:[#allocation2 + $0x88] sm:$0xff]
        %v6428 = vld [vmem:[#allocation2 + $0x98] sm:$0xff]
        %v6429 = vld [vmem:[#allocation2 + $0xa8] sm:$0xff]
        %v6430 = vld [vmem:[#allocation2 + $0xb8] sm:$0xff]
        %v6431 = vld [vmem:[#allocation2 + $0xc8] sm:$0xff]
        %v6432 = vld [vmem:[#allocation2 + $0xd8] sm:$0xff]
        %v6433 = vld [vmem:[#allocation2 + $0xe8] sm:$0xff]
        %v6434 = vld [vmem:[#allocation2 + $0xf8] sm:$0xff]
        %v6435 = vld [vmem:[#allocation2 + $0x108] sm:$0xff]
        %v6436 = vld [vmem:[#allocation2 + $0x118] sm:$0xff]
        %v6437 = vld [vmem:[#allocation2 + $0x128] sm:$0xff]
        %v6438 = vld [vmem:[#allocation2 + $0x138] sm:$0xff]
        %v6439 = vld [vmem:[#allocation2 + $0x148] sm:$0xff]
        %v6440 = vld [vmem:[#allocation2 + $0x158] sm:$0xff]
        %v6441 = vld [vmem:[#allocation2 + $0x168] sm:$0xff]
        %v6442 = vld [vmem:[#allocation2 + $0x178] sm:$0xff]
        %v6443 = vld [vmem:[#allocation2 + $0x188] sm:$0xff]
        %v6444 = vld [vmem:[#allocation2 + $0x198] sm:$0xff]
        %v6445 = vld [vmem:[#allocation2 + $0x1a8] sm:$0xff]
        %v6446 = vld [vmem:[#allocation2 + $0x1b8] sm:$0xff]
        %v6447 = vld [vmem:[#allocation2 + $0x1c8] sm:$0xff]
        %v6448 = vld [vmem:[#allocation2 + $0x1d8] sm:$0xff]
        %v6449 = vld [vmem:[#allocation2 + $0x1e8] sm:$0xff]
        %v6450 = vld [vmem:[#allocation2 + $0x1f8] sm:$0xff]
        %v6451 = vxor.u32 %v6387, 2147483648
        %v6452 = vxor.u32 %v6388, 2147483648
        %v6453 = vxor.u32 %v6389, 2147483648
        %v6454 = vxor.u32 %v6390, 2147483648
        %v6455 = vxor.u32 %v6391, 2147483648
        %v6456 = vxor.u32 %v6392, 2147483648
        %v6457 = vxor.u32 %v6393, 2147483648
        %v6458 = vxor.u32 %v6394, 2147483648
        %v6459 = vxor.u32 %v6395, 2147483648
        %v6460 = vxor.u32 %v6396, 2147483648
        %v6461 = vxor.u32 %v6397, 2147483648
        %v6462 = vxor.u32 %v6398, 2147483648
        %v6463 = vxor.u32 %v6399, 2147483648
        %v6464 = vxor.u32 %v6400, 2147483648
        %v6465 = vxor.u32 %v6401, 2147483648
        %v6466 = vxor.u32 %v6402, 2147483648
        %v6467 = vxor.u32 %v6403, 2147483648
        %v6468 = vxor.u32 %v6404, 2147483648
        %v6469 = vxor.u32 %v6405, 2147483648
        %v6470 = vxor.u32 %v6406, 2147483648
        %v6471 = vxor.u32 %v6407, 2147483648
        %v6472 = vxor.u32 %v6408, 2147483648
        %v6473 = vxor.u32 %v6409, 2147483648
        %v6474 = vxor.u32 %v6410, 2147483648
        %v6475 = vxor.u32 %v6411, 2147483648
        %v6476 = vxor.u32 %v6412, 2147483648
        %v6477 = vxor.u32 %v6413, 2147483648
        %v6478 = vxor.u32 %v6414, 2147483648
        %v6479 = vxor.u32 %v6415, 2147483648
        %v6480 = vxor.u32 %v6416, 2147483648
        %v6481 = vxor.u32 %v6417, 2147483648
        %v6482 = vxor.u32 %v6418, 2147483648
        %v6483 = vmul.f32 %v6451, 1.442695
        %v6484 = vpow.pop %v6483
        %v6485 = vmul.f32 %v6452, 1.442695
        %v6486 = vpow.pop %v6485
        %v6487 = vmul.f32 %v6453, 1.442695
        %v6488 = vpow.pop %v6487
        %v6489 = vmul.f32 %v6454, 1.442695
        %v6490 = vpow.pop %v6489
        %v6491 = vmul.f32 %v6455, 1.442695
        %v6492 = vpow.pop %v6491
        %v6493 = vmul.f32 %v6456, 1.442695
        %v6494 = vpow.pop %v6493
        %v6495 = vmul.f32 %v6457, 1.442695
        %v6496 = vpow.pop %v6495
        %v6497 = vmul.f32 %v6458, 1.442695
        %v6498 = vpow.pop %v6497
        %v6499 = vmul.f32 %v6459, 1.442695
        %v6500 = vpow.pop %v6499
        %v6501 = vmul.f32 %v6460, 1.442695
        %v6502 = vpow.pop %v6501
        %v6503 = vmul.f32 %v6461, 1.442695
        %v6504 = vpow.pop %v6503
        %v6505 = vmul.f32 %v6462, 1.442695
        %v6506 = vpow.pop %v6505
        %v6507 = vmul.f32 %v6463, 1.442695
        %v6508 = vpow.pop %v6507
        %v6509 = vmul.f32 %v6464, 1.442695
        %v6510 = vpow.pop %v6509
        %v6511 = vmul.f32 %v6465, 1.442695
        %v6512 = vpow.pop %v6511
        %v6513 = vmul.f32 %v6466, 1.442695
        %v6514 = vpow.pop %v6513
        %v6515 = vmul.f32 %v6467, 1.442695
        %v6516 = vpow.pop %v6515
        %v6517 = vmul.f32 %v6468, 1.442695
        %v6518 = vpow.pop %v6517
        %v6519 = vmul.f32 %v6469, 1.442695
        %v6520 = vpow.pop %v6519
        %v6521 = vmul.f32 %v6470, 1.442695
        %v6522 = vpow.pop %v6521
        %v6523 = vmul.f32 %v6471, 1.442695
        %v6524 = vpow.pop %v6523
        %v6525 = vmul.f32 %v6472, 1.442695
        %v6526 = vpow.pop %v6525
        %v6527 = vmul.f32 %v6473, 1.442695
        %v6528 = vpow.pop %v6527
        %v6529 = vmul.f32 %v6474, 1.442695
        %v6530 = vpow.pop %v6529
        %v6531 = vmul.f32 %v6475, 1.442695
        %v6532 = vpow.pop %v6531
        %v6533 = vmul.f32 %v6476, 1.442695
        %v6534 = vpow.pop %v6533
        %v6535 = vmul.f32 %v6477, 1.442695
        %v6536 = vpow.pop %v6535
        %v6537 = vmul.f32 %v6478, 1.442695
        %v6538 = vpow.pop %v6537
        %v6539 = vmul.f32 %v6479, 1.442695
        %v6540 = vpow.pop %v6539
        %v6541 = vmul.f32 %v6480, 1.442695
        %v6542 = vpow.pop %v6541
        %v6543 = vmul.f32 %v6481, 1.442695
        %v6544 = vpow.pop %v6543
        %v6545 = vmul.f32 %v6482, 1.442695
        %v6546 = vpow.pop %v6545
        %v6547 = vadd.f32 %v6484, 1.0
        %v6548 = vadd.f32 %v6486, 1.0
        %v6549 = vadd.f32 %v6488, 1.0
        %v6550 = vadd.f32 %v6490, 1.0
        %v6551 = vadd.f32 %v6492, 1.0
        %v6552 = vadd.f32 %v6494, 1.0
        %v6553 = vadd.f32 %v6496, 1.0
        %v6554 = vadd.f32 %v6498, 1.0
        %v6555 = vadd.f32 %v6500, 1.0
        %v6556 = vadd.f32 %v6502, 1.0
        %v6557 = vadd.f32 %v6504, 1.0
        %v6558 = vadd.f32 %v6506, 1.0
        %v6559 = vadd.f32 %v6508, 1.0
        %v6560 = vadd.f32 %v6510, 1.0
        %v6561 = vadd.f32 %v6512, 1.0
        %v6562 = vadd.f32 %v6514, 1.0
        %v6563 = vadd.f32 %v6516, 1.0
        %v6564 = vadd.f32 %v6518, 1.0
        %v6565 = vadd.f32 %v6520, 1.0
        %v6566 = vadd.f32 %v6522, 1.0
        %v6567 = vadd.f32 %v6524, 1.0
        %v6568 = vadd.f32 %v6526, 1.0
        %v6569 = vadd.f32 %v6528, 1.0
        %v6570 = vadd.f32 %v6530, 1.0
        %v6571 = vadd.f32 %v6532, 1.0
        %v6572 = vadd.f32 %v6534, 1.0
        %v6573 = vadd.f32 %v6536, 1.0
        %v6574 = vadd.f32 %v6538, 1.0
        %v6575 = vadd.f32 %v6540, 1.0
        %v6576 = vadd.f32 %v6542, 1.0
        %v6577 = vadd.f32 %v6544, 1.0
        %v6578 = vadd.f32 %v6546, 1.0
        %v6579 = vrcp.pop %v6547
        %v6580 = vmul.f32 1.0, %v6579
        %v6581 = vrcp.pop %v6548
        %v6582 = vmul.f32 1.0, %v6581
        %v6583 = vrcp.pop %v6549
        %v6584 = vmul.f32 1.0, %v6583
        %v6585 = vrcp.pop %v6550
        %v6586 = vmul.f32 1.0, %v6585
        %v6587 = vrcp.pop %v6551
        %v6588 = vmul.f32 1.0, %v6587
        %v6589 = vrcp.pop %v6552
        %v6590 = vmul.f32 1.0, %v6589
        %v6591 = vrcp.pop %v6553
        %v6592 = vmul.f32 1.0, %v6591
        %v6593 = vrcp.pop %v6554
        %v6594 = vmul.f32 1.0, %v6593
        %v6595 = vrcp.pop %v6555
        %v6596 = vmul.f32 1.0, %v6595
        %v6597 = vrcp.pop %v6556
        %v6598 = vmul.f32 1.0, %v6597
        %v6599 = vrcp.pop %v6557
        %v6600 = vmul.f32 1.0, %v6599
        %v6601 = vrcp.pop %v6558
        %v6602 = vmul.f32 1.0, %v6601
        %v6603 = vrcp.pop %v6559
        %v6604 = vmul.f32 1.0, %v6603
        %v6605 = vrcp.pop %v6560
        %v6606 = vmul.f32 1.0, %v6605
        %v6607 = vrcp.pop %v6561
        %v6608 = vmul.f32 1.0, %v6607
        %v6609 = vrcp.pop %v6562
        %v6610 = vmul.f32 1.0, %v6609
        %v6611 = vrcp.pop %v6563
        %v6612 = vmul.f32 1.0, %v6611
        %v6613 = vrcp.pop %v6564
        %v6614 = vmul.f32 1.0, %v6613
        %v6615 = vrcp.pop %v6565
        %v6616 = vmul.f32 1.0, %v6615
        %v6617 = vrcp.pop %v6566
        %v6618 = vmul.f32 1.0, %v6617
        %v6619 = vrcp.pop %v6567
        %v6620 = vmul.f32 1.0, %v6619
        %v6621 = vrcp.pop %v6568
        %v6622 = vmul.f32 1.0, %v6621
        %v6623 = vrcp.pop %v6569
        %v6624 = vmul.f32 1.0, %v6623
        %v6625 = vrcp.pop %v6570
        %v6626 = vmul.f32 1.0, %v6625
        %v6627 = vrcp.pop %v6571
        %v6628 = vmul.f32 1.0, %v6627
        %v6629 = vrcp.pop %v6572
        %v6630 = vmul.f32 1.0, %v6629
        %v6631 = vrcp.pop %v6573
        %v6632 = vmul.f32 1.0, %v6631
        %v6633 = vrcp.pop %v6574
        %v6634 = vmul.f32 1.0, %v6633
        %v6635 = vrcp.pop %v6575
        %v6636 = vmul.f32 1.0, %v6635
        %v6637 = vrcp.pop %v6576
        %v6638 = vmul.f32 1.0, %v6637
        %v6639 = vrcp.pop %v6577
        %v6640 = vmul.f32 1.0, %v6639
        %v6641 = vrcp.pop %v6578
        %v6642 = vmul.f32 1.0, %v6641
        %v6643 = vmul.f32 %v6419, %v6580
        %v6644 = vmul.f32 %v6420, %v6582
        %v6645 = vmul.f32 %v6421, %v6584
        %v6646 = vmul.f32 %v6422, %v6586
        %v6647 = vmul.f32 %v6423, %v6588
        %v6648 = vmul.f32 %v6424, %v6590
        %v6649 = vmul.f32 %v6425, %v6592
        %v6650 = vmul.f32 %v6426, %v6594
        %v6651 = vmul.f32 %v6427, %v6596
        %v6652 = vmul.f32 %v6428, %v6598
        %v6653 = vmul.f32 %v6429, %v6600
        %v6654 = vmul.f32 %v6430, %v6602
        %v6655 = vmul.f32 %v6431, %v6604
        %v6656 = vmul.f32 %v6432, %v6606
        %v6657 = vmul.f32 %v6433, %v6608
        %v6658 = vmul.f32 %v6434, %v6610
        %v6659 = vmul.f32 %v6435, %v6612
        %v6660 = vmul.f32 %v6436, %v6614
        %v6661 = vmul.f32 %v6437, %v6616
        %v6662 = vmul.f32 %v6438, %v6618
        %v6663 = vmul.f32 %v6439, %v6620
        %v6664 = vmul.f32 %v6440, %v6622
        %v6665 = vmul.f32 %v6441, %v6624
        %v6666 = vmul.f32 %v6442, %v6626
        %v6667 = vmul.f32 %v6443, %v6628
        %v6668 = vmul.f32 %v6444, %v6630
        %v6669 = vmul.f32 %v6445, %v6632
        %v6670 = vmul.f32 %v6446, %v6634
        %v6671 = vmul.f32 %v6447, %v6636
        %v6672 = vmul.f32 %v6448, %v6638
        %v6673 = vmul.f32 %v6449, %v6640
        %v6674 = vmul.f32 %v6450, %v6642
        %v6675 = vadd.f32 %v6217, %v6643
        %v6676 = vadd.f32 %v6218, %v6644
        %v6677 = vadd.f32 %v6219, %v6645
        %v6678 = vadd.f32 %v6220, %v6646
        %v6679 = vadd.f32 %v6221, %v6647
        %v6680 = vadd.f32 %v6222, %v6648
        %v6681 = vadd.f32 %v6223, %v6649
        %v6682 = vadd.f32 %v6224, %v6650
        %v6683 = vadd.f32 %v6225, %v6651
        %v6684 = vadd.f32 %v6226, %v6652
        %v6685 = vadd.f32 %v6227, %v6653
        %v6686 = vadd.f32 %v6228, %v6654
        %v6687 = vadd.f32 %v6229, %v6655
        %v6688 = vadd.f32 %v6230, %v6656
        %v6689 = vadd.f32 %v6231, %v6657
        %v6690 = vadd.f32 %v6232, %v6658
        %v6691 = vadd.f32 %v6233, %v6659
        %v6692 = vadd.f32 %v6234, %v6660
        %v6693 = vadd.f32 %v6235, %v6661
        %v6694 = vadd.f32 %v6236, %v6662
        %v6695 = vadd.f32 %v6237, %v6663
        %v6696 = vadd.f32 %v6238, %v6664
        %v6697 = vadd.f32 %v6239, %v6665
        %v6698 = vadd.f32 %v6240, %v6666
        %v6699 = vadd.f32 %v6241, %v6667
        %v6700 = vadd.f32 %v6242, %v6668
        %v6701 = vadd.f32 %v6243, %v6669
        %v6702 = vadd.f32 %v6244, %v6670
        %v6703 = vadd.f32 %v6245, %v6671
        %v6704 = vadd.f32 %v6246, %v6672
        %v6705 = vadd.f32 %v6247, %v6673
        %v6706 = vadd.f32 %v6248, %v6674
        %6707 = vst [vmem:[#allocation3 + $0x20] sm:$0xff] %v6675
        %6708 = vst [vmem:[#allocation3 + $0x30] sm:$0xff] %v6676
        %6709 = vst [vmem:[#allocation3 + $0x40] sm:$0xff] %v6677
        %6710 = vst [vmem:[#allocation3 + $0x50] sm:$0xff] %v6678
        %6711 = vst [vmem:[#allocation3 + $0x60] sm:$0xff] %v6679
        %6712 = vst [vmem:[#allocation3 + $0x70] sm:$0xff] %v6680
        %6713 = vst [vmem:[#allocation3 + $0x80] sm:$0xff] %v6681
        %6714 = vst [vmem:[#allocation3 + $0x90] sm:$0xff] %v6682
        %6715 = vst [vmem:[#allocation3 + $0xa0] sm:$0xff] %v6683
        %6716 = vst [vmem:[#allocation3 + $0xb0] sm:$0xff] %v6684
        %6717 = vst [vmem:[#allocation3 + $0xc0] sm:$0xff] %v6685
        %6718 = vst [vmem:[#allocation3 + $0xd0] sm:$0xff] %v6686
        %6719 = vst [vmem:[#allocation3 + $0xe0] sm:$0xff] %v6687
        %6720 = vst [vmem:[#allocation3 + $0xf0] sm:$0xff] %v6688
        %6721 = vst [vmem:[#allocation3 + $0x100] sm:$0xff] %v6689
        %6722 = vst [vmem:[#allocation3 + $0x110] sm:$0xff] %v6690
        %6723 = vst [vmem:[#allocation3 + $0x120] sm:$0xff] %v6691
        %6724 = vst [vmem:[#allocation3 + $0x130] sm:$0xff] %v6692
        %6725 = vst [vmem:[#allocation3 + $0x140] sm:$0xff] %v6693
        %6726 = vst [vmem:[#allocation3 + $0x150] sm:$0xff] %v6694
        %6727 = vst [vmem:[#allocation3 + $0x160] sm:$0xff] %v6695
        %6728 = vst [vmem:[#allocation3 + $0x170] sm:$0xff] %v6696
        %6729 = vst [vmem:[#allocation3 + $0x180] sm:$0xff] %v6697
        %6730 = vst [vmem:[#allocation3 + $0x190] sm:$0xff] %v6698
        %6731 = vst [vmem:[#allocation3 + $0x1a0] sm:$0xff] %v6699
        %6732 = vst [vmem:[#allocation3 + $0x1b0] sm:$0xff] %v6700
        %6733 = vst [vmem:[#allocation3 + $0x1c0] sm:$0xff] %v6701
        %6734 = vst [vmem:[#allocation3 + $0x1d0] sm:$0xff] %v6702
        %6735 = vst [vmem:[#allocation3 + $0x1e0] sm:$0xff] %v6703
        %6736 = vst [vmem:[#allocation3 + $0x1f0] sm:$0xff] %v6704
        %6737 = vst [vmem:[#allocation3 + $0x200] sm:$0xff] %v6705
        %6738 = vst [vmem:[#allocation3 + $0x210] sm:$0xff] %v6706
        %v6739 = vld [vmem:[#allocation3 + $0x20] sm:$0xff]
        %v6740 = vld [vmem:[#allocation3 + $0x30] sm:$0xff]
        %v6741 = vld [vmem:[#allocation3 + $0x40] sm:$0xff]
        %v6742 = vld [vmem:[#allocation3 + $0x50] sm:$0xff]
        %v6743 = vld [vmem:[#allocation3 + $0x60] sm:$0xff]
        %v6744 = vld [vmem:[#allocation3 + $0x70] sm:$0xff]
        %v6745 = vld [vmem:[#allocation3 + $0x80] sm:$0xff]
        %v6746 = vld [vmem:[#allocation3 + $0x90] sm:$0xff]
        %v6747 = vld [vmem:[#allocation3 + $0xa0] sm:$0xff]
        %v6748 = vld [vmem:[#allocation3 + $0xb0] sm:$0xff]
        %v6749 = vld [vmem:[#allocation3 + $0xc0] sm:$0xff]
        %v6750 = vld [vmem:[#allocation3 + $0xd0] sm:$0xff]
        %v6751 = vld [vmem:[#allocation3 + $0xe0] sm:$0xff]
        %v6752 = vld [vmem:[#allocation3 + $0xf0] sm:$0xff]
        %v6753 = vld [vmem:[#allocation3 + $0x100] sm:$0xff]
        %v6754 = vld [vmem:[#allocation3 + $0x110] sm:$0xff]
        %v6755 = vld [vmem:[#allocation3 + $0x120] sm:$0xff]
        %v6756 = vld [vmem:[#allocation3 + $0x130] sm:$0xff]
        %v6757 = vld [vmem:[#allocation3 + $0x140] sm:$0xff]
        %v6758 = vld [vmem:[#allocation3 + $0x150] sm:$0xff]
        %v6759 = vld [vmem:[#allocation3 + $0x160] sm:$0xff]
        %v6760 = vld [vmem:[#allocation3 + $0x170] sm:$0xff]
        %v6761 = vld [vmem:[#allocation3 + $0x180] sm:$0xff]
        %v6762 = vld [vmem:[#allocation3 + $0x190] sm:$0xff]
        %v6763 = vld [vmem:[#allocation3 + $0x1a0] sm:$0xff]
        %v6764 = vld [vmem:[#allocation3 + $0x1b0] sm:$0xff]
        %v6765 = vld [vmem:[#allocation3 + $0x1c0] sm:$0xff]
        %v6766 = vld [vmem:[#allocation3 + $0x1d0] sm:$0xff]
        %v6767 = vld [vmem:[#allocation3 + $0x1e0] sm:$0xff]
        %v6768 = vld [vmem:[#allocation3 + $0x1f0] sm:$0xff]
        %v6769 = vld [vmem:[#allocation3 + $0x200] sm:$0xff]
        %v6770 = vld [vmem:[#allocation3 + $0x210] sm:$0xff]
        %v6771 = vrot.slane %v6739, 7
        %v6772 = vrot.slane %v6740, 7
        %v6773 = vrot.slane %v6741, 7
        %v6774 = vrot.slane %v6742, 7
        %v6775 = vrot.slane %v6743, 7
        %v6776 = vrot.slane %v6744, 7
        %v6777 = vrot.slane %v6745, 7
        %v6778 = vrot.slane %v6746, 7
        %v6779 = vrot.slane %v6747, 7
        %v6780 = vrot.slane %v6748, 7
        %v6781 = vrot.slane %v6749, 7
        %v6782 = vrot.slane %v6750, 7
        %v6783 = vrot.slane %v6751, 7
        %v6784 = vrot.slane %v6752, 7
        %v6785 = vrot.slane %v6753, 7
        %v6786 = vrot.slane %v6754, 7
        %v6787 = vrot.slane %v6755, 7
        %v6788 = vrot.slane %v6756, 7
        %v6789 = vrot.slane %v6757, 7
        %v6790 = vrot.slane %v6758, 7
        %v6791 = vrot.slane %v6759, 7
        %v6792 = vrot.slane %v6760, 7
        %v6793 = vrot.slane %v6761, 7
        %v6794 = vrot.slane %v6762, 7
        %v6795 = vrot.slane %v6763, 7
        %v6796 = vrot.slane %v6764, 7
        %v6797 = vrot.slane %v6765, 7
        %v6798 = vrot.slane %v6766, 7
        %v6799 = vrot.slane %v6767, 7
        %v6800 = vrot.slane %v6768, 7
        %v6801 = vrot.slane %v6769, 7
        %v6802 = vrot.slane %v6770, 7
        %v6803 = vsel %vm2629, %v6801, %v6802
        %v6804 = vsel %vm2629, %v6800, %v6801
        %v6805 = vsel %vm2629, %v6799, %v6800
        %v6806 = vsel %vm2629, %v6798, %v6799
        %v6807 = vsel %vm2629, %v6797, %v6798
        %v6808 = vsel %vm2629, %v6796, %v6797
        %v6809 = vsel %vm2629, %v6795, %v6796
        %v6810 = vsel %vm2629, %v6794, %v6795
        %v6811 = vsel %vm2629, %v6793, %v6794
        %v6812 = vsel %vm2629, %v6792, %v6793
        %v6813 = vsel %vm2629, %v6791, %v6792
        %v6814 = vsel %vm2629, %v6790, %v6791
        %v6815 = vsel %vm2629, %v6789, %v6790
        %v6816 = vsel %vm2629, %v6788, %v6789
        %v6817 = vsel %vm2629, %v6787, %v6788
        %v6818 = vsel %vm2629, %v6786, %v6787
        %v6819 = vsel %vm2629, %v6785, %v6786
        %v6820 = vsel %vm2629, %v6784, %v6785
        %v6821 = vsel %vm2629, %v6783, %v6784
        %v6822 = vsel %vm2629, %v6782, %v6783
        %v6823 = vsel %vm2629, %v6781, %v6782
        %v6824 = vsel %vm2629, %v6780, %v6781
        %v6825 = vsel %vm2629, %v6779, %v6780
        %v6826 = vsel %vm2629, %v6778, %v6779
        %v6827 = vsel %vm2629, %v6777, %v6778
        %v6828 = vsel %vm2629, %v6776, %v6777
        %v6829 = vsel %vm2629, %v6775, %v6776
        %v6830 = vsel %vm2629, %v6774, %v6775
        %v6831 = vsel %vm2629, %v6773, %v6774
        %v6832 = vsel %vm2629, %v6772, %v6773
        %v6833 = vsel %vm2629, %v6771, %v6772
        %v6834 = vsel %vm2629, %v6802, %v6771
        %v6835 = vsel %vm2726, %v6834, 0.0
        %v6836 = vsel %vm2727, %v6833, 0.0
        %v6837 = vsel %vm2728, %v6832, 0.0
        %v6838 = vsel %vm2729, %v6831, 0.0
        %v6839 = vsel %vm2730, %v6830, 0.0
        %v6840 = vsel %vm2731, %v6829, 0.0
        %v6841 = vsel %vm2732, %v6828, 0.0
        %v6842 = vsel %vm2733, %v6827, 0.0
        %v6843 = vsel %vm2734, %v6826, 0.0
        %v6844 = vsel %vm2735, %v6825, 0.0
        %v6845 = vsel %vm2736, %v6824, 0.0
        %v6846 = vsel %vm2737, %v6823, 0.0
        %v6847 = vsel %vm2738, %v6822, 0.0
        %v6848 = vsel %vm2739, %v6821, 0.0
        %v6849 = vsel %vm2740, %v6820, 0.0
        %v6850 = vsel %vm2741, %v6819, 0.0
        %v6851 = vsel %vm2742, %v6818, 0.0
        %v6852 = vsel %vm2743, %v6817, 0.0
        %v6853 = vsel %vm2744, %v6816, 0.0
        %v6854 = vsel %vm2745, %v6815, 0.0
        %v6855 = vsel %vm2746, %v6814, 0.0
        %v6856 = vsel %vm2747, %v6813, 0.0
        %v6857 = vsel %vm2748, %v6812, 0.0
        %v6858 = vsel %vm2749, %v6811, 0.0
        %v6859 = vsel %vm2750, %v6810, 0.0
        %v6860 = vsel %vm2751, %v6809, 0.0
        %v6861 = vsel %vm2752, %v6808, 0.0
        %v6862 = vsel %vm2753, %v6807, 0.0
        %v6863 = vsel %vm2754, %v6806, 0.0
        %v6864 = vsel %vm2755, %v6805, 0.0
        %v6865 = vsel %vm2756, %v6804, 0.0
        %v6866 = vsel %vm2757, %v6803, 0.0
        %6867 = vst [vmem:[#allocation4 + $0x20] sm:$0xff] %v6835
        %6868 = vst [vmem:[#allocation4 + $0x30] sm:$0xff] %v6836
        %6869 = vst [vmem:[#allocation4 + $0x40] sm:$0xff] %v6837
        %6870 = vst [vmem:[#allocation4 + $0x50] sm:$0xff] %v6838
        %6871 = vst [vmem:[#allocation4 + $0x60] sm:$0xff] %v6839
        %6872 = vst [vmem:[#allocation4 + $0x70] sm:$0xff] %v6840
        %6873 = vst [vmem:[#allocation4 + $0x80] sm:$0xff] %v6841
        %6874 = vst [vmem:[#allocation4 + $0x90] sm:$0xff] %v6842
        %6875 = vst [vmem:[#allocation4 + $0xa0] sm:$0xff] %v6843
        %6876 = vst [vmem:[#allocation4 + $0xb0] sm:$0xff] %v6844
        %6877 = vst [vmem:[#allocation4 + $0xc0] sm:$0xff] %v6845
        %6878 = vst [vmem:[#allocation4 + $0xd0] sm:$0xff] %v6846
        %6879 = vst [vmem:[#allocation4 + $0xe0] sm:$0xff] %v6847
        %6880 = vst [vmem:[#allocation4 + $0xf0] sm:$0xff] %v6848
        %6881 = vst [vmem:[#allocation4 + $0x100] sm:$0xff] %v6849
        %6882 = vst [vmem:[#allocation4 + $0x110] sm:$0xff] %v6850
        %6883 = vst [vmem:[#allocation4 + $0x120] sm:$0xff] %v6851
        %6884 = vst [vmem:[#allocation4 + $0x130] sm:$0xff] %v6852
        %6885 = vst [vmem:[#allocation4 + $0x140] sm:$0xff] %v6853
        %6886 = vst [vmem:[#allocation4 + $0x150] sm:$0xff] %v6854
        %6887 = vst [vmem:[#allocation4 + $0x160] sm:$0xff] %v6855
        %6888 = vst [vmem:[#allocation4 + $0x170] sm:$0xff] %v6856
        %6889 = vst [vmem:[#allocation4 + $0x180] sm:$0xff] %v6857
        %6890 = vst [vmem:[#allocation4 + $0x190] sm:$0xff] %v6858
        %6891 = vst [vmem:[#allocation4 + $0x1a0] sm:$0xff] %v6859
        %6892 = vst [vmem:[#allocation4 + $0x1b0] sm:$0xff] %v6860
        %6893 = vst [vmem:[#allocation4 + $0x1c0] sm:$0xff] %v6861
        %6894 = vst [vmem:[#allocation4 + $0x1d0] sm:$0xff] %v6862
        %6895 = vst [vmem:[#allocation4 + $0x1e0] sm:$0xff] %v6863
        %6896 = vst [vmem:[#allocation4 + $0x1f0] sm:$0xff] %v6864
        %6897 = vst [vmem:[#allocation4 + $0x200] sm:$0xff] %v6865
        %6898 = vst [vmem:[#allocation4 + $0x210] sm:$0xff] %v6866
        %v6899 = vrot.slane %v6739, 1
        %v6900 = vrot.slane %v6740, 1
        %v6901 = vrot.slane %v6741, 1
        %v6902 = vrot.slane %v6742, 1
        %v6903 = vrot.slane %v6743, 1
        %v6904 = vrot.slane %v6744, 1
        %v6905 = vrot.slane %v6745, 1
        %v6906 = vrot.slane %v6746, 1
        %v6907 = vrot.slane %v6747, 1
        %v6908 = vrot.slane %v6748, 1
        %v6909 = vrot.slane %v6749, 1
        %v6910 = vrot.slane %v6750, 1
        %v6911 = vrot.slane %v6751, 1
        %v6912 = vrot.slane %v6752, 1
        %v6913 = vrot.slane %v6753, 1
        %v6914 = vrot.slane %v6754, 1
        %v6915 = vrot.slane %v6755, 1
        %v6916 = vrot.slane %v6756, 1
        %v6917 = vrot.slane %v6757, 1
        %v6918 = vrot.slane %v6758, 1
        %v6919 = vrot.slane %v6759, 1
        %v6920 = vrot.slane %v6760, 1
        %v6921 = vrot.slane %v6761, 1
        %v6922 = vrot.slane %v6762, 1
        %v6923 = vrot.slane %v6763, 1
        %v6924 = vrot.slane %v6764, 1
        %v6925 = vrot.slane %v6765, 1
        %v6926 = vrot.slane %v6766, 1
        %v6927 = vrot.slane %v6767, 1
        %v6928 = vrot.slane %v6768, 1
        %v6929 = vrot.slane %v6769, 1
        %v6930 = vrot.slane %v6770, 1
        %v6931 = vsel %vm2950, %v6929, %v6930
        %v6932 = vsel %vm2950, %v6928, %v6929
        %v6933 = vsel %vm2950, %v6927, %v6928
        %v6934 = vsel %vm2950, %v6926, %v6927
        %v6935 = vsel %vm2950, %v6925, %v6926
        %v6936 = vsel %vm2950, %v6924, %v6925
        %v6937 = vsel %vm2950, %v6923, %v6924
        %v6938 = vsel %vm2950, %v6922, %v6923
        %v6939 = vsel %vm2950, %v6921, %v6922
        %v6940 = vsel %vm2950, %v6920, %v6921
        %v6941 = vsel %vm2950, %v6919, %v6920
        %v6942 = vsel %vm2950, %v6918, %v6919
        %v6943 = vsel %vm2950, %v6917, %v6918
        %v6944 = vsel %vm2950, %v6916, %v6917
        %v6945 = vsel %vm2950, %v6915, %v6916
        %v6946 = vsel %vm2950, %v6914, %v6915
        %v6947 = vsel %vm2950, %v6913, %v6914
        %v6948 = vsel %vm2950, %v6912, %v6913
        %v6949 = vsel %vm2950, %v6911, %v6912
        %v6950 = vsel %vm2950, %v6910, %v6911
        %v6951 = vsel %vm2950, %v6909, %v6910
        %v6952 = vsel %vm2950, %v6908, %v6909
        %v6953 = vsel %vm2950, %v6907, %v6908
        %v6954 = vsel %vm2950, %v6906, %v6907
        %v6955 = vsel %vm2950, %v6905, %v6906
        %v6956 = vsel %vm2950, %v6904, %v6905
        %v6957 = vsel %vm2950, %v6903, %v6904
        %v6958 = vsel %vm2950, %v6902, %v6903
        %v6959 = vsel %vm2950, %v6901, %v6902
        %v6960 = vsel %vm2950, %v6900, %v6901
        %v6961 = vsel %vm2950, %v6899, %v6900
        %v6962 = vsel %vm2950, %v6930, %v6899
        %v6963 = vsel %vm3047, %v6961, 0.0
        %v6964 = vsel %vm3048, %v6960, 0.0
        %v6965 = vsel %vm3049, %v6959, 0.0
        %v6966 = vsel %vm3050, %v6958, 0.0
        %v6967 = vsel %vm3051, %v6957, 0.0
        %v6968 = vsel %vm3052, %v6956, 0.0
        %v6969 = vsel %vm3053, %v6955, 0.0
        %v6970 = vsel %vm3054, %v6954, 0.0
        %v6971 = vsel %vm3055, %v6953, 0.0
        %v6972 = vsel %vm3056, %v6952, 0.0
        %v6973 = vsel %vm3057, %v6951, 0.0
        %v6974 = vsel %vm3058, %v6950, 0.0
        %v6975 = vsel %vm3059, %v6949, 0.0
        %v6976 = vsel %vm3060, %v6948, 0.0
        %v6977 = vsel %vm3061, %v6947, 0.0
        %v6978 = vsel %vm3062, %v6946, 0.0
        %v6979 = vsel %vm3063, %v6945, 0.0
        %v6980 = vsel %vm3064, %v6944, 0.0
        %v6981 = vsel %vm3065, %v6943, 0.0
        %v6982 = vsel %vm3066, %v6942, 0.0
        %v6983 = vsel %vm3067, %v6941, 0.0
        %v6984 = vsel %vm3068, %v6940, 0.0
        %v6985 = vsel %vm3069, %v6939, 0.0
        %v6986 = vsel %vm3070, %v6938, 0.0
        %v6987 = vsel %vm3071, %v6937, 0.0
        %v6988 = vsel %vm3072, %v6936, 0.0
        %v6989 = vsel %vm3073, %v6935, 0.0
        %v6990 = vsel %vm3074, %v6934, 0.0
        %v6991 = vsel %vm3075, %v6933, 0.0
        %v6992 = vsel %vm3076, %v6932, 0.0
        %v6993 = vsel %vm3077, %v6931, 0.0
        %v6994 = vsel %vm3078, %v6962, 0.0
        %6995 = vst [vmem:[#allocation5 + $0x20] sm:$0xff] %v6963
        %6996 = vst [vmem:[#allocation5 + $0x30] sm:$0xff] %v6964
        %6997 = vst [vmem:[#allocation5 + $0x40] sm:$0xff] %v6965
        %6998 = vst [vmem:[#allocation5 + $0x50] sm:$0xff] %v6966
        %6999 = vst [vmem:[#allocation5 + $0x60] sm:$0xff] %v6967
        %7000 = vst [vmem:[#allocation5 + $0x70] sm:$0xff] %v6968
        %7001 = vst [vmem:[#allocation5 + $0x80] sm:$0xff] %v6969
        %7002 = vst [vmem:[#allocation5 + $0x90] sm:$0xff] %v6970
        %7003 = vst [vmem:[#allocation5 + $0xa0] sm:$0xff] %v6971
        %7004 = vst [vmem:[#allocation5 + $0xb0] sm:$0xff] %v6972
        %7005 = vst [vmem:[#allocation5 + $0xc0] sm:$0xff] %v6973
        %7006 = vst [vmem:[#allocation5 + $0xd0] sm:$0xff] %v6974
        %7007 = vst [vmem:[#allocation5 + $0xe0] sm:$0xff] %v6975
        %7008 = vst [vmem:[#allocation5 + $0xf0] sm:$0xff] %v6976
        %7009 = vst [vmem:[#allocation5 + $0x100] sm:$0xff] %v6977
        %7010 = vst [vmem:[#allocation5 + $0x110] sm:$0xff] %v6978
        %7011 = vst [vmem:[#allocation5 + $0x120] sm:$0xff] %v6979
        %7012 = vst [vmem:[#allocation5 + $0x130] sm:$0xff] %v6980
        %7013 = vst [vmem:[#allocation5 + $0x140] sm:$0xff] %v6981
        %7014 = vst [vmem:[#allocation5 + $0x150] sm:$0xff] %v6982
        %7015 = vst [vmem:[#allocation5 + $0x160] sm:$0xff] %v6983
        %7016 = vst [vmem:[#allocation5 + $0x170] sm:$0xff] %v6984
        %7017 = vst [vmem:[#allocation5 + $0x180] sm:$0xff] %v6985
        %7018 = vst [vmem:[#allocation5 + $0x190] sm:$0xff] %v6986
        %7019 = vst [vmem:[#allocation5 + $0x1a0] sm:$0xff] %v6987
        %7020 = vst [vmem:[#allocation5 + $0x1b0] sm:$0xff] %v6988
        %7021 = vst [vmem:[#allocation5 + $0x1c0] sm:$0xff] %v6989
        %7022 = vst [vmem:[#allocation5 + $0x1d0] sm:$0xff] %v6990
        %7023 = vst [vmem:[#allocation5 + $0x1e0] sm:$0xff] %v6991
        %7024 = vst [vmem:[#allocation5 + $0x1f0] sm:$0xff] %v6992
        %7025 = vst [vmem:[#allocation5 + $0x200] sm:$0xff] %v6993
        %7026 = vst [vmem:[#allocation5 + $0x210] sm:$0xff] %v6994
        %v7027 = vld [vmem:[%s6 + $0x20] sm:$0xff]
        %v7028 = vld [vmem:[%s6 + $0x30] sm:$0x1]
        %v7029 = vld [vmem:[%s6 + $0x31] ss:$0 sm:$0xff]
        %v7030 = vld [vmem:[#allocation4] sm:$0xff]
        %v7031 = vld [vmem:[#allocation4 + $0x10] sm:$0xff]
        %v7032 = vld [vmem:[#allocation4 + $0x20] sm:$0xff]
        %v7033 = vld [vmem:[#allocation4 + $0x30] sm:$0xff]
        %v7034 = vld [vmem:[#allocation4 + $0x40] sm:$0xff]
        %v7035 = vld [vmem:[#allocation4 + $0x50] sm:$0xff]
        %v7036 = vld [vmem:[#allocation4 + $0x60] sm:$0xff]
        %v7037 = vld [vmem:[#allocation4 + $0x70] sm:$0xff]
        %v7038 = vld [vmem:[#allocation4 + $0x80] sm:$0xff]
        %v7039 = vld [vmem:[#allocation4 + $0x90] sm:$0xff]
        %v7040 = vld [vmem:[#allocation4 + $0xa0] sm:$0xff]
        %v7041 = vld [vmem:[#allocation4 + $0xb0] sm:$0xff]
        %v7042 = vld [vmem:[#allocation4 + $0xc0] sm:$0xff]
        %v7043 = vld [vmem:[#allocation4 + $0xd0] sm:$0xff]
        %v7044 = vld [vmem:[#allocation4 + $0xe0] sm:$0xff]
        %v7045 = vld [vmem:[#allocation4 + $0xf0] sm:$0xff]
        %v7046 = vlaneseq
        %v7047 = vshrl.u32 %v7046, 7
        %v7048 = vsub.s32 0, %v7047
        %v7049 = vrot.slane %v7027, %v7048
        %v7050 = vmul.f32 %v7030, %v7049
        %v7051 = vmul.f32 %v7031, %v7049
        %v7052 = vmul.f32 %v7032, %v7049
        %v7053 = vmul.f32 %v7033, %v7049
        %v7054 = vmul.f32 %v7034, %v7049
        %v7055 = vmul.f32 %v7035, %v7049
        %v7056 = vmul.f32 %v7036, %v7049
        %v7057 = vmul.f32 %v7037, %v7049
        %v7058 = vmul.f32 %v7038, %v7049
        %v7059 = vmul.f32 %v7039, %v7049
        %v7060 = vmul.f32 %v7040, %v7049
        %v7061 = vmul.f32 %v7041, %v7049
        %v7062 = vmul.f32 %v7042, %v7049
        %v7063 = vmul.f32 %v7043, %v7049
        %v7064 = vmul.f32 %v7044, %v7049
        %v7065 = vmul.f32 %v7045, %v7049
        %v7066 = vadd.f32 %v7050, 0.0
        %v7067 = vadd.f32 %v7051, 0.0
        %v7068 = vadd.f32 %v7052, 0.0
        %v7069 = vadd.f32 %v7053, 0.0
        %v7070 = vadd.f32 %v7054, 0.0
        %v7071 = vadd.f32 %v7055, 0.0
        %v7072 = vadd.f32 %v7056, 0.0
        %v7073 = vadd.f32 %v7057, 0.0
        %v7074 = vadd.f32 %v7058, 0.0
        %v7075 = vadd.f32 %v7059, 0.0
        %v7076 = vadd.f32 %v7060, 0.0
        %v7077 = vadd.f32 %v7061, 0.0
        %v7078 = vadd.f32 %v7062, 0.0
        %v7079 = vadd.f32 %v7063, 0.0
        %v7080 = vadd.f32 %v7064, 0.0
        %v7081 = vadd.f32 %v7065, 0.0
        %v7082 = vld [vmem:[#allocation3] sm:$0xff]
        %v7083 = vld [vmem:[#allocation3 + $0x10] sm:$0xff]
        %v7084 = vld [vmem:[#allocation3 + $0x20] sm:$0xff]
        %v7085 = vld [vmem:[#allocation3 + $0x30] sm:$0xff]
        %v7086 = vld [vmem:[#allocation3 + $0x40] sm:$0xff]
        %v7087 = vld [vmem:[#allocation3 + $0x50] sm:$0xff]
        %v7088 = vld [vmem:[#allocation3 + $0x60] sm:$0xff]
        %v7089 = vld [vmem:[#allocation3 + $0x70] sm:$0xff]
        %v7090 = vld [vmem:[#allocation3 + $0x80] sm:$0xff]
        %v7091 = vld [vmem:[#allocation3 + $0x90] sm:$0xff]
        %v7092 = vld [vmem:[#allocation3 + $0xa0] sm:$0xff]
        %v7093 = vld [vmem:[#allocation3 + $0xb0] sm:$0xff]
        %v7094 = vld [vmem:[#allocation3 + $0xc0] sm:$0xff]
        %v7095 = vld [vmem:[#allocation3 + $0xd0] sm:$0xff]
        %v7096 = vld [vmem:[#allocation3 + $0xe0] sm:$0xff]
        %v7097 = vld [vmem:[#allocation3 + $0xf0] sm:$0xff]
        %v7098 = vlaneseq
        %v7099 = vshrl.u32 %v7098, 7
        %v7100 = vsub.s32 1, %v7099
        %v7101 = vrot.slane %v7027, %v7100
        %v7102 = vmul.f32 %v7082, %v7101
        %v7103 = vmul.f32 %v7083, %v7101
        %v7104 = vmul.f32 %v7084, %v7101
        %v7105 = vmul.f32 %v7085, %v7101
        %v7106 = vmul.f32 %v7086, %v7101
        %v7107 = vmul.f32 %v7087, %v7101
        %v7108 = vmul.f32 %v7088, %v7101
        %v7109 = vmul.f32 %v7089, %v7101
        %v7110 = vmul.f32 %v7090, %v7101
        %v7111 = vmul.f32 %v7091, %v7101
        %v7112 = vmul.f32 %v7092, %v7101
        %v7113 = vmul.f32 %v7093, %v7101
        %v7114 = vmul.f32 %v7094, %v7101
        %v7115 = vmul.f32 %v7095, %v7101
        %v7116 = vmul.f32 %v7096, %v7101
        %v7117 = vmul.f32 %v7097, %v7101
        %v7118 = vadd.f32 %v7066, %v7102
        %v7119 = vadd.f32 %v7067, %v7103
        %v7120 = vadd.f32 %v7068, %v7104
        %v7121 = vadd.f32 %v7069, %v7105
        %v7122 = vadd.f32 %v7070, %v7106
        %v7123 = vadd.f32 %v7071, %v7107
        %v7124 = vadd.f32 %v7072, %v7108
        %v7125 = vadd.f32 %v7073, %v7109
        %v7126 = vadd.f32 %v7074, %v7110
        %v7127 = vadd.f32 %v7075, %v7111
        %v7128 = vadd.f32 %v7076, %v7112
        %v7129 = vadd.f32 %v7077, %v7113
        %v7130 = vadd.f32 %v7078, %v7114
        %v7131 = vadd.f32 %v7079, %v7115
        %v7132 = vadd.f32 %v7080, %v7116
        %v7133 = vadd.f32 %v7081, %v7117
        %v7134 = vld [vmem:[#allocation5] sm:$0xff]
        %v7135 = vld [vmem:[#allocation5 + $0x10] sm:$0xff]
        %v7136 = vld [vmem:[#allocation5 + $0x20] sm:$0xff]
        %v7137 = vld [vmem:[#allocation5 + $0x30] sm:$0xff]
        %v7138 = vld [vmem:[#allocation5 + $0x40] sm:$0xff]
        %v7139 = vld [vmem:[#allocation5 + $0x50] sm:$0xff]
        %v7140 = vld [vmem:[#allocation5 + $0x60] sm:$0xff]
        %v7141 = vld [vmem:[#allocation5 + $0x70] sm:$0xff]
        %v7142 = vld [vmem:[#allocation5 + $0x80] sm:$0xff]
        %v7143 = vld [vmem:[#allocation5 + $0x90] sm:$0xff]
        %v7144 = vld [vmem:[#allocation5 + $0xa0] sm:$0xff]
        %v7145 = vld [vmem:[#allocation5 + $0xb0] sm:$0xff]
        %v7146 = vld [vmem:[#allocation5 + $0xc0] sm:$0xff]
        %v7147 = vld [vmem:[#allocation5 + $0xd0] sm:$0xff]
        %v7148 = vld [vmem:[#allocation5 + $0xe0] sm:$0xff]
        %v7149 = vld [vmem:[#allocation5 + $0xf0] sm:$0xff]
        %v7150 = vlaneseq
        %v7151 = vshrl.u32 %v7150, 7
        %v7152 = vsub.s32 2, %v7151
        %v7153 = vrot.slane %v7027, %v7152
        %v7154 = vmul.f32 %v7134, %v7153
        %v7155 = vmul.f32 %v7135, %v7153
        %v7156 = vmul.f32 %v7136, %v7153
        %v7157 = vmul.f32 %v7137, %v7153
        %v7158 = vmul.f32 %v7138, %v7153
        %v7159 = vmul.f32 %v7139, %v7153
        %v7160 = vmul.f32 %v7140, %v7153
        %v7161 = vmul.f32 %v7141, %v7153
        %v7162 = vmul.f32 %v7142, %v7153
        %v7163 = vmul.f32 %v7143, %v7153
        %v7164 = vmul.f32 %v7144, %v7153
        %v7165 = vmul.f32 %v7145, %v7153
        %v7166 = vmul.f32 %v7146, %v7153
        %v7167 = vmul.f32 %v7147, %v7153
        %v7168 = vmul.f32 %v7148, %v7153
        %v7169 = vmul.f32 %v7149, %v7153
        %v7170 = vadd.f32 %v7118, %v7154
        %v7171 = vadd.f32 %v7119, %v7155
        %v7172 = vadd.f32 %v7120, %v7156
        %v7173 = vadd.f32 %v7121, %v7157
        %v7174 = vadd.f32 %v7122, %v7158
        %v7175 = vadd.f32 %v7123, %v7159
        %v7176 = vadd.f32 %v7124, %v7160
        %v7177 = vadd.f32 %v7125, %v7161
        %v7178 = vadd.f32 %v7126, %v7162
        %v7179 = vadd.f32 %v7127, %v7163
        %v7180 = vadd.f32 %v7128, %v7164
        %v7181 = vadd.f32 %v7129, %v7165
        %v7182 = vadd.f32 %v7130, %v7166
        %v7183 = vadd.f32 %v7131, %v7167
        %v7184 = vadd.f32 %v7132, %v7168
        %v7185 = vadd.f32 %v7133, %v7169
        %v7186 = vld [vmem:[#allocation4 + $0x100] sm:$0xff]
        %v7187 = vld [vmem:[#allocation4 + $0x110] sm:$0xff]
        %v7188 = vlaneseq
        %v7189 = vshrl.u32 %v7188, 7
        %v7190 = vsub.s32 3, %v7189
        %v7191 = vrot.slane %v7027, %v7190
        %v7192 = vmul.f32 %v7032, %v7191
        %v7193 = vmul.f32 %v7033, %v7191
        %v7194 = vmul.f32 %v7034, %v7191
        %v7195 = vmul.f32 %v7035, %v7191
        %v7196 = vmul.f32 %v7036, %v7191
        %v7197 = vmul.f32 %v7037, %v7191
        %v7198 = vmul.f32 %v7038, %v7191
        %v7199 = vmul.f32 %v7039, %v7191
        %v7200 = vmul.f32 %v7040, %v7191
        %v7201 = vmul.f32 %v7041, %v7191
        %v7202 = vmul.f32 %v7042, %v7191
        %v7203 = vmul.f32 %v7043, %v7191
        %v7204 = vmul.f32 %v7044, %v7191
        %v7205 = vmul.f32 %v7045, %v7191
        %v7206 = vmul.f32 %v7186, %v7191
        %v7207 = vmul.f32 %v7187, %v7191
        %v7208 = vadd.f32 %v7170, %v7192
        %v7209 = vadd.f32 %v7171, %v7193
        %v7210 = vadd.f32 %v7172, %v7194
        %v7211 = vadd.f32 %v7173, %v7195
        %v7212 = vadd.f32 %v7174, %v7196
        %v7213 = vadd.f32 %v7175, %v7197
        %v7214 = vadd.f32 %v7176, %v7198
        %v7215 = vadd.f32 %v7177, %v7199
        %v7216 = vadd.f32 %v7178, %v7200
        %v7217 = vadd.f32 %v7179, %v7201
        %v7218 = vadd.f32 %v7180, %v7202
        %v7219 = vadd.f32 %v7181, %v7203
        %v7220 = vadd.f32 %v7182, %v7204
        %v7221 = vadd.f32 %v7183, %v7205
        %v7222 = vadd.f32 %v7184, %v7206
        %v7223 = vadd.f32 %v7185, %v7207
        %v7224 = vld [vmem:[#allocation3 + $0x100] sm:$0xff]
        %v7225 = vld [vmem:[#allocation3 + $0x110] sm:$0xff]
        %v7226 = vlaneseq
        %v7227 = vshrl.u32 %v7226, 7
        %v7228 = vsub.s32 4, %v7227
        %v7229 = vrot.slane %v7027, %v7228
        %v7230 = vmul.f32 %v7084, %v7229
        %v7231 = vmul.f32 %v7085, %v7229
        %v7232 = vmul.f32 %v7086, %v7229
        %v7233 = vmul.f32 %v7087, %v7229
        %v7234 = vmul.f32 %v7088, %v7229
        %v7235 = vmul.f32 %v7089, %v7229
        %v7236 = vmul.f32 %v7090, %v7229
        %v7237 = vmul.f32 %v7091, %v7229
        %v7238 = vmul.f32 %v7092, %v7229
        %v7239 = vmul.f32 %v7093, %v7229
        %v7240 = vmul.f32 %v7094, %v7229
        %v7241 = vmul.f32 %v7095, %v7229
        %v7242 = vmul.f32 %v7096, %v7229
        %v7243 = vmul.f32 %v7097, %v7229
        %v7244 = vmul.f32 %v7224, %v7229
        %v7245 = vmul.f32 %v7225, %v7229
        %v7246 = vadd.f32 %v7208, %v7230
        %v7247 = vadd.f32 %v7209, %v7231
        %v7248 = vadd.f32 %v7210, %v7232
        %v7249 = vadd.f32 %v7211, %v7233
        %v7250 = vadd.f32 %v7212, %v7234
        %v7251 = vadd.f32 %v7213, %v7235
        %v7252 = vadd.f32 %v7214, %v7236
        %v7253 = vadd.f32 %v7215, %v7237
        %v7254 = vadd.f32 %v7216, %v7238
        %v7255 = vadd.f32 %v7217, %v7239
        %v7256 = vadd.f32 %v7218, %v7240
        %v7257 = vadd.f32 %v7219, %v7241
        %v7258 = vadd.f32 %v7220, %v7242
        %v7259 = vadd.f32 %v7221, %v7243
        %v7260 = vadd.f32 %v7222, %v7244
        %v7261 = vadd.f32 %v7223, %v7245
        %v7262 = vld [vmem:[#allocation5 + $0x100] sm:$0xff]
        %v7263 = vld [vmem:[#allocation5 + $0x110] sm:$0xff]
        %v7264 = vlaneseq
        %v7265 = vshrl.u32 %v7264, 7
        %v7266 = vsub.s32 5, %v7265
        %v7267 = vrot.slane %v7027, %v7266
        %v7268 = vmul.f32 %v7136, %v7267
        %v7269 = vmul.f32 %v7137, %v7267
        %v7270 = vmul.f32 %v7138, %v7267
        %v7271 = vmul.f32 %v7139, %v7267
        %v7272 = vmul.f32 %v7140, %v7267
        %v7273 = vmul.f32 %v7141, %v7267
        %v7274 = vmul.f32 %v7142, %v7267
        %v7275 = vmul.f32 %v7143, %v7267
        %v7276 = vmul.f32 %v7144, %v7267
        %v7277 = vmul.f32 %v7145, %v7267
        %v7278 = vmul.f32 %v7146, %v7267
        %v7279 = vmul.f32 %v7147, %v7267
        %v7280 = vmul.f32 %v7148, %v7267
        %v7281 = vmul.f32 %v7149, %v7267
        %v7282 = vmul.f32 %v7262, %v7267
        %v7283 = vmul.f32 %v7263, %v7267
        %v7284 = vadd.f32 %v7246, %v7268
        %v7285 = vadd.f32 %v7247, %v7269
        %v7286 = vadd.f32 %v7248, %v7270
        %v7287 = vadd.f32 %v7249, %v7271
        %v7288 = vadd.f32 %v7250, %v7272
        %v7289 = vadd.f32 %v7251, %v7273
        %v7290 = vadd.f32 %v7252, %v7274
        %v7291 = vadd.f32 %v7253, %v7275
        %v7292 = vadd.f32 %v7254, %v7276
        %v7293 = vadd.f32 %v7255, %v7277
        %v7294 = vadd.f32 %v7256, %v7278
        %v7295 = vadd.f32 %v7257, %v7279
        %v7296 = vadd.f32 %v7258, %v7280
        %v7297 = vadd.f32 %v7259, %v7281
        %v7298 = vadd.f32 %v7260, %v7282
        %v7299 = vadd.f32 %v7261, %v7283
        %v7300 = vld [vmem:[#allocation4 + $0x120] sm:$0xff]
        %v7301 = vld [vmem:[#allocation4 + $0x130] sm:$0xff]
        %v7302 = vlaneseq
        %v7303 = vshrl.u32 %v7302, 7
        %v7304 = vsub.s32 6, %v7303
        %v7305 = vrot.slane %v7027, %v7304
        %v7306 = vmul.f32 %v7034, %v7305
        %v7307 = vmul.f32 %v7035, %v7305
        %v7308 = vmul.f32 %v7036, %v7305
        %v7309 = vmul.f32 %v7037, %v7305
        %v7310 = vmul.f32 %v7038, %v7305
        %v7311 = vmul.f32 %v7039, %v7305
        %v7312 = vmul.f32 %v7040, %v7305
        %v7313 = vmul.f32 %v7041, %v7305
        %v7314 = vmul.f32 %v7042, %v7305
        %v7315 = vmul.f32 %v7043, %v7305
        %v7316 = vmul.f32 %v7044, %v7305
        %v7317 = vmul.f32 %v7045, %v7305
        %v7318 = vmul.f32 %v7186, %v7305
        %v7319 = vmul.f32 %v7187, %v7305
        %v7320 = vmul.f32 %v7300, %v7305
        %v7321 = vmul.f32 %v7301, %v7305
        %v7322 = vadd.f32 %v7284, %v7306
        %v7323 = vadd.f32 %v7285, %v7307
        %v7324 = vadd.f32 %v7286, %v7308
        %v7325 = vadd.f32 %v7287, %v7309
        %v7326 = vadd.f32 %v7288, %v7310
        %v7327 = vadd.f32 %v7289, %v7311
        %v7328 = vadd.f32 %v7290, %v7312
        %v7329 = vadd.f32 %v7291, %v7313
        %v7330 = vadd.f32 %v7292, %v7314
        %v7331 = vadd.f32 %v7293, %v7315
        %v7332 = vadd.f32 %v7294, %v7316
        %v7333 = vadd.f32 %v7295, %v7317
        %v7334 = vadd.f32 %v7296, %v7318
        %v7335 = vadd.f32 %v7297, %v7319
        %v7336 = vadd.f32 %v7298, %v7320
        %v7337 = vadd.f32 %v7299, %v7321
        %v7338 = vld [vmem:[#allocation3 + $0x120] sm:$0xff]
        %v7339 = vld [vmem:[#allocation3 + $0x130] sm:$0xff]
        %v7340 = vlaneseq
        %v7341 = vshrl.u32 %v7340, 7
        %v7342 = vsub.s32 7, %v7341
        %v7343 = vrot.slane %v7027, %v7342
        %v7344 = vmul.f32 %v7086, %v7343
        %v7345 = vmul.f32 %v7087, %v7343
        %v7346 = vmul.f32 %v7088, %v7343
        %v7347 = vmul.f32 %v7089, %v7343
        %v7348 = vmul.f32 %v7090, %v7343
        %v7349 = vmul.f32 %v7091, %v7343
        %v7350 = vmul.f32 %v7092, %v7343
        %v7351 = vmul.f32 %v7093, %v7343
        %v7352 = vmul.f32 %v7094, %v7343
        %v7353 = vmul.f32 %v7095, %v7343
        %v7354 = vmul.f32 %v7096, %v7343
        %v7355 = vmul.f32 %v7097, %v7343
        %v7356 = vmul.f32 %v7224, %v7343
        %v7357 = vmul.f32 %v7225, %v7343
        %v7358 = vmul.f32 %v7338, %v7343
        %v7359 = vmul.f32 %v7339, %v7343
        %v7360 = vadd.f32 %v7322, %v7344
        %v7361 = vadd.f32 %v7323, %v7345
        %v7362 = vadd.f32 %v7324, %v7346
        %v7363 = vadd.f32 %v7325, %v7347
        %v7364 = vadd.f32 %v7326, %v7348
        %v7365 = vadd.f32 %v7327, %v7349
        %v7366 = vadd.f32 %v7328, %v7350
        %v7367 = vadd.f32 %v7329, %v7351
        %v7368 = vadd.f32 %v7330, %v7352
        %v7369 = vadd.f32 %v7331, %v7353
        %v7370 = vadd.f32 %v7332, %v7354
        %v7371 = vadd.f32 %v7333, %v7355
        %v7372 = vadd.f32 %v7334, %v7356
        %v7373 = vadd.f32 %v7335, %v7357
        %v7374 = vadd.f32 %v7336, %v7358
        %v7375 = vadd.f32 %v7337, %v7359
        %v7376 = vld [vmem:[#allocation5 + $0x120] sm:$0xff]
        %v7377 = vld [vmem:[#allocation5 + $0x130] sm:$0xff]
        %v7378 = vlaneseq
        %v7379 = vshrl.u32 %v7378, 7
        %v7380 = vsub.s32 0, %v7379
        %v7381 = vrot.slane %v7028, %v7380
        %v7382 = vmul.f32 %v7138, %v7381
        %v7383 = vmul.f32 %v7139, %v7381
        %v7384 = vmul.f32 %v7140, %v7381
        %v7385 = vmul.f32 %v7141, %v7381
        %v7386 = vmul.f32 %v7142, %v7381
        %v7387 = vmul.f32 %v7143, %v7381
        %v7388 = vmul.f32 %v7144, %v7381
        %v7389 = vmul.f32 %v7145, %v7381
        %v7390 = vmul.f32 %v7146, %v7381
        %v7391 = vmul.f32 %v7147, %v7381
        %v7392 = vmul.f32 %v7148, %v7381
        %v7393 = vmul.f32 %v7149, %v7381
        %v7394 = vmul.f32 %v7262, %v7381
        %v7395 = vmul.f32 %v7263, %v7381
        %v7396 = vmul.f32 %v7376, %v7381
        %v7397 = vmul.f32 %v7377, %v7381
        %v7398 = vadd.f32 %v7360, %v7382
        %v7399 = vadd.f32 %v7361, %v7383
        %v7400 = vadd.f32 %v7362, %v7384
        %v7401 = vadd.f32 %v7363, %v7385
        %v7402 = vadd.f32 %v7364, %v7386
        %v7403 = vadd.f32 %v7365, %v7387
        %v7404 = vadd.f32 %v7366, %v7388
        %v7405 = vadd.f32 %v7367, %v7389
        %v7406 = vadd.f32 %v7368, %v7390
        %v7407 = vadd.f32 %v7369, %v7391
        %v7408 = vadd.f32 %v7370, %v7392
        %v7409 = vadd.f32 %v7371, %v7393
        %v7410 = vadd.f32 %v7372, %v7394
        %v7411 = vadd.f32 %v7373, %v7395
        %v7412 = vadd.f32 %v7374, %v7396
        %v7413 = vadd.f32 %v7375, %v7397
        %v7414 = vadd.f32 %v7398, %v7029
        %v7415 = vadd.f32 %v7399, %v7029
        %v7416 = vadd.f32 %v7400, %v7029
        %v7417 = vadd.f32 %v7401, %v7029
        %v7418 = vadd.f32 %v7402, %v7029
        %v7419 = vadd.f32 %v7403, %v7029
        %v7420 = vadd.f32 %v7404, %v7029
        %v7421 = vadd.f32 %v7405, %v7029
        %v7422 = vadd.f32 %v7406, %v7029
        %v7423 = vadd.f32 %v7407, %v7029
        %v7424 = vadd.f32 %v7408, %v7029
        %v7425 = vadd.f32 %v7409, %v7029
        %v7426 = vadd.f32 %v7410, %v7029
        %v7427 = vadd.f32 %v7411, %v7029
        %v7428 = vadd.f32 %v7412, %v7029
        %v7429 = vadd.f32 %v7413, %v7029
        %7430 = vst [vmem:[#allocation6] sm:$0xff] %v7414
        %7431 = vst [vmem:[#allocation6 + $0x10] sm:$0xff] %v7415
        %7432 = vst [vmem:[#allocation6 + $0x20] sm:$0xff] %v7416
        %7433 = vst [vmem:[#allocation6 + $0x30] sm:$0xff] %v7417
        %7434 = vst [vmem:[#allocation6 + $0x40] sm:$0xff] %v7418
        %7435 = vst [vmem:[#allocation6 + $0x50] sm:$0xff] %v7419
        %7436 = vst [vmem:[#allocation6 + $0x60] sm:$0xff] %v7420
        %7437 = vst [vmem:[#allocation6 + $0x70] sm:$0xff] %v7421
        %7438 = vst [vmem:[#allocation6 + $0x80] sm:$0xff] %v7422
        %7439 = vst [vmem:[#allocation6 + $0x90] sm:$0xff] %v7423
        %7440 = vst [vmem:[#allocation6 + $0xa0] sm:$0xff] %v7424
        %7441 = vst [vmem:[#allocation6 + $0xb0] sm:$0xff] %v7425
        %7442 = vst [vmem:[#allocation6 + $0xc0] sm:$0xff] %v7426
        %7443 = vst [vmem:[#allocation6 + $0xd0] sm:$0xff] %v7427
        %7444 = vst [vmem:[#allocation6 + $0xe0] sm:$0xff] %v7428
        %7445 = vst [vmem:[#allocation6 + $0xf0] sm:$0xff] %v7429
        %v7446 = vld [vmem:[#allocation4 + $0x100] sm:$0xff]
        %v7447 = vld [vmem:[#allocation4 + $0x110] sm:$0xff]
        %v7448 = vld [vmem:[#allocation4 + $0x120] sm:$0xff]
        %v7449 = vld [vmem:[#allocation4 + $0x130] sm:$0xff]
        %v7450 = vld [vmem:[#allocation4 + $0x140] sm:$0xff]
        %v7451 = vld [vmem:[#allocation4 + $0x150] sm:$0xff]
        %v7452 = vld [vmem:[#allocation4 + $0x160] sm:$0xff]
        %v7453 = vld [vmem:[#allocation4 + $0x170] sm:$0xff]
        %v7454 = vld [vmem:[#allocation4 + $0x180] sm:$0xff]
        %v7455 = vld [vmem:[#allocation4 + $0x190] sm:$0xff]
        %v7456 = vld [vmem:[#allocation4 + $0x1a0] sm:$0xff]
        %v7457 = vld [vmem:[#allocation4 + $0x1b0] sm:$0xff]
        %v7458 = vld [vmem:[#allocation4 + $0x1c0] sm:$0xff]
        %v7459 = vld [vmem:[#allocation4 + $0x1d0] sm:$0xff]
        %v7460 = vld [vmem:[#allocation4 + $0x1e0] sm:$0xff]
        %v7461 = vld [vmem:[#allocation4 + $0x1f0] sm:$0xff]
        %v7462 = vmul.f32 %v7446, %v7049
        %v7463 = vmul.f32 %v7447, %v7049
        %v7464 = vmul.f32 %v7448, %v7049
        %v7465 = vmul.f32 %v7449, %v7049
        %v7466 = vmul.f32 %v7450, %v7049
        %v7467 = vmul.f32 %v7451, %v7049
        %v7468 = vmul.f32 %v7452, %v7049
        %v7469 = vmul.f32 %v7453, %v7049
        %v7470 = vmul.f32 %v7454, %v7049
        %v7471 = vmul.f32 %v7455, %v7049
        %v7472 = vmul.f32 %v7456, %v7049
        %v7473 = vmul.f32 %v7457, %v7049
        %v7474 = vmul.f32 %v7458, %v7049
        %v7475 = vmul.f32 %v7459, %v7049
        %v7476 = vmul.f32 %v7460, %v7049
        %v7477 = vmul.f32 %v7461, %v7049
        %v7478 = vadd.f32 %v7462, 0.0
        %v7479 = vadd.f32 %v7463, 0.0
        %v7480 = vadd.f32 %v7464, 0.0
        %v7481 = vadd.f32 %v7465, 0.0
        %v7482 = vadd.f32 %v7466, 0.0
        %v7483 = vadd.f32 %v7467, 0.0
        %v7484 = vadd.f32 %v7468, 0.0
        %v7485 = vadd.f32 %v7469, 0.0
        %v7486 = vadd.f32 %v7470, 0.0
        %v7487 = vadd.f32 %v7471, 0.0
        %v7488 = vadd.f32 %v7472, 0.0
        %v7489 = vadd.f32 %v7473, 0.0
        %v7490 = vadd.f32 %v7474, 0.0
        %v7491 = vadd.f32 %v7475, 0.0
        %v7492 = vadd.f32 %v7476, 0.0
        %v7493 = vadd.f32 %v7477, 0.0
        %v7494 = vld [vmem:[#allocation3 + $0x100] sm:$0xff]
        %v7495 = vld [vmem:[#allocation3 + $0x110] sm:$0xff]
        %v7496 = vld [vmem:[#allocation3 + $0x120] sm:$0xff]
        %v7497 = vld [vmem:[#allocation3 + $0x130] sm:$0xff]
        %v7498 = vld [vmem:[#allocation3 + $0x140] sm:$0xff]
        %v7499 = vld [vmem:[#allocation3 + $0x150] sm:$0xff]
        %v7500 = vld [vmem:[#allocation3 + $0x160] sm:$0xff]
        %v7501 = vld [vmem:[#allocation3 + $0x170] sm:$0xff]
        %v7502 = vld [vmem:[#allocation3 + $0x180] sm:$0xff]
        %v7503 = vld [vmem:[#allocation3 + $0x190] sm:$0xff]
        %v7504 = vld [vmem:[#allocation3 + $0x1a0] sm:$0xff]
        %v7505 = vld [vmem:[#allocation3 + $0x1b0] sm:$0xff]
        %v7506 = vld [vmem:[#allocation3 + $0x1c0] sm:$0xff]
        %v7507 = vld [vmem:[#allocation3 + $0x1d0] sm:$0xff]
        %v7508 = vld [vmem:[#allocation3 + $0x1e0] sm:$0xff]
        %v7509 = vld [vmem:[#allocation3 + $0x1f0] sm:$0xff]
        %v7510 = vmul.f32 %v7494, %v7101
        %v7511 = vmul.f32 %v7495, %v7101
        %v7512 = vmul.f32 %v7496, %v7101
        %v7513 = vmul.f32 %v7497, %v7101
        %v7514 = vmul.f32 %v7498, %v7101
        %v7515 = vmul.f32 %v7499, %v7101
        %v7516 = vmul.f32 %v7500, %v7101
        %v7517 = vmul.f32 %v7501, %v7101
        %v7518 = vmul.f32 %v7502, %v7101
        %v7519 = vmul.f32 %v7503, %v7101
        %v7520 = vmul.f32 %v7504, %v7101
        %v7521 = vmul.f32 %v7505, %v7101
        %v7522 = vmul.f32 %v7506, %v7101
        %v7523 = vmul.f32 %v7507, %v7101
        %v7524 = vmul.f32 %v7508, %v7101
        %v7525 = vmul.f32 %v7509, %v7101
        %v7526 = vadd.f32 %v7478, %v7510
        %v7527 = vadd.f32 %v7479, %v7511
        %v7528 = vadd.f32 %v7480, %v7512
        %v7529 = vadd.f32 %v7481, %v7513
        %v7530 = vadd.f32 %v7482, %v7514
        %v7531 = vadd.f32 %v7483, %v7515
        %v7532 = vadd.f32 %v7484, %v7516
        %v7533 = vadd.f32 %v7485, %v7517
        %v7534 = vadd.f32 %v7486, %v7518
        %v7535 = vadd.f32 %v7487, %v7519
        %v7536 = vadd.f32 %v7488, %v7520
        %v7537 = vadd.f32 %v7489, %v7521
        %v7538 = vadd.f32 %v7490, %v7522
        %v7539 = vadd.f32 %v7491, %v7523
        %v7540 = vadd.f32 %v7492, %v7524
        %v7541 = vadd.f32 %v7493, %v7525
        %v7542 = vld [vmem:[#allocation5 + $0x100] sm:$0xff]
        %v7543 = vld [vmem:[#allocation5 + $0x110] sm:$0xff]
        %v7544 = vld [vmem:[#allocation5 + $0x120] sm:$0xff]
        %v7545 = vld [vmem:[#allocation5 + $0x130] sm:$0xff]
        %v7546 = vld [vmem:[#allocation5 + $0x140] sm:$0xff]
        %v7547 = vld [vmem:[#allocation5 + $0x150] sm:$0xff]
        %v7548 = vld [vmem:[#allocation5 + $0x160] sm:$0xff]
        %v7549 = vld [vmem:[#allocation5 + $0x170] sm:$0xff]
        %v7550 = vld [vmem:[#allocation5 + $0x180] sm:$0xff]
        %v7551 = vld [vmem:[#allocation5 + $0x190] sm:$0xff]
        %v7552 = vld [vmem:[#allocation5 + $0x1a0] sm:$0xff]
        %v7553 = vld [vmem:[#allocation5 + $0x1b0] sm:$0xff]
        %v7554 = vld [vmem:[#allocation5 + $0x1c0] sm:$0xff]
        %v7555 = vld [vmem:[#allocation5 + $0x1d0] sm:$0xff]
        %v7556 = vld [vmem:[#allocation5 + $0x1e0] sm:$0xff]
        %v7557 = vld [vmem:[#allocation5 + $0x1f0] sm:$0xff]
        %v7558 = vmul.f32 %v7542, %v7153
        %v7559 = vmul.f32 %v7543, %v7153
        %v7560 = vmul.f32 %v7544, %v7153
        %v7561 = vmul.f32 %v7545, %v7153
        %v7562 = vmul.f32 %v7546, %v7153
        %v7563 = vmul.f32 %v7547, %v7153
        %v7564 = vmul.f32 %v7548, %v7153
        %v7565 = vmul.f32 %v7549, %v7153
        %v7566 = vmul.f32 %v7550, %v7153
        %v7567 = vmul.f32 %v7551, %v7153
        %v7568 = vmul.f32 %v7552, %v7153
        %v7569 = vmul.f32 %v7553, %v7153
        %v7570 = vmul.f32 %v7554, %v7153
        %v7571 = vmul.f32 %v7555, %v7153
        %v7572 = vmul.f32 %v7556, %v7153
        %v7573 = vmul.f32 %v7557, %v7153
        %v7574 = vadd.f32 %v7526, %v7558
        %v7575 = vadd.f32 %v7527, %v7559
        %v7576 = vadd.f32 %v7528, %v7560
        %v7577 = vadd.f32 %v7529, %v7561
        %v7578 = vadd.f32 %v7530, %v7562
        %v7579 = vadd.f32 %v7531, %v7563
        %v7580 = vadd.f32 %v7532, %v7564
        %v7581 = vadd.f32 %v7533, %v7565
        %v7582 = vadd.f32 %v7534, %v7566
        %v7583 = vadd.f32 %v7535, %v7567
        %v7584 = vadd.f32 %v7536, %v7568
        %v7585 = vadd.f32 %v7537, %v7569
        %v7586 = vadd.f32 %v7538, %v7570
        %v7587 = vadd.f32 %v7539, %v7571
        %v7588 = vadd.f32 %v7540, %v7572
        %v7589 = vadd.f32 %v7541, %v7573
        %v7590 = vld [vmem:[#allocation4 + $0x200] sm:$0xff]
        %v7591 = vld [vmem:[#allocation4 + $0x210] sm:$0xff]
        %v7592 = vmul.f32 %v7448, %v7191
        %v7593 = vmul.f32 %v7449, %v7191
        %v7594 = vmul.f32 %v7450, %v7191
        %v7595 = vmul.f32 %v7451, %v7191
        %v7596 = vmul.f32 %v7452, %v7191
        %v7597 = vmul.f32 %v7453, %v7191
        %v7598 = vmul.f32 %v7454, %v7191
        %v7599 = vmul.f32 %v7455, %v7191
        %v7600 = vmul.f32 %v7456, %v7191
        %v7601 = vmul.f32 %v7457, %v7191
        %v7602 = vmul.f32 %v7458, %v7191
        %v7603 = vmul.f32 %v7459, %v7191
        %v7604 = vmul.f32 %v7460, %v7191
        %v7605 = vmul.f32 %v7461, %v7191
        %v7606 = vmul.f32 %v7590, %v7191
        %v7607 = vmul.f32 %v7591, %v7191
        %v7608 = vadd.f32 %v7574, %v7592
        %v7609 = vadd.f32 %v7575, %v7593
        %v7610 = vadd.f32 %v7576, %v7594
        %v7611 = vadd.f32 %v7577, %v7595
        %v7612 = vadd.f32 %v7578, %v7596
        %v7613 = vadd.f32 %v7579, %v7597
        %v7614 = vadd.f32 %v7580, %v7598
        %v7615 = vadd.f32 %v7581, %v7599
        %v7616 = vadd.f32 %v7582, %v7600
        %v7617 = vadd.f32 %v7583, %v7601
        %v7618 = vadd.f32 %v7584, %v7602
        %v7619 = vadd.f32 %v7585, %v7603
        %v7620 = vadd.f32 %v7586, %v7604
        %v7621 = vadd.f32 %v7587, %v7605
        %v7622 = vadd.f32 %v7588, %v7606
        %v7623 = vadd.f32 %v7589, %v7607
        %v7624 = vld [vmem:[#allocation3 + $0x200] sm:$0xff]
        %v7625 = vld [vmem:[#allocation3 + $0x210] sm:$0xff]
        %v7626 = vmul.f32 %v7496, %v7229
        %v7627 = vmul.f32 %v7497, %v7229
        %v7628 = vmul.f32 %v7498, %v7229
        %v7629 = vmul.f32 %v7499, %v7229
        %v7630 = vmul.f32 %v7500, %v7229
        %v7631 = vmul.f32 %v7501, %v7229
        %v7632 = vmul.f32 %v7502, %v7229
        %v7633 = vmul.f32 %v7503, %v7229
        %v7634 = vmul.f32 %v7504, %v7229
        %v7635 = vmul.f32 %v7505, %v7229
        %v7636 = vmul.f32 %v7506, %v7229
        %v7637 = vmul.f32 %v7507, %v7229
        %v7638 = vmul.f32 %v7508, %v7229
        %v7639 = vmul.f32 %v7509, %v7229
        %v7640 = vmul.f32 %v7624, %v7229
        %v7641 = vmul.f32 %v7625, %v7229
        %v7642 = vadd.f32 %v7608, %v7626
        %v7643 = vadd.f32 %v7609, %v7627
        %v7644 = vadd.f32 %v7610, %v7628
        %v7645 = vadd.f32 %v7611, %v7629
        %v7646 = vadd.f32 %v7612, %v7630
        %v7647 = vadd.f32 %v7613, %v7631
        %v7648 = vadd.f32 %v7614, %v7632
        %v7649 = vadd.f32 %v7615, %v7633
        %v7650 = vadd.f32 %v7616, %v7634
        %v7651 = vadd.f32 %v7617, %v7635
        %v7652 = vadd.f32 %v7618, %v7636
        %v7653 = vadd.f32 %v7619, %v7637
        %v7654 = vadd.f32 %v7620, %v7638
        %v7655 = vadd.f32 %v7621, %v7639
        %v7656 = vadd.f32 %v7622, %v7640
        %v7657 = vadd.f32 %v7623, %v7641
        %v7658 = vld [vmem:[#allocation5 + $0x200] sm:$0xff]
        %v7659 = vld [vmem:[#allocation5 + $0x210] sm:$0xff]
        %v7660 = vmul.f32 %v7544, %v7267
        %v7661 = vmul.f32 %v7545, %v7267
        %v7662 = vmul.f32 %v7546, %v7267
        %v7663 = vmul.f32 %v7547, %v7267
        %v7664 = vmul.f32 %v7548, %v7267
        %v7665 = vmul.f32 %v7549, %v7267
        %v7666 = vmul.f32 %v7550, %v7267
        %v7667 = vmul.f32 %v7551, %v7267
        %v7668 = vmul.f32 %v7552, %v7267
        %v7669 = vmul.f32 %v7553, %v7267
        %v7670 = vmul.f32 %v7554, %v7267
        %v7671 = vmul.f32 %v7555, %v7267
        %v7672 = vmul.f32 %v7556, %v7267
        %v7673 = vmul.f32 %v7557, %v7267
        %v7674 = vmul.f32 %v7658, %v7267
        %v7675 = vmul.f32 %v7659, %v7267
        %v7676 = vadd.f32 %v7642, %v7660
        %v7677 = vadd.f32 %v7643, %v7661
        %v7678 = vadd.f32 %v7644, %v7662
        %v7679 = vadd.f32 %v7645, %v7663
        %v7680 = vadd.f32 %v7646, %v7664
        %v7681 = vadd.f32 %v7647, %v7665
        %v7682 = vadd.f32 %v7648, %v7666
        %v7683 = vadd.f32 %v7649, %v7667
        %v7684 = vadd.f32 %v7650, %v7668
        %v7685 = vadd.f32 %v7651, %v7669
        %v7686 = vadd.f32 %v7652, %v7670
        %v7687 = vadd.f32 %v7653, %v7671
        %v7688 = vadd.f32 %v7654, %v7672
        %v7689 = vadd.f32 %v7655, %v7673
        %v7690 = vadd.f32 %v7656, %v7674
        %v7691 = vadd.f32 %v7657, %v7675
        %v7692 = vld [vmem:[#allocation4 + $0x220] sm:$0xff]
        %v7693 = vld [vmem:[#allocation4 + $0x230] sm:$0xff]
        %v7694 = vmul.f32 %v7450, %v7305
        %v7695 = vmul.f32 %v7451, %v7305
        %v7696 = vmul.f32 %v7452, %v7305
        %v7697 = vmul.f32 %v7453, %v7305
        %v7698 = vmul.f32 %v7454, %v7305
        %v7699 = vmul.f32 %v7455, %v7305
        %v7700 = vmul.f32 %v7456, %v7305
        %v7701 = vmul.f32 %v7457, %v7305
        %v7702 = vmul.f32 %v7458, %v7305
        %v7703 = vmul.f32 %v7459, %v7305
        %v7704 = vmul.f32 %v7460, %v7305
        %v7705 = vmul.f32 %v7461, %v7305
        %v7706 = vmul.f32 %v7590, %v7305
        %v7707 = vmul.f32 %v7591, %v7305
        %v7708 = vmul.f32 %v7692, %v7305
        %v7709 = vmul.f32 %v7693, %v7305
        %v7710 = vadd.f32 %v7676, %v7694
        %v7711 = vadd.f32 %v7677, %v7695
        %v7712 = vadd.f32 %v7678, %v7696
        %v7713 = vadd.f32 %v7679, %v7697
        %v7714 = vadd.f32 %v7680, %v7698
        %v7715 = vadd.f32 %v7681, %v7699
        %v7716 = vadd.f32 %v7682, %v7700
        %v7717 = vadd.f32 %v7683, %v7701
        %v7718 = vadd.f32 %v7684, %v7702
        %v7719 = vadd.f32 %v7685, %v7703
        %v7720 = vadd.f32 %v7686, %v7704
        %v7721 = vadd.f32 %v7687, %v7705
        %v7722 = vadd.f32 %v7688, %v7706
        %v7723 = vadd.f32 %v7689, %v7707
        %v7724 = vadd.f32 %v7690, %v7708
        %v7725 = vadd.f32 %v7691, %v7709
        %v7726 = vld [vmem:[#allocation3 + $0x220] sm:$0xff]
        %v7727 = vld [vmem:[#allocation3 + $0x230] sm:$0xff]
        %v7728 = vmul.f32 %v7498, %v7343
        %v7729 = vmul.f32 %v7499, %v7343
        %v7730 = vmul.f32 %v7500, %v7343
        %v7731 = vmul.f32 %v7501, %v7343
        %v7732 = vmul.f32 %v7502, %v7343
        %v7733 = vmul.f32 %v7503, %v7343
        %v7734 = vmul.f32 %v7504, %v7343
        %v7735 = vmul.f32 %v7505, %v7343
        %v7736 = vmul.f32 %v7506, %v7343
        %v7737 = vmul.f32 %v7507, %v7343
        %v7738 = vmul.f32 %v7508, %v7343
        %v7739 = vmul.f32 %v7509, %v7343
        %v7740 = vmul.f32 %v7624, %v7343
        %v7741 = vmul.f32 %v7625, %v7343
        %v7742 = vmul.f32 %v7726, %v7343
        %v7743 = vmul.f32 %v7727, %v7343
        %v7744 = vadd.f32 %v7710, %v7728
        %v7745 = vadd.f32 %v7711, %v7729
        %v7746 = vadd.f32 %v7712, %v7730
        %v7747 = vadd.f32 %v7713, %v7731
        %v7748 = vadd.f32 %v7714, %v7732
        %v7749 = vadd.f32 %v7715, %v7733
        %v7750 = vadd.f32 %v7716, %v7734
        %v7751 = vadd.f32 %v7717, %v7735
        %v7752 = vadd.f32 %v7718, %v7736
        %v7753 = vadd.f32 %v7719, %v7737
        %v7754 = vadd.f32 %v7720, %v7738
        %v7755 = vadd.f32 %v7721, %v7739
        %v7756 = vadd.f32 %v7722, %v7740
        %v7757 = vadd.f32 %v7723, %v7741
        %v7758 = vadd.f32 %v7724, %v7742
        %v7759 = vadd.f32 %v7725, %v7743
        %v7760 = vld [vmem:[#allocation5 + $0x220] sm:$0xff]
        %v7761 = vld [vmem:[#allocation5 + $0x230] sm:$0xff]
        %v7762 = vmul.f32 %v7546, %v7381
        %v7763 = vmul.f32 %v7547, %v7381
        %v7764 = vmul.f32 %v7548, %v7381
        %v7765 = vmul.f32 %v7549, %v7381
        %v7766 = vmul.f32 %v7550, %v7381
        %v7767 = vmul.f32 %v7551, %v7381
        %v7768 = vmul.f32 %v7552, %v7381
        %v7769 = vmul.f32 %v7553, %v7381
        %v7770 = vmul.f32 %v7554, %v7381
        %v7771 = vmul.f32 %v7555, %v7381
        %v7772 = vmul.f32 %v7556, %v7381
        %v7773 = vmul.f32 %v7557, %v7381
        %v7774 = vmul.f32 %v7658, %v7381
        %v7775 = vmul.f32 %v7659, %v7381
        %v7776 = vmul.f32 %v7760, %v7381
        %v7777 = vmul.f32 %v7761, %v7381
        %v7778 = vadd.f32 %v7744, %v7762
        %v7779 = vadd.f32 %v7745, %v7763
        %v7780 = vadd.f32 %v7746, %v7764
        %v7781 = vadd.f32 %v7747, %v7765
        %v7782 = vadd.f32 %v7748, %v7766
        %v7783 = vadd.f32 %v7749, %v7767
        %v7784 = vadd.f32 %v7750, %v7768
        %v7785 = vadd.f32 %v7751, %v7769
        %v7786 = vadd.f32 %v7752, %v7770
        %v7787 = vadd.f32 %v7753, %v7771
        %v7788 = vadd.f32 %v7754, %v7772
        %v7789 = vadd.f32 %v7755, %v7773
        %v7790 = vadd.f32 %v7756, %v7774
        %v7791 = vadd.f32 %v7757, %v7775
        %v7792 = vadd.f32 %v7758, %v7776
        %v7793 = vadd.f32 %v7759, %v7777
        %v7794 = vadd.f32 %v7778, %v7029
        %v7795 = vadd.f32 %v7779, %v7029
        %v7796 = vadd.f32 %v7780, %v7029
        %v7797 = vadd.f32 %v7781, %v7029
        %v7798 = vadd.f32 %v7782, %v7029
        %v7799 = vadd.f32 %v7783, %v7029
        %v7800 = vadd.f32 %v7784, %v7029
        %v7801 = vadd.f32 %v7785, %v7029
        %v7802 = vadd.f32 %v7786, %v7029
        %v7803 = vadd.f32 %v7787, %v7029
        %v7804 = vadd.f32 %v7788, %v7029
        %v7805 = vadd.f32 %v7789, %v7029
        %v7806 = vadd.f32 %v7790, %v7029
        %v7807 = vadd.f32 %v7791, %v7029
        %v7808 = vadd.f32 %v7792, %v7029
        %v7809 = vadd.f32 %v7793, %v7029
        %7810 = vst [vmem:[#allocation6 + $0x100] sm:$0xff] %v7794
        %7811 = vst [vmem:[#allocation6 + $0x110] sm:$0xff] %v7795
        %7812 = vst [vmem:[#allocation6 + $0x120] sm:$0xff] %v7796
        %7813 = vst [vmem:[#allocation6 + $0x130] sm:$0xff] %v7797
        %7814 = vst [vmem:[#allocation6 + $0x140] sm:$0xff] %v7798
        %7815 = vst [vmem:[#allocation6 + $0x150] sm:$0xff] %v7799
        %7816 = vst [vmem:[#allocation6 + $0x160] sm:$0xff] %v7800
        %7817 = vst [vmem:[#allocation6 + $0x170] sm:$0xff] %v7801
        %7818 = vst [vmem:[#allocation6 + $0x180] sm:$0xff] %v7802
        %7819 = vst [vmem:[#allocation6 + $0x190] sm:$0xff] %v7803
        %7820 = vst [vmem:[#allocation6 + $0x1a0] sm:$0xff] %v7804
        %7821 = vst [vmem:[#allocation6 + $0x1b0] sm:$0xff] %v7805
        %7822 = vst [vmem:[#allocation6 + $0x1c0] sm:$0xff] %v7806
        %7823 = vst [vmem:[#allocation6 + $0x1d0] sm:$0xff] %v7807
        %7824 = vst [vmem:[#allocation6 + $0x1e0] sm:$0xff] %v7808
        %7825 = vst [vmem:[#allocation6 + $0x1f0] sm:$0xff] %v7809
        %v7826 = vld [vmem:[#allocation6] sm:$0xff]
        %v7827 = vld [vmem:[#allocation6 + $0x10] sm:$0xff]
        %v7828 = vld [vmem:[#allocation6 + $0x20] sm:$0xff]
        %v7829 = vld [vmem:[#allocation6 + $0x30] sm:$0xff]
        %v7830 = vld [vmem:[#allocation6 + $0x40] sm:$0xff]
        %v7831 = vld [vmem:[#allocation6 + $0x50] sm:$0xff]
        %v7832 = vld [vmem:[#allocation6 + $0x60] sm:$0xff]
        %v7833 = vld [vmem:[#allocation6 + $0x70] sm:$0xff]
        %v7834 = vld [vmem:[#allocation6 + $0x80] sm:$0xff]
        %v7835 = vld [vmem:[#allocation6 + $0x90] sm:$0xff]
        %v7836 = vld [vmem:[#allocation6 + $0xa0] sm:$0xff]
        %v7837 = vld [vmem:[#allocation6 + $0xb0] sm:$0xff]
        %v7838 = vld [vmem:[#allocation6 + $0xc0] sm:$0xff]
        %v7839 = vld [vmem:[#allocation6 + $0xd0] sm:$0xff]
        %v7840 = vld [vmem:[#allocation6 + $0xe0] sm:$0xff]
        %v7841 = vld [vmem:[#allocation6 + $0xf0] sm:$0xff]
        %v7842 = vld [vmem:[#allocation6 + $0x100] sm:$0xff]
        %v7843 = vld [vmem:[#allocation6 + $0x110] sm:$0xff]
        %v7844 = vld [vmem:[#allocation6 + $0x120] sm:$0xff]
        %v7845 = vld [vmem:[#allocation6 + $0x130] sm:$0xff]
        %v7846 = vld [vmem:[#allocation6 + $0x140] sm:$0xff]
        %v7847 = vld [vmem:[#allocation6 + $0x150] sm:$0xff]
        %v7848 = vld [vmem:[#allocation6 + $0x160] sm:$0xff]
        %v7849 = vld [vmem:[#allocation6 + $0x170] sm:$0xff]
        %v7850 = vld [vmem:[#allocation6 + $0x180] sm:$0xff]
        %v7851 = vld [vmem:[#allocation6 + $0x190] sm:$0xff]
        %v7852 = vld [vmem:[#allocation6 + $0x1a0] sm:$0xff]
        %v7853 = vld [vmem:[#allocation6 + $0x1b0] sm:$0xff]
        %v7854 = vld [vmem:[#allocation6 + $0x1c0] sm:$0xff]
        %v7855 = vld [vmem:[#allocation6 + $0x1d0] sm:$0xff]
        %v7856 = vld [vmem:[#allocation6 + $0x1e0] sm:$0xff]
        %v7857 = vld [vmem:[#allocation6 + $0x1f0] sm:$0xff]
        %v7858 = vld [vmem:[%s3] sm:$0xff]
        %v7859 = vld [vmem:[%s3 + $0x8] sm:$0xff]
        %v7860 = vld [vmem:[%s3 + $0x10] sm:$0xff]
        %v7861 = vld [vmem:[%s3 + $0x18] sm:$0xff]
        %v7862 = vld [vmem:[%s3 + $0x20] sm:$0xff]
        %v7863 = vld [vmem:[%s3 + $0x28] sm:$0xff]
        %v7864 = vld [vmem:[%s3 + $0x30] sm:$0xff]
        %v7865 = vld [vmem:[%s3 + $0x38] sm:$0xff]
        %v7866 = vld [vmem:[%s3 + $0x40] sm:$0xff]
        %v7867 = vld [vmem:[%s3 + $0x48] sm:$0xff]
        %v7868 = vld [vmem:[%s3 + $0x50] sm:$0xff]
        %v7869 = vld [vmem:[%s3 + $0x58] sm:$0xff]
        %v7870 = vld [vmem:[%s3 + $0x60] sm:$0xff]
        %v7871 = vld [vmem:[%s3 + $0x68] sm:$0xff]
        %v7872 = vld [vmem:[%s3 + $0x70] sm:$0xff]
        %v7873 = vld [vmem:[%s3 + $0x78] sm:$0xff]
        %v7874 = vld [vmem:[%s3 + $0x80] sm:$0xff]
        %v7875 = vld [vmem:[%s3 + $0x88] sm:$0xff]
        %v7876 = vld [vmem:[%s3 + $0x90] sm:$0xff]
        %v7877 = vld [vmem:[%s3 + $0x98] sm:$0xff]
        %v7878 = vld [vmem:[%s3 + $0xa0] sm:$0xff]
        %v7879 = vld [vmem:[%s3 + $0xa8] sm:$0xff]
        %v7880 = vld [vmem:[%s3 + $0xb0] sm:$0xff]
        %v7881 = vld [vmem:[%s3 + $0xb8] sm:$0xff]
        %v7882 = vld [vmem:[%s3 + $0xc0] sm:$0xff]
        %v7883 = vld [vmem:[%s3 + $0xc8] sm:$0xff]
        %v7884 = vld [vmem:[%s3 + $0xd0] sm:$0xff]
        %v7885 = vld [vmem:[%s3 + $0xd8] sm:$0xff]
        %v7886 = vld [vmem:[%s3 + $0xe0] sm:$0xff]
        %v7887 = vld [vmem:[%s3 + $0xe8] sm:$0xff]
        %v7888 = vld [vmem:[%s3 + $0xf0] sm:$0xff]
        %v7889 = vld [vmem:[%s3 + $0xf8] sm:$0xff]
        %s7890 = scalar_lea.vmem %s6, 50
        %v7891 = vld [vmem:[%s7890] ss:$8 sm:$0x3]
        %v7893 = vlaneseq
        %v7894 = vshrl.u32 %v7893, 7
        %v7895 = vsub.s32 0, %v7894
        %v7896 = vrot.slane %v7891, %v7895
        %v7897 = vlaneseq
        %v7898 = vshrl.u32 %v7897, 7
        %v7899 = vsub.s32 1, %v7898
        %v7900 = vrot.slane %v7891, %v7899
        %7903 = vmatprep.subr.mxu0 %v7859
        %7904 = vmatpush1.msra.mxu0 %v7858
        %7905 = vmatprep.subr.mxu0 %v7861
        %7906 = vmatpush1.msra.mxu0 %v7860
        %7907 = vmatprep.subr.mxu0 %v7863
        %7908 = vmatpush1.msra.mxu0 %v7862
        %7909 = vmatprep.subr.mxu0 %v7865
        %7910 = vmatpush1.msra.mxu0 %v7864
        %7911 = vmatprep.subr.mxu0 %v7867
        %7912 = vmatpush1.msra.mxu0 %v7866
        %7913 = vmatprep.subr.mxu0 %v7869
        %7914 = vmatpush1.msra.mxu0 %v7868
        %7915 = vmatprep.subr.mxu0 %v7871
        %7916 = vmatpush1.msra.mxu0 %v7870
        %7917 = vmatprep.subr.mxu0 %v7873
        %7918 = vmatpush1.msra.mxu0 %v7872
        %7919 = vmatprep.subr.mxu0 %v7875
        %7920 = vmatpush1.msra.mxu0 %v7874
        %7921 = vmatprep.subr.mxu0 %v7877
        %7922 = vmatpush1.msra.mxu0 %v7876
        %7923 = vmatprep.subr.mxu0 %v7879
        %7924 = vmatpush1.msra.mxu0 %v7878
        %7925 = vmatprep.subr.mxu0 %v7881
        %7926 = vmatpush1.msra.mxu0 %v7880
        %7927 = vmatprep.subr.mxu0 %v7883
        %7928 = vmatpush1.msra.mxu0 %v7882
        %7929 = vmatprep.subr.mxu0 %v7885
        %7930 = vmatpush1.msra.mxu0 %v7884
        %7931 = vmatprep.subr.mxu0 %v7887
        %7932 = vmatpush1.msra.mxu0 %v7886
        %7933 = vmatprep.subr.mxu0 %v7889
        %7934 = vmatpush1.msra.mxu0 %v7888
        %7935 = vmatprep.subr.mxu0 0.0
        %7936 = vmatpush1.msra.mxu0 0.0
        %7937 = vmatprep.subr.mxu0 0.0
        %7938 = vmatpush1.msra.mxu0 0.0
        %7939 = vmatprep.subr.mxu0 0.0
        %7940 = vmatpush1.msra.mxu0 0.0
        %7941 = vmatprep.subr.mxu0 0.0
        %7942 = vmatpush1.msra.mxu0 0.0
        %7943 = vmatprep.subr.mxu0 0.0
        %7944 = vmatpush1.msra.mxu0 0.0
        %7945 = vmatprep.subr.mxu0 0.0
        %7946 = vmatpush1.msra.mxu0 0.0
        %7947 = vmatprep.subr.mxu0 0.0
        %7948 = vmatpush1.msra.mxu0 0.0
        %7949 = vmatprep.subr.mxu0 0.0
        %7950 = vmatpush1.msra.mxu0 0.0
        %7951 = vmatprep.subr.mxu0 0.0
        %7952 = vmatpush1.msra.mxu0 0.0
        %7953 = vmatprep.subr.mxu0 0.0
        %7954 = vmatpush1.msra.mxu0 0.0
        %7955 = vmatprep.subr.mxu0 0.0
        %7956 = vmatpush1.msra.mxu0 0.0
        %7957 = vmatprep.subr.mxu0 0.0
        %7958 = vmatpush1.msra.mxu0 0.0
        %7959 = vmatprep.subr.mxu0 0.0
        %7960 = vmatpush1.msra.mxu0 0.0
        %7961 = vmatprep.subr.mxu0 0.0
        %7962 = vmatpush1.msra.mxu0 0.0
        %7963 = vmatprep.subr.mxu0 0.0
        %7964 = vmatpush1.msra.mxu0 0.0
        %7965 = vmatprep.subr.mxu0 0.0
        %7966 = vmatpush1.msra.mxu0 0.0
        %7967 = vmatprep.mubr.f32.mxu0 0.0
        %7968 = vmatmul.mubr.f32.gmra.mrb[0].mxu0 %v7826
        %v7969 = vpop.f32.mrb[0].mxu0
        %v7970 = vadd.f32 %v7896, %v7969
        %v7971 = vpop.f32.mrb[0].mxu0
        %v7972 = vadd.f32 %v7900, %v7971
        %7973 = vmatprep.mubr.f32.mxu0 0.0
        %7974 = vmatmul.mubr.f32.gmra.mrb[0].mxu0 %v7827
        %v7975 = vpop.f32.mrb[0].mxu0
        %v7976 = vadd.f32 %v7896, %v7975
        %v7977 = vpop.f32.mrb[0].mxu0
        %v7978 = vadd.f32 %v7900, %v7977
        %7979 = vmatprep.mubr.f32.mxu0 0.0
        %7980 = vmatmul.mubr.f32.gmra.mrb[0].mxu0 %v7828
        %v7981 = vpop.f32.mrb[0].mxu0
        %v7982 = vadd.f32 %v7896, %v7981
        %v7983 = vpop.f32.mrb[0].mxu0
        %v7984 = vadd.f32 %v7900, %v7983
        %7985 = vmatprep.mubr.f32.mxu0 0.0
        %7986 = vmatmul.mubr.f32.gmra.mrb[0].mxu0 %v7829
        %v7987 = vpop.f32.mrb[0].mxu0
        %v7988 = vadd.f32 %v7896, %v7987
        %v7989 = vpop.f32.mrb[0].mxu0
        %v7990 = vadd.f32 %v7900, %v7989
        %7991 = vmatprep.mubr.f32.mxu0 0.0
        %7992 = vmatmul.mubr.f32.gmra.mrb[0].mxu0 %v7830
        %v7993 = vpop.f32.mrb[0].mxu0
        %v7994 = vadd.f32 %v7896, %v7993
        %v7995 = vpop.f32.mrb[0].mxu0
        %v7996 = vadd.f32 %v7900, %v7995
        %7997 = vmatprep.mubr.f32.mxu0 0.0
        %7998 = vmatmul.mubr.f32.gmra.mrb[0].mxu0 %v7831
        %v7999 = vpop.f32.mrb[0].mxu0
        %v8000 = vadd.f32 %v7896, %v7999
        %v8001 = vpop.f32.mrb[0].mxu0
        %v8002 = vadd.f32 %v7900, %v8001
        %8003 = vmatprep.mubr.f32.mxu0 0.0
        %8004 = vmatmul.mubr.f32.gmra.mrb[0].mxu0 %v7832
        %v8005 = vpop.f32.mrb[0].mxu0
        %v8006 = vadd.f32 %v7896, %v8005
        %v8007 = vpop.f32.mrb[0].mxu0
        %v8008 = vadd.f32 %v7900, %v8007
        %8009 = vmatprep.mubr.f32.mxu0 0.0
        %8010 = vmatmul.mubr.f32.gmra.mrb[0].mxu0 %v7833
        %v8011 = vpop.f32.mrb[0].mxu0
        %v8012 = vadd.f32 %v7896, %v8011
        %v8013 = vpop.f32.mrb[0].mxu0
        %v8014 = vadd.f32 %v7900, %v8013
        %8015 = vmatprep.mubr.f32.mxu0 0.0
        %8016 = vmatmul.mubr.f32.gmra.mrb[0].mxu0 %v7834
        %v8017 = vpop.f32.mrb[0].mxu0
        %v8018 = vadd.f32 %v7896, %v8017
        %v8019 = vpop.f32.mrb[0].mxu0
        %v8020 = vadd.f32 %v7900, %v8019
        %8021 = vmatprep.mubr.f32.mxu0 0.0
        %8022 = vmatmul.mubr.f32.gmra.mrb[0].mxu0 %v7835
        %v8023 = vpop.f32.mrb[0].mxu0
        %v8024 = vadd.f32 %v7896, %v8023
        %v8025 = vpop.f32.mrb[0].mxu0
        %v8026 = vadd.f32 %v7900, %v8025
        %8027 = vmatprep.mubr.f32.mxu0 0.0
        %8028 = vmatmul.mubr.f32.gmra.mrb[0].mxu0 %v7836
        %v8029 = vpop.f32.mrb[0].mxu0
        %v8030 = vadd.f32 %v7896, %v8029
        %v8031 = vpop.f32.mrb[0].mxu0
        %v8032 = vadd.f32 %v7900, %v8031
        %8033 = vmatprep.mubr.f32.mxu0 0.0
        %8034 = vmatmul.mubr.f32.gmra.mrb[0].mxu0 %v7837
        %v8035 = vpop.f32.mrb[0].mxu0
        %v8036 = vadd.f32 %v7896, %v8035
        %v8037 = vpop.f32.mrb[0].mxu0
        %v8038 = vadd.f32 %v7900, %v8037
        %8039 = vmatprep.mubr.f32.mxu0 0.0
        %8040 = vmatmul.mubr.f32.gmra.mrb[0].mxu0 %v7838
        %v8041 = vpop.f32.mrb[0].mxu0
        %v8042 = vadd.f32 %v7896, %v8041
        %v8043 = vpop.f32.mrb[0].mxu0
        %v8044 = vadd.f32 %v7900, %v8043
        %8045 = vmatprep.mubr.f32.mxu0 0.0
        %8046 = vmatmul.mubr.f32.gmra.mrb[0].mxu0 %v7839
        %v8047 = vpop.f32.mrb[0].mxu0
        %v8048 = vadd.f32 %v7896, %v8047
        %v8049 = vpop.f32.mrb[0].mxu0
        %v8050 = vadd.f32 %v7900, %v8049
        %8051 = vmatprep.mubr.f32.mxu0 0.0
        %8052 = vmatmul.mubr.f32.gmra.mrb[0].mxu0 %v7840
        %v8053 = vpop.f32.mrb[0].mxu0
        %v8054 = vadd.f32 %v7896, %v8053
        %v8055 = vpop.f32.mrb[0].mxu0
        %v8056 = vadd.f32 %v7900, %v8055
        %8057 = vmatprep.mubr.f32.mxu0 0.0
        %8058 = vmatmul.mubr.f32.gmra.mrb[0].mxu0 %v7841
        %v8059 = vpop.f32.mrb[0].mxu0
        %v8060 = vadd.f32 %v7896, %v8059
        %v8061 = vpop.f32.mrb[0].mxu0
        %v8062 = vadd.f32 %v7900, %v8061
        %8063 = vmatprep.mubr.f32.mxu0 0.0
        %8064 = vmatmul.mubr.f32.gmra.mrb[0].mxu0 %v7842
        %v8065 = vpop.f32.mrb[0].mxu0
        %v8066 = vadd.f32 %v7896, %v8065
        %v8067 = vpop.f32.mrb[0].mxu0
        %v8068 = vadd.f32 %v7900, %v8067
        %8069 = vmatprep.mubr.f32.mxu0 0.0
        %8070 = vmatmul.mubr.f32.gmra.mrb[0].mxu0 %v7843
        %v8071 = vpop.f32.mrb[0].mxu0
        %v8072 = vadd.f32 %v7896, %v8071
        %v8073 = vpop.f32.mrb[0].mxu0
        %v8074 = vadd.f32 %v7900, %v8073
        %8075 = vmatprep.mubr.f32.mxu0 0.0
        %8076 = vmatmul.mubr.f32.gmra.mrb[0].mxu0 %v7844
        %v8077 = vpop.f32.mrb[0].mxu0
        %v8078 = vadd.f32 %v7896, %v8077
        %v8079 = vpop.f32.mrb[0].mxu0
        %v8080 = vadd.f32 %v7900, %v8079
        %8081 = vmatprep.mubr.f32.mxu0 0.0
        %8082 = vmatmul.mubr.f32.gmra.mrb[0].mxu0 %v7845
        %v8083 = vpop.f32.mrb[0].mxu0
        %v8084 = vadd.f32 %v7896, %v8083
        %v8085 = vpop.f32.mrb[0].mxu0
        %v8086 = vadd.f32 %v7900, %v8085
        %8087 = vmatprep.mubr.f32.mxu0 0.0
        %8088 = vmatmul.mubr.f32.gmra.mrb[0].mxu0 %v7846
        %v8089 = vpop.f32.mrb[0].mxu0
        %v8090 = vadd.f32 %v7896, %v8089
        %v8091 = vpop.f32.mrb[0].mxu0
        %v8092 = vadd.f32 %v7900, %v8091
        %8093 = vmatprep.mubr.f32.mxu0 0.0
        %8094 = vmatmul.mubr.f32.gmra.mrb[0].mxu0 %v7847
        %v8095 = vpop.f32.mrb[0].mxu0
        %v8096 = vadd.f32 %v7896, %v8095
        %v8097 = vpop.f32.mrb[0].mxu0
        %v8098 = vadd.f32 %v7900, %v8097
        %8099 = vmatprep.mubr.f32.mxu0 0.0
        %8100 = vmatmul.mubr.f32.gmra.mrb[0].mxu0 %v7848
        %v8101 = vpop.f32.mrb[0].mxu0
        %v8102 = vadd.f32 %v7896, %v8101
        %v8103 = vpop.f32.mrb[0].mxu0
        %v8104 = vadd.f32 %v7900, %v8103
        %8105 = vmatprep.mubr.f32.mxu0 0.0
        %8106 = vmatmul.mubr.f32.gmra.mrb[0].mxu0 %v7849
        %v8107 = vpop.f32.mrb[0].mxu0
        %v8108 = vadd.f32 %v7896, %v8107
        %v8109 = vpop.f32.mrb[0].mxu0
        %v8110 = vadd.f32 %v7900, %v8109
        %8111 = vmatprep.mubr.f32.mxu0 0.0
        %8112 = vmatmul.mubr.f32.gmra.mrb[0].mxu0 %v7850
        %v8113 = vpop.f32.mrb[0].mxu0
        %v8114 = vadd.f32 %v7896, %v8113
        %v8115 = vpop.f32.mrb[0].mxu0
        %v8116 = vadd.f32 %v7900, %v8115
        %8117 = vmatprep.mubr.f32.mxu0 0.0
        %8118 = vmatmul.mubr.f32.gmra.mrb[0].mxu0 %v7851
        %v8119 = vpop.f32.mrb[0].mxu0
        %v8120 = vadd.f32 %v7896, %v8119
        %v8121 = vpop.f32.mrb[0].mxu0
        %v8122 = vadd.f32 %v7900, %v8121
        %8123 = vmatprep.mubr.f32.mxu0 0.0
        %8124 = vmatmul.mubr.f32.gmra.mrb[0].mxu0 %v7852
        %v8125 = vpop.f32.mrb[0].mxu0
        %v8126 = vadd.f32 %v7896, %v8125
        %v8127 = vpop.f32.mrb[0].mxu0
        %v8128 = vadd.f32 %v7900, %v8127
        %8129 = vmatprep.mubr.f32.mxu0 0.0
        %8130 = vmatmul.mubr.f32.gmra.mrb[0].mxu0 %v7853
        %v8131 = vpop.f32.mrb[0].mxu0
        %v8132 = vadd.f32 %v7896, %v8131
        %v8133 = vpop.f32.mrb[0].mxu0
        %v8134 = vadd.f32 %v7900, %v8133
        %8135 = vmatprep.mubr.f32.mxu0 0.0
        %8136 = vmatmul.mubr.f32.gmra.mrb[0].mxu0 %v7854
        %v8137 = vpop.f32.mrb[0].mxu0
        %v8138 = vadd.f32 %v7896, %v8137
        %v8139 = vpop.f32.mrb[0].mxu0
        %v8140 = vadd.f32 %v7900, %v8139
        %8141 = vmatprep.mubr.f32.mxu0 0.0
        %8142 = vmatmul.mubr.f32.gmra.mrb[0].mxu0 %v7855
        %v8143 = vpop.f32.mrb[0].mxu0
        %v8144 = vadd.f32 %v7896, %v8143
        %v8145 = vpop.f32.mrb[0].mxu0
        %v8146 = vadd.f32 %v7900, %v8145
        %8147 = vmatprep.mubr.f32.mxu0 0.0
        %8148 = vmatmul.mubr.f32.gmra.mrb[0].mxu0 %v7856
        %v8149 = vpop.f32.mrb[0].mxu0
        %v8150 = vadd.f32 %v7896, %v8149
        %v8151 = vpop.f32.mrb[0].mxu0
        %v8152 = vadd.f32 %v7900, %v8151
        %8153 = vmatprep.mubr.f32.mxu0 0.0
        %8154 = vmatmul.mubr.f32.gmra.mrb[0].mxu0 %v7857
        %v8155 = vpop.f32.mrb[0].mxu0
        %v8156 = vadd.f32 %v7896, %v8155
        %v8157 = vpop.f32.mrb[0].mxu0
        %v8158 = vadd.f32 %v7900, %v8157
        %8159 = vdwg.mxu0
        %8160 = vst [vmem:[%s271] sm:$0xff] %v7970
        %8161 = vst [vmem:[%s271 + $0x8] sm:$0xff] %v7972
        %8162 = vst [vmem:[%s271 + $0x10] sm:$0xff] %v7976
        %8163 = vst [vmem:[%s271 + $0x18] sm:$0xff] %v7978
        %8164 = vst [vmem:[%s271 + $0x20] sm:$0xff] %v7982
        %8165 = vst [vmem:[%s271 + $0x28] sm:$0xff] %v7984
        %8166 = vst [vmem:[%s271 + $0x30] sm:$0xff] %v7988
        %8167 = vst [vmem:[%s271 + $0x38] sm:$0xff] %v7990
        %8168 = vst [vmem:[%s271 + $0x40] sm:$0xff] %v7994
        %8169 = vst [vmem:[%s271 + $0x48] sm:$0xff] %v7996
        %8170 = vst [vmem:[%s271 + $0x50] sm:$0xff] %v8000
        %8171 = vst [vmem:[%s271 + $0x58] sm:$0xff] %v8002
        %8172 = vst [vmem:[%s271 + $0x60] sm:$0xff] %v8006
        %8173 = vst [vmem:[%s271 + $0x68] sm:$0xff] %v8008
        %8174 = vst [vmem:[%s271 + $0x70] sm:$0xff] %v8012
        %8175 = vst [vmem:[%s271 + $0x78] sm:$0xff] %v8014
        %8176 = vst [vmem:[%s271 + $0x80] sm:$0xff] %v8018
        %8177 = vst [vmem:[%s271 + $0x88] sm:$0xff] %v8020
        %8178 = vst [vmem:[%s271 + $0x90] sm:$0xff] %v8024
        %8179 = vst [vmem:[%s271 + $0x98] sm:$0xff] %v8026
        %8180 = vst [vmem:[%s271 + $0xa0] sm:$0xff] %v8030
        %8181 = vst [vmem:[%s271 + $0xa8] sm:$0xff] %v8032
        %8182 = vst [vmem:[%s271 + $0xb0] sm:$0xff] %v8036
        %8183 = vst [vmem:[%s271 + $0xb8] sm:$0xff] %v8038
        %8184 = vst [vmem:[%s271 + $0xc0] sm:$0xff] %v8042
        %8185 = vst [vmem:[%s271 + $0xc8] sm:$0xff] %v8044
        %8186 = vst [vmem:[%s271 + $0xd0] sm:$0xff] %v8048
        %8187 = vst [vmem:[%s271 + $0xd8] sm:$0xff] %v8050
        %8188 = vst [vmem:[%s271 + $0xe0] sm:$0xff] %v8054
        %8189 = vst [vmem:[%s271 + $0xe8] sm:$0xff] %v8056
        %8190 = vst [vmem:[%s271 + $0xf0] sm:$0xff] %v8060
        %8191 = vst [vmem:[%s271 + $0xf8] sm:$0xff] %v8062
        %8192 = vst [vmem:[%s271 + $0x100] sm:$0xff] %v8066
        %8193 = vst [vmem:[%s271 + $0x108] sm:$0xff] %v8068
        %8194 = vst [vmem:[%s271 + $0x110] sm:$0xff] %v8072
        %8195 = vst [vmem:[%s271 + $0x118] sm:$0xff] %v8074
        %8196 = vst [vmem:[%s271 + $0x120] sm:$0xff] %v8078
        %8197 = vst [vmem:[%s271 + $0x128] sm:$0xff] %v8080
        %8198 = vst [vmem:[%s271 + $0x130] sm:$0xff] %v8084
        %8199 = vst [vmem:[%s271 + $0x138] sm:$0xff] %v8086
        %8200 = vst [vmem:[%s271 + $0x140] sm:$0xff] %v8090
        %8201 = vst [vmem:[%s271 + $0x148] sm:$0xff] %v8092
        %8202 = vst [vmem:[%s271 + $0x150] sm:$0xff] %v8096
        %8203 = vst [vmem:[%s271 + $0x158] sm:$0xff] %v8098
        %8204 = vst [vmem:[%s271 + $0x160] sm:$0xff] %v8102
        %8205 = vst [vmem:[%s271 + $0x168] sm:$0xff] %v8104
        %8206 = vst [vmem:[%s271 + $0x170] sm:$0xff] %v8108
        %8207 = vst [vmem:[%s271 + $0x178] sm:$0xff] %v8110
        %8208 = vst [vmem:[%s271 + $0x180] sm:$0xff] %v8114
        %8209 = vst [vmem:[%s271 + $0x188] sm:$0xff] %v8116
        %8210 = vst [vmem:[%s271 + $0x190] sm:$0xff] %v8120
        %8211 = vst [vmem:[%s271 + $0x198] sm:$0xff] %v8122
        %8212 = vst [vmem:[%s271 + $0x1a0] sm:$0xff] %v8126
        %8213 = vst [vmem:[%s271 + $0x1a8] sm:$0xff] %v8128
        %8214 = vst [vmem:[%s271 + $0x1b0] sm:$0xff] %v8132
        %8215 = vst [vmem:[%s271 + $0x1b8] sm:$0xff] %v8134
        %8216 = vst [vmem:[%s271 + $0x1c0] sm:$0xff] %v8138
        %8217 = vst [vmem:[%s271 + $0x1c8] sm:$0xff] %v8140
        %8218 = vst [vmem:[%s271 + $0x1d0] sm:$0xff] %v8144
        %8219 = vst [vmem:[%s271 + $0x1d8] sm:$0xff] %v8146
        %8220 = vst [vmem:[%s271 + $0x1e0] sm:$0xff] %v8150
        %8221 = vst [vmem:[%s271 + $0x1e8] sm:$0xff] %v8152
        %8222 = vst [vmem:[%s271 + $0x1f0] sm:$0xff] %v8156
        %8223 = vst [vmem:[%s271 + $0x1f8] sm:$0xff] %v8158
        %v8224 = vld [vmem:[%s271] sm:$0xff]
        %v8225 = vld [vmem:[%s271 + $0x8] sm:$0xff]
        %v8226 = vld [vmem:[%s271 + $0x10] sm:$0xff]
        %v8227 = vld [vmem:[%s271 + $0x18] sm:$0xff]
        %v8228 = vld [vmem:[%s271 + $0x20] sm:$0xff]
        %v8229 = vld [vmem:[%s271 + $0x28] sm:$0xff]
        %v8230 = vld [vmem:[%s271 + $0x30] sm:$0xff]
        %v8231 = vld [vmem:[%s271 + $0x38] sm:$0xff]
        %v8232 = vld [vmem:[%s271 + $0x40] sm:$0xff]
        %v8233 = vld [vmem:[%s271 + $0x48] sm:$0xff]
        %v8234 = vld [vmem:[%s271 + $0x50] sm:$0xff]
        %v8235 = vld [vmem:[%s271 + $0x58] sm:$0xff]
        %v8236 = vld [vmem:[%s271 + $0x60] sm:$0xff]
        %v8237 = vld [vmem:[%s271 + $0x68] sm:$0xff]
        %v8238 = vld [vmem:[%s271 + $0x70] sm:$0xff]
        %v8239 = vld [vmem:[%s271 + $0x78] sm:$0xff]
        %v8240 = vld [vmem:[%s271 + $0x80] sm:$0xff]
        %v8241 = vld [vmem:[%s271 + $0x88] sm:$0xff]
        %v8242 = vld [vmem:[%s271 + $0x90] sm:$0xff]
        %v8243 = vld [vmem:[%s271 + $0x98] sm:$0xff]
        %v8244 = vld [vmem:[%s271 + $0xa0] sm:$0xff]
        %v8245 = vld [vmem:[%s271 + $0xa8] sm:$0xff]
        %v8246 = vld [vmem:[%s271 + $0xb0] sm:$0xff]
        %v8247 = vld [vmem:[%s271 + $0xb8] sm:$0xff]
        %v8248 = vld [vmem:[%s271 + $0xc0] sm:$0xff]
        %v8249 = vld [vmem:[%s271 + $0xc8] sm:$0xff]
        %v8250 = vld [vmem:[%s271 + $0xd0] sm:$0xff]
        %v8251 = vld [vmem:[%s271 + $0xd8] sm:$0xff]
        %v8252 = vld [vmem:[%s271 + $0xe0] sm:$0xff]
        %v8253 = vld [vmem:[%s271 + $0xe8] sm:$0xff]
        %v8254 = vld [vmem:[%s271 + $0xf0] sm:$0xff]
        %v8255 = vld [vmem:[%s271 + $0xf8] sm:$0xff]
        %v8256 = vld [vmem:[%s271 + $0x100] sm:$0xff]
        %v8257 = vld [vmem:[%s271 + $0x108] sm:$0xff]
        %v8258 = vld [vmem:[%s271 + $0x110] sm:$0xff]
        %v8259 = vld [vmem:[%s271 + $0x118] sm:$0xff]
        %v8260 = vld [vmem:[%s271 + $0x120] sm:$0xff]
        %v8261 = vld [vmem:[%s271 + $0x128] sm:$0xff]
        %v8262 = vld [vmem:[%s271 + $0x130] sm:$0xff]
        %v8263 = vld [vmem:[%s271 + $0x138] sm:$0xff]
        %v8264 = vld [vmem:[%s271 + $0x140] sm:$0xff]
        %v8265 = vld [vmem:[%s271 + $0x148] sm:$0xff]
        %v8266 = vld [vmem:[%s271 + $0x150] sm:$0xff]
        %v8267 = vld [vmem:[%s271 + $0x158] sm:$0xff]
        %v8268 = vld [vmem:[%s271 + $0x160] sm:$0xff]
        %v8269 = vld [vmem:[%s271 + $0x168] sm:$0xff]
        %v8270 = vld [vmem:[%s271 + $0x170] sm:$0xff]
        %v8271 = vld [vmem:[%s271 + $0x178] sm:$0xff]
        %v8272 = vld [vmem:[%s271 + $0x180] sm:$0xff]
        %v8273 = vld [vmem:[%s271 + $0x188] sm:$0xff]
        %v8274 = vld [vmem:[%s271 + $0x190] sm:$0xff]
        %v8275 = vld [vmem:[%s271 + $0x198] sm:$0xff]
        %v8276 = vld [vmem:[%s271 + $0x1a0] sm:$0xff]
        %v8277 = vld [vmem:[%s271 + $0x1a8] sm:$0xff]
        %v8278 = vld [vmem:[%s271 + $0x1b0] sm:$0xff]
        %v8279 = vld [vmem:[%s271 + $0x1b8] sm:$0xff]
        %v8280 = vld [vmem:[%s271 + $0x1c0] sm:$0xff]
        %v8281 = vld [vmem:[%s271 + $0x1c8] sm:$0xff]
        %v8282 = vld [vmem:[%s271 + $0x1d0] sm:$0xff]
        %v8283 = vld [vmem:[%s271 + $0x1d8] sm:$0xff]
        %v8284 = vld [vmem:[%s271 + $0x1e0] sm:$0xff]
        %v8285 = vld [vmem:[%s271 + $0x1e8] sm:$0xff]
        %v8286 = vld [vmem:[%s271 + $0x1f0] sm:$0xff]
        %v8287 = vld [vmem:[%s271 + $0x1f8] sm:$0xff]
        %v8288 = vadd.f32 %v8224, %v8226
        %v8289 = vadd.f32 %v8288, %v8228
        %v8290 = vadd.f32 %v8289, %v8230
        %v8291 = vadd.f32 %v8290, %v8232
        %v8292 = vadd.f32 %v8291, %v8234
        %v8293 = vadd.f32 %v8292, %v8236
        %v8294 = vadd.f32 %v8293, %v8238
        %v8295 = vadd.f32 %v8294, %v8240
        %v8296 = vadd.f32 %v8295, %v8242
        %v8297 = vadd.f32 %v8296, %v8244
        %v8298 = vadd.f32 %v8297, %v8246
        %v8299 = vadd.f32 %v8298, %v8248
        %v8300 = vadd.f32 %v8299, %v8250
        %v8301 = vadd.f32 %v8300, %v8252
        %v8302 = vadd.f32 %v8301, %v8254
        %v8303 = vadd.f32 %v8302, %v8256
        %v8304 = vadd.f32 %v8303, %v8258
        %v8305 = vadd.f32 %v8304, %v8260
        %v8306 = vadd.f32 %v8305, %v8262
        %v8307 = vadd.f32 %v8306, %v8264
        %v8308 = vadd.f32 %v8307, %v8266
        %v8309 = vadd.f32 %v8308, %v8268
        %v8310 = vadd.f32 %v8309, %v8270
        %v8311 = vadd.f32 %v8310, %v8272
        %v8312 = vadd.f32 %v8311, %v8274
        %v8313 = vadd.f32 %v8312, %v8276
        %v8314 = vadd.f32 %v8313, %v8278
        %v8315 = vadd.f32 %v8314, %v8280
        %v8316 = vadd.f32 %v8315, %v8282
        %v8317 = vadd.f32 %v8316, %v8284
        %v8318 = vadd.f32 %v8317, %v8286
        %v8319 = vrot.slane %v8318, 4
        %v8320 = vadd.f32 %v8318, %v8319
        %v8321 = vrot.slane %v8320, 2
        %v8322 = vadd.f32 %v8320, %v8321
        %v8323 = vrot.slane %v8322, 1
        %v8324 = vadd.f32 %v8322, %v8323
        %v8325 = vadd.f32 %v8225, %v8227
        %v8326 = vadd.f32 %v8325, %v8229
        %v8327 = vadd.f32 %v8326, %v8231
        %v8328 = vadd.f32 %v8327, %v8233
        %v8329 = vadd.f32 %v8328, %v8235
        %v8330 = vadd.f32 %v8329, %v8237
        %v8331 = vadd.f32 %v8330, %v8239
        %v8332 = vadd.f32 %v8331, %v8241
        %v8333 = vadd.f32 %v8332, %v8243
        %v8334 = vadd.f32 %v8333, %v8245
        %v8335 = vadd.f32 %v8334, %v8247
        %v8336 = vadd.f32 %v8335, %v8249
        %v8337 = vadd.f32 %v8336, %v8251
        %v8338 = vadd.f32 %v8337, %v8253
        %v8339 = vadd.f32 %v8338, %v8255
        %v8340 = vadd.f32 %v8339, %v8257
        %v8341 = vadd.f32 %v8340, %v8259
        %v8342 = vadd.f32 %v8341, %v8261
        %v8343 = vadd.f32 %v8342, %v8263
        %v8344 = vadd.f32 %v8343, %v8265
        %v8345 = vadd.f32 %v8344, %v8267
        %v8346 = vadd.f32 %v8345, %v8269
        %v8347 = vadd.f32 %v8346, %v8271
        %v8348 = vadd.f32 %v8347, %v8273
        %v8349 = vadd.f32 %v8348, %v8275
        %v8350 = vadd.f32 %v8349, %v8277
        %v8351 = vadd.f32 %v8350, %v8279
        %v8352 = vadd.f32 %v8351, %v8281
        %v8353 = vadd.f32 %v8352, %v8283
        %v8354 = vadd.f32 %v8353, %v8285
        %v8355 = vadd.f32 %v8354, %v8287
        %v8356 = vrot.slane %v8355, 4
        %v8357 = vadd.f32 %v8355, %v8356
        %v8358 = vrot.slane %v8357, 2
        %v8359 = vadd.f32 %v8357, %v8358
        %v8360 = vrot.slane %v8359, 1
        %v8361 = vadd.f32 %v8359, %v8360
        %v8362 = vmul.f32 %v8224, %v8224
        %v8363 = vmul.f32 %v8225, %v8225
        %v8364 = vmul.f32 %v8226, %v8226
        %v8365 = vmul.f32 %v8227, %v8227
        %v8366 = vmul.f32 %v8228, %v8228
        %v8367 = vmul.f32 %v8229, %v8229
        %v8368 = vmul.f32 %v8230, %v8230
        %v8369 = vmul.f32 %v8231, %v8231
        %v8370 = vmul.f32 %v8232, %v8232
        %v8371 = vmul.f32 %v8233, %v8233
        %v8372 = vmul.f32 %v8234, %v8234
        %v8373 = vmul.f32 %v8235, %v8235
        %v8374 = vmul.f32 %v8236, %v8236
        %v8375 = vmul.f32 %v8237, %v8237
        %v8376 = vmul.f32 %v8238, %v8238
        %v8377 = vmul.f32 %v8239, %v8239
        %v8378 = vmul.f32 %v8240, %v8240
        %v8379 = vmul.f32 %v8241, %v8241
        %v8380 = vmul.f32 %v8242, %v8242
        %v8381 = vmul.f32 %v8243, %v8243
        %v8382 = vmul.f32 %v8244, %v8244
        %v8383 = vmul.f32 %v8245, %v8245
        %v8384 = vmul.f32 %v8246, %v8246
        %v8385 = vmul.f32 %v8247, %v8247
        %v8386 = vmul.f32 %v8248, %v8248
        %v8387 = vmul.f32 %v8249, %v8249
        %v8388 = vmul.f32 %v8250, %v8250
        %v8389 = vmul.f32 %v8251, %v8251
        %v8390 = vmul.f32 %v8252, %v8252
        %v8391 = vmul.f32 %v8253, %v8253
        %v8392 = vmul.f32 %v8254, %v8254
        %v8393 = vmul.f32 %v8255, %v8255
        %v8394 = vmul.f32 %v8256, %v8256
        %v8395 = vmul.f32 %v8257, %v8257
        %v8396 = vmul.f32 %v8258, %v8258
        %v8397 = vmul.f32 %v8259, %v8259
        %v8398 = vmul.f32 %v8260, %v8260
        %v8399 = vmul.f32 %v8261, %v8261
        %v8400 = vmul.f32 %v8262, %v8262
        %v8401 = vmul.f32 %v8263, %v8263
        %v8402 = vmul.f32 %v8264, %v8264
        %v8403 = vmul.f32 %v8265, %v8265
        %v8404 = vmul.f32 %v8266, %v8266
        %v8405 = vmul.f32 %v8267, %v8267
        %v8406 = vmul.f32 %v8268, %v8268
        %v8407 = vmul.f32 %v8269, %v8269
        %v8408 = vmul.f32 %v8270, %v8270
        %v8409 = vmul.f32 %v8271, %v8271
        %v8410 = vmul.f32 %v8272, %v8272
        %v8411 = vmul.f32 %v8273, %v8273
        %v8412 = vmul.f32 %v8274, %v8274
        %v8413 = vmul.f32 %v8275, %v8275
        %v8414 = vmul.f32 %v8276, %v8276
        %v8415 = vmul.f32 %v8277, %v8277
        %v8416 = vmul.f32 %v8278, %v8278
        %v8417 = vmul.f32 %v8279, %v8279
        %v8418 = vmul.f32 %v8280, %v8280
        %v8419 = vmul.f32 %v8281, %v8281
        %v8420 = vmul.f32 %v8282, %v8282
        %v8421 = vmul.f32 %v8283, %v8283
        %v8422 = vmul.f32 %v8284, %v8284
        %v8423 = vmul.f32 %v8285, %v8285
        %v8424 = vmul.f32 %v8286, %v8286
        %v8425 = vmul.f32 %v8287, %v8287
        %v8426 = vadd.f32 %v8362, %v8364
        %v8427 = vadd.f32 %v8426, %v8366
        %v8428 = vadd.f32 %v8427, %v8368
        %v8429 = vadd.f32 %v8428, %v8370
        %v8430 = vadd.f32 %v8429, %v8372
        %v8431 = vadd.f32 %v8430, %v8374
        %v8432 = vadd.f32 %v8431, %v8376
        %v8433 = vadd.f32 %v8432, %v8378
        %v8434 = vadd.f32 %v8433, %v8380
        %v8435 = vadd.f32 %v8434, %v8382
        %v8436 = vadd.f32 %v8435, %v8384
        %v8437 = vadd.f32 %v8436, %v8386
        %v8438 = vadd.f32 %v8437, %v8388
        %v8439 = vadd.f32 %v8438, %v8390
        %v8440 = vadd.f32 %v8439, %v8392
        %v8441 = vadd.f32 %v8440, %v8394
        %v8442 = vadd.f32 %v8441, %v8396
        %v8443 = vadd.f32 %v8442, %v8398
        %v8444 = vadd.f32 %v8443, %v8400
        %v8445 = vadd.f32 %v8444, %v8402
        %v8446 = vadd.f32 %v8445, %v8404
        %v8447 = vadd.f32 %v8446, %v8406
        %v8448 = vadd.f32 %v8447, %v8408
        %v8449 = vadd.f32 %v8448, %v8410
        %v8450 = vadd.f32 %v8449, %v8412
        %v8451 = vadd.f32 %v8450, %v8414
        %v8452 = vadd.f32 %v8451, %v8416
        %v8453 = vadd.f32 %v8452, %v8418
        %v8454 = vadd.f32 %v8453, %v8420
        %v8455 = vadd.f32 %v8454, %v8422
        %v8456 = vadd.f32 %v8455, %v8424
        %v8457 = vrot.slane %v8456, 4
        %v8458 = vadd.f32 %v8456, %v8457
        %v8459 = vrot.slane %v8458, 2
        %v8460 = vadd.f32 %v8458, %v8459
        %v8461 = vrot.slane %v8460, 1
        %v8462 = vadd.f32 %v8460, %v8461
        %v8463 = vadd.f32 %v8363, %v8365
        %v8464 = vadd.f32 %v8463, %v8367
        %v8465 = vadd.f32 %v8464, %v8369
        %v8466 = vadd.f32 %v8465, %v8371
        %v8467 = vadd.f32 %v8466, %v8373
        %v8468 = vadd.f32 %v8467, %v8375
        %v8469 = vadd.f32 %v8468, %v8377
        %v8470 = vadd.f32 %v8469, %v8379
        %v8471 = vadd.f32 %v8470, %v8381
        %v8472 = vadd.f32 %v8471, %v8383
        %v8473 = vadd.f32 %v8472, %v8385
        %v8474 = vadd.f32 %v8473, %v8387
        %v8475 = vadd.f32 %v8474, %v8389
        %v8476 = vadd.f32 %v8475, %v8391
        %v8477 = vadd.f32 %v8476, %v8393
        %v8478 = vadd.f32 %v8477, %v8395
        %v8479 = vadd.f32 %v8478, %v8397
        %v8480 = vadd.f32 %v8479, %v8399
        %v8481 = vadd.f32 %v8480, %v8401
        %v8482 = vadd.f32 %v8481, %v8403
        %v8483 = vadd.f32 %v8482, %v8405
        %v8484 = vadd.f32 %v8483, %v8407
        %v8485 = vadd.f32 %v8484, %v8409
        %v8486 = vadd.f32 %v8485, %v8411
        %v8487 = vadd.f32 %v8486, %v8413
        %v8488 = vadd.f32 %v8487, %v8415
        %v8489 = vadd.f32 %v8488, %v8417
        %v8490 = vadd.f32 %v8489, %v8419
        %v8491 = vadd.f32 %v8490, %v8421
        %v8492 = vadd.f32 %v8491, %v8423
        %v8493 = vadd.f32 %v8492, %v8425
        %v8494 = vrot.slane %v8493, 4
        %v8495 = vadd.f32 %v8493, %v8494
        %v8496 = vrot.slane %v8495, 2
        %v8497 = vadd.f32 %v8495, %v8496
        %v8498 = vrot.slane %v8497, 1
        %v8499 = vadd.f32 %v8497, %v8498
        %v8500 = vsel %vm1985, %v8324, %v8462
        %v8501 = vsel %vm1985, %v8361, %v8499
        %v8502 = vld [vmem:[%s5] sm:$0xff]
        %v8503 = vld [vmem:[%s5 + $0x8] sm:$0xff]
        %v8504 = vld [vmem:[%s5 + $0x10] sm:$0xff]
        %v8505 = vld [vmem:[%s5 + $0x18] sm:$0xff]
        %v8506 = vld [vmem:[%s5 + $0x20] sm:$0xff]
        %v8507 = vld [vmem:[%s5 + $0x28] sm:$0xff]
        %v8508 = vld [vmem:[%s5 + $0x30] sm:$0xff]
        %v8509 = vld [vmem:[%s5 + $0x38] sm:$0xff]
        %v8510 = vld [vmem:[%s5 + $0x40] sm:$0xff]
        %v8511 = vld [vmem:[%s5 + $0x48] sm:$0xff]
        %v8512 = vld [vmem:[%s5 + $0x50] sm:$0xff]
        %v8513 = vld [vmem:[%s5 + $0x58] sm:$0xff]
        %v8514 = vld [vmem:[%s5 + $0x60] sm:$0xff]
        %v8515 = vld [vmem:[%s5 + $0x68] sm:$0xff]
        %v8516 = vld [vmem:[%s5 + $0x70] sm:$0xff]
        %v8517 = vld [vmem:[%s5 + $0x78] sm:$0xff]
        %v8518 = vld [vmem:[%s5 + $0x80] sm:$0xff]
        %v8519 = vld [vmem:[%s5 + $0x88] sm:$0xff]
        %v8520 = vld [vmem:[%s5 + $0x90] sm:$0xff]
        %v8521 = vld [vmem:[%s5 + $0x98] sm:$0xff]
        %v8522 = vld [vmem:[%s5 + $0xa0] sm:$0xff]
        %v8523 = vld [vmem:[%s5 + $0xa8] sm:$0xff]
        %v8524 = vld [vmem:[%s5 + $0xb0] sm:$0xff]
        %v8525 = vld [vmem:[%s5 + $0xb8] sm:$0xff]
        %v8526 = vld [vmem:[%s5 + $0xc0] sm:$0xff]
        %v8527 = vld [vmem:[%s5 + $0xc8] sm:$0xff]
        %v8528 = vld [vmem:[%s5 + $0xd0] sm:$0xff]
        %v8529 = vld [vmem:[%s5 + $0xd8] sm:$0xff]
        %v8530 = vld [vmem:[%s5 + $0xe0] sm:$0xff]
        %v8531 = vld [vmem:[%s5 + $0xe8] sm:$0xff]
        %v8532 = vld [vmem:[%s5 + $0xf0] sm:$0xff]
        %v8533 = vld [vmem:[%s5 + $0xf8] sm:$0xff]
        %v8534 = vld [vmem:[%s5 + $0x100] sm:$0xff]
        %v8535 = vld [vmem:[%s5 + $0x108] sm:$0xff]
        %v8536 = vld [vmem:[%s5 + $0x110] sm:$0xff]
        %v8537 = vld [vmem:[%s5 + $0x118] sm:$0xff]
        %v8538 = vld [vmem:[%s5 + $0x120] sm:$0xff]
        %v8539 = vld [vmem:[%s5 + $0x128] sm:$0xff]
        %v8540 = vld [vmem:[%s5 + $0x130] sm:$0xff]
        %v8541 = vld [vmem:[%s5 + $0x138] sm:$0xff]
        %v8542 = vld [vmem:[%s5 + $0x140] sm:$0xff]
        %v8543 = vld [vmem:[%s5 + $0x148] sm:$0xff]
        %v8544 = vld [vmem:[%s5 + $0x150] sm:$0xff]
        %v8545 = vld [vmem:[%s5 + $0x158] sm:$0xff]
        %v8546 = vld [vmem:[%s5 + $0x160] sm:$0xff]
        %v8547 = vld [vmem:[%s5 + $0x168] sm:$0xff]
        %v8548 = vld [vmem:[%s5 + $0x170] sm:$0xff]
        %v8549 = vld [vmem:[%s5 + $0x178] sm:$0xff]
        %v8550 = vld [vmem:[%s5 + $0x180] sm:$0xff]
        %v8551 = vld [vmem:[%s5 + $0x188] sm:$0xff]
        %v8552 = vld [vmem:[%s5 + $0x190] sm:$0xff]
        %v8553 = vld [vmem:[%s5 + $0x198] sm:$0xff]
        %v8554 = vld [vmem:[%s5 + $0x1a0] sm:$0xff]
        %v8555 = vld [vmem:[%s5 + $0x1a8] sm:$0xff]
        %v8556 = vld [vmem:[%s5 + $0x1b0] sm:$0xff]
        %v8557 = vld [vmem:[%s5 + $0x1b8] sm:$0xff]
        %v8558 = vld [vmem:[%s5 + $0x1c0] sm:$0xff]
        %v8559 = vld [vmem:[%s5 + $0x1c8] sm:$0xff]
        %v8560 = vld [vmem:[%s5 + $0x1d0] sm:$0xff]
        %v8561 = vld [vmem:[%s5 + $0x1d8] sm:$0xff]
        %v8562 = vld [vmem:[%s5 + $0x1e0] sm:$0xff]
        %v8563 = vld [vmem:[%s5 + $0x1e8] sm:$0xff]
        %v8564 = vld [vmem:[%s5 + $0x1f0] sm:$0xff]
        %v8565 = vld [vmem:[%s5 + $0x1f8] sm:$0xff]
        %8566 = vmatprep.subr.mxu0 %v8503
        %8567 = vmatpush1.msra.mxu0 %v8502
        %8568 = vmatprep.subr.mxu0 %v8505
        %8569 = vmatpush1.msra.mxu0 %v8504
        %8570 = vmatprep.subr.mxu0 %v8507
        %8571 = vmatpush1.msra.mxu0 %v8506
        %8572 = vmatprep.subr.mxu0 %v8509
        %8573 = vmatpush1.msra.mxu0 %v8508
        %8574 = vmatprep.subr.mxu0 %v8511
        %8575 = vmatpush1.msra.mxu0 %v8510
        %8576 = vmatprep.subr.mxu0 %v8513
        %8577 = vmatpush1.msra.mxu0 %v8512
        %8578 = vmatprep.subr.mxu0 %v8515
        %8579 = vmatpush1.msra.mxu0 %v8514
        %8580 = vmatprep.subr.mxu0 %v8517
        %8581 = vmatpush1.msra.mxu0 %v8516
        %8582 = vmatprep.subr.mxu0 %v8519
        %8583 = vmatpush1.msra.mxu0 %v8518
        %8584 = vmatprep.subr.mxu0 %v8521
        %8585 = vmatpush1.msra.mxu0 %v8520
        %8586 = vmatprep.subr.mxu0 %v8523
        %8587 = vmatpush1.msra.mxu0 %v8522
        %8588 = vmatprep.subr.mxu0 %v8525
        %8589 = vmatpush1.msra.mxu0 %v8524
        %8590 = vmatprep.subr.mxu0 %v8527
        %8591 = vmatpush1.msra.mxu0 %v8526
        %8592 = vmatprep.subr.mxu0 %v8529
        %8593 = vmatpush1.msra.mxu0 %v8528
        %8594 = vmatprep.subr.mxu0 %v8531
        %8595 = vmatpush1.msra.mxu0 %v8530
        %8596 = vmatprep.subr.mxu0 %v8533
        %8597 = vmatpush1.msra.mxu0 %v8532
        %8598 = vmatprep.subr.mxu0 %v8535
        %8599 = vmatpush1.msra.mxu0 %v8534
        %8600 = vmatprep.subr.mxu0 %v8537
        %8601 = vmatpush1.msra.mxu0 %v8536
        %8602 = vmatprep.subr.mxu0 %v8539
        %8603 = vmatpush1.msra.mxu0 %v8538
        %8604 = vmatprep.subr.mxu0 %v8541
        %8605 = vmatpush1.msra.mxu0 %v8540
        %8606 = vmatprep.subr.mxu0 %v8543
        %8607 = vmatpush1.msra.mxu0 %v8542
        %8608 = vmatprep.subr.mxu0 %v8545
        %8609 = vmatpush1.msra.mxu0 %v8544
        %8610 = vmatprep.subr.mxu0 %v8547
        %8611 = vmatpush1.msra.mxu0 %v8546
        %8612 = vmatprep.subr.mxu0 %v8549
        %8613 = vmatpush1.msra.mxu0 %v8548
        %8614 = vmatprep.subr.mxu0 %v8551
        %8615 = vmatpush1.msra.mxu0 %v8550
        %8616 = vmatprep.subr.mxu0 %v8553
        %8617 = vmatpush1.msra.mxu0 %v8552
        %8618 = vmatprep.subr.mxu0 %v8555
        %8619 = vmatpush1.msra.mxu0 %v8554
        %8620 = vmatprep.subr.mxu0 %v8557
        %8621 = vmatpush1.msra.mxu0 %v8556
        %8622 = vmatprep.subr.mxu0 %v8559
        %8623 = vmatpush1.msra.mxu0 %v8558
        %8624 = vmatprep.subr.mxu0 %v8561
        %8625 = vmatpush1.msra.mxu0 %v8560
        %8626 = vmatprep.subr.mxu0 %v8563
        %8627 = vmatpush1.msra.mxu0 %v8562
        %8628 = vmatprep.subr.mxu0 %v8565
        %8629 = vmatpush1.msra.mxu0 %v8564
        %8630 = vmatprep.mubr.f32.mxu0 %v8501
        %8631 = vmatmul.mubr.f32.gmra.mrb[0].mxu0 %v8500
        %v8632 = vpop.f32.mrb[0].mxu0
        %v8633 = vadd.f32 0.0, %v8632
        %v8634 = vpop.f32.mrb[0].mxu0
        %v8635 = vadd.f32 0.0, %v8634
        %8636 = vdwg.mxu0
        %v8637 = vmul.f32 %v8633, %v8633
        %v8638 = vmul.f32 %v8635, %v8635
        %v8641 = vrot.slane %v8637, 7
        %v8642 = vrot.slane %v8638, 7
        %v8645 = vsub.f32 %v8633, %v8641
        %v8646 = vsub.f32 %v8635, %v8642
        %v8647 = vmax.f32 %v8645, 0.0
        %v8648 = vmax.f32 %v8646, 0.0
        %v8649 = vadd.f32 %v8647, 1e-05
        %v8650 = vadd.f32 %v8648, 1e-05
        %v8651 = vrsqrt.pop %v8649
        %v8652 = vrsqrt.pop %v8650
        %v8653 = vlaneseq
        %v8654 = vshrl.u32 %v8653, 7
        %v8655 = vsub.s32 0, %v8654
        %v8656 = vrot.slane %v8633, %v8655
        %v8657 = vlaneseq
        %v8658 = vshrl.u32 %v8657, 7
        %v8659 = vsub.s32 0, %v8658
        %v8660 = vrot.slane %v8635, %v8659
        %v8661 = vsub.f32 %v8224, %v8656
        %v8662 = vsub.f32 %v8225, %v8660
        %v8663 = vsub.f32 %v8226, %v8656
        %v8664 = vsub.f32 %v8227, %v8660
        %v8665 = vsub.f32 %v8228, %v8656
        %v8666 = vsub.f32 %v8229, %v8660
        %v8667 = vsub.f32 %v8230, %v8656
        %v8668 = vsub.f32 %v8231, %v8660
        %v8669 = vsub.f32 %v8232, %v8656
        %v8670 = vsub.f32 %v8233, %v8660
        %v8671 = vsub.f32 %v8234, %v8656
        %v8672 = vsub.f32 %v8235, %v8660
        %v8673 = vsub.f32 %v8236, %v8656
        %v8674 = vsub.f32 %v8237, %v8660
        %v8675 = vsub.f32 %v8238, %v8656
        %v8676 = vsub.f32 %v8239, %v8660
        %v8677 = vsub.f32 %v8240, %v8656
        %v8678 = vsub.f32 %v8241, %v8660
        %v8679 = vsub.f32 %v8242, %v8656
        %v8680 = vsub.f32 %v8243, %v8660
        %v8681 = vsub.f32 %v8244, %v8656
        %v8682 = vsub.f32 %v8245, %v8660
        %v8683 = vsub.f32 %v8246, %v8656
        %v8684 = vsub.f32 %v8247, %v8660
        %v8685 = vsub.f32 %v8248, %v8656
        %v8686 = vsub.f32 %v8249, %v8660
        %v8687 = vsub.f32 %v8250, %v8656
        %v8688 = vsub.f32 %v8251, %v8660
        %v8689 = vsub.f32 %v8252, %v8656
        %v8690 = vsub.f32 %v8253, %v8660
        %v8691 = vsub.f32 %v8254, %v8656
        %v8692 = vsub.f32 %v8255, %v8660
        %v8693 = vsub.f32 %v8256, %v8656
        %v8694 = vsub.f32 %v8257, %v8660
        %v8695 = vsub.f32 %v8258, %v8656
        %v8696 = vsub.f32 %v8259, %v8660
        %v8697 = vsub.f32 %v8260, %v8656
        %v8698 = vsub.f32 %v8261, %v8660
        %v8699 = vsub.f32 %v8262, %v8656
        %v8700 = vsub.f32 %v8263, %v8660
        %v8701 = vsub.f32 %v8264, %v8656
        %v8702 = vsub.f32 %v8265, %v8660
        %v8703 = vsub.f32 %v8266, %v8656
        %v8704 = vsub.f32 %v8267, %v8660
        %v8705 = vsub.f32 %v8268, %v8656
        %v8706 = vsub.f32 %v8269, %v8660
        %v8707 = vsub.f32 %v8270, %v8656
        %v8708 = vsub.f32 %v8271, %v8660
        %v8709 = vsub.f32 %v8272, %v8656
        %v8710 = vsub.f32 %v8273, %v8660
        %v8711 = vsub.f32 %v8274, %v8656
        %v8712 = vsub.f32 %v8275, %v8660
        %v8713 = vsub.f32 %v8276, %v8656
        %v8714 = vsub.f32 %v8277, %v8660
        %v8715 = vsub.f32 %v8278, %v8656
        %v8716 = vsub.f32 %v8279, %v8660
        %v8717 = vsub.f32 %v8280, %v8656
        %v8718 = vsub.f32 %v8281, %v8660
        %v8719 = vsub.f32 %v8282, %v8656
        %v8720 = vsub.f32 %v8283, %v8660
        %v8721 = vsub.f32 %v8284, %v8656
        %v8722 = vsub.f32 %v8285, %v8660
        %v8723 = vsub.f32 %v8286, %v8656
        %v8724 = vsub.f32 %v8287, %v8660
        %v8725 = vlaneseq
        %v8726 = vshrl.u32 %v8725, 7
        %v8727 = vsub.s32 1, %v8726
        %v8728 = vrot.slane %v8651, %v8727
        %v8729 = vlaneseq
        %v8730 = vshrl.u32 %v8729, 7
        %v8731 = vsub.s32 1, %v8730
        %v8732 = vrot.slane %v8652, %v8731
        %v8733 = vmul.f32 %v8661, %v8728
        %v8734 = vmul.f32 %v8662, %v8732
        %v8735 = vmul.f32 %v8663, %v8728
        %v8736 = vmul.f32 %v8664, %v8732
        %v8737 = vmul.f32 %v8665, %v8728
        %v8738 = vmul.f32 %v8666, %v8732
        %v8739 = vmul.f32 %v8667, %v8728
        %v8740 = vmul.f32 %v8668, %v8732
        %v8741 = vmul.f32 %v8669, %v8728
        %v8742 = vmul.f32 %v8670, %v8732
        %v8743 = vmul.f32 %v8671, %v8728
        %v8744 = vmul.f32 %v8672, %v8732
        %v8745 = vmul.f32 %v8673, %v8728
        %v8746 = vmul.f32 %v8674, %v8732
        %v8747 = vmul.f32 %v8675, %v8728
        %v8748 = vmul.f32 %v8676, %v8732
        %v8749 = vmul.f32 %v8677, %v8728
        %v8750 = vmul.f32 %v8678, %v8732
        %v8751 = vmul.f32 %v8679, %v8728
        %v8752 = vmul.f32 %v8680, %v8732
        %v8753 = vmul.f32 %v8681, %v8728
        %v8754 = vmul.f32 %v8682, %v8732
        %v8755 = vmul.f32 %v8683, %v8728
        %v8756 = vmul.f32 %v8684, %v8732
        %v8757 = vmul.f32 %v8685, %v8728
        %v8758 = vmul.f32 %v8686, %v8732
        %v8759 = vmul.f32 %v8687, %v8728
        %v8760 = vmul.f32 %v8688, %v8732
        %v8761 = vmul.f32 %v8689, %v8728
        %v8762 = vmul.f32 %v8690, %v8732
        %v8763 = vmul.f32 %v8691, %v8728
        %v8764 = vmul.f32 %v8692, %v8732
        %v8765 = vmul.f32 %v8693, %v8728
        %v8766 = vmul.f32 %v8694, %v8732
        %v8767 = vmul.f32 %v8695, %v8728
        %v8768 = vmul.f32 %v8696, %v8732
        %v8769 = vmul.f32 %v8697, %v8728
        %v8770 = vmul.f32 %v8698, %v8732
        %v8771 = vmul.f32 %v8699, %v8728
        %v8772 = vmul.f32 %v8700, %v8732
        %v8773 = vmul.f32 %v8701, %v8728
        %v8774 = vmul.f32 %v8702, %v8732
        %v8775 = vmul.f32 %v8703, %v8728
        %v8776 = vmul.f32 %v8704, %v8732
        %v8777 = vmul.f32 %v8705, %v8728
        %v8778 = vmul.f32 %v8706, %v8732
        %v8779 = vmul.f32 %v8707, %v8728
        %v8780 = vmul.f32 %v8708, %v8732
        %v8781 = vmul.f32 %v8709, %v8728
        %v8782 = vmul.f32 %v8710, %v8732
        %v8783 = vmul.f32 %v8711, %v8728
        %v8784 = vmul.f32 %v8712, %v8732
        %v8785 = vmul.f32 %v8713, %v8728
        %v8786 = vmul.f32 %v8714, %v8732
        %v8787 = vmul.f32 %v8715, %v8728
        %v8788 = vmul.f32 %v8716, %v8732
        %v8789 = vmul.f32 %v8717, %v8728
        %v8790 = vmul.f32 %v8718, %v8732
        %v8791 = vmul.f32 %v8719, %v8728
        %v8792 = vmul.f32 %v8720, %v8732
        %v8793 = vmul.f32 %v8721, %v8728
        %v8794 = vmul.f32 %v8722, %v8732
        %v8795 = vmul.f32 %v8723, %v8728
        %v8796 = vmul.f32 %v8724, %v8732
        %s8797 = scalar_lea.vmem %s6, 51
        %v8798 = vld [vmem:[%s8797] ss:$8 sm:$0x3]
        %v8800 = vlaneseq
        %v8801 = vshrl.u32 %v8800, 7
        %v8802 = vsub.s32 0, %v8801
        %v8803 = vrot.slane %v8798, %v8802
        %v8804 = vlaneseq
        %v8805 = vshrl.u32 %v8804, 7
        %v8806 = vsub.s32 1, %v8805
        %v8807 = vrot.slane %v8798, %v8806
        %v8810 = vmul.f32 %v8733, %v8803
        %v8811 = vmul.f32 %v8734, %v8807
        %v8812 = vmul.f32 %v8735, %v8803
        %v8813 = vmul.f32 %v8736, %v8807
        %v8814 = vmul.f32 %v8737, %v8803
        %v8815 = vmul.f32 %v8738, %v8807
        %v8816 = vmul.f32 %v8739, %v8803
        %v8817 = vmul.f32 %v8740, %v8807
        %v8818 = vmul.f32 %v8741, %v8803
        %v8819 = vmul.f32 %v8742, %v8807
        %v8820 = vmul.f32 %v8743, %v8803
        %v8821 = vmul.f32 %v8744, %v8807
        %v8822 = vmul.f32 %v8745, %v8803
        %v8823 = vmul.f32 %v8746, %v8807
        %v8824 = vmul.f32 %v8747, %v8803
        %v8825 = vmul.f32 %v8748, %v8807
        %v8826 = vmul.f32 %v8749, %v8803
        %v8827 = vmul.f32 %v8750, %v8807
        %v8828 = vmul.f32 %v8751, %v8803
        %v8829 = vmul.f32 %v8752, %v8807
        %v8830 = vmul.f32 %v8753, %v8803
        %v8831 = vmul.f32 %v8754, %v8807
        %v8832 = vmul.f32 %v8755, %v8803
        %v8833 = vmul.f32 %v8756, %v8807
        %v8834 = vmul.f32 %v8757, %v8803
        %v8835 = vmul.f32 %v8758, %v8807
        %v8836 = vmul.f32 %v8759, %v8803
        %v8837 = vmul.f32 %v8760, %v8807
        %v8838 = vmul.f32 %v8761, %v8803
        %v8839 = vmul.f32 %v8762, %v8807
        %v8840 = vmul.f32 %v8763, %v8803
        %v8841 = vmul.f32 %v8764, %v8807
        %v8842 = vmul.f32 %v8765, %v8803
        %v8843 = vmul.f32 %v8766, %v8807
        %v8844 = vmul.f32 %v8767, %v8803
        %v8845 = vmul.f32 %v8768, %v8807
        %v8846 = vmul.f32 %v8769, %v8803
        %v8847 = vmul.f32 %v8770, %v8807
        %v8848 = vmul.f32 %v8771, %v8803
        %v8849 = vmul.f32 %v8772, %v8807
        %v8850 = vmul.f32 %v8773, %v8803
        %v8851 = vmul.f32 %v8774, %v8807
        %v8852 = vmul.f32 %v8775, %v8803
        %v8853 = vmul.f32 %v8776, %v8807
        %v8854 = vmul.f32 %v8777, %v8803
        %v8855 = vmul.f32 %v8778, %v8807
        %v8856 = vmul.f32 %v8779, %v8803
        %v8857 = vmul.f32 %v8780, %v8807
        %v8858 = vmul.f32 %v8781, %v8803
        %v8859 = vmul.f32 %v8782, %v8807
        %v8860 = vmul.f32 %v8783, %v8803
        %v8861 = vmul.f32 %v8784, %v8807
        %v8862 = vmul.f32 %v8785, %v8803
        %v8863 = vmul.f32 %v8786, %v8807
        %v8864 = vmul.f32 %v8787, %v8803
        %v8865 = vmul.f32 %v8788, %v8807
        %v8866 = vmul.f32 %v8789, %v8803
        %v8867 = vmul.f32 %v8790, %v8807
        %v8868 = vmul.f32 %v8791, %v8803
        %v8869 = vmul.f32 %v8792, %v8807
        %v8870 = vmul.f32 %v8793, %v8803
        %v8871 = vmul.f32 %v8794, %v8807
        %v8872 = vmul.f32 %v8795, %v8803
        %v8873 = vmul.f32 %v8796, %v8807
        %s8874 = scalar_lea.vmem %s6, 52
        %v8875 = vld [vmem:[%s8874] ss:$8 sm:$0x3]
        %v8877 = vlaneseq
        %v8878 = vshrl.u32 %v8877, 7
        %v8879 = vsub.s32 0, %v8878
        %v8880 = vrot.slane %v8875, %v8879
        %v8881 = vlaneseq
        %v8882 = vshrl.u32 %v8881, 7
        %v8883 = vsub.s32 1, %v8882
        %v8884 = vrot.slane %v8875, %v8883
        %v8887 = vadd.f32 %v8810, %v8880
        %v8888 = vadd.f32 %v8811, %v8884
        %v8889 = vadd.f32 %v8812, %v8880
        %v8890 = vadd.f32 %v8813, %v8884
        %v8891 = vadd.f32 %v8814, %v8880
        %v8892 = vadd.f32 %v8815, %v8884
        %v8893 = vadd.f32 %v8816, %v8880
        %v8894 = vadd.f32 %v8817, %v8884
        %v8895 = vadd.f32 %v8818, %v8880
        %v8896 = vadd.f32 %v8819, %v8884
        %v8897 = vadd.f32 %v8820, %v8880
        %v8898 = vadd.f32 %v8821, %v8884
        %v8899 = vadd.f32 %v8822, %v8880
        %v8900 = vadd.f32 %v8823, %v8884
        %v8901 = vadd.f32 %v8824, %v8880
        %v8902 = vadd.f32 %v8825, %v8884
        %v8903 = vadd.f32 %v8826, %v8880
        %v8904 = vadd.f32 %v8827, %v8884
        %v8905 = vadd.f32 %v8828, %v8880
        %v8906 = vadd.f32 %v8829, %v8884
        %v8907 = vadd.f32 %v8830, %v8880
        %v8908 = vadd.f32 %v8831, %v8884
        %v8909 = vadd.f32 %v8832, %v8880
        %v8910 = vadd.f32 %v8833, %v8884
        %v8911 = vadd.f32 %v8834, %v8880
        %v8912 = vadd.f32 %v8835, %v8884
        %v8913 = vadd.f32 %v8836, %v8880
        %v8914 = vadd.f32 %v8837, %v8884
        %v8915 = vadd.f32 %v8838, %v8880
        %v8916 = vadd.f32 %v8839, %v8884
        %v8917 = vadd.f32 %v8840, %v8880
        %v8918 = vadd.f32 %v8841, %v8884
        %v8919 = vadd.f32 %v8842, %v8880
        %v8920 = vadd.f32 %v8843, %v8884
        %v8921 = vadd.f32 %v8844, %v8880
        %v8922 = vadd.f32 %v8845, %v8884
        %v8923 = vadd.f32 %v8846, %v8880
        %v8924 = vadd.f32 %v8847, %v8884
        %v8925 = vadd.f32 %v8848, %v8880
        %v8926 = vadd.f32 %v8849, %v8884
        %v8927 = vadd.f32 %v8850, %v8880
        %v8928 = vadd.f32 %v8851, %v8884
        %v8929 = vadd.f32 %v8852, %v8880
        %v8930 = vadd.f32 %v8853, %v8884
        %v8931 = vadd.f32 %v8854, %v8880
        %v8932 = vadd.f32 %v8855, %v8884
        %v8933 = vadd.f32 %v8856, %v8880
        %v8934 = vadd.f32 %v8857, %v8884
        %v8935 = vadd.f32 %v8858, %v8880
        %v8936 = vadd.f32 %v8859, %v8884
        %v8937 = vadd.f32 %v8860, %v8880
        %v8938 = vadd.f32 %v8861, %v8884
        %v8939 = vadd.f32 %v8862, %v8880
        %v8940 = vadd.f32 %v8863, %v8884
        %v8941 = vadd.f32 %v8864, %v8880
        %v8942 = vadd.f32 %v8865, %v8884
        %v8943 = vadd.f32 %v8866, %v8880
        %v8944 = vadd.f32 %v8867, %v8884
        %v8945 = vadd.f32 %v8868, %v8880
        %v8946 = vadd.f32 %v8869, %v8884
        %v8947 = vadd.f32 %v8870, %v8880
        %v8948 = vadd.f32 %v8871, %v8884
        %v8949 = vadd.f32 %v8872, %v8880
        %v8950 = vadd.f32 %v8873, %v8884
        %v8951 = vmax.f32 %v8887, 0.0
        %v8952 = vmax.f32 %v8888, 0.0
        %v8953 = vmax.f32 %v8889, 0.0
        %v8954 = vmax.f32 %v8890, 0.0
        %v8955 = vmax.f32 %v8891, 0.0
        %v8956 = vmax.f32 %v8892, 0.0
        %v8957 = vmax.f32 %v8893, 0.0
        %v8958 = vmax.f32 %v8894, 0.0
        %v8959 = vmax.f32 %v8895, 0.0
        %v8960 = vmax.f32 %v8896, 0.0
        %v8961 = vmax.f32 %v8897, 0.0
        %v8962 = vmax.f32 %v8898, 0.0
        %v8963 = vmax.f32 %v8899, 0.0
        %v8964 = vmax.f32 %v8900, 0.0
        %v8965 = vmax.f32 %v8901, 0.0
        %v8966 = vmax.f32 %v8902, 0.0
        %v8967 = vmax.f32 %v8903, 0.0
        %v8968 = vmax.f32 %v8904, 0.0
        %v8969 = vmax.f32 %v8905, 0.0
        %v8970 = vmax.f32 %v8906, 0.0
        %v8971 = vmax.f32 %v8907, 0.0
        %v8972 = vmax.f32 %v8908, 0.0
        %v8973 = vmax.f32 %v8909, 0.0
        %v8974 = vmax.f32 %v8910, 0.0
        %v8975 = vmax.f32 %v8911, 0.0
        %v8976 = vmax.f32 %v8912, 0.0
        %v8977 = vmax.f32 %v8913, 0.0
        %v8978 = vmax.f32 %v8914, 0.0
        %v8979 = vmax.f32 %v8915, 0.0
        %v8980 = vmax.f32 %v8916, 0.0
        %v8981 = vmax.f32 %v8917, 0.0
        %v8982 = vmax.f32 %v8918, 0.0
        %v8983 = vmax.f32 %v8919, 0.0
        %v8984 = vmax.f32 %v8920, 0.0
        %v8985 = vmax.f32 %v8921, 0.0
        %v8986 = vmax.f32 %v8922, 0.0
        %v8987 = vmax.f32 %v8923, 0.0
        %v8988 = vmax.f32 %v8924, 0.0
        %v8989 = vmax.f32 %v8925, 0.0
        %v8990 = vmax.f32 %v8926, 0.0
        %v8991 = vmax.f32 %v8927, 0.0
        %v8992 = vmax.f32 %v8928, 0.0
        %v8993 = vmax.f32 %v8929, 0.0
        %v8994 = vmax.f32 %v8930, 0.0
        %v8995 = vmax.f32 %v8931, 0.0
        %v8996 = vmax.f32 %v8932, 0.0
        %v8997 = vmax.f32 %v8933, 0.0
        %v8998 = vmax.f32 %v8934, 0.0
        %v8999 = vmax.f32 %v8935, 0.0
        %v9000 = vmax.f32 %v8936, 0.0
        %v9001 = vmax.f32 %v8937, 0.0
        %v9002 = vmax.f32 %v8938, 0.0
        %v9003 = vmax.f32 %v8939, 0.0
        %v9004 = vmax.f32 %v8940, 0.0
        %v9005 = vmax.f32 %v8941, 0.0
        %v9006 = vmax.f32 %v8942, 0.0
        %v9007 = vmax.f32 %v8943, 0.0
        %v9008 = vmax.f32 %v8944, 0.0
        %v9009 = vmax.f32 %v8945, 0.0
        %v9010 = vmax.f32 %v8946, 0.0
        %v9011 = vmax.f32 %v8947, 0.0
        %v9012 = vmax.f32 %v8948, 0.0
        %v9013 = vmax.f32 %v8949, 0.0
        %v9014 = vmax.f32 %v8950, 0.0
        %9015 = vst [vmem:[%s271] sm:$0xff] %v8951
        %9016 = vst [vmem:[%s271 + $0x8] sm:$0xff] %v8952
        %9017 = vst [vmem:[%s271 + $0x10] sm:$0xff] %v8953
        %9018 = vst [vmem:[%s271 + $0x18] sm:$0xff] %v8954
        %9019 = vst [vmem:[%s271 + $0x20] sm:$0xff] %v8955
        %9020 = vst [vmem:[%s271 + $0x28] sm:$0xff] %v8956
        %9021 = vst [vmem:[%s271 + $0x30] sm:$0xff] %v8957
        %9022 = vst [vmem:[%s271 + $0x38] sm:$0xff] %v8958
        %9023 = vst [vmem:[%s271 + $0x40] sm:$0xff] %v8959
        %9024 = vst [vmem:[%s271 + $0x48] sm:$0xff] %v8960
        %9025 = vst [vmem:[%s271 + $0x50] sm:$0xff] %v8961
        %9026 = vst [vmem:[%s271 + $0x58] sm:$0xff] %v8962
        %9027 = vst [vmem:[%s271 + $0x60] sm:$0xff] %v8963
        %9028 = vst [vmem:[%s271 + $0x68] sm:$0xff] %v8964
        %9029 = vst [vmem:[%s271 + $0x70] sm:$0xff] %v8965
        %9030 = vst [vmem:[%s271 + $0x78] sm:$0xff] %v8966
        %9031 = vst [vmem:[%s271 + $0x80] sm:$0xff] %v8967
        %9032 = vst [vmem:[%s271 + $0x88] sm:$0xff] %v8968
        %9033 = vst [vmem:[%s271 + $0x90] sm:$0xff] %v8969
        %9034 = vst [vmem:[%s271 + $0x98] sm:$0xff] %v8970
        %9035 = vst [vmem:[%s271 + $0xa0] sm:$0xff] %v8971
        %9036 = vst [vmem:[%s271 + $0xa8] sm:$0xff] %v8972
        %9037 = vst [vmem:[%s271 + $0xb0] sm:$0xff] %v8973
        %9038 = vst [vmem:[%s271 + $0xb8] sm:$0xff] %v8974
        %9039 = vst [vmem:[%s271 + $0xc0] sm:$0xff] %v8975
        %9040 = vst [vmem:[%s271 + $0xc8] sm:$0xff] %v8976
        %9041 = vst [vmem:[%s271 + $0xd0] sm:$0xff] %v8977
        %9042 = vst [vmem:[%s271 + $0xd8] sm:$0xff] %v8978
        %9043 = vst [vmem:[%s271 + $0xe0] sm:$0xff] %v8979
        %9044 = vst [vmem:[%s271 + $0xe8] sm:$0xff] %v8980
        %9045 = vst [vmem:[%s271 + $0xf0] sm:$0xff] %v8981
        %9046 = vst [vmem:[%s271 + $0xf8] sm:$0xff] %v8982
        %9047 = vst [vmem:[%s271 + $0x100] sm:$0xff] %v8983
        %9048 = vst [vmem:[%s271 + $0x108] sm:$0xff] %v8984
        %9049 = vst [vmem:[%s271 + $0x110] sm:$0xff] %v8985
        %9050 = vst [vmem:[%s271 + $0x118] sm:$0xff] %v8986
        %9051 = vst [vmem:[%s271 + $0x120] sm:$0xff] %v8987
        %9052 = vst [vmem:[%s271 + $0x128] sm:$0xff] %v8988
        %9053 = vst [vmem:[%s271 + $0x130] sm:$0xff] %v8989
        %9054 = vst [vmem:[%s271 + $0x138] sm:$0xff] %v8990
        %9055 = vst [vmem:[%s271 + $0x140] sm:$0xff] %v8991
        %9056 = vst [vmem:[%s271 + $0x148] sm:$0xff] %v8992
        %9057 = vst [vmem:[%s271 + $0x150] sm:$0xff] %v8993
        %9058 = vst [vmem:[%s271 + $0x158] sm:$0xff] %v8994
        %9059 = vst [vmem:[%s271 + $0x160] sm:$0xff] %v8995
        %9060 = vst [vmem:[%s271 + $0x168] sm:$0xff] %v8996
        %9061 = vst [vmem:[%s271 + $0x170] sm:$0xff] %v8997
        %9062 = vst [vmem:[%s271 + $0x178] sm:$0xff] %v8998
        %9063 = vst [vmem:[%s271 + $0x180] sm:$0xff] %v8999
        %9064 = vst [vmem:[%s271 + $0x188] sm:$0xff] %v9000
        %9065 = vst [vmem:[%s271 + $0x190] sm:$0xff] %v9001
        %9066 = vst [vmem:[%s271 + $0x198] sm:$0xff] %v9002
        %9067 = vst [vmem:[%s271 + $0x1a0] sm:$0xff] %v9003
        %9068 = vst [vmem:[%s271 + $0x1a8] sm:$0xff] %v9004
        %9069 = vst [vmem:[%s271 + $0x1b0] sm:$0xff] %v9005
        %9070 = vst [vmem:[%s271 + $0x1b8] sm:$0xff] %v9006
        %9071 = vst [vmem:[%s271 + $0x1c0] sm:$0xff] %v9007
        %9072 = vst [vmem:[%s271 + $0x1c8] sm:$0xff] %v9008
        %9073 = vst [vmem:[%s271 + $0x1d0] sm:$0xff] %v9009
        %9074 = vst [vmem:[%s271 + $0x1d8] sm:$0xff] %v9010
        %9075 = vst [vmem:[%s271 + $0x1e0] sm:$0xff] %v9011
        %9076 = vst [vmem:[%s271 + $0x1e8] sm:$0xff] %v9012
        %9077 = vst [vmem:[%s271 + $0x1f0] sm:$0xff] %v9013
        %9078 = vst [vmem:[%s271 + $0x1f8] sm:$0xff] %v9014
        %s9079 = sand.u32 %s181, 1
        %s9080 = scalar_lea.sflag [#allocation9], %s9079
        %s9081 = sand.u32 %s181, 1
        %s9082 = smul.addr %s9081, 512
        %s9083 = scalar_lea.vmem [#allocation8], %s9082
        // Predicated region
        $region49: #{mfa_forward_nhwc.1} parent=47 // pred_check
          %p9084 = pneg %p191
        $region50: #{mfa_forward_nhwc.1} parent=47 // pred_check_branch
          %9086 = sbr.rel (%p9084) target = $region52
        $region51: #{mfa_forward_nhwc.1} parent=47 // pred_region
          %s9088 = ssub.s32 8192, 8192
          %9089 = vsyncadd %s9080, %s9088
          %s9090 = smul.addr %s21, 64
          %s9091 = smul.addr %s9090, 128
          %s9092 = scalar_lea.hbm %s7, %s9091
          %s9093 = sshll.u32 %s9083, 4
          %s9094 = int_to_ptr.vmem [resolvable:$true] %s9093
          %9099 = dma.vmem_to_hbm [thread:$0]  %s9094, 8192, %s9092, %s9080, 256, 256, 16
        $region52: #{mfa_forward_nhwc.1} parent=47 // pred_fallthru
          _
      $region48: #{mfa_forward_nhwc.1} parent=5 // pred_fallthru
        _
      %p9100 = scmp.le.s32.totalorder 2, %s16
      // Predicated region
      $region53: #{mfa_forward_nhwc.1} parent=5 // pred_check
        %p9101 = pneg %p9100
      $region54: #{mfa_forward_nhwc.1} parent=5 // pred_check_branch
        %9103 = sbr.rel (%p9101) target = $region56
      $region55: #{mfa_forward_nhwc.1} parent=5 // pred_region
        %s9104 = ssub.s32 %s16, 2
        // Predicated region
        $region57: #{mfa_forward_nhwc.1} parent=55 // pred_check
          %p9105 = pneg %p197
        $region58: #{mfa_forward_nhwc.1} parent=55 // pred_check_branch
          %9107 = sbr.rel (%p9105) target = $region60
        $region59: #{mfa_forward_nhwc.1} parent=55 // pred_region
          %s9108 = sand.u32 %s182, 1
          %s9109 = scalar_lea.sflag [#allocation9], %s9108
          %s9110 = sand.u32 %s182, 1
          %s9111 = smul.addr %s9110, 512
          %s9112 = scalar_lea.vmem [#allocation8], %s9111
          %9113 = dma.done %s9109, 8192
        $region60: #{mfa_forward_nhwc.1} parent=55 // pred_fallthru
          _
      $region56: #{mfa_forward_nhwc.1} parent=5 // pred_fallthru
        _
    $region6: #{mfa_forward_nhwc.1} parent=1 // loop_footer
      %s20 = sadd.s32 1, %s16
    $region7: #{mfa_forward_nhwc.1} parent=1 // loop_footer_branch
      %15 = sbr.rel target = $region3
    $region8: #{mfa_forward_nhwc.1} parent=1 // loop_exit
      _
    %9114 = vsyncpa [#allocation9], 1
    %s9115 = scalar_lea.sflag [#allocation9], 1
    %9116 = vsyncpa %s9115, 1

</llo_original>
